<compile_context>
chip_gen: v5e
topology: v5e:2x2
jax: 0.10.0
libtpu: 0.0.40
codegen_flags: <defaults>
</compile_context>

<pallas_src>
import jax
import jax.numpy as jnp
from jax.experimental import pallas as pl
from jax.experimental.pallas import tpu as pltpu

_VMEM = pl.BlockSpec(memory_space=pltpu.MemorySpace.VMEM)
_BN_EPS = 1e-5


# ----------------------------- fused block kernel ---------------------------

def _make_block_kernel(*, N, Ho, Wo, Cin, Cout, tap_map, project, eps):
    """Build the fused standard-block kernel for one set of static shapes."""
    M = N * Ho * Wo
    HW = Ho * Wo
    bf16 = jnp.bfloat16
    f32 = jnp.float32

    def celu(v):
        # CELU(alpha=1); f32 epilogue math (exp(x)-1 is adequate at f32 here).
        return jnp.where(v > 0, v, jnp.exp(v) - 1.0)

    def bn_celu(v, g, b):
        # BatchNorm2d in training mode: per-channel batch stats over N*Ho*Wo,
        # biased variance (matches PyTorch's normalization in train()).
        mean = jnp.mean(v, axis=0, keepdims=True)
        var = jnp.mean(jnp.square(v - mean), axis=0, keepdims=True)
        return celu((v - mean) * jax.lax.rsqrt(var + eps) * g + b)

    def kernel(*refs):
        if project:
            (taps_ref, w1_ref, b1_ref, g1_ref, be1_ref,
             w2_ref, b2_ref, g2_ref, be2_ref,
             sw1_ref, sb1_ref, sw2_ref, sb2_ref,
             wp_ref, bp_ref, out_ref, pad_ref) = refs
        else:
            (taps_ref, w1_ref, b1_ref, g1_ref, be1_ref,
             w2_ref, b2_ref, g2_ref, be2_ref,
             sw1_ref, sb1_ref, sw2_ref, sb2_ref,
             out_ref, pad_ref) = refs
            wp_ref = bp_ref = None

        # ---- conv1: 9 shifted taps accumulated on the MXU (no HBM im2col) --
        taps = []
        for t in range(9):
            pidx, oy, ox = tap_map[t]                 # static Python ints
            tap = taps_ref[pidx, :, oy:oy + Ho, ox:ox + Wo, :]   # (N,Ho,Wo,Cin)
            taps.append(tap.reshape(M, Cin))          # layout-trivial reshape
        acc = jnp.zeros((M, Cout), f32)
        for t in range(9):
            acc += jnp.dot(taps[t].astype(bf16), w1_ref[t],
                           preferred_element_type=f32)
        o1 = bn_celu(acc + b1_ref[...], g1_ref[...], be1_ref[...])   # (M,Cout)

        # ---- conv2: pad conv1 output in a VMEM scratch, 9 more tap matmuls -
        pad_ref[...] = jnp.zeros_like(pad_ref)
        pad_ref[:, 1:1 + Ho, 1:1 + Wo, :] = o1.reshape(N, Ho, Wo, Cout)
        acc2 = jnp.zeros((M, Cout), f32)
        for t in range(9):
            dy, dx = divmod(t, 3)
            tap2 = pad_ref[:, dy:dy + Ho, dx:dx + Wo, :].reshape(M, Cout)
            acc2 += jnp.dot(tap2.astype(bf16), w2_ref[t],
                            preferred_element_type=f32)
        o2 = bn_celu(acc2 + b2_ref[...], g2_ref[...], be2_ref[...])  # (M,Cout)

        # ---- SE: global pool + 2 tiny GEMMs + sigmoid scale (epilogue) -----
        o2_3d = o2.reshape(N, HW, Cout)
        pooled = jnp.mean(o2_3d, axis=1)                             # (N,Cout)
        h = jnp.dot(pooled.astype(bf16), sw1_ref[...],
                    preferred_element_type=f32) + sb1_ref[...]
        h = celu(h)
        z = jnp.dot(h.astype(bf16), sw2_ref[...],
                    preferred_element_type=f32) + sb2_ref[...]
        s = pl.reciprocal(1.0 + jnp.exp(-z), approx=True)            # sigmoid
        o2s = (o2_3d * s[:, None, :]).reshape(M, Cout)

        # ---- residual (optional strided 1x1 projection) + final CELU -------
        if project:
            # center tap (dy=dx=1) == the stride-sampled, unpadded input.
            res = jnp.dot(taps[4].astype(bf16), wp_ref[...],
                          preferred_element_type=f32) + bp_ref[...]
        else:
            res = taps[4]        # identity shortcut (f32 input, Cin == Cout)
        out_ref[...] = celu(o2s + res)

    return kernel


# ------------------------------ wrapper glue --------------------------------

def _prep_taps(x_nhwc, stride):
    """Pad with a 1-px halo; for stride 2 split into 2x2 spatial parities so
    every in-kernel tap is a contiguous static slice (no strided loads, no
    HBM im2col: total bytes == padded input)."""
    N, H, W, C = x_nhwc.shape
    xp = jnp.pad(x_nhwc, ((0, 0), (1, 1), (1, 1), (0, 0)))
    Ho = (H + 2 - 3) // stride + 1
    Wo = (W + 2 - 3) // stride + 1
    if stride == 1:
        taps_src = xp[None]                                   # (1,N,H+2,W+2,C)
        tap_map = tuple((0, dy, dx) for dy in range(3) for dx in range(3))
    elif stride == 2:
        assert H % 2 == 0 and W % 2 == 0, "stride-2 path assumes even H, W"
        parts = [xp[:, py::2, px::2, :] for py in range(2) for px in range(2)]
        taps_src = jnp.stack(parts, axis=0)                   # (4,N,H/2+1,W/2+1,C)
        tap_map = tuple((2 * (dy % 2) + (dx % 2), dy // 2, dx // 2)
                        for dy in range(3) for dx in range(3))
    else:
        raise NotImplementedError("only stride 1 or 2 supported")
    return taps_src, tap_map, Ho, Wo


def standard_block_fwd(x_nhwc, p, stride, project):
    N, _, _, Cin = x_nhwc.shape
    Cout = p["b1"].shape[0]
    Csq = p["se_b1"].shape[0]
    taps_src, tap_map, Ho, Wo = _prep_taps(x_nhwc, stride)
    M = N * Ho * Wo

    kernel = _make_block_kernel(N=N, Ho=Ho, Wo=Wo, Cin=Cin, Cout=Cout,
                                tap_map=tap_map, project=project, eps=_BN_EPS)

    bf16 = jnp.bfloat16
    args = [
        taps_src,
        p["w1"].reshape(9, Cin, Cout).astype(bf16),   # bf16 MXU operands
        p["b1"].reshape(1, Cout),
        p["gamma1"].reshape(1, Cout), p["beta1"].reshape(1, Cout),
        p["w2"].reshape(9, Cout, Cout).astype(bf16),
        p["b2"].reshape(1, Cout),
        p["gamma2"].reshape(1, Cout), p["beta2"].reshape(1, Cout),
        p["se_w1"].astype(bf16), p["se_b1"].reshape(1, Csq),
        p["se_w2"].astype(bf16), p["se_b2"].reshape(1, Cout),
    ]
    if project:
        args += [p["wp"].astype(bf16), p["bp"].reshape(1, Cout)]

    out2d = pl.pallas_call(
        kernel,
        out_shape=jax.ShapeDtypeStruct((M, Cout), jnp.float32),
        in_specs=[_VMEM] * len(args),
        out_specs=_VMEM,
        scratch_shapes=[pltpu.VMEM((N, Ho + 2, Wo + 2, Cout), jnp.float32)],
    )(*args)
    return out2d.reshape(N, Ho, Wo, Cout)


# --------------------------- parameter initialization -----------------------

def init_standard_block(key, cin, cout, project):
    ks = jax.random.split(key, 8)
    p = {}
    p["w1"] = jax.random.normal(ks[0], (3, 3, cin, cout), jnp.float32) / jnp.sqrt(9.0 * cin)
    p["b1"] = jax.random.normal(ks[1], (cout,), jnp.float32) * 0.01
    p["w2"] = jax.random.normal(ks[2], (3, 3, cout, cout), jnp.float32) / jnp.sqrt(9.0 * cout)
    p["b2"] = jax.random.normal(ks[3], (cout,), jnp.float32) * 0.01
    csq = round(cout / 4)                      # matches nn.Linear(round(C/4)) in the spec
    p["se_w1"] = jax.random.normal(ks[4], (cout, csq), jnp.float32) / jnp.sqrt(1.0 * cout)
    p["se_b1"] = jnp.zeros((csq,), jnp.float32)
    p["se_w2"] = jax.random.normal(ks[5], (csq, cout), jnp.float32) / jnp.sqrt(1.0 * csq)
    p["se_b2"] = jnp.zeros((cout,), jnp.float32)
    p["gamma1"] = jnp.ones((cout,), jnp.float32)
    p["beta1"] = jnp.zeros((cout,), jnp.float32)
    p["gamma2"] = jnp.ones((cout,), jnp.float32)
    p["beta2"] = jnp.zeros((cout,), jnp.float32)
    if project:
        p["wp"] = jax.random.normal(ks[6], (cin, cout), jnp.float32) / jnp.sqrt(1.0 * cin)
        p["bp"] = jax.random.normal(ks[7], (cout,), jnp.float32) * 0.01
    return p


def init_stack_layer(key, filters, strides, resnet_size, first_num_filters):
    keys = jax.random.split(key, resnet_size)
    blocks = []
    for i in range(resnet_size):
        if i == 0:
            cin = filters if filters == first_num_filters else filters // 2
            blocks.append(dict(p=init_standard_block(keys[i], cin, filters, True),
                               stride=strides, project=True))
        else:
            blocks.append(dict(p=init_standard_block(keys[i], filters, filters, False),
                               stride=1, project=False))
    return blocks


def stack_layer_fwd(x_nchw, blocks):
    # TODO(synk): BatchNorm runs in training mode (batch statistics); PyTorch
    # running_mean/var buffer updates (momentum) are a training side effect and
    # are not tracked here.
    x = jnp.transpose(x_nchw, (0, 2, 3, 1))                  # NCHW -> NHWC
    for blk in blocks:
        x = standard_block_fwd(x, blk["p"], blk["stride"], blk["project"])
    return jnp.transpose(x, (0, 3, 1, 2))                    # NHWC -> NCHW


# --------------------------------- main --------------------------------------

if __name__ == "__main__":
    key = jax.random.PRNGKey(0)
    k_param, k_x = jax.random.split(key)

    # stack_layer(filters=8, strides=2, resnet_size=2, first_num_filters=4)
    filters, strides, resnet_size, first_num_filters = 8, 2, 2, 4
    blocks = init_stack_layer(k_param, filters, strides, resnet_size, first_num_filters)

    # first block's input channels = filters // 2 (since filters != first_num_filters)
    x = jax.random.normal(k_x, (2, filters // 2, 16, 16), jnp.float32)  # NCHW

    out = jax.jit(lambda xx: stack_layer_fwd(xx, blocks))(x)
    out = jax.block_until_ready(out)

    expected_shape = (2, filters, 16 // strides, 16 // strides)
    assert out.shape == expected_shape, (out.shape, expected_shape)
    assert bool(jnp.all(jnp.isfinite(out)))
    print("KERNEL_OK")
</pallas_src>

<mosaic_0001>
module attributes {stable_mosaic.version = 11 : i64} {
  func.func @kernel(%arg0: memref<4x2x9x9x4xf32, #tpu.memory_space<vmem>>, %arg1: memref<9x4x8xbf16, #tpu.memory_space<vmem>>, %arg2: memref<1x8xf32, #tpu.memory_space<vmem>>, %arg3: memref<1x8xf32, #tpu.memory_space<vmem>>, %arg4: memref<1x8xf32, #tpu.memory_space<vmem>>, %arg5: memref<9x8x8xbf16, #tpu.memory_space<vmem>>, %arg6: memref<1x8xf32, #tpu.memory_space<vmem>>, %arg7: memref<1x8xf32, #tpu.memory_space<vmem>>, %arg8: memref<1x8xf32, #tpu.memory_space<vmem>>, %arg9: memref<8x2xbf16, #tpu.memory_space<vmem>>, %arg10: memref<1x2xf32, #tpu.memory_space<vmem>>, %arg11: memref<2x8xbf16, #tpu.memory_space<vmem>>, %arg12: memref<1x8xf32, #tpu.memory_space<vmem>>, %arg13: memref<4x8xbf16, #tpu.memory_space<vmem>>, %arg14: memref<1x8xf32, #tpu.memory_space<vmem>>, %arg15: memref<128x8xf32, #tpu.memory_space<vmem>>, %arg16: memref<2x10x10x8xf32, #tpu.memory_space<vmem>>) attributes {dimension_semantics = [], scalar_prefetch = 0 : i64, scratch_operands = 1 : i64, tpu.core_type = #tpu.core_type<tc>} {
    %c0 = arith.constant 0 : index
    %c0_0 = arith.constant 0 : index
    %c0_1 = arith.constant 0 : index
    %c0_2 = arith.constant 0 : index
    %c0_3 = arith.constant 0 : index
    %0 = vector.load %arg0[%c0, %c0_0, %c0_1, %c0_2, %c0_3] : memref<4x2x9x9x4xf32, #tpu.memory_space<vmem>>, vector<1x2x8x8x4xf32>
    %1 = vector.shape_cast %0 : vector<1x2x8x8x4xf32> to vector<2x8x8x4xf32>
    %2 = vector.shape_cast %1 : vector<2x8x8x4xf32> to vector<128x4xf32>
    %c1 = arith.constant 1 : index
    %c0_4 = arith.constant 0 : index
    %c0_5 = arith.constant 0 : index
    %c0_6 = arith.constant 0 : index
    %c0_7 = arith.constant 0 : index
    %3 = vector.load %arg0[%c1, %c0_4, %c0_5, %c0_6, %c0_7] : memref<4x2x9x9x4xf32, #tpu.memory_space<vmem>>, vector<1x2x8x8x4xf32>
    %4 = vector.shape_cast %3 : vector<1x2x8x8x4xf32> to vector<2x8x8x4xf32>
    %5 = vector.shape_cast %4 : vector<2x8x8x4xf32> to vector<128x4xf32>
    %c0_8 = arith.constant 0 : index
    %c0_9 = arith.constant 0 : index
    %c0_10 = arith.constant 0 : index
    %c1_11 = arith.constant 1 : index
    %c0_12 = arith.constant 0 : index
    %6 = vector.load %arg0[%c0_8, %c0_9, %c0_10, %c1_11, %c0_12] : memref<4x2x9x9x4xf32, #tpu.memory_space<vmem>>, vector<1x2x8x8x4xf32>
    %7 = vector.shape_cast %6 : vector<1x2x8x8x4xf32> to vector<2x8x8x4xf32>
    %8 = vector.shape_cast %7 : vector<2x8x8x4xf32> to vector<128x4xf32>
    %c2 = arith.constant 2 : index
    %c0_13 = arith.constant 0 : index
    %c0_14 = arith.constant 0 : index
    %c0_15 = arith.constant 0 : index
    %c0_16 = arith.constant 0 : index
    %9 = vector.load %arg0[%c2, %c0_13, %c0_14, %c0_15, %c0_16] : memref<4x2x9x9x4xf32, #tpu.memory_space<vmem>>, vector<1x2x8x8x4xf32>
    %10 = vector.shape_cast %9 : vector<1x2x8x8x4xf32> to vector<2x8x8x4xf32>
    %11 = vector.shape_cast %10 : vector<2x8x8x4xf32> to vector<128x4xf32>
    %c3 = arith.constant 3 : index
    %c0_17 = arith.constant 0 : index
    %c0_18 = arith.constant 0 : index
    %c0_19 = arith.constant 0 : index
    %c0_20 = arith.constant 0 : index
    %12 = vector.load %arg0[%c3, %c0_17, %c0_18, %c0_19, %c0_20] : memref<4x2x9x9x4xf32, #tpu.memory_space<vmem>>, vector<1x2x8x8x4xf32>
    %13 = vector.shape_cast %12 : vector<1x2x8x8x4xf32> to vector<2x8x8x4xf32>
    %14 = vector.shape_cast %13 : vector<2x8x8x4xf32> to vector<128x4xf32>
    %c2_21 = arith.constant 2 : index
    %c0_22 = arith.constant 0 : index
    %c0_23 = arith.constant 0 : index
    %c1_24 = arith.constant 1 : index
    %c0_25 = arith.constant 0 : index
    %15 = vector.load %arg0[%c2_21, %c0_22, %c0_23, %c1_24, %c0_25] : memref<4x2x9x9x4xf32, #tpu.memory_space<vmem>>, vector<1x2x8x8x4xf32>
    %16 = vector.shape_cast %15 : vector<1x2x8x8x4xf32> to vector<2x8x8x4xf32>
    %17 = vector.shape_cast %16 : vector<2x8x8x4xf32> to vector<128x4xf32>
    %c0_26 = arith.constant 0 : index
    %c0_27 = arith.constant 0 : index
    %c1_28 = arith.constant 1 : index
    %c0_29 = arith.constant 0 : index
    %c0_30 = arith.constant 0 : index
    %18 = vector.load %arg0[%c0_26, %c0_27, %c1_28, %c0_29, %c0_30] : memref<4x2x9x9x4xf32, #tpu.memory_space<vmem>>, vector<1x2x8x8x4xf32>
    %19 = vector.shape_cast %18 : vector<1x2x8x8x4xf32> to vector<2x8x8x4xf32>
    %20 = vector.shape_cast %19 : vector<2x8x8x4xf32> to vector<128x4xf32>
    %c1_31 = arith.constant 1 : index
    %c0_32 = arith.constant 0 : index
    %c1_33 = arith.constant 1 : index
    %c0_34 = arith.constant 0 : index
    %c0_35 = arith.constant 0 : index
    %21 = vector.load %arg0[%c1_31, %c0_32, %c1_33, %c0_34, %c0_35] : memref<4x2x9x9x4xf32, #tpu.memory_space<vmem>>, vector<1x2x8x8x4xf32>
    %22 = vector.shape_cast %21 : vector<1x2x8x8x4xf32> to vector<2x8x8x4xf32>
    %23 = vector.shape_cast %22 : vector<2x8x8x4xf32> to vector<128x4xf32>
    %c0_36 = arith.constant 0 : index
    %c0_37 = arith.constant 0 : index
    %c1_38 = arith.constant 1 : index
    %c1_39 = arith.constant 1 : index
    %c0_40 = arith.constant 0 : index
    %24 = vector.load %arg0[%c0_36, %c0_37, %c1_38, %c1_39, %c0_40] : memref<4x2x9x9x4xf32, #tpu.memory_space<vmem>>, vector<1x2x8x8x4xf32>
    %25 = vector.shape_cast %24 : vector<1x2x8x8x4xf32> to vector<2x8x8x4xf32>
    %26 = vector.shape_cast %25 : vector<2x8x8x4xf32> to vector<128x4xf32>
    %cst = arith.constant 0.000000e+00 : f32
    %27 = vector.broadcast %cst : f32 to vector<128x8xf32>
    %28 = arith.truncf %2 : vector<128x4xf32> to vector<128x4xbf16>
    %c0_41 = arith.constant 0 : index
    %c0_42 = arith.constant 0 : index
    %c0_43 = arith.constant 0 : index
    %29 = vector.load %arg1[%c0_41, %c0_42, %c0_43] : memref<9x4x8xbf16, #tpu.memory_space<vmem>>, vector<1x4x8xbf16>
    %30 = vector.shape_cast %29 : vector<1x4x8xbf16> to vector<4x8xbf16>
    %cst_44 = arith.constant dense<0.000000e+00> : vector<128x8xf32>
    %31 = tpu.matmul %28, %30, %cst_44 {dimension_numbers = #tpu.dot_dimension_numbers<[1], [0], [0], [1], [0, 0, 1, 1], [], []>} : vector<128x4xbf16>, vector<4x8xbf16>, vector<128x8xf32> -> vector<128x8xf32>
    %32 = arith.addf %27, %31 : vector<128x8xf32>
    %33 = arith.truncf %5 : vector<128x4xf32> to vector<128x4xbf16>
    %c1_45 = arith.constant 1 : index
    %c0_46 = arith.constant 0 : index
    %c0_47 = arith.constant 0 : index
    %34 = vector.load %arg1[%c1_45, %c0_46, %c0_47] : memref<9x4x8xbf16, #tpu.memory_space<vmem>>, vector<1x4x8xbf16>
    %35 = vector.shape_cast %34 : vector<1x4x8xbf16> to vector<4x8xbf16>
    %cst_48 = arith.constant dense<0.000000e+00> : vector<128x8xf32>
    %36 = tpu.matmul %33, %35, %cst_48 {dimension_numbers = #tpu.dot_dimension_numbers<[1], [0], [0], [1], [0, 0, 1, 1], [], []>} : vector<128x4xbf16>, vector<4x8xbf16>, vector<128x8xf32> -> vector<128x8xf32>
    %37 = arith.addf %32, %36 : vector<128x8xf32>
    %38 = arith.truncf %8 : vector<128x4xf32> to vector<128x4xbf16>
    %c2_49 = arith.constant 2 : index
    %c0_50 = arith.constant 0 : index
    %c0_51 = arith.constant 0 : index
    %39 = vector.load %arg1[%c2_49, %c0_50, %c0_51] : memref<9x4x8xbf16, #tpu.memory_space<vmem>>, vector<1x4x8xbf16>
    %40 = vector.shape_cast %39 : vector<1x4x8xbf16> to vector<4x8xbf16>
    %cst_52 = arith.constant dense<0.000000e+00> : vector<128x8xf32>
    %41 = tpu.matmul %38, %40, %cst_52 {dimension_numbers = #tpu.dot_dimension_numbers<[1], [0], [0], [1], [0, 0, 1, 1], [], []>} : vector<128x4xbf16>, vector<4x8xbf16>, vector<128x8xf32> -> vector<128x8xf32>
    %42 = arith.addf %37, %41 : vector<128x8xf32>
    %43 = arith.truncf %11 : vector<128x4xf32> to vector<128x4xbf16>
    %c3_53 = arith.constant 3 : index
    %c0_54 = arith.constant 0 : index
    %c0_55 = arith.constant 0 : index
    %44 = vector.load %arg1[%c3_53, %c0_54, %c0_55] : memref<9x4x8xbf16, #tpu.memory_space<vmem>>, vector<1x4x8xbf16>
    %45 = vector.shape_cast %44 : vector<1x4x8xbf16> to vector<4x8xbf16>
    %cst_56 = arith.constant dense<0.000000e+00> : vector<128x8xf32>
    %46 = tpu.matmul %43, %45, %cst_56 {dimension_numbers = #tpu.dot_dimension_numbers<[1], [0], [0], [1], [0, 0, 1, 1], [], []>} : vector<128x4xbf16>, vector<4x8xbf16>, vector<128x8xf32> -> vector<128x8xf32>
    %47 = arith.addf %42, %46 : vector<128x8xf32>
    %48 = arith.truncf %14 : vector<128x4xf32> to vector<128x4xbf16>
    %c4 = arith.constant 4 : index
    %c0_57 = arith.constant 0 : index
    %c0_58 = arith.constant 0 : index
    %49 = vector.load %arg1[%c4, %c0_57, %c0_58] : memref<9x4x8xbf16, #tpu.memory_space<vmem>>, vector<1x4x8xbf16>
    %50 = vector.shape_cast %49 : vector<1x4x8xbf16> to vector<4x8xbf16>
    %cst_59 = arith.constant dense<0.000000e+00> : vector<128x8xf32>
    %51 = tpu.matmul %48, %50, %cst_59 {dimension_numbers = #tpu.dot_dimension_numbers<[1], [0], [0], [1], [0, 0, 1, 1], [], []>} : vector<128x4xbf16>, vector<4x8xbf16>, vector<128x8xf32> -> vector<128x8xf32>
    %52 = arith.addf %47, %51 : vector<128x8xf32>
    %53 = arith.truncf %17 : vector<128x4xf32> to vector<128x4xbf16>
    %c5 = arith.constant 5 : index
    %c0_60 = arith.constant 0 : index
    %c0_61 = arith.constant 0 : index
    %54 = vector.load %arg1[%c5, %c0_60, %c0_61] : memref<9x4x8xbf16, #tpu.memory_space<vmem>>, vector<1x4x8xbf16>
    %55 = vector.shape_cast %54 : vector<1x4x8xbf16> to vector<4x8xbf16>
    %cst_62 = arith.constant dense<0.000000e+00> : vector<128x8xf32>
    %56 = tpu.matmul %53, %55, %cst_62 {dimension_numbers = #tpu.dot_dimension_numbers<[1], [0], [0], [1], [0, 0, 1, 1], [], []>} : vector<128x4xbf16>, vector<4x8xbf16>, vector<128x8xf32> -> vector<128x8xf32>
    %57 = arith.addf %52, %56 : vector<128x8xf32>
    %58 = arith.truncf %20 : vector<128x4xf32> to vector<128x4xbf16>
    %c6 = arith.constant 6 : index
    %c0_63 = arith.constant 0 : index
    %c0_64 = arith.constant 0 : index
    %59 = vector.load %arg1[%c6, %c0_63, %c0_64] : memref<9x4x8xbf16, #tpu.memory_space<vmem>>, vector<1x4x8xbf16>
    %60 = vector.shape_cast %59 : vector<1x4x8xbf16> to vector<4x8xbf16>
    %cst_65 = arith.constant dense<0.000000e+00> : vector<128x8xf32>
    %61 = tpu.matmul %58, %60, %cst_65 {dimension_numbers = #tpu.dot_dimension_numbers<[1], [0], [0], [1], [0, 0, 1, 1], [], []>} : vector<128x4xbf16>, vector<4x8xbf16>, vector<128x8xf32> -> vector<128x8xf32>
    %62 = arith.addf %57, %61 : vector<128x8xf32>
    %63 = arith.truncf %23 : vector<128x4xf32> to vector<128x4xbf16>
    %c7 = arith.constant 7 : index
    %c0_66 = arith.constant 0 : index
    %c0_67 = arith.constant 0 : index
    %64 = vector.load %arg1[%c7, %c0_66, %c0_67] : memref<9x4x8xbf16, #tpu.memory_space<vmem>>, vector<1x4x8xbf16>
    %65 = vector.shape_cast %64 : vector<1x4x8xbf16> to vector<4x8xbf16>
    %cst_68 = arith.constant dense<0.000000e+00> : vector<128x8xf32>
    %66 = tpu.matmul %63, %65, %cst_68 {dimension_numbers = #tpu.dot_dimension_numbers<[1], [0], [0], [1], [0, 0, 1, 1], [], []>} : vector<128x4xbf16>, vector<4x8xbf16>, vector<128x8xf32> -> vector<128x8xf32>
    %67 = arith.addf %62, %66 : vector<128x8xf32>
    %68 = arith.truncf %26 : vector<128x4xf32> to vector<128x4xbf16>
    %c8 = arith.constant 8 : index
    %c0_69 = arith.constant 0 : index
    %c0_70 = arith.constant 0 : index
    %69 = vector.load %arg1[%c8, %c0_69, %c0_70] : memref<9x4x8xbf16, #tpu.memory_space<vmem>>, vector<1x4x8xbf16>
    %70 = vector.shape_cast %69 : vector<1x4x8xbf16> to vector<4x8xbf16>
    %cst_71 = arith.constant dense<0.000000e+00> : vector<128x8xf32>
    %71 = tpu.matmul %68, %70, %cst_71 {dimension_numbers = #tpu.dot_dimension_numbers<[1], [0], [0], [1], [0, 0, 1, 1], [], []>} : vector<128x4xbf16>, vector<4x8xbf16>, vector<128x8xf32> -> vector<128x8xf32>
    %72 = arith.addf %67, %71 : vector<128x8xf32>
    %c0_72 = arith.constant 0 : index
    %c0_73 = arith.constant 0 : index
    %73 = vector.load %arg2[%c0_72, %c0_73] : memref<1x8xf32, #tpu.memory_space<vmem>>, vector<1x8xf32>
    %74 = vector.broadcast %73 : vector<1x8xf32> to vector<128x8xf32>
    %75 = arith.addf %72, %74 : vector<128x8xf32>
    %c0_74 = arith.constant 0 : index
    %c0_75 = arith.constant 0 : index
    %76 = vector.load %arg3[%c0_74, %c0_75] : memref<1x8xf32, #tpu.memory_space<vmem>>, vector<1x8xf32>
    %c0_76 = arith.constant 0 : index
    %c0_77 = arith.constant 0 : index
    %77 = vector.load %arg4[%c0_76, %c0_77] : memref<1x8xf32, #tpu.memory_space<vmem>>, vector<1x8xf32>
    %cst_78 = arith.constant dense<0.000000e+00> : vector<8xf32>
    %78 = vector.multi_reduction <add>, %75, %cst_78 [0] : vector<128x8xf32> to vector<8xf32>
    %79 = vector.shape_cast %78 : vector<8xf32> to vector<1x8xf32>
    %cst_79 = arith.constant 1.280000e+02 : f32
    %80 = vector.broadcast %cst_79 : f32 to vector<1x8xf32>
    %81 = arith.divf %79, %80 : vector<1x8xf32>
    %82 = vector.broadcast %81 : vector<1x8xf32> to vector<128x8xf32>
    %83 = arith.subf %75, %82 : vector<128x8xf32>
    %84 = arith.mulf %83, %83 : vector<128x8xf32>
    %cst_80 = arith.constant dense<0.000000e+00> : vector<8xf32>
    %85 = vector.multi_reduction <add>, %84, %cst_80 [0] : vector<128x8xf32> to vector<8xf32>
    %86 = vector.shape_cast %85 : vector<8xf32> to vector<1x8xf32>
    %cst_81 = arith.constant 1.280000e+02 : f32
    %87 = vector.broadcast %cst_81 : f32 to vector<1x8xf32>
    %88 = arith.divf %86, %87 : vector<1x8xf32>
    %89 = vector.broadcast %81 : vector<1x8xf32> to vector<128x8xf32>
    %90 = arith.subf %75, %89 : vector<128x8xf32>
    %cst_82 = arith.constant 9.99999974E-6 : f32
    %91 = vector.broadcast %cst_82 : f32 to vector<1x8xf32>
    %92 = arith.addf %88, %91 : vector<1x8xf32>
    %93 = math.rsqrt %92 : vector<1x8xf32>
    %94 = vector.broadcast %93 : vector<1x8xf32> to vector<128x8xf32>
    %95 = arith.mulf %90, %94 : vector<128x8xf32>
    %96 = vector.broadcast %76 : vector<1x8xf32> to vector<128x8xf32>
    %97 = arith.mulf %95, %96 : vector<128x8xf32>
    %98 = vector.broadcast %77 : vector<1x8xf32> to vector<128x8xf32>
    %99 = arith.addf %97, %98 : vector<128x8xf32>
    %cst_83 = arith.constant 0.000000e+00 : f32
    %100 = vector.broadcast %cst_83 : f32 to vector<128x8xf32>
    %101 = arith.cmpf ogt, %99, %100 : vector<128x8xf32>
    %102 = math.exp %99 : vector<128x8xf32>
    %cst_84 = arith.constant 1.000000e+00 : f32
    %103 = vector.broadcast %cst_84 : f32 to vector<128x8xf32>
    %104 = arith.subf %102, %103 : vector<128x8xf32>
    %105 = arith.select %101, %99, %104 : vector<128x8xi1>, vector<128x8xf32>
    %cst_85 = arith.constant 0.000000e+00 : f32
    %106 = vector.broadcast %cst_85 : f32 to vector<2x10x10x8xf32>
    %c0_86 = arith.constant 0 : index
    %c0_87 = arith.constant 0 : index
    %c0_88 = arith.constant 0 : index
    %c0_89 = arith.constant 0 : index
    %107 = vector.load %arg16[%c0_86, %c0_87, %c0_88, %c0_89] : memref<2x10x10x8xf32, #tpu.memory_space<vmem>>, vector<2x10x10x8xf32>
    tpu.vector_store %arg16[%c0_86, %c0_87, %c0_88, %c0_89], %106 {strides = array<i32>} : memref<2x10x10x8xf32, #tpu.memory_space<vmem>>, vector<2x10x10x8xf32>,
    %108 = vector.shape_cast %105 : vector<128x8xf32> to vector<2x8x8x8xf32>
    %c0_90 = arith.constant 0 : index
    %c1_91 = arith.constant 1 : index
    %c1_92 = arith.constant 1 : index
    %c0_93 = arith.constant 0 : index
    %109 = vector.load %arg16[%c0_90, %c1_91, %c1_92, %c0_93] : memref<2x10x10x8xf32, #tpu.memory_space<vmem>>, vector<2x8x8x8xf32>
    tpu.vector_store %arg16[%c0_90, %c1_91, %c1_92, %c0_93], %108 {strides = array<i32>} : memref<2x10x10x8xf32, #tpu.memory_space<vmem>>, vector<2x8x8x8xf32>,
    %cst_94 = arith.constant 0.000000e+00 : f32
    %110 = vector.broadcast %cst_94 : f32 to vector<128x8xf32>
    %c0_95 = arith.constant 0 : index
    %c0_96 = arith.constant 0 : index
    %c0_97 = arith.constant 0 : index
    %c0_98 = arith.constant 0 : index
    %111 = vector.load %arg16[%c0_95, %c0_96, %c0_97, %c0_98] : memref<2x10x10x8xf32, #tpu.memory_space<vmem>>, vector<2x8x8x8xf32>
    %112 = vector.shape_cast %111 : vector<2x8x8x8xf32> to vector<128x8xf32>
    %113 = arith.truncf %112 : vector<128x8xf32> to vector<128x8xbf16>
    %c0_99 = arith.constant 0 : index
    %c0_100 = arith.constant 0 : index
    %c0_101 = arith.constant 0 : index
    %114 = vector.load %arg5[%c0_99, %c0_100, %c0_101] : memref<9x8x8xbf16, #tpu.memory_space<vmem>>, vector<1x8x8xbf16>
    %115 = vector.shape_cast %114 : vector<1x8x8xbf16> to vector<8x8xbf16>
    %cst_102 = arith.constant dense<0.000000e+00> : vector<128x8xf32>
    %116 = tpu.matmul %113, %115, %cst_102 {dimension_numbers = #tpu.dot_dimension_numbers<[1], [0], [0], [1], [0, 0, 1, 1], [], []>} : vector<128x8xbf16>, vector<8x8xbf16>, vector<128x8xf32> -> vector<128x8xf32>
    %117 = arith.addf %110, %116 : vector<128x8xf32>
    %c0_103 = arith.constant 0 : index
    %c0_104 = arith.constant 0 : index
    %c1_105 = arith.constant 1 : index
    %c0_106 = arith.constant 0 : index
    %118 = vector.load %arg16[%c0_103, %c0_104, %c1_105, %c0_106] : memref<2x10x10x8xf32, #tpu.memory_space<vmem>>, vector<2x8x8x8xf32>
    %119 = vector.shape_cast %118 : vector<2x8x8x8xf32> to vector<128x8xf32>
    %120 = arith.truncf %119 : vector<128x8xf32> to vector<128x8xbf16>
    %c1_107 = arith.constant 1 : index
    %c0_108 = arith.constant 0 : index
    %c0_109 = arith.constant 0 : index
    %121 = vector.load %arg5[%c1_107, %c0_108, %c0_109] : memref<9x8x8xbf16, #tpu.memory_space<vmem>>, vector<1x8x8xbf16>
    %122 = vector.shape_cast %121 : vector<1x8x8xbf16> to vector<8x8xbf16>
    %cst_110 = arith.constant dense<0.000000e+00> : vector<128x8xf32>
    %123 = tpu.matmul %120, %122, %cst_110 {dimension_numbers = #tpu.dot_dimension_numbers<[1], [0], [0], [1], [0, 0, 1, 1], [], []>} : vector<128x8xbf16>, vector<8x8xbf16>, vector<128x8xf32> -> vector<128x8xf32>
    %124 = arith.addf %117, %123 : vector<128x8xf32>
    %c0_111 = arith.constant 0 : index
    %c0_112 = arith.constant 0 : index
    %c2_113 = arith.constant 2 : index
    %c0_114 = arith.constant 0 : index
    %125 = vector.load %arg16[%c0_111, %c0_112, %c2_113, %c0_114] : memref<2x10x10x8xf32, #tpu.memory_space<vmem>>, vector<2x8x8x8xf32>
    %126 = vector.shape_cast %125 : vector<2x8x8x8xf32> to vector<128x8xf32>
    %127 = arith.truncf %126 : vector<128x8xf32> to vector<128x8xbf16>
    %c2_115 = arith.constant 2 : index
    %c0_116 = arith.constant 0 : index
    %c0_117 = arith.constant 0 : index
    %128 = vector.load %arg5[%c2_115, %c0_116, %c0_117] : memref<9x8x8xbf16, #tpu.memory_space<vmem>>, vector<1x8x8xbf16>
    %129 = vector.shape_cast %128 : vector<1x8x8xbf16> to vector<8x8xbf16>
    %cst_118 = arith.constant dense<0.000000e+00> : vector<128x8xf32>
    %130 = tpu.matmul %127, %129, %cst_118 {dimension_numbers = #tpu.dot_dimension_numbers<[1], [0], [0], [1], [0, 0, 1, 1], [], []>} : vector<128x8xbf16>, vector<8x8xbf16>, vector<128x8xf32> -> vector<128x8xf32>
    %131 = arith.addf %124, %130 : vector<128x8xf32>
    %c0_119 = arith.constant 0 : index
    %c1_120 = arith.constant 1 : index
    %c0_121 = arith.constant 0 : index
    %c0_122 = arith.constant 0 : index
    %132 = vector.load %arg16[%c0_119, %c1_120, %c0_121, %c0_122] : memref<2x10x10x8xf32, #tpu.memory_space<vmem>>, vector<2x8x8x8xf32>
    %133 = vector.shape_cast %132 : vector<2x8x8x8xf32> to vector<128x8xf32>
    %134 = arith.truncf %133 : vector<128x8xf32> to vector<128x8xbf16>
    %c3_123 = arith.constant 3 : index
    %c0_124 = arith.constant 0 : index
    %c0_125 = arith.constant 0 : index
    %135 = vector.load %arg5[%c3_123, %c0_124, %c0_125] : memref<9x8x8xbf16, #tpu.memory_space<vmem>>, vector<1x8x8xbf16>
    %136 = vector.shape_cast %135 : vector<1x8x8xbf16> to vector<8x8xbf16>
    %cst_126 = arith.constant dense<0.000000e+00> : vector<128x8xf32>
    %137 = tpu.matmul %134, %136, %cst_126 {dimension_numbers = #tpu.dot_dimension_numbers<[1], [0], [0], [1], [0, 0, 1, 1], [], []>} : vector<128x8xbf16>, vector<8x8xbf16>, vector<128x8xf32> -> vector<128x8xf32>
    %138 = arith.addf %131, %137 : vector<128x8xf32>
    %c0_127 = arith.constant 0 : index
    %c1_128 = arith.constant 1 : index
    %c1_129 = arith.constant 1 : index
    %c0_130 = arith.constant 0 : index
    %139 = vector.load %arg16[%c0_127, %c1_128, %c1_129, %c0_130] : memref<2x10x10x8xf32, #tpu.memory_space<vmem>>, vector<2x8x8x8xf32>
    %140 = vector.shape_cast %139 : vector<2x8x8x8xf32> to vector<128x8xf32>
    %141 = arith.truncf %140 : vector<128x8xf32> to vector<128x8xbf16>
    %c4_131 = arith.constant 4 : index
    %c0_132 = arith.constant 0 : index
    %c0_133 = arith.constant 0 : index
    %142 = vector.load %arg5[%c4_131, %c0_132, %c0_133] : memref<9x8x8xbf16, #tpu.memory_space<vmem>>, vector<1x8x8xbf16>
    %143 = vector.shape_cast %142 : vector<1x8x8xbf16> to vector<8x8xbf16>
    %cst_134 = arith.constant dense<0.000000e+00> : vector<128x8xf32>
    %144 = tpu.matmul %141, %143, %cst_134 {dimension_numbers = #tpu.dot_dimension_numbers<[1], [0], [0], [1], [0, 0, 1, 1], [], []>} : vector<128x8xbf16>, vector<8x8xbf16>, vector<128x8xf32> -> vector<128x8xf32>
    %145 = arith.addf %138, %144 : vector<128x8xf32>
    %c0_135 = arith.constant 0 : index
    %c1_136 = arith.constant 1 : index
    %c2_137 = arith.constant 2 : index
    %c0_138 = arith.constant 0 : index
    %146 = vector.load %arg16[%c0_135, %c1_136, %c2_137, %c0_138] : memref<2x10x10x8xf32, #tpu.memory_space<vmem>>, vector<2x8x8x8xf32>
    %147 = vector.shape_cast %146 : vector<2x8x8x8xf32> to vector<128x8xf32>
    %148 = arith.truncf %147 : vector<128x8xf32> to vector<128x8xbf16>
    %c5_139 = arith.constant 5 : index
    %c0_140 = arith.constant 0 : index
    %c0_141 = arith.constant 0 : index
    %149 = vector.load %arg5[%c5_139, %c0_140, %c0_141] : memref<9x8x8xbf16, #tpu.memory_space<vmem>>, vector<1x8x8xbf16>
    %150 = vector.shape_cast %149 : vector<1x8x8xbf16> to vector<8x8xbf16>
    %cst_142 = arith.constant dense<0.000000e+00> : vector<128x8xf32>
    %151 = tpu.matmul %148, %150, %cst_142 {dimension_numbers = #tpu.dot_dimension_numbers<[1], [0], [0], [1], [0, 0, 1, 1], [], []>} : vector<128x8xbf16>, vector<8x8xbf16>, vector<128x8xf32> -> vector<128x8xf32>
    %152 = arith.addf %145, %151 : vector<128x8xf32>
    %c0_143 = arith.constant 0 : index
    %c2_144 = arith.constant 2 : index
    %c0_145 = arith.constant 0 : index
    %c0_146 = arith.constant 0 : index
    %153 = vector.load %arg16[%c0_143, %c2_144, %c0_145, %c0_146] : memref<2x10x10x8xf32, #tpu.memory_space<vmem>>, vector<2x8x8x8xf32>
    %154 = vector.shape_cast %153 : vector<2x8x8x8xf32> to vector<128x8xf32>
    %155 = arith.truncf %154 : vector<128x8xf32> to vector<128x8xbf16>
    %c6_147 = arith.constant 6 : index
    %c0_148 = arith.constant 0 : index
    %c0_149 = arith.constant 0 : index
    %156 = vector.load %arg5[%c6_147, %c0_148, %c0_149] : memref<9x8x8xbf16, #tpu.memory_space<vmem>>, vector<1x8x8xbf16>
    %157 = vector.shape_cast %156 : vector<1x8x8xbf16> to vector<8x8xbf16>
    %cst_150 = arith.constant dense<0.000000e+00> : vector<128x8xf32>
    %158 = tpu.matmul %155, %157, %cst_150 {dimension_numbers = #tpu.dot_dimension_numbers<[1], [0], [0], [1], [0, 0, 1, 1], [], []>} : vector<128x8xbf16>, vector<8x8xbf16>, vector<128x8xf32> -> vector<128x8xf32>
    %159 = arith.addf %152, %158 : vector<128x8xf32>
    %c0_151 = arith.constant 0 : index
    %c2_152 = arith.constant 2 : index
    %c1_153 = arith.constant 1 : index
    %c0_154 = arith.constant 0 : index
    %160 = vector.load %arg16[%c0_151, %c2_152, %c1_153, %c0_154] : memref<2x10x10x8xf32, #tpu.memory_space<vmem>>, vector<2x8x8x8xf32>
    %161 = vector.shape_cast %160 : vector<2x8x8x8xf32> to vector<128x8xf32>
    %162 = arith.truncf %161 : vector<128x8xf32> to vector<128x8xbf16>
    %c7_155 = arith.constant 7 : index
    %c0_156 = arith.constant 0 : index
    %c0_157 = arith.constant 0 : index
    %163 = vector.load %arg5[%c7_155, %c0_156, %c0_157] : memref<9x8x8xbf16, #tpu.memory_space<vmem>>, vector<1x8x8xbf16>
    %164 = vector.shape_cast %163 : vector<1x8x8xbf16> to vector<8x8xbf16>
    %cst_158 = arith.constant dense<0.000000e+00> : vector<128x8xf32>
    %165 = tpu.matmul %162, %164, %cst_158 {dimension_numbers = #tpu.dot_dimension_numbers<[1], [0], [0], [1], [0, 0, 1, 1], [], []>} : vector<128x8xbf16>, vector<8x8xbf16>, vector<128x8xf32> -> vector<128x8xf32>
    %166 = arith.addf %159, %165 : vector<128x8xf32>
    %c0_159 = arith.constant 0 : index
    %c2_160 = arith.constant 2 : index
    %c2_161 = arith.constant 2 : index
    %c0_162 = arith.constant 0 : index
    %167 = vector.load %arg16[%c0_159, %c2_160, %c2_161, %c0_162] : memref<2x10x10x8xf32, #tpu.memory_space<vmem>>, vector<2x8x8x8xf32>
    %168 = vector.shape_cast %167 : vector<2x8x8x8xf32> to vector<128x8xf32>
    %169 = arith.truncf %168 : vector<128x8xf32> to vector<128x8xbf16>
    %c8_163 = arith.constant 8 : index
    %c0_164 = arith.constant 0 : index
    %c0_165 = arith.constant 0 : index
    %170 = vector.load %arg5[%c8_163, %c0_164, %c0_165] : memref<9x8x8xbf16, #tpu.memory_space<vmem>>, vector<1x8x8xbf16>
    %171 = vector.shape_cast %170 : vector<1x8x8xbf16> to vector<8x8xbf16>
    %cst_166 = arith.constant dense<0.000000e+00> : vector<128x8xf32>
    %172 = tpu.matmul %169, %171, %cst_166 {dimension_numbers = #tpu.dot_dimension_numbers<[1], [0], [0], [1], [0, 0, 1, 1], [], []>} : vector<128x8xbf16>, vector<8x8xbf16>, vector<128x8xf32> -> vector<128x8xf32>
    %173 = arith.addf %166, %172 : vector<128x8xf32>
    %c0_167 = arith.constant 0 : index
    %c0_168 = arith.constant 0 : index
    %174 = vector.load %arg6[%c0_167, %c0_168] : memref<1x8xf32, #tpu.memory_space<vmem>>, vector<1x8xf32>
    %175 = vector.broadcast %174 : vector<1x8xf32> to vector<128x8xf32>
    %176 = arith.addf %173, %175 : vector<128x8xf32>
    %c0_169 = arith.constant 0 : index
    %c0_170 = arith.constant 0 : index
    %177 = vector.load %arg7[%c0_169, %c0_170] : memref<1x8xf32, #tpu.memory_space<vmem>>, vector<1x8xf32>
    %c0_171 = arith.constant 0 : index
    %c0_172 = arith.constant 0 : index
    %178 = vector.load %arg8[%c0_171, %c0_172] : memref<1x8xf32, #tpu.memory_space<vmem>>, vector<1x8xf32>
    %cst_173 = arith.constant dense<0.000000e+00> : vector<8xf32>
    %179 = vector.multi_reduction <add>, %176, %cst_173 [0] : vector<128x8xf32> to vector<8xf32>
    %180 = vector.shape_cast %179 : vector<8xf32> to vector<1x8xf32>
    %cst_174 = arith.constant 1.280000e+02 : f32
    %181 = vector.broadcast %cst_174 : f32 to vector<1x8xf32>
    %182 = arith.divf %180, %181 : vector<1x8xf32>
    %183 = vector.broadcast %182 : vector<1x8xf32> to vector<128x8xf32>
    %184 = arith.subf %176, %183 : vector<128x8xf32>
    %185 = arith.mulf %184, %184 : vector<128x8xf32>
    %cst_175 = arith.constant dense<0.000000e+00> : vector<8xf32>
    %186 = vector.multi_reduction <add>, %185, %cst_175 [0] : vector<128x8xf32> to vector<8xf32>
    %187 = vector.shape_cast %186 : vector<8xf32> to vector<1x8xf32>
    %cst_176 = arith.constant 1.280000e+02 : f32
    %188 = vector.broadcast %cst_176 : f32 to vector<1x8xf32>
    %189 = arith.divf %187, %188 : vector<1x8xf32>
    %190 = vector.broadcast %182 : vector<1x8xf32> to vector<128x8xf32>
    %191 = arith.subf %176, %190 : vector<128x8xf32>
    %cst_177 = arith.constant 9.99999974E-6 : f32
    %192 = vector.broadcast %cst_177 : f32 to vector<1x8xf32>
    %193 = arith.addf %189, %192 : vector<1x8xf32>
    %194 = math.rsqrt %193 : vector<1x8xf32>
    %195 = vector.broadcast %194 : vector<1x8xf32> to vector<128x8xf32>
    %196 = arith.mulf %191, %195 : vector<128x8xf32>
    %197 = vector.broadcast %177 : vector<1x8xf32> to vector<128x8xf32>
    %198 = arith.mulf %196, %197 : vector<128x8xf32>
    %199 = vector.broadcast %178 : vector<1x8xf32> to vector<128x8xf32>
    %200 = arith.addf %198, %199 : vector<128x8xf32>
    %cst_178 = arith.constant 0.000000e+00 : f32
    %201 = vector.broadcast %cst_178 : f32 to vector<128x8xf32>
    %202 = arith.cmpf ogt, %200, %201 : vector<128x8xf32>
    %203 = math.exp %200 : vector<128x8xf32>
    %cst_179 = arith.constant 1.000000e+00 : f32
    %204 = vector.broadcast %cst_179 : f32 to vector<128x8xf32>
    %205 = arith.subf %203, %204 : vector<128x8xf32>
    %206 = arith.select %202, %200, %205 : vector<128x8xi1>, vector<128x8xf32>
    %207 = vector.shape_cast %206 : vector<128x8xf32> to vector<2x64x8xf32>
    %cst_180 = arith.constant dense<0.000000e+00> : vector<2x8xf32>
    %208 = vector.multi_reduction <add>, %207, %cst_180 [1] : vector<2x64x8xf32> to vector<2x8xf32>
    %cst_181 = arith.constant 6.400000e+01 : f32
    %209 = vector.broadcast %cst_181 : f32 to vector<2x8xf32>
    %210 = arith.divf %208, %209 : vector<2x8xf32>
    %211 = arith.truncf %210 : vector<2x8xf32> to vector<2x8xbf16>
    %c0_182 = arith.constant 0 : index
    %c0_183 = arith.constant 0 : index
    %212 = vector.load %arg9[%c0_182, %c0_183] : memref<8x2xbf16, #tpu.memory_space<vmem>>, vector<8x2xbf16>
    %cst_184 = arith.constant dense<0.000000e+00> : vector<2x2xf32>
    %213 = tpu.matmul %211, %212, %cst_184 {dimension_numbers = #tpu.dot_dimension_numbers<[1], [0], [0], [1], [0, 0, 1, 1], [], []>} : vector<2x8xbf16>, vector<8x2xbf16>, vector<2x2xf32> -> vector<2x2xf32>
    %c0_185 = arith.constant 0 : index
    %c0_186 = arith.constant 0 : index
    %214 = vector.load %arg10[%c0_185, %c0_186] : memref<1x2xf32, #tpu.memory_space<vmem>>, vector<1x2xf32>
    %215 = vector.broadcast %214 : vector<1x2xf32> to vector<2x2xf32>
    %216 = arith.addf %213, %215 : vector<2x2xf32>
    %cst_187 = arith.constant 0.000000e+00 : f32
    %217 = vector.broadcast %cst_187 : f32 to vector<2x2xf32>
    %218 = arith.cmpf ogt, %216, %217 : vector<2x2xf32>
    %219 = math.exp %216 : vector<2x2xf32>
    %cst_188 = arith.constant 1.000000e+00 : f32
    %220 = vector.broadcast %cst_188 : f32 to vector<2x2xf32>
    %221 = arith.subf %219, %220 : vector<2x2xf32>
    %222 = arith.select %218, %216, %221 : vector<2x2xi1>, vector<2x2xf32>
    %223 = arith.truncf %222 : vector<2x2xf32> to vector<2x2xbf16>
    %c0_189 = arith.constant 0 : index
    %c0_190 = arith.constant 0 : index
    %224 = vector.load %arg11[%c0_189, %c0_190] : memref<2x8xbf16, #tpu.memory_space<vmem>>, vector<2x8xbf16>
    %cst_191 = arith.constant dense<0.000000e+00> : vector<2x8xf32>
    %225 = tpu.matmul %223, %224, %cst_191 {dimension_numbers = #tpu.dot_dimension_numbers<[1], [0], [0], [1], [0, 0, 1, 1], [], []>} : vector<2x2xbf16>, vector<2x8xbf16>, vector<2x8xf32> -> vector<2x8xf32>
    %c0_192 = arith.constant 0 : index
    %c0_193 = arith.constant 0 : index
    %226 = vector.load %arg12[%c0_192, %c0_193] : memref<1x8xf32, #tpu.memory_space<vmem>>, vector<1x8xf32>
    %227 = vector.broadcast %226 : vector<1x8xf32> to vector<2x8xf32>
    %228 = arith.addf %225, %227 : vector<2x8xf32>
    %cst_194 = arith.constant 0.000000e+00 : f32
    %229 = vector.broadcast %cst_194 : f32 to vector<2x8xf32>
    %230 = arith.subf %229, %228 : vector<2x8xf32>
    %231 = math.exp %230 : vector<2x8xf32>
    %cst_195 = arith.constant 1.000000e+00 : f32
    %232 = vector.broadcast %cst_195 : f32 to vector<2x8xf32>
    %233 = arith.addf %232, %231 : vector<2x8xf32>
    %234 = tpu.reciprocal %233 {approx = true} : vector<2x8xf32> -> vector<2x8xf32>
    %235 = vector.shape_cast %234 : vector<2x8xf32> to vector<2x1x8xf32>
    %236 = vector.broadcast %235 : vector<2x1x8xf32> to vector<2x64x8xf32>
    %237 = arith.mulf %207, %236 : vector<2x64x8xf32>
    %238 = vector.shape_cast %237 : vector<2x64x8xf32> to vector<128x8xf32>
    %239 = arith.truncf %14 : vector<128x4xf32> to vector<128x4xbf16>
    %c0_196 = arith.constant 0 : index
    %c0_197 = arith.constant 0 : index
    %240 = vector.load %arg13[%c0_196, %c0_197] : memref<4x8xbf16, #tpu.memory_space<vmem>>, vector<4x8xbf16>
    %cst_198 = arith.constant dense<0.000000e+00> : vector<128x8xf32>
    %241 = tpu.matmul %239, %240, %cst_198 {dimension_numbers = #tpu.dot_dimension_numbers<[1], [0], [0], [1], [0, 0, 1, 1], [], []>} : vector<128x4xbf16>, vector<4x8xbf16>, vector<128x8xf32> -> vector<128x8xf32>
    %c0_199 = arith.constant 0 : index
    %c0_200 = arith.constant 0 : index
    %242 = vector.load %arg14[%c0_199, %c0_200] : memref<1x8xf32, #tpu.memory_space<vmem>>, vector<1x8xf32>
    %243 = vector.broadcast %242 : vector<1x8xf32> to vector<128x8xf32>
    %244 = arith.addf %241, %243 : vector<128x8xf32>
    %245 = arith.addf %238, %244 : vector<128x8xf32>
    %cst_201 = arith.constant 0.000000e+00 : f32
    %246 = vector.broadcast %cst_201 : f32 to vector<128x8xf32>
    %247 = arith.cmpf ogt, %245, %246 : vector<128x8xf32>
    %248 = math.exp %245 : vector<128x8xf32>
    %cst_202 = arith.constant 1.000000e+00 : f32
    %249 = vector.broadcast %cst_202 : f32 to vector<128x8xf32>
    %250 = arith.subf %248, %249 : vector<128x8xf32>
    %251 = arith.select %247, %245, %250 : vector<128x8xi1>, vector<128x8xf32>
    %c0_203 = arith.constant 0 : index
    %c0_204 = arith.constant 0 : index
    %252 = vector.load %arg15[%c0_203, %c0_204] : memref<128x8xf32, #tpu.memory_space<vmem>>, vector<128x8xf32>
    tpu.vector_store %arg15[%c0_203, %c0_204], %251 {strides = array<i32>} : memref<128x8xf32, #tpu.memory_space<vmem>>, vector<128x8xf32>,
    return
  }
}

module attributes {stable_mosaic.version = 11 : i64} {
  func.func @kernel(%arg0: memref<1x2x10x10x8xf32, #tpu.memory_space<vmem>>, %arg1: memref<9x8x8xbf16, #tpu.memory_space<vmem>>, %arg2: memref<1x8xf32, #tpu.memory_space<vmem>>, %arg3: memref<1x8xf32, #tpu.memory_space<vmem>>, %arg4: memref<1x8xf32, #tpu.memory_space<vmem>>, %arg5: memref<9x8x8xbf16, #tpu.memory_space<vmem>>, %arg6: memref<1x8xf32, #tpu.memory_space<vmem>>, %arg7: memref<1x8xf32, #tpu.memory_space<vmem>>, %arg8: memref<1x8xf32, #tpu.memory_space<vmem>>, %arg9: memref<8x2xbf16, #tpu.memory_space<vmem>>, %arg10: memref<1x2xf32, #tpu.memory_space<vmem>>, %arg11: memref<2x8xbf16, #tpu.memory_space<vmem>>, %arg12: memref<1x8xf32, #tpu.memory_space<vmem>>, %arg13: memref<128x8xf32, #tpu.memory_space<vmem>>, %arg14: memref<2x10x10x8xf32, #tpu.memory_space<vmem>>) attributes {dimension_semantics = [], scalar_prefetch = 0 : i64, scratch_operands = 1 : i64, tpu.core_type = #tpu.core_type<tc>} {
    %c0 = arith.constant 0 : index
    %c0_0 = arith.constant 0 : index
    %c0_1 = arith.constant 0 : index
    %c0_2 = arith.constant 0 : index
    %c0_3 = arith.constant 0 : index
    %0 = vector.load %arg0[%c0, %c0_0, %c0_1, %c0_2, %c0_3] : memref<1x2x10x10x8xf32, #tpu.memory_space<vmem>>, vector<1x2x8x8x8xf32>
    %1 = vector.shape_cast %0 : vector<1x2x8x8x8xf32> to vector<2x8x8x8xf32>
    %2 = vector.shape_cast %1 : vector<2x8x8x8xf32> to vector<128x8xf32>
    %c0_4 = arith.constant 0 : index
    %c0_5 = arith.constant 0 : index
    %c0_6 = arith.constant 0 : index
    %c1 = arith.constant 1 : index
    %c0_7 = arith.constant 0 : index
    %3 = vector.load %arg0[%c0_4, %c0_5, %c0_6, %c1, %c0_7] : memref<1x2x10x10x8xf32, #tpu.memory_space<vmem>>, vector<1x2x8x8x8xf32>
    %4 = vector.shape_cast %3 : vector<1x2x8x8x8xf32> to vector<2x8x8x8xf32>
    %5 = vector.shape_cast %4 : vector<2x8x8x8xf32> to vector<128x8xf32>
    %c0_8 = arith.constant 0 : index
    %c0_9 = arith.constant 0 : index
    %c0_10 = arith.constant 0 : index
    %c2 = arith.constant 2 : index
    %c0_11 = arith.constant 0 : index
    %6 = vector.load %arg0[%c0_8, %c0_9, %c0_10, %c2, %c0_11] : memref<1x2x10x10x8xf32, #tpu.memory_space<vmem>>, vector<1x2x8x8x8xf32>
    %7 = vector.shape_cast %6 : vector<1x2x8x8x8xf32> to vector<2x8x8x8xf32>
    %8 = vector.shape_cast %7 : vector<2x8x8x8xf32> to vector<128x8xf32>
    %c0_12 = arith.constant 0 : index
    %c0_13 = arith.constant 0 : index
    %c1_14 = arith.constant 1 : index
    %c0_15 = arith.constant 0 : index
    %c0_16 = arith.constant 0 : index
    %9 = vector.load %arg0[%c0_12, %c0_13, %c1_14, %c0_15, %c0_16] : memref<1x2x10x10x8xf32, #tpu.memory_space<vmem>>, vector<1x2x8x8x8xf32>
    %10 = vector.shape_cast %9 : vector<1x2x8x8x8xf32> to vector<2x8x8x8xf32>
    %11 = vector.shape_cast %10 : vector<2x8x8x8xf32> to vector<128x8xf32>
    %c0_17 = arith.constant 0 : index
    %c0_18 = arith.constant 0 : index
    %c1_19 = arith.constant 1 : index
    %c1_20 = arith.constant 1 : index
    %c0_21 = arith.constant 0 : index
    %12 = vector.load %arg0[%c0_17, %c0_18, %c1_19, %c1_20, %c0_21] : memref<1x2x10x10x8xf32, #tpu.memory_space<vmem>>, vector<1x2x8x8x8xf32>
    %13 = vector.shape_cast %12 : vector<1x2x8x8x8xf32> to vector<2x8x8x8xf32>
    %14 = vector.shape_cast %13 : vector<2x8x8x8xf32> to vector<128x8xf32>
    %c0_22 = arith.constant 0 : index
    %c0_23 = arith.constant 0 : index
    %c1_24 = arith.constant 1 : index
    %c2_25 = arith.constant 2 : index
    %c0_26 = arith.constant 0 : index
    %15 = vector.load %arg0[%c0_22, %c0_23, %c1_24, %c2_25, %c0_26] : memref<1x2x10x10x8xf32, #tpu.memory_space<vmem>>, vector<1x2x8x8x8xf32>
    %16 = vector.shape_cast %15 : vector<1x2x8x8x8xf32> to vector<2x8x8x8xf32>
    %17 = vector.shape_cast %16 : vector<2x8x8x8xf32> to vector<128x8xf32>
    %c0_27 = arith.constant 0 : index
    %c0_28 = arith.constant 0 : index
    %c2_29 = arith.constant 2 : index
    %c0_30 = arith.constant 0 : index
    %c0_31 = arith.constant 0 : index
    %18 = vector.load %arg0[%c0_27, %c0_28, %c2_29, %c0_30, %c0_31] : memref<1x2x10x10x8xf32, #tpu.memory_space<vmem>>, vector<1x2x8x8x8xf32>
    %19 = vector.shape_cast %18 : vector<1x2x8x8x8xf32> to vector<2x8x8x8xf32>
    %20 = vector.shape_cast %19 : vector<2x8x8x8xf32> to vector<128x8xf32>
    %c0_32 = arith.constant 0 : index
    %c0_33 = arith.constant 0 : index
    %c2_34 = arith.constant 2 : index
    %c1_35 = arith.constant 1 : index
    %c0_36 = arith.constant 0 : index
    %21 = vector.load %arg0[%c0_32, %c0_33, %c2_34, %c1_35, %c0_36] : memref<1x2x10x10x8xf32, #tpu.memory_space<vmem>>, vector<1x2x8x8x8xf32>
    %22 = vector.shape_cast %21 : vector<1x2x8x8x8xf32> to vector<2x8x8x8xf32>
    %23 = vector.shape_cast %22 : vector<2x8x8x8xf32> to vector<128x8xf32>
    %c0_37 = arith.constant 0 : index
    %c0_38 = arith.constant 0 : index
    %c2_39 = arith.constant 2 : index
    %c2_40 = arith.constant 2 : index
    %c0_41 = arith.constant 0 : index
    %24 = vector.load %arg0[%c0_37, %c0_38, %c2_39, %c2_40, %c0_41] : memref<1x2x10x10x8xf32, #tpu.memory_space<vmem>>, vector<1x2x8x8x8xf32>
    %25 = vector.shape_cast %24 : vector<1x2x8x8x8xf32> to vector<2x8x8x8xf32>
    %26 = vector.shape_cast %25 : vector<2x8x8x8xf32> to vector<128x8xf32>
    %cst = arith.constant 0.000000e+00 : f32
    %27 = vector.broadcast %cst : f32 to vector<128x8xf32>
    %28 = arith.truncf %2 : vector<128x8xf32> to vector<128x8xbf16>
    %c0_42 = arith.constant 0 : index
    %c0_43 = arith.constant 0 : index
    %c0_44 = arith.constant 0 : index
    %29 = vector.load %arg1[%c0_42, %c0_43, %c0_44] : memref<9x8x8xbf16, #tpu.memory_space<vmem>>, vector<1x8x8xbf16>
    %30 = vector.shape_cast %29 : vector<1x8x8xbf16> to vector<8x8xbf16>
    %cst_45 = arith.constant dense<0.000000e+00> : vector<128x8xf32>
    %31 = tpu.matmul %28, %30, %cst_45 {dimension_numbers = #tpu.dot_dimension_numbers<[1], [0], [0], [1], [0, 0, 1, 1], [], []>} : vector<128x8xbf16>, vector<8x8xbf16>, vector<128x8xf32> -> vector<128x8xf32>
    %32 = arith.addf %27, %31 : vector<128x8xf32>
    %33 = arith.truncf %5 : vector<128x8xf32> to vector<128x8xbf16>
    %c1_46 = arith.constant 1 : index
    %c0_47 = arith.constant 0 : index
    %c0_48 = arith.constant 0 : index
    %34 = vector.load %arg1[%c1_46, %c0_47, %c0_48] : memref<9x8x8xbf16, #tpu.memory_space<vmem>>, vector<1x8x8xbf16>
    %35 = vector.shape_cast %34 : vector<1x8x8xbf16> to vector<8x8xbf16>
    %cst_49 = arith.constant dense<0.000000e+00> : vector<128x8xf32>
    %36 = tpu.matmul %33, %35, %cst_49 {dimension_numbers = #tpu.dot_dimension_numbers<[1], [0], [0], [1], [0, 0, 1, 1], [], []>} : vector<128x8xbf16>, vector<8x8xbf16>, vector<128x8xf32> -> vector<128x8xf32>
    %37 = arith.addf %32, %36 : vector<128x8xf32>
    %38 = arith.truncf %8 : vector<128x8xf32> to vector<128x8xbf16>
    %c2_50 = arith.constant 2 : index
    %c0_51 = arith.constant 0 : index
    %c0_52 = arith.constant 0 : index
    %39 = vector.load %arg1[%c2_50, %c0_51, %c0_52] : memref<9x8x8xbf16, #tpu.memory_space<vmem>>, vector<1x8x8xbf16>
    %40 = vector.shape_cast %39 : vector<1x8x8xbf16> to vector<8x8xbf16>
    %cst_53 = arith.constant dense<0.000000e+00> : vector<128x8xf32>
    %41 = tpu.matmul %38, %40, %cst_53 {dimension_numbers = #tpu.dot_dimension_numbers<[1], [0], [0], [1], [0, 0, 1, 1], [], []>} : vector<128x8xbf16>, vector<8x8xbf16>, vector<128x8xf32> -> vector<128x8xf32>
    %42 = arith.addf %37, %41 : vector<128x8xf32>
    %43 = arith.truncf %11 : vector<128x8xf32> to vector<128x8xbf16>
    %c3 = arith.constant 3 : index
    %c0_54 = arith.constant 0 : index
    %c0_55 = arith.constant 0 : index
    %44 = vector.load %arg1[%c3, %c0_54, %c0_55] : memref<9x8x8xbf16, #tpu.memory_space<vmem>>, vector<1x8x8xbf16>
    %45 = vector.shape_cast %44 : vector<1x8x8xbf16> to vector<8x8xbf16>
    %cst_56 = arith.constant dense<0.000000e+00> : vector<128x8xf32>
    %46 = tpu.matmul %43, %45, %cst_56 {dimension_numbers = #tpu.dot_dimension_numbers<[1], [0], [0], [1], [0, 0, 1, 1], [], []>} : vector<128x8xbf16>, vector<8x8xbf16>, vector<128x8xf32> -> vector<128x8xf32>
    %47 = arith.addf %42, %46 : vector<128x8xf32>
    %48 = arith.truncf %14 : vector<128x8xf32> to vector<128x8xbf16>
    %c4 = arith.constant 4 : index
    %c0_57 = arith.constant 0 : index
    %c0_58 = arith.constant 0 : index
    %49 = vector.load %arg1[%c4, %c0_57, %c0_58] : memref<9x8x8xbf16, #tpu.memory_space<vmem>>, vector<1x8x8xbf16>
    %50 = vector.shape_cast %49 : vector<1x8x8xbf16> to vector<8x8xbf16>
    %cst_59 = arith.constant dense<0.000000e+00> : vector<128x8xf32>
    %51 = tpu.matmul %48, %50, %cst_59 {dimension_numbers = #tpu.dot_dimension_numbers<[1], [0], [0], [1], [0, 0, 1, 1], [], []>} : vector<128x8xbf16>, vector<8x8xbf16>, vector<128x8xf32> -> vector<128x8xf32>
    %52 = arith.addf %47, %51 : vector<128x8xf32>
    %53 = arith.truncf %17 : vector<128x8xf32> to vector<128x8xbf16>
    %c5 = arith.constant 5 : index
    %c0_60 = arith.constant 0 : index
    %c0_61 = arith.constant 0 : index
    %54 = vector.load %arg1[%c5, %c0_60, %c0_61] : memref<9x8x8xbf16, #tpu.memory_space<vmem>>, vector<1x8x8xbf16>
    %55 = vector.shape_cast %54 : vector<1x8x8xbf16> to vector<8x8xbf16>
    %cst_62 = arith.constant dense<0.000000e+00> : vector<128x8xf32>
    %56 = tpu.matmul %53, %55, %cst_62 {dimension_numbers = #tpu.dot_dimension_numbers<[1], [0], [0], [1], [0, 0, 1, 1], [], []>} : vector<128x8xbf16>, vector<8x8xbf16>, vector<128x8xf32> -> vector<128x8xf32>
    %57 = arith.addf %52, %56 : vector<128x8xf32>
    %58 = arith.truncf %20 : vector<128x8xf32> to vector<128x8xbf16>
    %c6 = arith.constant 6 : index
    %c0_63 = arith.constant 0 : index
    %c0_64 = arith.constant 0 : index
    %59 = vector.load %arg1[%c6, %c0_63, %c0_64] : memref<9x8x8xbf16, #tpu.memory_space<vmem>>, vector<1x8x8xbf16>
    %60 = vector.shape_cast %59 : vector<1x8x8xbf16> to vector<8x8xbf16>
    %cst_65 = arith.constant dense<0.000000e+00> : vector<128x8xf32>
    %61 = tpu.matmul %58, %60, %cst_65 {dimension_numbers = #tpu.dot_dimension_numbers<[1], [0], [0], [1], [0, 0, 1, 1], [], []>} : vector<128x8xbf16>, vector<8x8xbf16>, vector<128x8xf32> -> vector<128x8xf32>
    %62 = arith.addf %57, %61 : vector<128x8xf32>
    %63 = arith.truncf %23 : vector<128x8xf32> to vector<128x8xbf16>
    %c7 = arith.constant 7 : index
    %c0_66 = arith.constant 0 : index
    %c0_67 = arith.constant 0 : index
    %64 = vector.load %arg1[%c7, %c0_66, %c0_67] : memref<9x8x8xbf16, #tpu.memory_space<vmem>>, vector<1x8x8xbf16>
    %65 = vector.shape_cast %64 : vector<1x8x8xbf16> to vector<8x8xbf16>
    %cst_68 = arith.constant dense<0.000000e+00> : vector<128x8xf32>
    %66 = tpu.matmul %63, %65, %cst_68 {dimension_numbers = #tpu.dot_dimension_numbers<[1], [0], [0], [1], [0, 0, 1, 1], [], []>} : vector<128x8xbf16>, vector<8x8xbf16>, vector<128x8xf32> -> vector<128x8xf32>
    %67 = arith.addf %62, %66 : vector<128x8xf32>
    %68 = arith.truncf %26 : vector<128x8xf32> to vector<128x8xbf16>
    %c8 = arith.constant 8 : index
    %c0_69 = arith.constant 0 : index
    %c0_70 = arith.constant 0 : index
    %69 = vector.load %arg1[%c8, %c0_69, %c0_70] : memref<9x8x8xbf16, #tpu.memory_space<vmem>>, vector<1x8x8xbf16>
    %70 = vector.shape_cast %69 : vector<1x8x8xbf16> to vector<8x8xbf16>
    %cst_71 = arith.constant dense<0.000000e+00> : vector<128x8xf32>
    %71 = tpu.matmul %68, %70, %cst_71 {dimension_numbers = #tpu.dot_dimension_numbers<[1], [0], [0], [1], [0, 0, 1, 1], [], []>} : vector<128x8xbf16>, vector<8x8xbf16>, vector<128x8xf32> -> vector<128x8xf32>
    %72 = arith.addf %67, %71 : vector<128x8xf32>
    %c0_72 = arith.constant 0 : index
    %c0_73 = arith.constant 0 : index
    %73 = vector.load %arg2[%c0_72, %c0_73] : memref<1x8xf32, #tpu.memory_space<vmem>>, vector<1x8xf32>
    %74 = vector.broadcast %73 : vector<1x8xf32> to vector<128x8xf32>
    %75 = arith.addf %72, %74 : vector<128x8xf32>
    %c0_74 = arith.constant 0 : index
    %c0_75 = arith.constant 0 : index
    %76 = vector.load %arg3[%c0_74, %c0_75] : memref<1x8xf32, #tpu.memory_space<vmem>>, vector<1x8xf32>
    %c0_76 = arith.constant 0 : index
    %c0_77 = arith.constant 0 : index
    %77 = vector.load %arg4[%c0_76, %c0_77] : memref<1x8xf32, #tpu.memory_space<vmem>>, vector<1x8xf32>
    %cst_78 = arith.constant dense<0.000000e+00> : vector<8xf32>
    %78 = vector.multi_reduction <add>, %75, %cst_78 [0] : vector<128x8xf32> to vector<8xf32>
    %79 = vector.shape_cast %78 : vector<8xf32> to vector<1x8xf32>
    %cst_79 = arith.constant 1.280000e+02 : f32
    %80 = vector.broadcast %cst_79 : f32 to vector<1x8xf32>
    %81 = arith.divf %79, %80 : vector<1x8xf32>
    %82 = vector.broadcast %81 : vector<1x8xf32> to vector<128x8xf32>
    %83 = arith.subf %75, %82 : vector<128x8xf32>
    %84 = arith.mulf %83, %83 : vector<128x8xf32>
    %cst_80 = arith.constant dense<0.000000e+00> : vector<8xf32>
    %85 = vector.multi_reduction <add>, %84, %cst_80 [0] : vector<128x8xf32> to vector<8xf32>
    %86 = vector.shape_cast %85 : vector<8xf32> to vector<1x8xf32>
    %cst_81 = arith.constant 1.280000e+02 : f32
    %87 = vector.broadcast %cst_81 : f32 to vector<1x8xf32>
    %88 = arith.divf %86, %87 : vector<1x8xf32>
    %89 = vector.broadcast %81 : vector<1x8xf32> to vector<128x8xf32>
    %90 = arith.subf %75, %89 : vector<128x8xf32>
    %cst_82 = arith.constant 9.99999974E-6 : f32
    %91 = vector.broadcast %cst_82 : f32 to vector<1x8xf32>
    %92 = arith.addf %88, %91 : vector<1x8xf32>
    %93 = math.rsqrt %92 : vector<1x8xf32>
    %94 = vector.broadcast %93 : vector<1x8xf32> to vector<128x8xf32>
    %95 = arith.mulf %90, %94 : vector<128x8xf32>
    %96 = vector.broadcast %76 : vector<1x8xf32> to vector<128x8xf32>
    %97 = arith.mulf %95, %96 : vector<128x8xf32>
    %98 = vector.broadcast %77 : vector<1x8xf32> to vector<128x8xf32>
    %99 = arith.addf %97, %98 : vector<128x8xf32>
    %cst_83 = arith.constant 0.000000e+00 : f32
    %100 = vector.broadcast %cst_83 : f32 to vector<128x8xf32>
    %101 = arith.cmpf ogt, %99, %100 : vector<128x8xf32>
    %102 = math.exp %99 : vector<128x8xf32>
    %cst_84 = arith.constant 1.000000e+00 : f32
    %103 = vector.broadcast %cst_84 : f32 to vector<128x8xf32>
    %104 = arith.subf %102, %103 : vector<128x8xf32>
    %105 = arith.select %101, %99, %104 : vector<128x8xi1>, vector<128x8xf32>
    %cst_85 = arith.constant 0.000000e+00 : f32
    %106 = vector.broadcast %cst_85 : f32 to vector<2x10x10x8xf32>
    %c0_86 = arith.constant 0 : index
    %c0_87 = arith.constant 0 : index
    %c0_88 = arith.constant 0 : index
    %c0_89 = arith.constant 0 : index
    %107 = vector.load %arg14[%c0_86, %c0_87, %c0_88, %c0_89] : memref<2x10x10x8xf32, #tpu.memory_space<vmem>>, vector<2x10x10x8xf32>
    tpu.vector_store %arg14[%c0_86, %c0_87, %c0_88, %c0_89], %106 {strides = array<i32>} : memref<2x10x10x8xf32, #tpu.memory_space<vmem>>, vector<2x10x10x8xf32>,
    %108 = vector.shape_cast %105 : vector<128x8xf32> to vector<2x8x8x8xf32>
    %c0_90 = arith.constant 0 : index
    %c1_91 = arith.constant 1 : index
    %c1_92 = arith.constant 1 : index
    %c0_93 = arith.constant 0 : index
    %109 = vector.load %arg14[%c0_90, %c1_91, %c1_92, %c0_93] : memref<2x10x10x8xf32, #tpu.memory_space<vmem>>, vector<2x8x8x8xf32>
    tpu.vector_store %arg14[%c0_90, %c1_91, %c1_92, %c0_93], %108 {strides = array<i32>} : memref<2x10x10x8xf32, #tpu.memory_space<vmem>>, vector<2x8x8x8xf32>,
    %cst_94 = arith.constant 0.000000e+00 : f32
    %110 = vector.broadcast %cst_94 : f32 to vector<128x8xf32>
    %c0_95 = arith.constant 0 : index
    %c0_96 = arith.constant 0 : index
    %c0_97 = arith.constant 0 : index
    %c0_98 = arith.constant 0 : index
    %111 = vector.load %arg14[%c0_95, %c0_96, %c0_97, %c0_98] : memref<2x10x10x8xf32, #tpu.memory_space<vmem>>, vector<2x8x8x8xf32>
    %112 = vector.shape_cast %111 : vector<2x8x8x8xf32> to vector<128x8xf32>
    %113 = arith.truncf %112 : vector<128x8xf32> to vector<128x8xbf16>
    %c0_99 = arith.constant 0 : index
    %c0_100 = arith.constant 0 : index
    %c0_101 = arith.constant 0 : index
    %114 = vector.load %arg5[%c0_99, %c0_100, %c0_101] : memref<9x8x8xbf16, #tpu.memory_space<vmem>>, vector<1x8x8xbf16>
    %115 = vector.shape_cast %114 : vector<1x8x8xbf16> to vector<8x8xbf16>
    %cst_102 = arith.constant dense<0.000000e+00> : vector<128x8xf32>
    %116 = tpu.matmul %113, %115, %cst_102 {dimension_numbers = #tpu.dot_dimension_numbers<[1], [0], [0], [1], [0, 0, 1, 1], [], []>} : vector<128x8xbf16>, vector<8x8xbf16>, vector<128x8xf32> -> vector<128x8xf32>
    %117 = arith.addf %110, %116 : vector<128x8xf32>
    %c0_103 = arith.constant 0 : index
    %c0_104 = arith.constant 0 : index
    %c1_105 = arith.constant 1 : index
    %c0_106 = arith.constant 0 : index
    %118 = vector.load %arg14[%c0_103, %c0_104, %c1_105, %c0_106] : memref<2x10x10x8xf32, #tpu.memory_space<vmem>>, vector<2x8x8x8xf32>
    %119 = vector.shape_cast %118 : vector<2x8x8x8xf32> to vector<128x8xf32>
    %120 = arith.truncf %119 : vector<128x8xf32> to vector<128x8xbf16>
    %c1_107 = arith.constant 1 : index
    %c0_108 = arith.constant 0 : index
    %c0_109 = arith.constant 0 : index
    %121 = vector.load %arg5[%c1_107, %c0_108, %c0_109] : memref<9x8x8xbf16, #tpu.memory_space<vmem>>, vector<1x8x8xbf16>
    %122 = vector.shape_cast %121 : vector<1x8x8xbf16> to vector<8x8xbf16>
    %cst_110 = arith.constant dense<0.000000e+00> : vector<128x8xf32>
    %123 = tpu.matmul %120, %122, %cst_110 {dimension_numbers = #tpu.dot_dimension_numbers<[1], [0], [0], [1], [0, 0, 1, 1], [], []>} : vector<128x8xbf16>, vector<8x8xbf16>, vector<128x8xf32> -> vector<128x8xf32>
    %124 = arith.addf %117, %123 : vector<128x8xf32>
    %c0_111 = arith.constant 0 : index
    %c0_112 = arith.constant 0 : index
    %c2_113 = arith.constant 2 : index
    %c0_114 = arith.constant 0 : index
    %125 = vector.load %arg14[%c0_111, %c0_112, %c2_113, %c0_114] : memref<2x10x10x8xf32, #tpu.memory_space<vmem>>, vector<2x8x8x8xf32>
    %126 = vector.shape_cast %125 : vector<2x8x8x8xf32> to vector<128x8xf32>
    %127 = arith.truncf %126 : vector<128x8xf32> to vector<128x8xbf16>
    %c2_115 = arith.constant 2 : index
    %c0_116 = arith.constant 0 : index
    %c0_117 = arith.constant 0 : index
    %128 = vector.load %arg5[%c2_115, %c0_116, %c0_117] : memref<9x8x8xbf16, #tpu.memory_space<vmem>>, vector<1x8x8xbf16>
    %129 = vector.shape_cast %128 : vector<1x8x8xbf16> to vector<8x8xbf16>
    %cst_118 = arith.constant dense<0.000000e+00> : vector<128x8xf32>
    %130 = tpu.matmul %127, %129, %cst_118 {dimension_numbers = #tpu.dot_dimension_numbers<[1], [0], [0], [1], [0, 0, 1, 1], [], []>} : vector<128x8xbf16>, vector<8x8xbf16>, vector<128x8xf32> -> vector<128x8xf32>
    %131 = arith.addf %124, %130 : vector<128x8xf32>
    %c0_119 = arith.constant 0 : index
    %c1_120 = arith.constant 1 : index
    %c0_121 = arith.constant 0 : index
    %c0_122 = arith.constant 0 : index
    %132 = vector.load %arg14[%c0_119, %c1_120, %c0_121, %c0_122] : memref<2x10x10x8xf32, #tpu.memory_space<vmem>>, vector<2x8x8x8xf32>
    %133 = vector.shape_cast %132 : vector<2x8x8x8xf32> to vector<128x8xf32>
    %134 = arith.truncf %133 : vector<128x8xf32> to vector<128x8xbf16>
    %c3_123 = arith.constant 3 : index
    %c0_124 = arith.constant 0 : index
    %c0_125 = arith.constant 0 : index
    %135 = vector.load %arg5[%c3_123, %c0_124, %c0_125] : memref<9x8x8xbf16, #tpu.memory_space<vmem>>, vector<1x8x8xbf16>
    %136 = vector.shape_cast %135 : vector<1x8x8xbf16> to vector<8x8xbf16>
    %cst_126 = arith.constant dense<0.000000e+00> : vector<128x8xf32>
    %137 = tpu.matmul %134, %136, %cst_126 {dimension_numbers = #tpu.dot_dimension_numbers<[1], [0], [0], [1], [0, 0, 1, 1], [], []>} : vector<128x8xbf16>, vector<8x8xbf16>, vector<128x8xf32> -> vector<128x8xf32>
    %138 = arith.addf %131, %137 : vector<128x8xf32>
    %c0_127 = arith.constant 0 : index
    %c1_128 = arith.constant 1 : index
    %c1_129 = arith.constant 1 : index
    %c0_130 = arith.constant 0 : index
    %139 = vector.load %arg14[%c0_127, %c1_128, %c1_129, %c0_130] : memref<2x10x10x8xf32, #tpu.memory_space<vmem>>, vector<2x8x8x8xf32>
    %140 = vector.shape_cast %139 : vector<2x8x8x8xf32> to vector<128x8xf32>
    %141 = arith.truncf %140 : vector<128x8xf32> to vector<128x8xbf16>
    %c4_131 = arith.constant 4 : index
    %c0_132 = arith.constant 0 : index
    %c0_133 = arith.constant 0 : index
    %142 = vector.load %arg5[%c4_131, %c0_132, %c0_133] : memref<9x8x8xbf16, #tpu.memory_space<vmem>>, vector<1x8x8xbf16>
    %143 = vector.shape_cast %142 : vector<1x8x8xbf16> to vector<8x8xbf16>
    %cst_134 = arith.constant dense<0.000000e+00> : vector<128x8xf32>
    %144 = tpu.matmul %141, %143, %cst_134 {dimension_numbers = #tpu.dot_dimension_numbers<[1], [0], [0], [1], [0, 0, 1, 1], [], []>} : vector<128x8xbf16>, vector<8x8xbf16>, vector<128x8xf32> -> vector<128x8xf32>
    %145 = arith.addf %138, %144 : vector<128x8xf32>
    %c0_135 = arith.constant 0 : index
    %c1_136 = arith.constant 1 : index
    %c2_137 = arith.constant 2 : index
    %c0_138 = arith.constant 0 : index
    %146 = vector.load %arg14[%c0_135, %c1_136, %c2_137, %c0_138] : memref<2x10x10x8xf32, #tpu.memory_space<vmem>>, vector<2x8x8x8xf32>
    %147 = vector.shape_cast %146 : vector<2x8x8x8xf32> to vector<128x8xf32>
    %148 = arith.truncf %147 : vector<128x8xf32> to vector<128x8xbf16>
    %c5_139 = arith.constant 5 : index
    %c0_140 = arith.constant 0 : index
    %c0_141 = arith.constant 0 : index
    %149 = vector.load %arg5[%c5_139, %c0_140, %c0_141] : memref<9x8x8xbf16, #tpu.memory_space<vmem>>, vector<1x8x8xbf16>
    %150 = vector.shape_cast %149 : vector<1x8x8xbf16> to vector<8x8xbf16>
    %cst_142 = arith.constant dense<0.000000e+00> : vector<128x8xf32>
    %151 = tpu.matmul %148, %150, %cst_142 {dimension_numbers = #tpu.dot_dimension_numbers<[1], [0], [0], [1], [0, 0, 1, 1], [], []>} : vector<128x8xbf16>, vector<8x8xbf16>, vector<128x8xf32> -> vector<128x8xf32>
    %152 = arith.addf %145, %151 : vector<128x8xf32>
    %c0_143 = arith.constant 0 : index
    %c2_144 = arith.constant 2 : index
    %c0_145 = arith.constant 0 : index
    %c0_146 = arith.constant 0 : index
    %153 = vector.load %arg14[%c0_143, %c2_144, %c0_145, %c0_146] : memref<2x10x10x8xf32, #tpu.memory_space<vmem>>, vector<2x8x8x8xf32>
    %154 = vector.shape_cast %153 : vector<2x8x8x8xf32> to vector<128x8xf32>
    %155 = arith.truncf %154 : vector<128x8xf32> to vector<128x8xbf16>
    %c6_147 = arith.constant 6 : index
    %c0_148 = arith.constant 0 : index
    %c0_149 = arith.constant 0 : index
    %156 = vector.load %arg5[%c6_147, %c0_148, %c0_149] : memref<9x8x8xbf16, #tpu.memory_space<vmem>>, vector<1x8x8xbf16>
    %157 = vector.shape_cast %156 : vector<1x8x8xbf16> to vector<8x8xbf16>
    %cst_150 = arith.constant dense<0.000000e+00> : vector<128x8xf32>
    %158 = tpu.matmul %155, %157, %cst_150 {dimension_numbers = #tpu.dot_dimension_numbers<[1], [0], [0], [1], [0, 0, 1, 1], [], []>} : vector<128x8xbf16>, vector<8x8xbf16>, vector<128x8xf32> -> vector<128x8xf32>
    %159 = arith.addf %152, %158 : vector<128x8xf32>
    %c0_151 = arith.constant 0 : index
    %c2_152 = arith.constant 2 : index
    %c1_153 = arith.constant 1 : index
    %c0_154 = arith.constant 0 : index
    %160 = vector.load %arg14[%c0_151, %c2_152, %c1_153, %c0_154] : memref<2x10x10x8xf32, #tpu.memory_space<vmem>>, vector<2x8x8x8xf32>
    %161 = vector.shape_cast %160 : vector<2x8x8x8xf32> to vector<128x8xf32>
    %162 = arith.truncf %161 : vector<128x8xf32> to vector<128x8xbf16>
    %c7_155 = arith.constant 7 : index
    %c0_156 = arith.constant 0 : index
    %c0_157 = arith.constant 0 : index
    %163 = vector.load %arg5[%c7_155, %c0_156, %c0_157] : memref<9x8x8xbf16, #tpu.memory_space<vmem>>, vector<1x8x8xbf16>
    %164 = vector.shape_cast %163 : vector<1x8x8xbf16> to vector<8x8xbf16>
    %cst_158 = arith.constant dense<0.000000e+00> : vector<128x8xf32>
    %165 = tpu.matmul %162, %164, %cst_158 {dimension_numbers = #tpu.dot_dimension_numbers<[1], [0], [0], [1], [0, 0, 1, 1], [], []>} : vector<128x8xbf16>, vector<8x8xbf16>, vector<128x8xf32> -> vector<128x8xf32>
    %166 = arith.addf %159, %165 : vector<128x8xf32>
    %c0_159 = arith.constant 0 : index
    %c2_160 = arith.constant 2 : index
    %c2_161 = arith.constant 2 : index
    %c0_162 = arith.constant 0 : index
    %167 = vector.load %arg14[%c0_159, %c2_160, %c2_161, %c0_162] : memref<2x10x10x8xf32, #tpu.memory_space<vmem>>, vector<2x8x8x8xf32>
    %168 = vector.shape_cast %167 : vector<2x8x8x8xf32> to vector<128x8xf32>
    %169 = arith.truncf %168 : vector<128x8xf32> to vector<128x8xbf16>
    %c8_163 = arith.constant 8 : index
    %c0_164 = arith.constant 0 : index
    %c0_165 = arith.constant 0 : index
    %170 = vector.load %arg5[%c8_163, %c0_164, %c0_165] : memref<9x8x8xbf16, #tpu.memory_space<vmem>>, vector<1x8x8xbf16>
    %171 = vector.shape_cast %170 : vector<1x8x8xbf16> to vector<8x8xbf16>
    %cst_166 = arith.constant dense<0.000000e+00> : vector<128x8xf32>
    %172 = tpu.matmul %169, %171, %cst_166 {dimension_numbers = #tpu.dot_dimension_numbers<[1], [0], [0], [1], [0, 0, 1, 1], [], []>} : vector<128x8xbf16>, vector<8x8xbf16>, vector<128x8xf32> -> vector<128x8xf32>
    %173 = arith.addf %166, %172 : vector<128x8xf32>
    %c0_167 = arith.constant 0 : index
    %c0_168 = arith.constant 0 : index
    %174 = vector.load %arg6[%c0_167, %c0_168] : memref<1x8xf32, #tpu.memory_space<vmem>>, vector<1x8xf32>
    %175 = vector.broadcast %174 : vector<1x8xf32> to vector<128x8xf32>
    %176 = arith.addf %173, %175 : vector<128x8xf32>
    %c0_169 = arith.constant 0 : index
    %c0_170 = arith.constant 0 : index
    %177 = vector.load %arg7[%c0_169, %c0_170] : memref<1x8xf32, #tpu.memory_space<vmem>>, vector<1x8xf32>
    %c0_171 = arith.constant 0 : index
    %c0_172 = arith.constant 0 : index
    %178 = vector.load %arg8[%c0_171, %c0_172] : memref<1x8xf32, #tpu.memory_space<vmem>>, vector<1x8xf32>
    %cst_173 = arith.constant dense<0.000000e+00> : vector<8xf32>
    %179 = vector.multi_reduction <add>, %176, %cst_173 [0] : vector<128x8xf32> to vector<8xf32>
    %180 = vector.shape_cast %179 : vector<8xf32> to vector<1x8xf32>
    %cst_174 = arith.constant 1.280000e+02 : f32
    %181 = vector.broadcast %cst_174 : f32 to vector<1x8xf32>
    %182 = arith.divf %180, %181 : vector<1x8xf32>
    %183 = vector.broadcast %182 : vector<1x8xf32> to vector<128x8xf32>
    %184 = arith.subf %176, %183 : vector<128x8xf32>
    %185 = arith.mulf %184, %184 : vector<128x8xf32>
    %cst_175 = arith.constant dense<0.000000e+00> : vector<8xf32>
    %186 = vector.multi_reduction <add>, %185, %cst_175 [0] : vector<128x8xf32> to vector<8xf32>
    %187 = vector.shape_cast %186 : vector<8xf32> to vector<1x8xf32>
    %cst_176 = arith.constant 1.280000e+02 : f32
    %188 = vector.broadcast %cst_176 : f32 to vector<1x8xf32>
    %189 = arith.divf %187, %188 : vector<1x8xf32>
    %190 = vector.broadcast %182 : vector<1x8xf32> to vector<128x8xf32>
    %191 = arith.subf %176, %190 : vector<128x8xf32>
    %cst_177 = arith.constant 9.99999974E-6 : f32
    %192 = vector.broadcast %cst_177 : f32 to vector<1x8xf32>
    %193 = arith.addf %189, %192 : vector<1x8xf32>
    %194 = math.rsqrt %193 : vector<1x8xf32>
    %195 = vector.broadcast %194 : vector<1x8xf32> to vector<128x8xf32>
    %196 = arith.mulf %191, %195 : vector<128x8xf32>
    %197 = vector.broadcast %177 : vector<1x8xf32> to vector<128x8xf32>
    %198 = arith.mulf %196, %197 : vector<128x8xf32>
    %199 = vector.broadcast %178 : vector<1x8xf32> to vector<128x8xf32>
    %200 = arith.addf %198, %199 : vector<128x8xf32>
    %cst_178 = arith.constant 0.000000e+00 : f32
    %201 = vector.broadcast %cst_178 : f32 to vector<128x8xf32>
    %202 = arith.cmpf ogt, %200, %201 : vector<128x8xf32>
    %203 = math.exp %200 : vector<128x8xf32>
    %cst_179 = arith.constant 1.000000e+00 : f32
    %204 = vector.broadcast %cst_179 : f32 to vector<128x8xf32>
    %205 = arith.subf %203, %204 : vector<128x8xf32>
    %206 = arith.select %202, %200, %205 : vector<128x8xi1>, vector<128x8xf32>
    %207 = vector.shape_cast %206 : vector<128x8xf32> to vector<2x64x8xf32>
    %cst_180 = arith.constant dense<0.000000e+00> : vector<2x8xf32>
    %208 = vector.multi_reduction <add>, %207, %cst_180 [1] : vector<2x64x8xf32> to vector<2x8xf32>
    %cst_181 = arith.constant 6.400000e+01 : f32
    %209 = vector.broadcast %cst_181 : f32 to vector<2x8xf32>
    %210 = arith.divf %208, %209 : vector<2x8xf32>
    %211 = arith.truncf %210 : vector<2x8xf32> to vector<2x8xbf16>
    %c0_182 = arith.constant 0 : index
    %c0_183 = arith.constant 0 : index
    %212 = vector.load %arg9[%c0_182, %c0_183] : memref<8x2xbf16, #tpu.memory_space<vmem>>, vector<8x2xbf16>
    %cst_184 = arith.constant dense<0.000000e+00> : vector<2x2xf32>
    %213 = tpu.matmul %211, %212, %cst_184 {dimension_numbers = #tpu.dot_dimension_numbers<[1], [0], [0], [1], [0, 0, 1, 1], [], []>} : vector<2x8xbf16>, vector<8x2xbf16>, vector<2x2xf32> -> vector<2x2xf32>
    %c0_185 = arith.constant 0 : index
    %c0_186 = arith.constant 0 : index
    %214 = vector.load %arg10[%c0_185, %c0_186] : memref<1x2xf32, #tpu.memory_space<vmem>>, vector<1x2xf32>
    %215 = vector.broadcast %214 : vector<1x2xf32> to vector<2x2xf32>
    %216 = arith.addf %213, %215 : vector<2x2xf32>
    %cst_187 = arith.constant 0.000000e+00 : f32
    %217 = vector.broadcast %cst_187 : f32 to vector<2x2xf32>
    %218 = arith.cmpf ogt, %216, %217 : vector<2x2xf32>
    %219 = math.exp %216 : vector<2x2xf32>
    %cst_188 = arith.constant 1.000000e+00 : f32
    %220 = vector.broadcast %cst_188 : f32 to vector<2x2xf32>
    %221 = arith.subf %219, %220 : vector<2x2xf32>
    %222 = arith.select %218, %216, %221 : vector<2x2xi1>, vector<2x2xf32>
    %223 = arith.truncf %222 : vector<2x2xf32> to vector<2x2xbf16>
    %c0_189 = arith.constant 0 : index
    %c0_190 = arith.constant 0 : index
    %224 = vector.load %arg11[%c0_189, %c0_190] : memref<2x8xbf16, #tpu.memory_space<vmem>>, vector<2x8xbf16>
    %cst_191 = arith.constant dense<0.000000e+00> : vector<2x8xf32>
    %225 = tpu.matmul %223, %224, %cst_191 {dimension_numbers = #tpu.dot_dimension_numbers<[1], [0], [0], [1], [0, 0, 1, 1], [], []>} : vector<2x2xbf16>, vector<2x8xbf16>, vector<2x8xf32> -> vector<2x8xf32>
    %c0_192 = arith.constant 0 : index
    %c0_193 = arith.constant 0 : index
    %226 = vector.load %arg12[%c0_192, %c0_193] : memref<1x8xf32, #tpu.memory_space<vmem>>, vector<1x8xf32>
    %227 = vector.broadcast %226 : vector<1x8xf32> to vector<2x8xf32>
    %228 = arith.addf %225, %227 : vector<2x8xf32>
    %cst_194 = arith.constant 0.000000e+00 : f32
    %229 = vector.broadcast %cst_194 : f32 to vector<2x8xf32>
    %230 = arith.subf %229, %228 : vector<2x8xf32>
    %231 = math.exp %230 : vector<2x8xf32>
    %cst_195 = arith.constant 1.000000e+00 : f32
    %232 = vector.broadcast %cst_195 : f32 to vector<2x8xf32>
    %233 = arith.addf %232, %231 : vector<2x8xf32>
    %234 = tpu.reciprocal %233 {approx = true} : vector<2x8xf32> -> vector<2x8xf32>
    %235 = vector.shape_cast %234 : vector<2x8xf32> to vector<2x1x8xf32>
    %236 = vector.broadcast %235 : vector<2x1x8xf32> to vector<2x64x8xf32>
    %237 = arith.mulf %207, %236 : vector<2x64x8xf32>
    %238 = vector.shape_cast %237 : vector<2x64x8xf32> to vector<128x8xf32>
    %239 = arith.addf %238, %14 : vector<128x8xf32>
    %cst_196 = arith.constant 0.000000e+00 : f32
    %240 = vector.broadcast %cst_196 : f32 to vector<128x8xf32>
    %241 = arith.cmpf ogt, %239, %240 : vector<128x8xf32>
    %242 = math.exp %239 : vector<128x8xf32>
    %cst_197 = arith.constant 1.000000e+00 : f32
    %243 = vector.broadcast %cst_197 : f32 to vector<128x8xf32>
    %244 = arith.subf %242, %243 : vector<128x8xf32>
    %245 = arith.select %241, %239, %244 : vector<128x8xi1>, vector<128x8xf32>
    %c0_198 = arith.constant 0 : index
    %c0_199 = arith.constant 0 : index
    %246 = vector.load %arg13[%c0_198, %c0_199] : memref<128x8xf32, #tpu.memory_space<vmem>>, vector<128x8xf32>
    tpu.vector_store %arg13[%c0_198, %c0_199], %245 {strides = array<i32>} : memref<128x8xf32, #tpu.memory_space<vmem>>, vector<128x8xf32>,
    return
  }
}

</mosaic_0001>

<llo_original>
// kernel: _lambda_.3
$region0: #{_lambda_.3}
  #allocation0 [shape = 'u32[]', space=smem, size = 0x4, offset = 0x4, fixed_abs, tag = 'smem constant byte address 0x4 - core index']
  #allocation1 [shape = 'u32[72,128]{1,0:T(1,128)}', space=vmem, size = 0x9000, scoped, tag = 'internal scratch']
  #allocation2 [shape = 'f32[2,10,10,8]{3,2,1,0:T(8,128)}', space=vmem, size = 0x28000, scoped, tag = 'scratch operand']
  %s0 = inlined_call_operand.vmem [shape: f32[1,2,10,10,8], index: 0, kind: input, shape index: {}]
  %s1 = inlined_call_operand.vmem [shape: bf16[9,8,8], index: 1, kind: input, shape index: {}]
  %s2 = inlined_call_operand.vmem [shape: f32[1,8], index: 2, kind: input, shape index: {}]
  %s3 = inlined_call_operand.vmem [shape: f32[1,8], index: 3, kind: input, shape index: {}, may-alias: {3,7}]
  %s4 = inlined_call_operand.vmem [shape: f32[1,8], index: 4, kind: input, shape index: {}, may-alias: {4,8,12}]
  %s5 = inlined_call_operand.vmem [shape: bf16[9,8,8], index: 5, kind: input, shape index: {}]
  %s6 = inlined_call_operand.vmem [shape: f32[1,8], index: 6, kind: input, shape index: {}]
  %s7 = inlined_call_operand.vmem [shape: f32[1,8], index: 7, kind: input, shape index: {}, may-alias: {3,7}]
  %s8 = inlined_call_operand.vmem [shape: f32[1,8], index: 8, kind: input, shape index: {}, may-alias: {4,8,12}]
  %s9 = inlined_call_operand.vmem [shape: bf16[8,2], index: 9, kind: input, shape index: {}]
  %s10 = inlined_call_operand.vmem [shape: f32[1,2], index: 10, kind: input, shape index: {}]
  %s11 = inlined_call_operand.vmem [shape: bf16[2,8], index: 11, kind: input, shape index: {}]
  %s12 = inlined_call_operand.vmem [shape: f32[1,8], index: 12, kind: input, shape index: {}, may-alias: {4,8,12}]
  %s13 = inlined_call_operand.vmem [shape: f32[128,8], index: 13, kind: output, shape index: {}]
  %s14 = sld [smem:[#allocation0]]
  $region62: #{_lambda_.3} parent=0
    _
  %s16 = ssub.s32 1, %s14
  %s17 = scalar_select 0, %s16, %s14
  // Predicated region
  $region2: #{_lambda_.3} parent=0 // pred_check
    _
  $region3: #{_lambda_.3} parent=0 // pred_check_branch
    %19 = sbr.rel (0) target = $region5
  $region4: #{_lambda_.3} parent=0 // pred_region
    _
  $region5: #{_lambda_.3} parent=0 // pred_fallthru
    _
  // Predicated region
  $region6: #{_lambda_.3} parent=0 // pred_check
    _
  $region7: #{_lambda_.3} parent=0 // pred_check_branch
    %21 = sbr.rel (0) target = $region9
  $region8: #{_lambda_.3} parent=0 // pred_region
    _
  $region9: #{_lambda_.3} parent=0 // pred_fallthru
    _
  // Predicated region
  $region10: #{_lambda_.3} parent=0 // pred_check
    _
  $region11: #{_lambda_.3} parent=0 // pred_check_branch
    %23 = sbr.rel (0) target = $region13
  $region12: #{_lambda_.3} parent=0 // pred_region
    _
  $region13: #{_lambda_.3} parent=0 // pred_fallthru
    _
  // Predicated region
  $region14: #{_lambda_.3} parent=0 // pred_check
    _
  $region15: #{_lambda_.3} parent=0 // pred_check_branch
    %25 = sbr.rel (0) target = $region17
  $region16: #{_lambda_.3} parent=0 // pred_region
    _
  $region17: #{_lambda_.3} parent=0 // pred_fallthru
    _
  // Predicated region
  $region18: #{_lambda_.3} parent=0 // pred_check
    _
  $region19: #{_lambda_.3} parent=0 // pred_check_branch
    %27 = sbr.rel (0) target = $region21
  $region20: #{_lambda_.3} parent=0 // pred_region
    _
  $region21: #{_lambda_.3} parent=0 // pred_fallthru
    _
  // Predicated region
  $region22: #{_lambda_.3} parent=0 // pred_check
    _
  $region23: #{_lambda_.3} parent=0 // pred_check_branch
    %29 = sbr.rel (0) target = $region25
  $region24: #{_lambda_.3} parent=0 // pred_region
    _
  $region25: #{_lambda_.3} parent=0 // pred_fallthru
    _
  // Predicated region
  $region26: #{_lambda_.3} parent=0 // pred_check
    _
  $region27: #{_lambda_.3} parent=0 // pred_check_branch
    %31 = sbr.rel (0) target = $region29
  $region28: #{_lambda_.3} parent=0 // pred_region
    _
  $region29: #{_lambda_.3} parent=0 // pred_fallthru
    _
  // Predicated region
  $region30: #{_lambda_.3} parent=0 // pred_check
    _
  $region31: #{_lambda_.3} parent=0 // pred_check_branch
    %33 = sbr.rel (0) target = $region33
  $region32: #{_lambda_.3} parent=0 // pred_region
    _
  $region33: #{_lambda_.3} parent=0 // pred_fallthru
    _
  // Predicated region
  $region34: #{_lambda_.3} parent=0 // pred_check
    _
  $region35: #{_lambda_.3} parent=0 // pred_check_branch
    %35 = sbr.rel (0) target = $region37
  $region36: #{_lambda_.3} parent=0 // pred_region
    _
  $region37: #{_lambda_.3} parent=0 // pred_fallthru
    _
  // Predicated region
  $region38: #{_lambda_.3} parent=0 // pred_check
    _
  $region39: #{_lambda_.3} parent=0 // pred_check_branch
    %37 = sbr.rel (0) target = $region41
  $region40: #{_lambda_.3} parent=0 // pred_region
    _
  $region41: #{_lambda_.3} parent=0 // pred_fallthru
    _
  // Predicated region
  $region42: #{_lambda_.3} parent=0 // pred_check
    _
  $region43: #{_lambda_.3} parent=0 // pred_check_branch
    %39 = sbr.rel (0) target = $region45
  $region44: #{_lambda_.3} parent=0 // pred_region
    _
  $region45: #{_lambda_.3} parent=0 // pred_fallthru
    _
  // Predicated region
  $region46: #{_lambda_.3} parent=0 // pred_check
    _
  $region47: #{_lambda_.3} parent=0 // pred_check_branch
    %41 = sbr.rel (0) target = $region49
  $region48: #{_lambda_.3} parent=0 // pred_region
    _
  $region49: #{_lambda_.3} parent=0 // pred_fallthru
    _
  // Predicated region
  $region50: #{_lambda_.3} parent=0 // pred_check
    _
  $region51: #{_lambda_.3} parent=0 // pred_check_branch
    %43 = sbr.rel (0) target = $region53
  $region52: #{_lambda_.3} parent=0 // pred_region
    _
  $region53: #{_lambda_.3} parent=0 // pred_fallthru
    _
  %v45 = vld [vmem:[%s0] sm:$0xff]
  %v46 = vld [vmem:[%s0 + $0x10] sm:$0xff]
  %v47 = vld [vmem:[%s0 + $0x20] sm:$0xff]
  %v48 = vld [vmem:[%s0 + $0x30] sm:$0xff]
  %v49 = vld [vmem:[%s0 + $0x40] sm:$0xff]
  %v50 = vld [vmem:[%s0 + $0x50] sm:$0xff]
  %v51 = vld [vmem:[%s0 + $0x60] sm:$0xff]
  %v52 = vld [vmem:[%s0 + $0x70] sm:$0xff]
  %v53 = vld [vmem:[%s0 + $0xa0] sm:$0xff]
  %v54 = vld [vmem:[%s0 + $0xb0] sm:$0xff]
  %v55 = vld [vmem:[%s0 + $0xc0] sm:$0xff]
  %v56 = vld [vmem:[%s0 + $0xd0] sm:$0xff]
  %v57 = vld [vmem:[%s0 + $0xe0] sm:$0xff]
  %v58 = vld [vmem:[%s0 + $0xf0] sm:$0xff]
  %v59 = vld [vmem:[%s0 + $0x100] sm:$0xff]
  %v60 = vld [vmem:[%s0 + $0x110] sm:$0xff]
  %v61 = vld [vmem:[%s0 + $0x1] sm:$0xff]
  %v62 = vld [vmem:[%s0 + $0x11] sm:$0xff]
  %v63 = vld [vmem:[%s0 + $0x21] sm:$0xff]
  %v64 = vld [vmem:[%s0 + $0x31] sm:$0xff]
  %v65 = vld [vmem:[%s0 + $0x41] sm:$0xff]
  %v66 = vld [vmem:[%s0 + $0x51] sm:$0xff]
  %v67 = vld [vmem:[%s0 + $0x61] sm:$0xff]
  %v68 = vld [vmem:[%s0 + $0x71] sm:$0xff]
  %v69 = vld [vmem:[%s0 + $0xa1] sm:$0xff]
  %v70 = vld [vmem:[%s0 + $0xb1] sm:$0xff]
  %v71 = vld [vmem:[%s0 + $0xc1] sm:$0xff]
  %v72 = vld [vmem:[%s0 + $0xd1] sm:$0xff]
  %v73 = vld [vmem:[%s0 + $0xe1] sm:$0xff]
  %v74 = vld [vmem:[%s0 + $0xf1] sm:$0xff]
  %v75 = vld [vmem:[%s0 + $0x101] sm:$0xff]
  %v76 = vld [vmem:[%s0 + $0x111] sm:$0xff]
  %v77 = vld [vmem:[%s0 + $0x2] sm:$0xff]
  %v78 = vld [vmem:[%s0 + $0x12] sm:$0xff]
  %v79 = vld [vmem:[%s0 + $0x22] sm:$0xff]
  %v80 = vld [vmem:[%s0 + $0x32] sm:$0xff]
  %v81 = vld [vmem:[%s0 + $0x42] sm:$0xff]
  %v82 = vld [vmem:[%s0 + $0x52] sm:$0xff]
  %v83 = vld [vmem:[%s0 + $0x62] sm:$0xff]
  %v84 = vld [vmem:[%s0 + $0x72] sm:$0xff]
  %v85 = vld [vmem:[%s0 + $0xa2] sm:$0xff]
  %v86 = vld [vmem:[%s0 + $0xb2] sm:$0xff]
  %v87 = vld [vmem:[%s0 + $0xc2] sm:$0xff]
  %v88 = vld [vmem:[%s0 + $0xd2] sm:$0xff]
  %v89 = vld [vmem:[%s0 + $0xe2] sm:$0xff]
  %v90 = vld [vmem:[%s0 + $0xf2] sm:$0xff]
  %v91 = vld [vmem:[%s0 + $0x102] sm:$0xff]
  %v92 = vld [vmem:[%s0 + $0x112] sm:$0xff]
  %s93 = scalar_lea.vmem %s0, 16
  %v94 = vld [vmem:[%s93] sm:$0xff]
  %v95 = vld [vmem:[%s93 + $0x10] sm:$0xff]
  %v96 = vld [vmem:[%s93 + $0x20] sm:$0xff]
  %v97 = vld [vmem:[%s93 + $0x30] sm:$0xff]
  %v98 = vld [vmem:[%s93 + $0x40] sm:$0xff]
  %v99 = vld [vmem:[%s93 + $0x50] sm:$0xff]
  %v100 = vld [vmem:[%s93 + $0x60] sm:$0xff]
  %v101 = vld [vmem:[%s93 + $0x70] sm:$0xff]
  %v102 = vld [vmem:[%s93 + $0xa0] sm:$0xff]
  %v103 = vld [vmem:[%s93 + $0xb0] sm:$0xff]
  %v104 = vld [vmem:[%s93 + $0xc0] sm:$0xff]
  %v105 = vld [vmem:[%s93 + $0xd0] sm:$0xff]
  %v106 = vld [vmem:[%s93 + $0xe0] sm:$0xff]
  %v107 = vld [vmem:[%s93 + $0xf0] sm:$0xff]
  %v108 = vld [vmem:[%s93 + $0x100] sm:$0xff]
  %v109 = vld [vmem:[%s93 + $0x110] sm:$0xff]
  %v110 = vld [vmem:[%s93 + $0x1] sm:$0xff]
  %v111 = vld [vmem:[%s93 + $0x11] sm:$0xff]
  %v112 = vld [vmem:[%s93 + $0x21] sm:$0xff]
  %v113 = vld [vmem:[%s93 + $0x31] sm:$0xff]
  %v114 = vld [vmem:[%s93 + $0x41] sm:$0xff]
  %v115 = vld [vmem:[%s93 + $0x51] sm:$0xff]
  %v116 = vld [vmem:[%s93 + $0x61] sm:$0xff]
  %v117 = vld [vmem:[%s93 + $0x71] sm:$0xff]
  %v118 = vld [vmem:[%s93 + $0xa1] sm:$0xff]
  %v119 = vld [vmem:[%s93 + $0xb1] sm:$0xff]
  %v120 = vld [vmem:[%s93 + $0xc1] sm:$0xff]
  %v121 = vld [vmem:[%s93 + $0xd1] sm:$0xff]
  %v122 = vld [vmem:[%s93 + $0xe1] sm:$0xff]
  %v123 = vld [vmem:[%s93 + $0xf1] sm:$0xff]
  %v124 = vld [vmem:[%s93 + $0x101] sm:$0xff]
  %v125 = vld [vmem:[%s93 + $0x111] sm:$0xff]
  %v126 = vld [vmem:[%s93 + $0x2] sm:$0xff]
  %v127 = vld [vmem:[%s93 + $0x12] sm:$0xff]
  %v128 = vld [vmem:[%s93 + $0x22] sm:$0xff]
  %v129 = vld [vmem:[%s93 + $0x32] sm:$0xff]
  %v130 = vld [vmem:[%s93 + $0x42] sm:$0xff]
  %v131 = vld [vmem:[%s93 + $0x52] sm:$0xff]
  %v132 = vld [vmem:[%s93 + $0x62] sm:$0xff]
  %v133 = vld [vmem:[%s93 + $0x72] sm:$0xff]
  %v134 = vld [vmem:[%s93 + $0xa2] sm:$0xff]
  %v135 = vld [vmem:[%s93 + $0xb2] sm:$0xff]
  %v136 = vld [vmem:[%s93 + $0xc2] sm:$0xff]
  %v137 = vld [vmem:[%s93 + $0xd2] sm:$0xff]
  %v138 = vld [vmem:[%s93 + $0xe2] sm:$0xff]
  %v139 = vld [vmem:[%s93 + $0xf2] sm:$0xff]
  %v140 = vld [vmem:[%s93 + $0x102] sm:$0xff]
  %v141 = vld [vmem:[%s93 + $0x112] sm:$0xff]
  %s142 = scalar_lea.vmem %s0, 32
  %v143 = vld [vmem:[%s142] sm:$0xff]
  %v144 = vld [vmem:[%s142 + $0x10] sm:$0xff]
  %v145 = vld [vmem:[%s142 + $0x20] sm:$0xff]
  %v146 = vld [vmem:[%s142 + $0x30] sm:$0xff]
  %v147 = vld [vmem:[%s142 + $0x40] sm:$0xff]
  %v148 = vld [vmem:[%s142 + $0x50] sm:$0xff]
  %v149 = vld [vmem:[%s142 + $0x60] sm:$0xff]
  %v150 = vld [vmem:[%s142 + $0x70] sm:$0xff]
  %v151 = vld [vmem:[%s142 + $0xa0] sm:$0xff]
  %v152 = vld [vmem:[%s142 + $0xb0] sm:$0xff]
  %v153 = vld [vmem:[%s142 + $0xc0] sm:$0xff]
  %v154 = vld [vmem:[%s142 + $0xd0] sm:$0xff]
  %v155 = vld [vmem:[%s142 + $0xe0] sm:$0xff]
  %v156 = vld [vmem:[%s142 + $0xf0] sm:$0xff]
  %v157 = vld [vmem:[%s142 + $0x100] sm:$0xff]
  %v158 = vld [vmem:[%s142 + $0x110] sm:$0xff]
  %v159 = vld [vmem:[%s142 + $0x1] sm:$0xff]
  %v160 = vld [vmem:[%s142 + $0x11] sm:$0xff]
  %v161 = vld [vmem:[%s142 + $0x21] sm:$0xff]
  %v162 = vld [vmem:[%s142 + $0x31] sm:$0xff]
  %v163 = vld [vmem:[%s142 + $0x41] sm:$0xff]
  %v164 = vld [vmem:[%s142 + $0x51] sm:$0xff]
  %v165 = vld [vmem:[%s142 + $0x61] sm:$0xff]
  %v166 = vld [vmem:[%s142 + $0x71] sm:$0xff]
  %v167 = vld [vmem:[%s142 + $0xa1] sm:$0xff]
  %v168 = vld [vmem:[%s142 + $0xb1] sm:$0xff]
  %v169 = vld [vmem:[%s142 + $0xc1] sm:$0xff]
  %v170 = vld [vmem:[%s142 + $0xd1] sm:$0xff]
  %v171 = vld [vmem:[%s142 + $0xe1] sm:$0xff]
  %v172 = vld [vmem:[%s142 + $0xf1] sm:$0xff]
  %v173 = vld [vmem:[%s142 + $0x101] sm:$0xff]
  %v174 = vld [vmem:[%s142 + $0x111] sm:$0xff]
  %v175 = vld [vmem:[%s142 + $0x2] sm:$0xff]
  %v176 = vld [vmem:[%s142 + $0x12] sm:$0xff]
  %v177 = vld [vmem:[%s142 + $0x22] sm:$0xff]
  %v178 = vld [vmem:[%s142 + $0x32] sm:$0xff]
  %v179 = vld [vmem:[%s142 + $0x42] sm:$0xff]
  %v180 = vld [vmem:[%s142 + $0x52] sm:$0xff]
  %v181 = vld [vmem:[%s142 + $0x62] sm:$0xff]
  %v182 = vld [vmem:[%s142 + $0x72] sm:$0xff]
  %v183 = vld [vmem:[%s142 + $0xa2] sm:$0xff]
  %v184 = vld [vmem:[%s142 + $0xb2] sm:$0xff]
  %v185 = vld [vmem:[%s142 + $0xc2] sm:$0xff]
  %v186 = vld [vmem:[%s142 + $0xd2] sm:$0xff]
  %v187 = vld [vmem:[%s142 + $0xe2] sm:$0xff]
  %v188 = vld [vmem:[%s142 + $0xf2] sm:$0xff]
  %v189 = vld [vmem:[%s142 + $0x102] sm:$0xff]
  %v190 = vld [vmem:[%s142 + $0x112] sm:$0xff]
  %v191 = vpack.c.bf16 %v46, %v45
  %v192 = vpack.c.bf16 %v48, %v47
  %v193 = vpack.c.bf16 %v50, %v49
  %v194 = vpack.c.bf16 %v52, %v51
  %v195 = vpack.c.bf16 %v54, %v53
  %v196 = vpack.c.bf16 %v56, %v55
  %v197 = vpack.c.bf16 %v58, %v57
  %v198 = vpack.c.bf16 %v60, %v59
  %v199 = vld [vmem:[%s1] sm:$0xf]
  %v200 = vpack.c.bf16 %v62, %v61
  %v201 = vpack.c.bf16 %v64, %v63
  %v202 = vpack.c.bf16 %v66, %v65
  %v203 = vpack.c.bf16 %v68, %v67
  %v204 = vpack.c.bf16 %v70, %v69
  %v205 = vpack.c.bf16 %v72, %v71
  %v206 = vpack.c.bf16 %v74, %v73
  %v207 = vpack.c.bf16 %v76, %v75
  %s208 = scalar_lea.vmem %s1, 4
  %v209 = vld [vmem:[%s208] sm:$0xf]
  %vm210 = vcmask 64512
  %v212 = vsel %vm210, %v200, 0
  %v215 = vsel %vm210, %v201, 0
  %v218 = vsel %vm210, %v202, 0
  %v221 = vsel %vm210, %v203, 0
  %v224 = vsel %vm210, %v204, 0
  %v227 = vsel %vm210, %v205, 0
  %v230 = vsel %vm210, %v206, 0
  %v233 = vsel %vm210, %v207, 0
  %vm235 = vcmask 1043456
  %v237 = vsel %vm235, %v209, 0
  %239 = vmatpush.bf16.msra.mxu0 0
  %240 = vmatpush.bf16.msra.mxu0 0
  %241 = vmatpush.bf16.msra.mxu0 0
  %242 = vmatpush.bf16.msra.mxu0 0
  %243 = vmatpush.bf16.msra.mxu0 0
  %244 = vmatpush.bf16.msra.mxu0 0
  %245 = vmatpush.bf16.msra.mxu0 0
  %246 = vmatpush.bf16.msra.mxu0 %v237
  %247 = vmatmul.bf16.gmra.mxu0 %v212
  %v248 = vpop.f32.mrf.mxu0
  %v249 = vadd.f32 0.0, %v248
  %v250 = vpop.f32.mrf.mxu0
  %v251 = vadd.f32 0.0, %v250
  %252 = vmatmul.bf16.gmra.mxu0 %v215
  %v253 = vpop.f32.mrf.mxu0
  %v254 = vadd.f32 0.0, %v253
  %v255 = vpop.f32.mrf.mxu0
  %v256 = vadd.f32 0.0, %v255
  %257 = vmatmul.bf16.gmra.mxu0 %v218
  %v258 = vpop.f32.mrf.mxu0
  %v259 = vadd.f32 0.0, %v258
  %v260 = vpop.f32.mrf.mxu0
  %v261 = vadd.f32 0.0, %v260
  %262 = vmatmul.bf16.gmra.mxu0 %v221
  %v263 = vpop.f32.mrf.mxu0
  %v264 = vadd.f32 0.0, %v263
  %v265 = vpop.f32.mrf.mxu0
  %v266 = vadd.f32 0.0, %v265
  %267 = vmatmul.bf16.gmra.mxu0 %v224
  %v268 = vpop.f32.mrf.mxu0
  %v269 = vadd.f32 0.0, %v268
  %v270 = vpop.f32.mrf.mxu0
  %v271 = vadd.f32 0.0, %v270
  %272 = vmatmul.bf16.gmra.mxu0 %v227
  %v273 = vpop.f32.mrf.mxu0
  %v274 = vadd.f32 0.0, %v273
  %v275 = vpop.f32.mrf.mxu0
  %v276 = vadd.f32 0.0, %v275
  %277 = vmatmul.bf16.gmra.mxu0 %v230
  %v278 = vpop.f32.mrf.mxu0
  %v279 = vadd.f32 0.0, %v278
  %v280 = vpop.f32.mrf.mxu0
  %v281 = vadd.f32 0.0, %v280
  %282 = vmatmul.bf16.gmra.mxu0 %v233
  %v283 = vpop.f32.mrf.mxu0
  %v284 = vadd.f32 0.0, %v283
  %v285 = vpop.f32.mrf.mxu0
  %v286 = vadd.f32 0.0, %v285
  %287 = vdwg.mxu0
  %v289 = vsel %vm210, %v191, 0
  %v292 = vsel %vm210, %v192, 0
  %v295 = vsel %vm210, %v193, 0
  %v298 = vsel %vm210, %v194, 0
  %v301 = vsel %vm210, %v195, 0
  %v304 = vsel %vm210, %v196, 0
  %v307 = vsel %vm210, %v197, 0
  %v310 = vsel %vm210, %v198, 0
  %v313 = vsel %vm235, %v199, 0
  %315 = vmatpush.bf16.msra.mxu0 0
  %316 = vmatpush.bf16.msra.mxu0 0
  %317 = vmatpush.bf16.msra.mxu0 0
  %318 = vmatpush.bf16.msra.mxu0 0
  %319 = vmatpush.bf16.msra.mxu0 0
  %320 = vmatpush.bf16.msra.mxu0 0
  %321 = vmatpush.bf16.msra.mxu0 0
  %322 = vmatpush.bf16.msra.mxu0 %v313
  %323 = vmatmul.bf16.gmra.mxu0 %v289
  %v324 = vpop.f32.mrf.mxu0
  %v325 = vadd.f32 %v249, %v324
  %v326 = vpop.f32.mrf.mxu0
  %v327 = vadd.f32 %v251, %v326
  %328 = vmatmul.bf16.gmra.mxu0 %v292
  %v329 = vpop.f32.mrf.mxu0
  %v330 = vadd.f32 %v254, %v329
  %v331 = vpop.f32.mrf.mxu0
  %v332 = vadd.f32 %v256, %v331
  %333 = vmatmul.bf16.gmra.mxu0 %v295
  %v334 = vpop.f32.mrf.mxu0
  %v335 = vadd.f32 %v259, %v334
  %v336 = vpop.f32.mrf.mxu0
  %v337 = vadd.f32 %v261, %v336
  %338 = vmatmul.bf16.gmra.mxu0 %v298
  %v339 = vpop.f32.mrf.mxu0
  %v340 = vadd.f32 %v264, %v339
  %v341 = vpop.f32.mrf.mxu0
  %v342 = vadd.f32 %v266, %v341
  %343 = vmatmul.bf16.gmra.mxu0 %v301
  %v344 = vpop.f32.mrf.mxu0
  %v345 = vadd.f32 %v269, %v344
  %v346 = vpop.f32.mrf.mxu0
  %v347 = vadd.f32 %v271, %v346
  %348 = vmatmul.bf16.gmra.mxu0 %v304
  %v349 = vpop.f32.mrf.mxu0
  %v350 = vadd.f32 %v274, %v349
  %v351 = vpop.f32.mrf.mxu0
  %v352 = vadd.f32 %v276, %v351
  %353 = vmatmul.bf16.gmra.mxu0 %v307
  %v354 = vpop.f32.mrf.mxu0
  %v355 = vadd.f32 %v279, %v354
  %v356 = vpop.f32.mrf.mxu0
  %v357 = vadd.f32 %v281, %v356
  %358 = vmatmul.bf16.gmra.mxu0 %v310
  %v359 = vpop.f32.mrf.mxu0
  %v360 = vadd.f32 %v284, %v359
  %v361 = vpop.f32.mrf.mxu0
  %v362 = vadd.f32 %v286, %v361
  %363 = vdwg.mxu0
  %v364 = vpack.c.bf16 %v78, %v77
  %v365 = vpack.c.bf16 %v80, %v79
  %v366 = vpack.c.bf16 %v82, %v81
  %v367 = vpack.c.bf16 %v84, %v83
  %v368 = vpack.c.bf16 %v86, %v85
  %v369 = vpack.c.bf16 %v88, %v87
  %v370 = vpack.c.bf16 %v90, %v89
  %v371 = vpack.c.bf16 %v92, %v91
  %s372 = scalar_lea.vmem %s1, 8
  %v373 = vld [vmem:[%s372] sm:$0xf]
  %v375 = vsel %vm210, %v364, 0
  %v378 = vsel %vm210, %v365, 0
  %v381 = vsel %vm210, %v366, 0
  %v384 = vsel %vm210, %v367, 0
  %v387 = vsel %vm210, %v368, 0
  %v390 = vsel %vm210, %v369, 0
  %v393 = vsel %vm210, %v370, 0
  %v396 = vsel %vm210, %v371, 0
  %v399 = vsel %vm235, %v373, 0
  %401 = vmatpush.bf16.msra.mxu0 0
  %402 = vmatpush.bf16.msra.mxu0 0
  %403 = vmatpush.bf16.msra.mxu0 0
  %404 = vmatpush.bf16.msra.mxu0 0
  %405 = vmatpush.bf16.msra.mxu0 0
  %406 = vmatpush.bf16.msra.mxu0 0
  %407 = vmatpush.bf16.msra.mxu0 0
  %408 = vmatpush.bf16.msra.mxu0 %v399
  %409 = vmatmul.bf16.gmra.mxu0 %v375
  %v410 = vpop.f32.mrf.mxu0
  %v411 = vadd.f32 0.0, %v410
  %v412 = vpop.f32.mrf.mxu0
  %v413 = vadd.f32 0.0, %v412
  %414 = vmatmul.bf16.gmra.mxu0 %v378
  %v415 = vpop.f32.mrf.mxu0
  %v416 = vadd.f32 0.0, %v415
  %v417 = vpop.f32.mrf.mxu0
  %v418 = vadd.f32 0.0, %v417
  %419 = vmatmul.bf16.gmra.mxu0 %v381
  %v420 = vpop.f32.mrf.mxu0
  %v421 = vadd.f32 0.0, %v420
  %v422 = vpop.f32.mrf.mxu0
  %v423 = vadd.f32 0.0, %v422
  %424 = vmatmul.bf16.gmra.mxu0 %v384
  %v425 = vpop.f32.mrf.mxu0
  %v426 = vadd.f32 0.0, %v425
  %v427 = vpop.f32.mrf.mxu0
  %v428 = vadd.f32 0.0, %v427
  %429 = vmatmul.bf16.gmra.mxu0 %v387
  %v430 = vpop.f32.mrf.mxu0
  %v431 = vadd.f32 0.0, %v430
  %v432 = vpop.f32.mrf.mxu0
  %v433 = vadd.f32 0.0, %v432
  %434 = vmatmul.bf16.gmra.mxu0 %v390
  %v435 = vpop.f32.mrf.mxu0
  %v436 = vadd.f32 0.0, %v435
  %v437 = vpop.f32.mrf.mxu0
  %v438 = vadd.f32 0.0, %v437
  %439 = vmatmul.bf16.gmra.mxu0 %v393
  %v440 = vpop.f32.mrf.mxu0
  %v441 = vadd.f32 0.0, %v440
  %v442 = vpop.f32.mrf.mxu0
  %v443 = vadd.f32 0.0, %v442
  %444 = vmatmul.bf16.gmra.mxu0 %v396
  %v445 = vpop.f32.mrf.mxu0
  %v446 = vadd.f32 0.0, %v445
  %v447 = vpop.f32.mrf.mxu0
  %v448 = vadd.f32 0.0, %v447
  %449 = vdwg.mxu0
  %v450 = vadd.f32 %v325, %v411
  %v451 = vadd.f32 %v327, %v413
  %v452 = vadd.f32 %v330, %v416
  %v453 = vadd.f32 %v332, %v418
  %v454 = vadd.f32 %v335, %v421
  %v455 = vadd.f32 %v337, %v423
  %v456 = vadd.f32 %v340, %v426
  %v457 = vadd.f32 %v342, %v428
  %v458 = vadd.f32 %v345, %v431
  %v459 = vadd.f32 %v347, %v433
  %v460 = vadd.f32 %v350, %v436
  %v461 = vadd.f32 %v352, %v438
  %v462 = vadd.f32 %v355, %v441
  %v463 = vadd.f32 %v357, %v443
  %v464 = vadd.f32 %v360, %v446
  %v465 = vadd.f32 %v362, %v448
  %v466 = vpack.c.bf16 %v95, %v94
  %v467 = vpack.c.bf16 %v97, %v96
  %v468 = vpack.c.bf16 %v99, %v98
  %v469 = vpack.c.bf16 %v101, %v100
  %v470 = vpack.c.bf16 %v103, %v102
  %v471 = vpack.c.bf16 %v105, %v104
  %v472 = vpack.c.bf16 %v107, %v106
  %v473 = vpack.c.bf16 %v109, %v108
  %s474 = scalar_lea.vmem %s1, 12
  %v475 = vld [vmem:[%s474] sm:$0xf]
  %v477 = vsel %vm210, %v466, 0
  %v480 = vsel %vm210, %v467, 0
  %v483 = vsel %vm210, %v468, 0
  %v486 = vsel %vm210, %v469, 0
  %v489 = vsel %vm210, %v470, 0
  %v492 = vsel %vm210, %v471, 0
  %v495 = vsel %vm210, %v472, 0
  %v498 = vsel %vm210, %v473, 0
  %v501 = vsel %vm235, %v475, 0
  %503 = vmatpush.bf16.msra.mxu0 0
  %504 = vmatpush.bf16.msra.mxu0 0
  %505 = vmatpush.bf16.msra.mxu0 0
  %506 = vmatpush.bf16.msra.mxu0 0
  %507 = vmatpush.bf16.msra.mxu0 0
  %508 = vmatpush.bf16.msra.mxu0 0
  %509 = vmatpush.bf16.msra.mxu0 0
  %510 = vmatpush.bf16.msra.mxu0 %v501
  %511 = vmatmul.bf16.gmra.mxu0 %v477
  %v512 = vpop.f32.mrf.mxu0
  %v513 = vadd.f32 0.0, %v512
  %v514 = vpop.f32.mrf.mxu0
  %v515 = vadd.f32 0.0, %v514
  %516 = vmatmul.bf16.gmra.mxu0 %v480
  %v517 = vpop.f32.mrf.mxu0
  %v518 = vadd.f32 0.0, %v517
  %v519 = vpop.f32.mrf.mxu0
  %v520 = vadd.f32 0.0, %v519
  %521 = vmatmul.bf16.gmra.mxu0 %v483
  %v522 = vpop.f32.mrf.mxu0
  %v523 = vadd.f32 0.0, %v522
  %v524 = vpop.f32.mrf.mxu0
  %v525 = vadd.f32 0.0, %v524
  %526 = vmatmul.bf16.gmra.mxu0 %v486
  %v527 = vpop.f32.mrf.mxu0
  %v528 = vadd.f32 0.0, %v527
  %v529 = vpop.f32.mrf.mxu0
  %v530 = vadd.f32 0.0, %v529
  %531 = vmatmul.bf16.gmra.mxu0 %v489
  %v532 = vpop.f32.mrf.mxu0
  %v533 = vadd.f32 0.0, %v532
  %v534 = vpop.f32.mrf.mxu0
  %v535 = vadd.f32 0.0, %v534
  %536 = vmatmul.bf16.gmra.mxu0 %v492
  %v537 = vpop.f32.mrf.mxu0
  %v538 = vadd.f32 0.0, %v537
  %v539 = vpop.f32.mrf.mxu0
  %v540 = vadd.f32 0.0, %v539
  %541 = vmatmul.bf16.gmra.mxu0 %v495
  %v542 = vpop.f32.mrf.mxu0
  %v543 = vadd.f32 0.0, %v542
  %v544 = vpop.f32.mrf.mxu0
  %v545 = vadd.f32 0.0, %v544
  %546 = vmatmul.bf16.gmra.mxu0 %v498
  %v547 = vpop.f32.mrf.mxu0
  %v548 = vadd.f32 0.0, %v547
  %v549 = vpop.f32.mrf.mxu0
  %v550 = vadd.f32 0.0, %v549
  %551 = vdwg.mxu0
  %v552 = vadd.f32 %v450, %v513
  %v553 = vadd.f32 %v451, %v515
  %v554 = vadd.f32 %v452, %v518
  %v555 = vadd.f32 %v453, %v520
  %v556 = vadd.f32 %v454, %v523
  %v557 = vadd.f32 %v455, %v525
  %v558 = vadd.f32 %v456, %v528
  %v559 = vadd.f32 %v457, %v530
  %v560 = vadd.f32 %v458, %v533
  %v561 = vadd.f32 %v459, %v535
  %v562 = vadd.f32 %v460, %v538
  %v563 = vadd.f32 %v461, %v540
  %v564 = vadd.f32 %v462, %v543
  %v565 = vadd.f32 %v463, %v545
  %v566 = vadd.f32 %v464, %v548
  %v567 = vadd.f32 %v465, %v550
  %v568 = vpack.c.bf16 %v111, %v110
  %v569 = vpack.c.bf16 %v113, %v112
  %v570 = vpack.c.bf16 %v115, %v114
  %v571 = vpack.c.bf16 %v117, %v116
  %v572 = vpack.c.bf16 %v119, %v118
  %v573 = vpack.c.bf16 %v121, %v120
  %v574 = vpack.c.bf16 %v123, %v122
  %v575 = vpack.c.bf16 %v125, %v124
  %s576 = scalar_lea.vmem %s1, 16
  %v577 = vld [vmem:[%s576] sm:$0xf]
  %v579 = vsel %vm210, %v568, 0
  %v582 = vsel %vm210, %v569, 0
  %v585 = vsel %vm210, %v570, 0
  %v588 = vsel %vm210, %v571, 0
  %v591 = vsel %vm210, %v572, 0
  %v594 = vsel %vm210, %v573, 0
  %v597 = vsel %vm210, %v574, 0
  %v600 = vsel %vm210, %v575, 0
  %v603 = vsel %vm235, %v577, 0
  %605 = vmatpush.bf16.msra.mxu0 0
  %606 = vmatpush.bf16.msra.mxu0 0
  %607 = vmatpush.bf16.msra.mxu0 0
  %608 = vmatpush.bf16.msra.mxu0 0
  %609 = vmatpush.bf16.msra.mxu0 0
  %610 = vmatpush.bf16.msra.mxu0 0
  %611 = vmatpush.bf16.msra.mxu0 0
  %612 = vmatpush.bf16.msra.mxu0 %v603
  %613 = vmatmul.bf16.gmra.mxu0 %v579
  %v614 = vpop.f32.mrf.mxu0
  %v615 = vadd.f32 0.0, %v614
  %v616 = vpop.f32.mrf.mxu0
  %v617 = vadd.f32 0.0, %v616
  %618 = vmatmul.bf16.gmra.mxu0 %v582
  %v619 = vpop.f32.mrf.mxu0
  %v620 = vadd.f32 0.0, %v619
  %v621 = vpop.f32.mrf.mxu0
  %v622 = vadd.f32 0.0, %v621
  %623 = vmatmul.bf16.gmra.mxu0 %v585
  %v624 = vpop.f32.mrf.mxu0
  %v625 = vadd.f32 0.0, %v624
  %v626 = vpop.f32.mrf.mxu0
  %v627 = vadd.f32 0.0, %v626
  %628 = vmatmul.bf16.gmra.mxu0 %v588
  %v629 = vpop.f32.mrf.mxu0
  %v630 = vadd.f32 0.0, %v629
  %v631 = vpop.f32.mrf.mxu0
  %v632 = vadd.f32 0.0, %v631
  %633 = vmatmul.bf16.gmra.mxu0 %v591
  %v634 = vpop.f32.mrf.mxu0
  %v635 = vadd.f32 0.0, %v634
  %v636 = vpop.f32.mrf.mxu0
  %v637 = vadd.f32 0.0, %v636
  %638 = vmatmul.bf16.gmra.mxu0 %v594
  %v639 = vpop.f32.mrf.mxu0
  %v640 = vadd.f32 0.0, %v639
  %v641 = vpop.f32.mrf.mxu0
  %v642 = vadd.f32 0.0, %v641
  %643 = vmatmul.bf16.gmra.mxu0 %v597
  %v644 = vpop.f32.mrf.mxu0
  %v645 = vadd.f32 0.0, %v644
  %v646 = vpop.f32.mrf.mxu0
  %v647 = vadd.f32 0.0, %v646
  %648 = vmatmul.bf16.gmra.mxu0 %v600
  %v649 = vpop.f32.mrf.mxu0
  %v650 = vadd.f32 0.0, %v649
  %v651 = vpop.f32.mrf.mxu0
  %v652 = vadd.f32 0.0, %v651
  %653 = vdwg.mxu0
  %v654 = vadd.f32 %v552, %v615
  %v655 = vadd.f32 %v553, %v617
  %v656 = vadd.f32 %v554, %v620
  %v657 = vadd.f32 %v555, %v622
  %v658 = vadd.f32 %v556, %v625
  %v659 = vadd.f32 %v557, %v627
  %v660 = vadd.f32 %v558, %v630
  %v661 = vadd.f32 %v559, %v632
  %v662 = vadd.f32 %v560, %v635
  %v663 = vadd.f32 %v561, %v637
  %v664 = vadd.f32 %v562, %v640
  %v665 = vadd.f32 %v563, %v642
  %v666 = vadd.f32 %v564, %v645
  %v667 = vadd.f32 %v565, %v647
  %v668 = vadd.f32 %v566, %v650
  %v669 = vadd.f32 %v567, %v652
  %v670 = vpack.c.bf16 %v127, %v126
  %v671 = vpack.c.bf16 %v129, %v128
  %v672 = vpack.c.bf16 %v131, %v130
  %v673 = vpack.c.bf16 %v133, %v132
  %v674 = vpack.c.bf16 %v135, %v134
  %v675 = vpack.c.bf16 %v137, %v136
  %v676 = vpack.c.bf16 %v139, %v138
  %v677 = vpack.c.bf16 %v141, %v140
  %s678 = scalar_lea.vmem %s1, 20
  %v679 = vld [vmem:[%s678] sm:$0xf]
  %v681 = vsel %vm210, %v670, 0
  %v684 = vsel %vm210, %v671, 0
  %v687 = vsel %vm210, %v672, 0
  %v690 = vsel %vm210, %v673, 0
  %v693 = vsel %vm210, %v674, 0
  %v696 = vsel %vm210, %v675, 0
  %v699 = vsel %vm210, %v676, 0
  %v702 = vsel %vm210, %v677, 0
  %v705 = vsel %vm235, %v679, 0
  %707 = vmatpush.bf16.msra.mxu0 0
  %708 = vmatpush.bf16.msra.mxu0 0
  %709 = vmatpush.bf16.msra.mxu0 0
  %710 = vmatpush.bf16.msra.mxu0 0
  %711 = vmatpush.bf16.msra.mxu0 0
  %712 = vmatpush.bf16.msra.mxu0 0
  %713 = vmatpush.bf16.msra.mxu0 0
  %714 = vmatpush.bf16.msra.mxu0 %v705
  %715 = vmatmul.bf16.gmra.mxu0 %v681
  %v716 = vpop.f32.mrf.mxu0
  %v717 = vadd.f32 0.0, %v716
  %v718 = vpop.f32.mrf.mxu0
  %v719 = vadd.f32 0.0, %v718
  %720 = vmatmul.bf16.gmra.mxu0 %v684
  %v721 = vpop.f32.mrf.mxu0
  %v722 = vadd.f32 0.0, %v721
  %v723 = vpop.f32.mrf.mxu0
  %v724 = vadd.f32 0.0, %v723
  %725 = vmatmul.bf16.gmra.mxu0 %v687
  %v726 = vpop.f32.mrf.mxu0
  %v727 = vadd.f32 0.0, %v726
  %v728 = vpop.f32.mrf.mxu0
  %v729 = vadd.f32 0.0, %v728
  %730 = vmatmul.bf16.gmra.mxu0 %v690
  %v731 = vpop.f32.mrf.mxu0
  %v732 = vadd.f32 0.0, %v731
  %v733 = vpop.f32.mrf.mxu0
  %v734 = vadd.f32 0.0, %v733
  %735 = vmatmul.bf16.gmra.mxu0 %v693
  %v736 = vpop.f32.mrf.mxu0
  %v737 = vadd.f32 0.0, %v736
  %v738 = vpop.f32.mrf.mxu0
  %v739 = vadd.f32 0.0, %v738
  %740 = vmatmul.bf16.gmra.mxu0 %v696
  %v741 = vpop.f32.mrf.mxu0
  %v742 = vadd.f32 0.0, %v741
  %v743 = vpop.f32.mrf.mxu0
  %v744 = vadd.f32 0.0, %v743
  %745 = vmatmul.bf16.gmra.mxu0 %v699
  %v746 = vpop.f32.mrf.mxu0
  %v747 = vadd.f32 0.0, %v746
  %v748 = vpop.f32.mrf.mxu0
  %v749 = vadd.f32 0.0, %v748
  %750 = vmatmul.bf16.gmra.mxu0 %v702
  %v751 = vpop.f32.mrf.mxu0
  %v752 = vadd.f32 0.0, %v751
  %v753 = vpop.f32.mrf.mxu0
  %v754 = vadd.f32 0.0, %v753
  %755 = vdwg.mxu0
  %v756 = vadd.f32 %v654, %v717
  %v757 = vadd.f32 %v655, %v719
  %v758 = vadd.f32 %v656, %v722
  %v759 = vadd.f32 %v657, %v724
  %v760 = vadd.f32 %v658, %v727
  %v761 = vadd.f32 %v659, %v729
  %v762 = vadd.f32 %v660, %v732
  %v763 = vadd.f32 %v661, %v734
  %v764 = vadd.f32 %v662, %v737
  %v765 = vadd.f32 %v663, %v739
  %v766 = vadd.f32 %v664, %v742
  %v767 = vadd.f32 %v665, %v744
  %v768 = vadd.f32 %v666, %v747
  %v769 = vadd.f32 %v667, %v749
  %v770 = vadd.f32 %v668, %v752
  %v771 = vadd.f32 %v669, %v754
  %v772 = vpack.c.bf16 %v144, %v143
  %v773 = vpack.c.bf16 %v146, %v145
  %v774 = vpack.c.bf16 %v148, %v147
  %v775 = vpack.c.bf16 %v150, %v149
  %v776 = vpack.c.bf16 %v152, %v151
  %v777 = vpack.c.bf16 %v154, %v153
  %v778 = vpack.c.bf16 %v156, %v155
  %v779 = vpack.c.bf16 %v158, %v157
  %s780 = scalar_lea.vmem %s1, 24
  %v781 = vld [vmem:[%s780] sm:$0xf]
  %v783 = vsel %vm210, %v772, 0
  %v786 = vsel %vm210, %v773, 0
  %v789 = vsel %vm210, %v774, 0
  %v792 = vsel %vm210, %v775, 0
  %v795 = vsel %vm210, %v776, 0
  %v798 = vsel %vm210, %v777, 0
  %v801 = vsel %vm210, %v778, 0
  %v804 = vsel %vm210, %v779, 0
  %v807 = vsel %vm235, %v781, 0
  %809 = vmatpush.bf16.msra.mxu0 0
  %810 = vmatpush.bf16.msra.mxu0 0
  %811 = vmatpush.bf16.msra.mxu0 0
  %812 = vmatpush.bf16.msra.mxu0 0
  %813 = vmatpush.bf16.msra.mxu0 0
  %814 = vmatpush.bf16.msra.mxu0 0
  %815 = vmatpush.bf16.msra.mxu0 0
  %816 = vmatpush.bf16.msra.mxu0 %v807
  %817 = vmatmul.bf16.gmra.mxu0 %v783
  %v818 = vpop.f32.mrf.mxu0
  %v819 = vadd.f32 0.0, %v818
  %v820 = vpop.f32.mrf.mxu0
  %v821 = vadd.f32 0.0, %v820
  %822 = vmatmul.bf16.gmra.mxu0 %v786
  %v823 = vpop.f32.mrf.mxu0
  %v824 = vadd.f32 0.0, %v823
  %v825 = vpop.f32.mrf.mxu0
  %v826 = vadd.f32 0.0, %v825
  %827 = vmatmul.bf16.gmra.mxu0 %v789
  %v828 = vpop.f32.mrf.mxu0
  %v829 = vadd.f32 0.0, %v828
  %v830 = vpop.f32.mrf.mxu0
  %v831 = vadd.f32 0.0, %v830
  %832 = vmatmul.bf16.gmra.mxu0 %v792
  %v833 = vpop.f32.mrf.mxu0
  %v834 = vadd.f32 0.0, %v833
  %v835 = vpop.f32.mrf.mxu0
  %v836 = vadd.f32 0.0, %v835
  %837 = vmatmul.bf16.gmra.mxu0 %v795
  %v838 = vpop.f32.mrf.mxu0
  %v839 = vadd.f32 0.0, %v838
  %v840 = vpop.f32.mrf.mxu0
  %v841 = vadd.f32 0.0, %v840
  %842 = vmatmul.bf16.gmra.mxu0 %v798
  %v843 = vpop.f32.mrf.mxu0
  %v844 = vadd.f32 0.0, %v843
  %v845 = vpop.f32.mrf.mxu0
  %v846 = vadd.f32 0.0, %v845
  %847 = vmatmul.bf16.gmra.mxu0 %v801
  %v848 = vpop.f32.mrf.mxu0
  %v849 = vadd.f32 0.0, %v848
  %v850 = vpop.f32.mrf.mxu0
  %v851 = vadd.f32 0.0, %v850
  %852 = vmatmul.bf16.gmra.mxu0 %v804
  %v853 = vpop.f32.mrf.mxu0
  %v854 = vadd.f32 0.0, %v853
  %v855 = vpop.f32.mrf.mxu0
  %v856 = vadd.f32 0.0, %v855
  %857 = vdwg.mxu0
  %v858 = vadd.f32 %v756, %v819
  %v859 = vadd.f32 %v757, %v821
  %v860 = vadd.f32 %v758, %v824
  %v861 = vadd.f32 %v759, %v826
  %v862 = vadd.f32 %v760, %v829
  %v863 = vadd.f32 %v761, %v831
  %v864 = vadd.f32 %v762, %v834
  %v865 = vadd.f32 %v763, %v836
  %v866 = vadd.f32 %v764, %v839
  %v867 = vadd.f32 %v765, %v841
  %v868 = vadd.f32 %v766, %v844
  %v869 = vadd.f32 %v767, %v846
  %v870 = vadd.f32 %v768, %v849
  %v871 = vadd.f32 %v769, %v851
  %v872 = vadd.f32 %v770, %v854
  %v873 = vadd.f32 %v771, %v856
  %v874 = vpack.c.bf16 %v160, %v159
  %v875 = vpack.c.bf16 %v162, %v161
  %v876 = vpack.c.bf16 %v164, %v163
  %v877 = vpack.c.bf16 %v166, %v165
  %v878 = vpack.c.bf16 %v168, %v167
  %v879 = vpack.c.bf16 %v170, %v169
  %v880 = vpack.c.bf16 %v172, %v171
  %v881 = vpack.c.bf16 %v174, %v173
  %s882 = scalar_lea.vmem %s1, 28
  %v883 = vld [vmem:[%s882] sm:$0xf]
  %v885 = vsel %vm210, %v874, 0
  %v888 = vsel %vm210, %v875, 0
  %v891 = vsel %vm210, %v876, 0
  %v894 = vsel %vm210, %v877, 0
  %v897 = vsel %vm210, %v878, 0
  %v900 = vsel %vm210, %v879, 0
  %v903 = vsel %vm210, %v880, 0
  %v906 = vsel %vm210, %v881, 0
  %v909 = vsel %vm235, %v883, 0
  %911 = vmatpush.bf16.msra.mxu0 0
  %912 = vmatpush.bf16.msra.mxu0 0
  %913 = vmatpush.bf16.msra.mxu0 0
  %914 = vmatpush.bf16.msra.mxu0 0
  %915 = vmatpush.bf16.msra.mxu0 0
  %916 = vmatpush.bf16.msra.mxu0 0
  %917 = vmatpush.bf16.msra.mxu0 0
  %918 = vmatpush.bf16.msra.mxu0 %v909
  %919 = vmatmul.bf16.gmra.mxu0 %v885
  %v920 = vpop.f32.mrf.mxu0
  %v921 = vadd.f32 0.0, %v920
  %v922 = vpop.f32.mrf.mxu0
  %v923 = vadd.f32 0.0, %v922
  %924 = vmatmul.bf16.gmra.mxu0 %v888
  %v925 = vpop.f32.mrf.mxu0
  %v926 = vadd.f32 0.0, %v925
  %v927 = vpop.f32.mrf.mxu0
  %v928 = vadd.f32 0.0, %v927
  %929 = vmatmul.bf16.gmra.mxu0 %v891
  %v930 = vpop.f32.mrf.mxu0
  %v931 = vadd.f32 0.0, %v930
  %v932 = vpop.f32.mrf.mxu0
  %v933 = vadd.f32 0.0, %v932
  %934 = vmatmul.bf16.gmra.mxu0 %v894
  %v935 = vpop.f32.mrf.mxu0
  %v936 = vadd.f32 0.0, %v935
  %v937 = vpop.f32.mrf.mxu0
  %v938 = vadd.f32 0.0, %v937
  %939 = vmatmul.bf16.gmra.mxu0 %v897
  %v940 = vpop.f32.mrf.mxu0
  %v941 = vadd.f32 0.0, %v940
  %v942 = vpop.f32.mrf.mxu0
  %v943 = vadd.f32 0.0, %v942
  %944 = vmatmul.bf16.gmra.mxu0 %v900
  %v945 = vpop.f32.mrf.mxu0
  %v946 = vadd.f32 0.0, %v945
  %v947 = vpop.f32.mrf.mxu0
  %v948 = vadd.f32 0.0, %v947
  %949 = vmatmul.bf16.gmra.mxu0 %v903
  %v950 = vpop.f32.mrf.mxu0
  %v951 = vadd.f32 0.0, %v950
  %v952 = vpop.f32.mrf.mxu0
  %v953 = vadd.f32 0.0, %v952
  %954 = vmatmul.bf16.gmra.mxu0 %v906
  %v955 = vpop.f32.mrf.mxu0
  %v956 = vadd.f32 0.0, %v955
  %v957 = vpop.f32.mrf.mxu0
  %v958 = vadd.f32 0.0, %v957
  %959 = vdwg.mxu0
  %v960 = vadd.f32 %v858, %v921
  %v961 = vadd.f32 %v859, %v923
  %v962 = vadd.f32 %v860, %v926
  %v963 = vadd.f32 %v861, %v928
  %v964 = vadd.f32 %v862, %v931
  %v965 = vadd.f32 %v863, %v933
  %v966 = vadd.f32 %v864, %v936
  %v967 = vadd.f32 %v865, %v938
  %v968 = vadd.f32 %v866, %v941
  %v969 = vadd.f32 %v867, %v943
  %v970 = vadd.f32 %v868, %v946
  %v971 = vadd.f32 %v869, %v948
  %v972 = vadd.f32 %v870, %v951
  %v973 = vadd.f32 %v871, %v953
  %v974 = vadd.f32 %v872, %v956
  %v975 = vadd.f32 %v873, %v958
  %v976 = vpack.c.bf16 %v176, %v175
  %v977 = vpack.c.bf16 %v178, %v177
  %v978 = vpack.c.bf16 %v180, %v179
  %v979 = vpack.c.bf16 %v182, %v181
  %v980 = vpack.c.bf16 %v184, %v183
  %v981 = vpack.c.bf16 %v186, %v185
  %v982 = vpack.c.bf16 %v188, %v187
  %v983 = vpack.c.bf16 %v190, %v189
  %s984 = scalar_lea.vmem %s1, 32
  %v985 = vld [vmem:[%s984] sm:$0xf]
  %v987 = vsel %vm210, %v976, 0
  %v990 = vsel %vm210, %v977, 0
  %v993 = vsel %vm210, %v978, 0
  %v996 = vsel %vm210, %v979, 0
  %v999 = vsel %vm210, %v980, 0
  %v1002 = vsel %vm210, %v981, 0
  %v1005 = vsel %vm210, %v982, 0
  %v1008 = vsel %vm210, %v983, 0
  %v1011 = vsel %vm235, %v985, 0
  %1013 = vmatpush.bf16.msra.mxu0 0
  %1014 = vmatpush.bf16.msra.mxu0 0
  %1015 = vmatpush.bf16.msra.mxu0 0
  %1016 = vmatpush.bf16.msra.mxu0 0
  %1017 = vmatpush.bf16.msra.mxu0 0
  %1018 = vmatpush.bf16.msra.mxu0 0
  %1019 = vmatpush.bf16.msra.mxu0 0
  %1020 = vmatpush.bf16.msra.mxu0 %v1011
  %1021 = vmatmul.bf16.gmra.mxu0 %v987
  %v1022 = vpop.f32.mrf.mxu0
  %v1023 = vadd.f32 0.0, %v1022
  %v1024 = vpop.f32.mrf.mxu0
  %v1025 = vadd.f32 0.0, %v1024
  %1026 = vmatmul.bf16.gmra.mxu0 %v990
  %v1027 = vpop.f32.mrf.mxu0
  %v1028 = vadd.f32 0.0, %v1027
  %v1029 = vpop.f32.mrf.mxu0
  %v1030 = vadd.f32 0.0, %v1029
  %1031 = vmatmul.bf16.gmra.mxu0 %v993
  %v1032 = vpop.f32.mrf.mxu0
  %v1033 = vadd.f32 0.0, %v1032
  %v1034 = vpop.f32.mrf.mxu0
  %v1035 = vadd.f32 0.0, %v1034
  %1036 = vmatmul.bf16.gmra.mxu0 %v996
  %v1037 = vpop.f32.mrf.mxu0
  %v1038 = vadd.f32 0.0, %v1037
  %v1039 = vpop.f32.mrf.mxu0
  %v1040 = vadd.f32 0.0, %v1039
  %1041 = vmatmul.bf16.gmra.mxu0 %v999
  %v1042 = vpop.f32.mrf.mxu0
  %v1043 = vadd.f32 0.0, %v1042
  %v1044 = vpop.f32.mrf.mxu0
  %v1045 = vadd.f32 0.0, %v1044
  %1046 = vmatmul.bf16.gmra.mxu0 %v1002
  %v1047 = vpop.f32.mrf.mxu0
  %v1048 = vadd.f32 0.0, %v1047
  %v1049 = vpop.f32.mrf.mxu0
  %v1050 = vadd.f32 0.0, %v1049
  %1051 = vmatmul.bf16.gmra.mxu0 %v1005
  %v1052 = vpop.f32.mrf.mxu0
  %v1053 = vadd.f32 0.0, %v1052
  %v1054 = vpop.f32.mrf.mxu0
  %v1055 = vadd.f32 0.0, %v1054
  %1056 = vmatmul.bf16.gmra.mxu0 %v1008
  %v1057 = vpop.f32.mrf.mxu0
  %v1058 = vadd.f32 0.0, %v1057
  %v1059 = vpop.f32.mrf.mxu0
  %v1060 = vadd.f32 0.0, %v1059
  %1061 = vdwg.mxu0
  %v1062 = vadd.f32 %v960, %v1023
  %v1063 = vadd.f32 %v961, %v1025
  %v1064 = vadd.f32 %v962, %v1028
  %v1065 = vadd.f32 %v963, %v1030
  %v1066 = vadd.f32 %v964, %v1033
  %v1067 = vadd.f32 %v965, %v1035
  %v1068 = vadd.f32 %v966, %v1038
  %v1069 = vadd.f32 %v967, %v1040
  %v1070 = vadd.f32 %v968, %v1043
  %v1071 = vadd.f32 %v969, %v1045
  %v1072 = vadd.f32 %v970, %v1048
  %v1073 = vadd.f32 %v971, %v1050
  %v1074 = vadd.f32 %v972, %v1053
  %v1075 = vadd.f32 %v973, %v1055
  %v1076 = vadd.f32 %v974, %v1058
  %v1077 = vadd.f32 %v975, %v1060
  %v1078 = vld [vmem:[%s2] sm:$0x1]
  %v1080 = vperm.slane %v1078, 0
  %v1082 = vadd.f32 %v1062, %v1080
  %v1083 = vadd.f32 %v1063, %v1080
  %v1084 = vadd.f32 %v1064, %v1080
  %v1085 = vadd.f32 %v1065, %v1080
  %v1086 = vadd.f32 %v1066, %v1080
  %v1087 = vadd.f32 %v1067, %v1080
  %v1088 = vadd.f32 %v1068, %v1080
  %v1089 = vadd.f32 %v1069, %v1080
  %v1090 = vadd.f32 %v1070, %v1080
  %v1091 = vadd.f32 %v1071, %v1080
  %v1092 = vadd.f32 %v1072, %v1080
  %v1093 = vadd.f32 %v1073, %v1080
  %v1094 = vadd.f32 %v1074, %v1080
  %v1095 = vadd.f32 %v1075, %v1080
  %v1096 = vadd.f32 %v1076, %v1080
  %v1097 = vadd.f32 %v1077, %v1080
  %v1098 = vld [vmem:[%s3] sm:$0x1]
  %v1099 = vld [vmem:[%s4] sm:$0x1]
  %v1100 = vsel %vm210, %v1082, 0.0
  %v1101 = vsel %vm210, %v1083, 0.0
  %v1102 = vadd.f32 %v1100, %v1101
  %v1103 = vsel %vm210, %v1084, 0.0
  %v1104 = vadd.f32 %v1102, %v1103
  %v1105 = vsel %vm210, %v1085, 0.0
  %v1106 = vadd.f32 %v1104, %v1105
  %v1107 = vsel %vm210, %v1086, 0.0
  %v1108 = vadd.f32 %v1106, %v1107
  %v1109 = vsel %vm210, %v1087, 0.0
  %v1110 = vadd.f32 %v1108, %v1109
  %v1111 = vsel %vm210, %v1088, 0.0
  %v1112 = vadd.f32 %v1110, %v1111
  %v1113 = vsel %vm210, %v1089, 0.0
  %v1114 = vadd.f32 %v1112, %v1113
  %v1115 = vsel %vm210, %v1090, 0.0
  %v1116 = vadd.f32 %v1114, %v1115
  %v1117 = vsel %vm210, %v1091, 0.0
  %v1118 = vadd.f32 %v1116, %v1117
  %v1119 = vsel %vm210, %v1092, 0.0
  %v1120 = vadd.f32 %v1118, %v1119
  %v1121 = vsel %vm210, %v1093, 0.0
  %v1122 = vadd.f32 %v1120, %v1121
  %v1123 = vsel %vm210, %v1094, 0.0
  %v1124 = vadd.f32 %v1122, %v1123
  %v1125 = vsel %vm210, %v1095, 0.0
  %v1126 = vadd.f32 %v1124, %v1125
  %v1127 = vsel %vm210, %v1096, 0.0
  %v1128 = vadd.f32 %v1126, %v1127
  %v1129 = vsel %vm210, %v1097, 0.0
  %v1130 = vadd.f32 %v1128, %v1129
  %v1131 = vrot.slane %v1130, 4
  %v1132 = vadd.f32 %v1130, %v1131
  %v1133 = vrot.slane %v1132, 2
  %v1134 = vadd.f32 %v1132, %v1133
  %v1135 = vrot.slane %v1134, 1
  %v1136 = vadd.f32 %v1134, %v1135
  %v1137 = vrcp.pop 128.0
  %v1138 = vmul.f32 128.0, %v1137
  %v1139 = vsub.f32 1.0, %v1138
  %v1140 = vmul.f32 %v1137, %v1139
  %v1141 = vadd.f32 %v1137, %v1140
  %vm1142 = vweird.f32 %v1137
  %v1143 = vsel %vm1142, %v1137, %v1141
  %v1144 = vmul.f32 %v1136, %v1143
  %v1145 = vsub.f32 %v1082, %v1144
  %v1146 = vsub.f32 %v1083, %v1144
  %v1147 = vsub.f32 %v1084, %v1144
  %v1148 = vsub.f32 %v1085, %v1144
  %v1149 = vsub.f32 %v1086, %v1144
  %v1150 = vsub.f32 %v1087, %v1144
  %v1151 = vsub.f32 %v1088, %v1144
  %v1152 = vsub.f32 %v1089, %v1144
  %v1153 = vsub.f32 %v1090, %v1144
  %v1154 = vsub.f32 %v1091, %v1144
  %v1155 = vsub.f32 %v1092, %v1144
  %v1156 = vsub.f32 %v1093, %v1144
  %v1157 = vsub.f32 %v1094, %v1144
  %v1158 = vsub.f32 %v1095, %v1144
  %v1159 = vsub.f32 %v1096, %v1144
  %v1160 = vsub.f32 %v1097, %v1144
  %v1161 = vmul.f32 %v1145, %v1145
  %v1162 = vmul.f32 %v1146, %v1146
  %v1163 = vmul.f32 %v1147, %v1147
  %v1164 = vmul.f32 %v1148, %v1148
  %v1165 = vmul.f32 %v1149, %v1149
  %v1166 = vmul.f32 %v1150, %v1150
  %v1167 = vmul.f32 %v1151, %v1151
  %v1168 = vmul.f32 %v1152, %v1152
  %v1169 = vmul.f32 %v1153, %v1153
  %v1170 = vmul.f32 %v1154, %v1154
  %v1171 = vmul.f32 %v1155, %v1155
  %v1172 = vmul.f32 %v1156, %v1156
  %v1173 = vmul.f32 %v1157, %v1157
  %v1174 = vmul.f32 %v1158, %v1158
  %v1175 = vmul.f32 %v1159, %v1159
  %v1176 = vmul.f32 %v1160, %v1160
  %v1177 = vsel %vm210, %v1161, 0.0
  %v1178 = vsel %vm210, %v1162, 0.0
  %v1179 = vadd.f32 %v1177, %v1178
  %v1180 = vsel %vm210, %v1163, 0.0
  %v1181 = vadd.f32 %v1179, %v1180
  %v1182 = vsel %vm210, %v1164, 0.0
  %v1183 = vadd.f32 %v1181, %v1182
  %v1184 = vsel %vm210, %v1165, 0.0
  %v1185 = vadd.f32 %v1183, %v1184
  %v1186 = vsel %vm210, %v1166, 0.0
  %v1187 = vadd.f32 %v1185, %v1186
  %v1188 = vsel %vm210, %v1167, 0.0
  %v1189 = vadd.f32 %v1187, %v1188
  %v1190 = vsel %vm210, %v1168, 0.0
  %v1191 = vadd.f32 %v1189, %v1190
  %v1192 = vsel %vm210, %v1169, 0.0
  %v1193 = vadd.f32 %v1191, %v1192
  %v1194 = vsel %vm210, %v1170, 0.0
  %v1195 = vadd.f32 %v1193, %v1194
  %v1196 = vsel %vm210, %v1171, 0.0
  %v1197 = vadd.f32 %v1195, %v1196
  %v1198 = vsel %vm210, %v1172, 0.0
  %v1199 = vadd.f32 %v1197, %v1198
  %v1200 = vsel %vm210, %v1173, 0.0
  %v1201 = vadd.f32 %v1199, %v1200
  %v1202 = vsel %vm210, %v1174, 0.0
  %v1203 = vadd.f32 %v1201, %v1202
  %v1204 = vsel %vm210, %v1175, 0.0
  %v1205 = vadd.f32 %v1203, %v1204
  %v1206 = vsel %vm210, %v1176, 0.0
  %v1207 = vadd.f32 %v1205, %v1206
  %v1208 = vrot.slane %v1207, 4
  %v1209 = vadd.f32 %v1207, %v1208
  %v1210 = vrot.slane %v1209, 2
  %v1211 = vadd.f32 %v1209, %v1210
  %v1212 = vrot.slane %v1211, 1
  %v1213 = vadd.f32 %v1211, %v1212
  %v1214 = vmul.f32 %v1213, %v1143
  %v1215 = vadd.f32 %v1214, 1e-05
  %v1216 = vrsqrt.pop %v1215
  %v1217 = vmul.f32 %v1216, %v1215
  %v1218 = vmul.f32 %v1217, %v1216
  %v1219 = vmul.f32 0.5, %v1218
  %v1220 = vsub.f32 1.5, %v1219
  %v1221 = vmul.f32 %v1216, %v1220
  %vm1222 = vweird.f32 %v1215
  %vm1223 = vweird.f32 %v1216
  %vm1224 = vmor %vm1222, %vm1223
  %v1225 = vsel %vm1224, %v1216, %v1221
  %v1226 = vmul.f32 %v1145, %v1225
  %v1227 = vmul.f32 %v1146, %v1225
  %v1228 = vmul.f32 %v1147, %v1225
  %v1229 = vmul.f32 %v1148, %v1225
  %v1230 = vmul.f32 %v1149, %v1225
  %v1231 = vmul.f32 %v1150, %v1225
  %v1232 = vmul.f32 %v1151, %v1225
  %v1233 = vmul.f32 %v1152, %v1225
  %v1234 = vmul.f32 %v1153, %v1225
  %v1235 = vmul.f32 %v1154, %v1225
  %v1236 = vmul.f32 %v1155, %v1225
  %v1237 = vmul.f32 %v1156, %v1225
  %v1238 = vmul.f32 %v1157, %v1225
  %v1239 = vmul.f32 %v1158, %v1225
  %v1240 = vmul.f32 %v1159, %v1225
  %v1241 = vmul.f32 %v1160, %v1225
  %v1243 = vperm.slane %v1098, 0
  %v1245 = vmul.f32 %v1226, %v1243
  %v1246 = vmul.f32 %v1227, %v1243
  %v1247 = vmul.f32 %v1228, %v1243
  %v1248 = vmul.f32 %v1229, %v1243
  %v1249 = vmul.f32 %v1230, %v1243
  %v1250 = vmul.f32 %v1231, %v1243
  %v1251 = vmul.f32 %v1232, %v1243
  %v1252 = vmul.f32 %v1233, %v1243
  %v1253 = vmul.f32 %v1234, %v1243
  %v1254 = vmul.f32 %v1235, %v1243
  %v1255 = vmul.f32 %v1236, %v1243
  %v1256 = vmul.f32 %v1237, %v1243
  %v1257 = vmul.f32 %v1238, %v1243
  %v1258 = vmul.f32 %v1239, %v1243
  %v1259 = vmul.f32 %v1240, %v1243
  %v1260 = vmul.f32 %v1241, %v1243
  %v1262 = vperm.slane %v1099, 0
  %v1264 = vadd.f32 %v1245, %v1262
  %v1265 = vadd.f32 %v1246, %v1262
  %v1266 = vadd.f32 %v1247, %v1262
  %v1267 = vadd.f32 %v1248, %v1262
  %v1268 = vadd.f32 %v1249, %v1262
  %v1269 = vadd.f32 %v1250, %v1262
  %v1270 = vadd.f32 %v1251, %v1262
  %v1271 = vadd.f32 %v1252, %v1262
  %v1272 = vadd.f32 %v1253, %v1262
  %v1273 = vadd.f32 %v1254, %v1262
  %v1274 = vadd.f32 %v1255, %v1262
  %v1275 = vadd.f32 %v1256, %v1262
  %v1276 = vadd.f32 %v1257, %v1262
  %v1277 = vadd.f32 %v1258, %v1262
  %v1278 = vadd.f32 %v1259, %v1262
  %v1279 = vadd.f32 %v1260, %v1262
  %vm1280 = vcmp.gt.f32.partialorder %v1264, 0.0
  %vm1281 = vcmp.gt.f32.partialorder %v1265, 0.0
  %vm1282 = vcmp.gt.f32.partialorder %v1266, 0.0
  %vm1283 = vcmp.gt.f32.partialorder %v1267, 0.0
  %vm1284 = vcmp.gt.f32.partialorder %v1268, 0.0
  %vm1285 = vcmp.gt.f32.partialorder %v1269, 0.0
  %vm1286 = vcmp.gt.f32.partialorder %v1270, 0.0
  %vm1287 = vcmp.gt.f32.partialorder %v1271, 0.0
  %vm1288 = vcmp.gt.f32.partialorder %v1272, 0.0
  %vm1289 = vcmp.gt.f32.partialorder %v1273, 0.0
  %vm1290 = vcmp.gt.f32.partialorder %v1274, 0.0
  %vm1291 = vcmp.gt.f32.partialorder %v1275, 0.0
  %vm1292 = vcmp.gt.f32.partialorder %v1276, 0.0
  %vm1293 = vcmp.gt.f32.partialorder %v1277, 0.0
  %vm1294 = vcmp.gt.f32.partialorder %v1278, 0.0
  %vm1295 = vcmp.gt.f32.partialorder %v1279, 0.0
  %v1296 = vmul.f32 %v1264, 1.442695
  %v1297 = vpow.pop %v1296
  %v1298 = vmul.f32 %v1265, 1.442695
  %v1299 = vpow.pop %v1298
  %v1300 = vmul.f32 %v1266, 1.442695
  %v1301 = vpow.pop %v1300
  %v1302 = vmul.f32 %v1267, 1.442695
  %v1303 = vpow.pop %v1302
  %v1304 = vmul.f32 %v1268, 1.442695
  %v1305 = vpow.pop %v1304
  %v1306 = vmul.f32 %v1269, 1.442695
  %v1307 = vpow.pop %v1306
  %v1308 = vmul.f32 %v1270, 1.442695
  %v1309 = vpow.pop %v1308
  %v1310 = vmul.f32 %v1271, 1.442695
  %v1311 = vpow.pop %v1310
  %v1312 = vmul.f32 %v1272, 1.442695
  %v1313 = vpow.pop %v1312
  %v1314 = vmul.f32 %v1273, 1.442695
  %v1315 = vpow.pop %v1314
  %v1316 = vmul.f32 %v1274, 1.442695
  %v1317 = vpow.pop %v1316
  %v1318 = vmul.f32 %v1275, 1.442695
  %v1319 = vpow.pop %v1318
  %v1320 = vmul.f32 %v1276, 1.442695
  %v1321 = vpow.pop %v1320
  %v1322 = vmul.f32 %v1277, 1.442695
  %v1323 = vpow.pop %v1322
  %v1324 = vmul.f32 %v1278, 1.442695
  %v1325 = vpow.pop %v1324
  %v1326 = vmul.f32 %v1279, 1.442695
  %v1327 = vpow.pop %v1326
  %v1328 = vsub.f32 %v1297, 1.0
  %v1329 = vsub.f32 %v1299, 1.0
  %v1330 = vsub.f32 %v1301, 1.0
  %v1331 = vsub.f32 %v1303, 1.0
  %v1332 = vsub.f32 %v1305, 1.0
  %v1333 = vsub.f32 %v1307, 1.0
  %v1334 = vsub.f32 %v1309, 1.0
  %v1335 = vsub.f32 %v1311, 1.0
  %v1336 = vsub.f32 %v1313, 1.0
  %v1337 = vsub.f32 %v1315, 1.0
  %v1338 = vsub.f32 %v1317, 1.0
  %v1339 = vsub.f32 %v1319, 1.0
  %v1340 = vsub.f32 %v1321, 1.0
  %v1341 = vsub.f32 %v1323, 1.0
  %v1342 = vsub.f32 %v1325, 1.0
  %v1343 = vsub.f32 %v1327, 1.0
  %v1344 = vsel %vm1280, %v1264, %v1328
  %v1345 = vsel %vm1281, %v1265, %v1329
  %v1346 = vsel %vm1282, %v1266, %v1330
  %v1347 = vsel %vm1283, %v1267, %v1331
  %v1348 = vsel %vm1284, %v1268, %v1332
  %v1349 = vsel %vm1285, %v1269, %v1333
  %v1350 = vsel %vm1286, %v1270, %v1334
  %v1351 = vsel %vm1287, %v1271, %v1335
  %v1352 = vsel %vm1288, %v1272, %v1336
  %v1353 = vsel %vm1289, %v1273, %v1337
  %v1354 = vsel %vm1290, %v1274, %v1338
  %v1355 = vsel %vm1291, %v1275, %v1339
  %v1356 = vsel %vm1292, %v1276, %v1340
  %v1357 = vsel %vm1293, %v1277, %v1341
  %v1358 = vsel %vm1294, %v1278, %v1342
  %v1359 = vsel %vm1295, %v1279, %v1343
  %1360 = vst.msk [vmem:[#allocation2] sm:$0xff] %vm210, 0.0
  %vm1361 = vcmask 58368
  %1362 = vst.msk [vmem:[#allocation2 + $0x8] sm:$0x3] %vm1361, 0.0
  %1363 = vst.msk [vmem:[#allocation2 + $0x10] sm:$0xff] %vm210, 0.0
  %1364 = vst.msk [vmem:[#allocation2 + $0x18] sm:$0x3] %vm1361, 0.0
  %1365 = vst.msk [vmem:[#allocation2 + $0x20] sm:$0xff] %vm210, 0.0
  %1366 = vst.msk [vmem:[#allocation2 + $0x28] sm:$0x3] %vm1361, 0.0
  %1367 = vst.msk [vmem:[#allocation2 + $0x30] sm:$0xff] %vm210, 0.0
  %1368 = vst.msk [vmem:[#allocation2 + $0x38] sm:$0x3] %vm1361, 0.0
  %1369 = vst.msk [vmem:[#allocation2 + $0x40] sm:$0xff] %vm210, 0.0
  %1370 = vst.msk [vmem:[#allocation2 + $0x48] sm:$0x3] %vm1361, 0.0
  %1371 = vst.msk [vmem:[#allocation2 + $0x50] sm:$0xff] %vm210, 0.0
  %1372 = vst.msk [vmem:[#allocation2 + $0x58] sm:$0x3] %vm1361, 0.0
  %1373 = vst.msk [vmem:[#allocation2 + $0x60] sm:$0xff] %vm210, 0.0
  %1374 = vst.msk [vmem:[#allocation2 + $0x68] sm:$0x3] %vm1361, 0.0
  %1375 = vst.msk [vmem:[#allocation2 + $0x70] sm:$0xff] %vm210, 0.0
  %1376 = vst.msk [vmem:[#allocation2 + $0x78] sm:$0x3] %vm1361, 0.0
  %1377 = vst.msk [vmem:[#allocation2 + $0x80] sm:$0xff] %vm210, 0.0
  %1378 = vst.msk [vmem:[#allocation2 + $0x88] sm:$0x3] %vm1361, 0.0
  %1379 = vst.msk [vmem:[#allocation2 + $0x90] sm:$0xff] %vm210, 0.0
  %1380 = vst.msk [vmem:[#allocation2 + $0x98] sm:$0x3] %vm1361, 0.0
  %1381 = vst.msk [vmem:[#allocation2 + $0xa0] sm:$0xff] %vm210, 0.0
  %1382 = vst.msk [vmem:[#allocation2 + $0xa8] sm:$0x3] %vm1361, 0.0
  %1383 = vst.msk [vmem:[#allocation2 + $0xb0] sm:$0xff] %vm210, 0.0
  %1384 = vst.msk [vmem:[#allocation2 + $0xb8] sm:$0x3] %vm1361, 0.0
  %1385 = vst.msk [vmem:[#allocation2 + $0xc0] sm:$0xff] %vm210, 0.0
  %1386 = vst.msk [vmem:[#allocation2 + $0xc8] sm:$0x3] %vm1361, 0.0
  %1387 = vst.msk [vmem:[#allocation2 + $0xd0] sm:$0xff] %vm210, 0.0
  %1388 = vst.msk [vmem:[#allocation2 + $0xd8] sm:$0x3] %vm1361, 0.0
  %1389 = vst.msk [vmem:[#allocation2 + $0xe0] sm:$0xff] %vm210, 0.0
  %1390 = vst.msk [vmem:[#allocation2 + $0xe8] sm:$0x3] %vm1361, 0.0
  %1391 = vst.msk [vmem:[#allocation2 + $0xf0] sm:$0xff] %vm210, 0.0
  %1392 = vst.msk [vmem:[#allocation2 + $0xf8] sm:$0x3] %vm1361, 0.0
  %1393 = vst.msk [vmem:[#allocation2 + $0x100] sm:$0xff] %vm210, 0.0
  %1394 = vst.msk [vmem:[#allocation2 + $0x108] sm:$0x3] %vm1361, 0.0
  %1395 = vst.msk [vmem:[#allocation2 + $0x110] sm:$0xff] %vm210, 0.0
  %1396 = vst.msk [vmem:[#allocation2 + $0x118] sm:$0x3] %vm1361, 0.0
  %1397 = vst.msk [vmem:[#allocation2 + $0x120] sm:$0xff] %vm210, 0.0
  %1398 = vst.msk [vmem:[#allocation2 + $0x128] sm:$0x3] %vm1361, 0.0
  %1399 = vst.msk [vmem:[#allocation2 + $0x130] sm:$0xff] %vm210, 0.0
  %1400 = vst.msk [vmem:[#allocation2 + $0x138] sm:$0x3] %vm1361, 0.0
  %s1401 = scalar_lea.vmem [#allocation2], 16
  %1402 = vst.msk [vmem:[%s1401 + $0x1] sm:$0xff] %vm210, %v1344
  %1403 = vst.msk [vmem:[%s1401 + $0x11] sm:$0xff] %vm210, %v1345
  %1404 = vst.msk [vmem:[%s1401 + $0x21] sm:$0xff] %vm210, %v1346
  %1405 = vst.msk [vmem:[%s1401 + $0x31] sm:$0xff] %vm210, %v1347
  %1406 = vst.msk [vmem:[%s1401 + $0x41] sm:$0xff] %vm210, %v1348
  %1407 = vst.msk [vmem:[%s1401 + $0x51] sm:$0xff] %vm210, %v1349
  %1408 = vst.msk [vmem:[%s1401 + $0x61] sm:$0xff] %vm210, %v1350
  %1409 = vst.msk [vmem:[%s1401 + $0x71] sm:$0xff] %vm210, %v1351
  %1410 = vst.msk [vmem:[%s1401 + $0xa1] sm:$0xff] %vm210, %v1352
  %1411 = vst.msk [vmem:[%s1401 + $0xb1] sm:$0xff] %vm210, %v1353
  %1412 = vst.msk [vmem:[%s1401 + $0xc1] sm:$0xff] %vm210, %v1354
  %1413 = vst.msk [vmem:[%s1401 + $0xd1] sm:$0xff] %vm210, %v1355
  %1414 = vst.msk [vmem:[%s1401 + $0xe1] sm:$0xff] %vm210, %v1356
  %1415 = vst.msk [vmem:[%s1401 + $0xf1] sm:$0xff] %vm210, %v1357
  %1416 = vst.msk [vmem:[%s1401 + $0x101] sm:$0xff] %vm210, %v1358
  %1417 = vst.msk [vmem:[%s1401 + $0x111] sm:$0xff] %vm210, %v1359
  %v1418 = vld [vmem:[#allocation2] sm:$0xff]
  %v1419 = vld [vmem:[#allocation2 + $0x10] sm:$0xff]
  %v1420 = vld [vmem:[#allocation2 + $0x20] sm:$0xff]
  %v1421 = vld [vmem:[#allocation2 + $0x30] sm:$0xff]
  %v1422 = vld [vmem:[#allocation2 + $0x40] sm:$0xff]
  %v1423 = vld [vmem:[#allocation2 + $0x50] sm:$0xff]
  %v1424 = vld [vmem:[#allocation2 + $0x60] sm:$0xff]
  %v1425 = vld [vmem:[#allocation2 + $0x70] sm:$0xff]
  %v1426 = vld [vmem:[#allocation2 + $0xa0] sm:$0xff]
  %v1427 = vld [vmem:[#allocation2 + $0xb0] sm:$0xff]
  %v1428 = vld [vmem:[#allocation2 + $0xc0] sm:$0xff]
  %v1429 = vld [vmem:[#allocation2 + $0xd0] sm:$0xff]
  %v1430 = vld [vmem:[#allocation2 + $0xe0] sm:$0xff]
  %v1431 = vld [vmem:[#allocation2 + $0xf0] sm:$0xff]
  %v1432 = vld [vmem:[#allocation2 + $0x100] sm:$0xff]
  %v1433 = vld [vmem:[#allocation2 + $0x110] sm:$0xff]
  %v1434 = vpack.c.bf16 %v1419, %v1418
  %v1435 = vpack.c.bf16 %v1421, %v1420
  %v1436 = vpack.c.bf16 %v1423, %v1422
  %v1437 = vpack.c.bf16 %v1425, %v1424
  %v1438 = vpack.c.bf16 %v1427, %v1426
  %v1439 = vpack.c.bf16 %v1429, %v1428
  %v1440 = vpack.c.bf16 %v1431, %v1430
  %v1441 = vpack.c.bf16 %v1433, %v1432
  %v1442 = vld [vmem:[%s5] sm:$0xf]
  %v1443 = vld [vmem:[#allocation2 + $0x1] sm:$0xff]
  %v1444 = vld [vmem:[#allocation2 + $0x11] sm:$0xff]
  %v1445 = vld [vmem:[#allocation2 + $0x21] sm:$0xff]
  %v1446 = vld [vmem:[#allocation2 + $0x31] sm:$0xff]
  %v1447 = vld [vmem:[#allocation2 + $0x41] sm:$0xff]
  %v1448 = vld [vmem:[#allocation2 + $0x51] sm:$0xff]
  %v1449 = vld [vmem:[#allocation2 + $0x61] sm:$0xff]
  %v1450 = vld [vmem:[#allocation2 + $0x71] sm:$0xff]
  %v1451 = vld [vmem:[#allocation2 + $0xa1] sm:$0xff]
  %v1452 = vld [vmem:[#allocation2 + $0xb1] sm:$0xff]
  %v1453 = vld [vmem:[#allocation2 + $0xc1] sm:$0xff]
  %v1454 = vld [vmem:[#allocation2 + $0xd1] sm:$0xff]
  %v1455 = vld [vmem:[#allocation2 + $0xe1] sm:$0xff]
  %v1456 = vld [vmem:[#allocation2 + $0xf1] sm:$0xff]
  %v1457 = vld [vmem:[#allocation2 + $0x101] sm:$0xff]
  %v1458 = vld [vmem:[#allocation2 + $0x111] sm:$0xff]
  %v1459 = vpack.c.bf16 %v1444, %v1443
  %v1460 = vpack.c.bf16 %v1446, %v1445
  %v1461 = vpack.c.bf16 %v1448, %v1447
  %v1462 = vpack.c.bf16 %v1450, %v1449
  %v1463 = vpack.c.bf16 %v1452, %v1451
  %v1464 = vpack.c.bf16 %v1454, %v1453
  %v1465 = vpack.c.bf16 %v1456, %v1455
  %v1466 = vpack.c.bf16 %v1458, %v1457
  %s1467 = scalar_lea.vmem %s5, 4
  %v1468 = vld [vmem:[%s1467] sm:$0xf]
  %v1470 = vsel %vm210, %v1459, 0
  %v1473 = vsel %vm210, %v1460, 0
  %v1476 = vsel %vm210, %v1461, 0
  %v1479 = vsel %vm210, %v1462, 0
  %v1482 = vsel %vm210, %v1463, 0
  %v1485 = vsel %vm210, %v1464, 0
  %v1488 = vsel %vm210, %v1465, 0
  %v1491 = vsel %vm210, %v1466, 0
  %v1494 = vsel %vm235, %v1468, 0
  %1496 = vmatpush.bf16.msra.mxu0 0
  %1497 = vmatpush.bf16.msra.mxu0 0
  %1498 = vmatpush.bf16.msra.mxu0 0
  %1499 = vmatpush.bf16.msra.mxu0 0
  %1500 = vmatpush.bf16.msra.mxu0 0
  %1501 = vmatpush.bf16.msra.mxu0 0
  %1502 = vmatpush.bf16.msra.mxu0 0
  %1503 = vmatpush.bf16.msra.mxu0 %v1494
  %1504 = vmatmul.bf16.gmra.mxu0 %v1470
  %v1505 = vpop.f32.mrf.mxu0
  %v1506 = vadd.f32 0.0, %v1505
  %v1507 = vpop.f32.mrf.mxu0
  %v1508 = vadd.f32 0.0, %v1507
  %1509 = vmatmul.bf16.gmra.mxu0 %v1473
  %v1510 = vpop.f32.mrf.mxu0
  %v1511 = vadd.f32 0.0, %v1510
  %v1512 = vpop.f32.mrf.mxu0
  %v1513 = vadd.f32 0.0, %v1512
  %1514 = vmatmul.bf16.gmra.mxu0 %v1476
  %v1515 = vpop.f32.mrf.mxu0
  %v1516 = vadd.f32 0.0, %v1515
  %v1517 = vpop.f32.mrf.mxu0
  %v1518 = vadd.f32 0.0, %v1517
  %1519 = vmatmul.bf16.gmra.mxu0 %v1479
  %v1520 = vpop.f32.mrf.mxu0
  %v1521 = vadd.f32 0.0, %v1520
  %v1522 = vpop.f32.mrf.mxu0
  %v1523 = vadd.f32 0.0, %v1522
  %1524 = vmatmul.bf16.gmra.mxu0 %v1482
  %v1525 = vpop.f32.mrf.mxu0
  %v1526 = vadd.f32 0.0, %v1525
  %v1527 = vpop.f32.mrf.mxu0
  %v1528 = vadd.f32 0.0, %v1527
  %1529 = vmatmul.bf16.gmra.mxu0 %v1485
  %v1530 = vpop.f32.mrf.mxu0
  %v1531 = vadd.f32 0.0, %v1530
  %v1532 = vpop.f32.mrf.mxu0
  %v1533 = vadd.f32 0.0, %v1532
  %1534 = vmatmul.bf16.gmra.mxu0 %v1488
  %v1535 = vpop.f32.mrf.mxu0
  %v1536 = vadd.f32 0.0, %v1535
  %v1537 = vpop.f32.mrf.mxu0
  %v1538 = vadd.f32 0.0, %v1537
  %1539 = vmatmul.bf16.gmra.mxu0 %v1491
  %v1540 = vpop.f32.mrf.mxu0
  %v1541 = vadd.f32 0.0, %v1540
  %v1542 = vpop.f32.mrf.mxu0
  %v1543 = vadd.f32 0.0, %v1542
  %1544 = vdwg.mxu0
  %v1546 = vsel %vm210, %v1434, 0
  %v1549 = vsel %vm210, %v1435, 0
  %v1552 = vsel %vm210, %v1436, 0
  %v1555 = vsel %vm210, %v1437, 0
  %v1558 = vsel %vm210, %v1438, 0
  %v1561 = vsel %vm210, %v1439, 0
  %v1564 = vsel %vm210, %v1440, 0
  %v1567 = vsel %vm210, %v1441, 0
  %v1570 = vsel %vm235, %v1442, 0
  %1572 = vmatpush.bf16.msra.mxu0 0
  %1573 = vmatpush.bf16.msra.mxu0 0
  %1574 = vmatpush.bf16.msra.mxu0 0
  %1575 = vmatpush.bf16.msra.mxu0 0
  %1576 = vmatpush.bf16.msra.mxu0 0
  %1577 = vmatpush.bf16.msra.mxu0 0
  %1578 = vmatpush.bf16.msra.mxu0 0
  %1579 = vmatpush.bf16.msra.mxu0 %v1570
  %1580 = vmatmul.bf16.gmra.mxu0 %v1546
  %v1581 = vpop.f32.mrf.mxu0
  %v1582 = vadd.f32 %v1506, %v1581
  %v1583 = vpop.f32.mrf.mxu0
  %v1584 = vadd.f32 %v1508, %v1583
  %1585 = vmatmul.bf16.gmra.mxu0 %v1549
  %v1586 = vpop.f32.mrf.mxu0
  %v1587 = vadd.f32 %v1511, %v1586
  %v1588 = vpop.f32.mrf.mxu0
  %v1589 = vadd.f32 %v1513, %v1588
  %1590 = vmatmul.bf16.gmra.mxu0 %v1552
  %v1591 = vpop.f32.mrf.mxu0
  %v1592 = vadd.f32 %v1516, %v1591
  %v1593 = vpop.f32.mrf.mxu0
  %v1594 = vadd.f32 %v1518, %v1593
  %1595 = vmatmul.bf16.gmra.mxu0 %v1555
  %v1596 = vpop.f32.mrf.mxu0
  %v1597 = vadd.f32 %v1521, %v1596
  %v1598 = vpop.f32.mrf.mxu0
  %v1599 = vadd.f32 %v1523, %v1598
  %1600 = vmatmul.bf16.gmra.mxu0 %v1558
  %v1601 = vpop.f32.mrf.mxu0
  %v1602 = vadd.f32 %v1526, %v1601
  %v1603 = vpop.f32.mrf.mxu0
  %v1604 = vadd.f32 %v1528, %v1603
  %1605 = vmatmul.bf16.gmra.mxu0 %v1561
  %v1606 = vpop.f32.mrf.mxu0
  %v1607 = vadd.f32 %v1531, %v1606
  %v1608 = vpop.f32.mrf.mxu0
  %v1609 = vadd.f32 %v1533, %v1608
  %1610 = vmatmul.bf16.gmra.mxu0 %v1564
  %v1611 = vpop.f32.mrf.mxu0
  %v1612 = vadd.f32 %v1536, %v1611
  %v1613 = vpop.f32.mrf.mxu0
  %v1614 = vadd.f32 %v1538, %v1613
  %1615 = vmatmul.bf16.gmra.mxu0 %v1567
  %v1616 = vpop.f32.mrf.mxu0
  %v1617 = vadd.f32 %v1541, %v1616
  %v1618 = vpop.f32.mrf.mxu0
  %v1619 = vadd.f32 %v1543, %v1618
  %1620 = vdwg.mxu0
  %v1621 = vld [vmem:[#allocation2 + $0x2] sm:$0xff]
  %v1622 = vld [vmem:[#allocation2 + $0x12] sm:$0xff]
  %v1623 = vld [vmem:[#allocation2 + $0x22] sm:$0xff]
  %v1624 = vld [vmem:[#allocation2 + $0x32] sm:$0xff]
  %v1625 = vld [vmem:[#allocation2 + $0x42] sm:$0xff]
  %v1626 = vld [vmem:[#allocation2 + $0x52] sm:$0xff]
  %v1627 = vld [vmem:[#allocation2 + $0x62] sm:$0xff]
  %v1628 = vld [vmem:[#allocation2 + $0x72] sm:$0xff]
  %v1629 = vld [vmem:[#allocation2 + $0xa2] sm:$0xff]
  %v1630 = vld [vmem:[#allocation2 + $0xb2] sm:$0xff]
  %v1631 = vld [vmem:[#allocation2 + $0xc2] sm:$0xff]
  %v1632 = vld [vmem:[#allocation2 + $0xd2] sm:$0xff]
  %v1633 = vld [vmem:[#allocation2 + $0xe2] sm:$0xff]
  %v1634 = vld [vmem:[#allocation2 + $0xf2] sm:$0xff]
  %v1635 = vld [vmem:[#allocation2 + $0x102] sm:$0xff]
  %v1636 = vld [vmem:[#allocation2 + $0x112] sm:$0xff]
  %v1637 = vpack.c.bf16 %v1622, %v1621
  %v1638 = vpack.c.bf16 %v1624, %v1623
  %v1639 = vpack.c.bf16 %v1626, %v1625
  %v1640 = vpack.c.bf16 %v1628, %v1627
  %v1641 = vpack.c.bf16 %v1630, %v1629
  %v1642 = vpack.c.bf16 %v1632, %v1631
  %v1643 = vpack.c.bf16 %v1634, %v1633
  %v1644 = vpack.c.bf16 %v1636, %v1635
  %s1645 = scalar_lea.vmem %s5, 8
  %v1646 = vld [vmem:[%s1645] sm:$0xf]
  %v1648 = vsel %vm210, %v1637, 0
  %v1651 = vsel %vm210, %v1638, 0
  %v1654 = vsel %vm210, %v1639, 0
  %v1657 = vsel %vm210, %v1640, 0
  %v1660 = vsel %vm210, %v1641, 0
  %v1663 = vsel %vm210, %v1642, 0
  %v1666 = vsel %vm210, %v1643, 0
  %v1669 = vsel %vm210, %v1644, 0
  %v1672 = vsel %vm235, %v1646, 0
  %1674 = vmatpush.bf16.msra.mxu0 0
  %1675 = vmatpush.bf16.msra.mxu0 0
  %1676 = vmatpush.bf16.msra.mxu0 0
  %1677 = vmatpush.bf16.msra.mxu0 0
  %1678 = vmatpush.bf16.msra.mxu0 0
  %1679 = vmatpush.bf16.msra.mxu0 0
  %1680 = vmatpush.bf16.msra.mxu0 0
  %1681 = vmatpush.bf16.msra.mxu0 %v1672
  %1682 = vmatmul.bf16.gmra.mxu0 %v1648
  %v1683 = vpop.f32.mrf.mxu0
  %v1684 = vadd.f32 0.0, %v1683
  %v1685 = vpop.f32.mrf.mxu0
  %v1686 = vadd.f32 0.0, %v1685
  %1687 = vmatmul.bf16.gmra.mxu0 %v1651
  %v1688 = vpop.f32.mrf.mxu0
  %v1689 = vadd.f32 0.0, %v1688
  %v1690 = vpop.f32.mrf.mxu0
  %v1691 = vadd.f32 0.0, %v1690
  %1692 = vmatmul.bf16.gmra.mxu0 %v1654
  %v1693 = vpop.f32.mrf.mxu0
  %v1694 = vadd.f32 0.0, %v1693
  %v1695 = vpop.f32.mrf.mxu0
  %v1696 = vadd.f32 0.0, %v1695
  %1697 = vmatmul.bf16.gmra.mxu0 %v1657
  %v1698 = vpop.f32.mrf.mxu0
  %v1699 = vadd.f32 0.0, %v1698
  %v1700 = vpop.f32.mrf.mxu0
  %v1701 = vadd.f32 0.0, %v1700
  %1702 = vmatmul.bf16.gmra.mxu0 %v1660
  %v1703 = vpop.f32.mrf.mxu0
  %v1704 = vadd.f32 0.0, %v1703
  %v1705 = vpop.f32.mrf.mxu0
  %v1706 = vadd.f32 0.0, %v1705
  %1707 = vmatmul.bf16.gmra.mxu0 %v1663
  %v1708 = vpop.f32.mrf.mxu0
  %v1709 = vadd.f32 0.0, %v1708
  %v1710 = vpop.f32.mrf.mxu0
  %v1711 = vadd.f32 0.0, %v1710
  %1712 = vmatmul.bf16.gmra.mxu0 %v1666
  %v1713 = vpop.f32.mrf.mxu0
  %v1714 = vadd.f32 0.0, %v1713
  %v1715 = vpop.f32.mrf.mxu0
  %v1716 = vadd.f32 0.0, %v1715
  %1717 = vmatmul.bf16.gmra.mxu0 %v1669
  %v1718 = vpop.f32.mrf.mxu0
  %v1719 = vadd.f32 0.0, %v1718
  %v1720 = vpop.f32.mrf.mxu0
  %v1721 = vadd.f32 0.0, %v1720
  %1722 = vdwg.mxu0
  %v1723 = vadd.f32 %v1582, %v1684
  %v1724 = vadd.f32 %v1584, %v1686
  %v1725 = vadd.f32 %v1587, %v1689
  %v1726 = vadd.f32 %v1589, %v1691
  %v1727 = vadd.f32 %v1592, %v1694
  %v1728 = vadd.f32 %v1594, %v1696
  %v1729 = vadd.f32 %v1597, %v1699
  %v1730 = vadd.f32 %v1599, %v1701
  %v1731 = vadd.f32 %v1602, %v1704
  %v1732 = vadd.f32 %v1604, %v1706
  %v1733 = vadd.f32 %v1607, %v1709
  %v1734 = vadd.f32 %v1609, %v1711
  %v1735 = vadd.f32 %v1612, %v1714
  %v1736 = vadd.f32 %v1614, %v1716
  %v1737 = vadd.f32 %v1617, %v1719
  %v1738 = vadd.f32 %v1619, %v1721
  %v1739 = vld [vmem:[%s1401] sm:$0xff]
  %v1740 = vld [vmem:[%s1401 + $0x10] sm:$0xff]
  %v1741 = vld [vmem:[%s1401 + $0x20] sm:$0xff]
  %v1742 = vld [vmem:[%s1401 + $0x30] sm:$0xff]
  %v1743 = vld [vmem:[%s1401 + $0x40] sm:$0xff]
  %v1744 = vld [vmem:[%s1401 + $0x50] sm:$0xff]
  %v1745 = vld [vmem:[%s1401 + $0x60] sm:$0xff]
  %v1746 = vld [vmem:[%s1401 + $0x70] sm:$0xff]
  %v1747 = vld [vmem:[%s1401 + $0xa0] sm:$0xff]
  %v1748 = vld [vmem:[%s1401 + $0xb0] sm:$0xff]
  %v1749 = vld [vmem:[%s1401 + $0xc0] sm:$0xff]
  %v1750 = vld [vmem:[%s1401 + $0xd0] sm:$0xff]
  %v1751 = vld [vmem:[%s1401 + $0xe0] sm:$0xff]
  %v1752 = vld [vmem:[%s1401 + $0xf0] sm:$0xff]
  %v1753 = vld [vmem:[%s1401 + $0x100] sm:$0xff]
  %v1754 = vld [vmem:[%s1401 + $0x110] sm:$0xff]
  %v1755 = vpack.c.bf16 %v1740, %v1739
  %v1756 = vpack.c.bf16 %v1742, %v1741
  %v1757 = vpack.c.bf16 %v1744, %v1743
  %v1758 = vpack.c.bf16 %v1746, %v1745
  %v1759 = vpack.c.bf16 %v1748, %v1747
  %v1760 = vpack.c.bf16 %v1750, %v1749
  %v1761 = vpack.c.bf16 %v1752, %v1751
  %v1762 = vpack.c.bf16 %v1754, %v1753
  %s1763 = scalar_lea.vmem %s5, 12
  %v1764 = vld [vmem:[%s1763] sm:$0xf]
  %v1766 = vsel %vm210, %v1755, 0
  %v1769 = vsel %vm210, %v1756, 0
  %v1772 = vsel %vm210, %v1757, 0
  %v1775 = vsel %vm210, %v1758, 0
  %v1778 = vsel %vm210, %v1759, 0
  %v1781 = vsel %vm210, %v1760, 0
  %v1784 = vsel %vm210, %v1761, 0
  %v1787 = vsel %vm210, %v1762, 0
  %v1790 = vsel %vm235, %v1764, 0
  %1792 = vmatpush.bf16.msra.mxu0 0
  %1793 = vmatpush.bf16.msra.mxu0 0
  %1794 = vmatpush.bf16.msra.mxu0 0
  %1795 = vmatpush.bf16.msra.mxu0 0
  %1796 = vmatpush.bf16.msra.mxu0 0
  %1797 = vmatpush.bf16.msra.mxu0 0
  %1798 = vmatpush.bf16.msra.mxu0 0
  %1799 = vmatpush.bf16.msra.mxu0 %v1790
  %1800 = vmatmul.bf16.gmra.mxu0 %v1766
  %v1801 = vpop.f32.mrf.mxu0
  %v1802 = vadd.f32 0.0, %v1801
  %v1803 = vpop.f32.mrf.mxu0
  %v1804 = vadd.f32 0.0, %v1803
  %1805 = vmatmul.bf16.gmra.mxu0 %v1769
  %v1806 = vpop.f32.mrf.mxu0
  %v1807 = vadd.f32 0.0, %v1806
  %v1808 = vpop.f32.mrf.mxu0
  %v1809 = vadd.f32 0.0, %v1808
  %1810 = vmatmul.bf16.gmra.mxu0 %v1772
  %v1811 = vpop.f32.mrf.mxu0
  %v1812 = vadd.f32 0.0, %v1811
  %v1813 = vpop.f32.mrf.mxu0
  %v1814 = vadd.f32 0.0, %v1813
  %1815 = vmatmul.bf16.gmra.mxu0 %v1775
  %v1816 = vpop.f32.mrf.mxu0
  %v1817 = vadd.f32 0.0, %v1816
  %v1818 = vpop.f32.mrf.mxu0
  %v1819 = vadd.f32 0.0, %v1818
  %1820 = vmatmul.bf16.gmra.mxu0 %v1778
  %v1821 = vpop.f32.mrf.mxu0
  %v1822 = vadd.f32 0.0, %v1821
  %v1823 = vpop.f32.mrf.mxu0
  %v1824 = vadd.f32 0.0, %v1823
  %1825 = vmatmul.bf16.gmra.mxu0 %v1781
  %v1826 = vpop.f32.mrf.mxu0
  %v1827 = vadd.f32 0.0, %v1826
  %v1828 = vpop.f32.mrf.mxu0
  %v1829 = vadd.f32 0.0, %v1828
  %1830 = vmatmul.bf16.gmra.mxu0 %v1784
  %v1831 = vpop.f32.mrf.mxu0
  %v1832 = vadd.f32 0.0, %v1831
  %v1833 = vpop.f32.mrf.mxu0
  %v1834 = vadd.f32 0.0, %v1833
  %1835 = vmatmul.bf16.gmra.mxu0 %v1787
  %v1836 = vpop.f32.mrf.mxu0
  %v1837 = vadd.f32 0.0, %v1836
  %v1838 = vpop.f32.mrf.mxu0
  %v1839 = vadd.f32 0.0, %v1838
  %1840 = vdwg.mxu0
  %v1841 = vadd.f32 %v1723, %v1802
  %v1842 = vadd.f32 %v1724, %v1804
  %v1843 = vadd.f32 %v1725, %v1807
  %v1844 = vadd.f32 %v1726, %v1809
  %v1845 = vadd.f32 %v1727, %v1812
  %v1846 = vadd.f32 %v1728, %v1814
  %v1847 = vadd.f32 %v1729, %v1817
  %v1848 = vadd.f32 %v1730, %v1819
  %v1849 = vadd.f32 %v1731, %v1822
  %v1850 = vadd.f32 %v1732, %v1824
  %v1851 = vadd.f32 %v1733, %v1827
  %v1852 = vadd.f32 %v1734, %v1829
  %v1853 = vadd.f32 %v1735, %v1832
  %v1854 = vadd.f32 %v1736, %v1834
  %v1855 = vadd.f32 %v1737, %v1837
  %v1856 = vadd.f32 %v1738, %v1839
  %v1857 = vld [vmem:[%s1401 + $0x1] sm:$0xff]
  %v1858 = vld [vmem:[%s1401 + $0x11] sm:$0xff]
  %v1859 = vld [vmem:[%s1401 + $0x21] sm:$0xff]
  %v1860 = vld [vmem:[%s1401 + $0x31] sm:$0xff]
  %v1861 = vld [vmem:[%s1401 + $0x41] sm:$0xff]
  %v1862 = vld [vmem:[%s1401 + $0x51] sm:$0xff]
  %v1863 = vld [vmem:[%s1401 + $0x61] sm:$0xff]
  %v1864 = vld [vmem:[%s1401 + $0x71] sm:$0xff]
  %v1865 = vld [vmem:[%s1401 + $0xa1] sm:$0xff]
  %v1866 = vld [vmem:[%s1401 + $0xb1] sm:$0xff]
  %v1867 = vld [vmem:[%s1401 + $0xc1] sm:$0xff]
  %v1868 = vld [vmem:[%s1401 + $0xd1] sm:$0xff]
  %v1869 = vld [vmem:[%s1401 + $0xe1] sm:$0xff]
  %v1870 = vld [vmem:[%s1401 + $0xf1] sm:$0xff]
  %v1871 = vld [vmem:[%s1401 + $0x101] sm:$0xff]
  %v1872 = vld [vmem:[%s1401 + $0x111] sm:$0xff]
  %v1873 = vpack.c.bf16 %v1858, %v1857
  %v1874 = vpack.c.bf16 %v1860, %v1859
  %v1875 = vpack.c.bf16 %v1862, %v1861
  %v1876 = vpack.c.bf16 %v1864, %v1863
  %v1877 = vpack.c.bf16 %v1866, %v1865
  %v1878 = vpack.c.bf16 %v1868, %v1867
  %v1879 = vpack.c.bf16 %v1870, %v1869
  %v1880 = vpack.c.bf16 %v1872, %v1871
  %s1881 = scalar_lea.vmem %s5, 16
  %v1882 = vld [vmem:[%s1881] sm:$0xf]
  %v1884 = vsel %vm210, %v1873, 0
  %v1887 = vsel %vm210, %v1874, 0
  %v1890 = vsel %vm210, %v1875, 0
  %v1893 = vsel %vm210, %v1876, 0
  %v1896 = vsel %vm210, %v1877, 0
  %v1899 = vsel %vm210, %v1878, 0
  %v1902 = vsel %vm210, %v1879, 0
  %v1905 = vsel %vm210, %v1880, 0
  %v1908 = vsel %vm235, %v1882, 0
  %1910 = vmatpush.bf16.msra.mxu0 0
  %1911 = vmatpush.bf16.msra.mxu0 0
  %1912 = vmatpush.bf16.msra.mxu0 0
  %1913 = vmatpush.bf16.msra.mxu0 0
  %1914 = vmatpush.bf16.msra.mxu0 0
  %1915 = vmatpush.bf16.msra.mxu0 0
  %1916 = vmatpush.bf16.msra.mxu0 0
  %1917 = vmatpush.bf16.msra.mxu0 %v1908
  %1918 = vmatmul.bf16.gmra.mxu0 %v1884
  %v1919 = vpop.f32.mrf.mxu0
  %v1920 = vadd.f32 0.0, %v1919
  %v1921 = vpop.f32.mrf.mxu0
  %v1922 = vadd.f32 0.0, %v1921
  %1923 = vmatmul.bf16.gmra.mxu0 %v1887
  %v1924 = vpop.f32.mrf.mxu0
  %v1925 = vadd.f32 0.0, %v1924
  %v1926 = vpop.f32.mrf.mxu0
  %v1927 = vadd.f32 0.0, %v1926
  %1928 = vmatmul.bf16.gmra.mxu0 %v1890
  %v1929 = vpop.f32.mrf.mxu0
  %v1930 = vadd.f32 0.0, %v1929
  %v1931 = vpop.f32.mrf.mxu0
  %v1932 = vadd.f32 0.0, %v1931
  %1933 = vmatmul.bf16.gmra.mxu0 %v1893
  %v1934 = vpop.f32.mrf.mxu0
  %v1935 = vadd.f32 0.0, %v1934
  %v1936 = vpop.f32.mrf.mxu0
  %v1937 = vadd.f32 0.0, %v1936
  %1938 = vmatmul.bf16.gmra.mxu0 %v1896
  %v1939 = vpop.f32.mrf.mxu0
  %v1940 = vadd.f32 0.0, %v1939
  %v1941 = vpop.f32.mrf.mxu0
  %v1942 = vadd.f32 0.0, %v1941
  %1943 = vmatmul.bf16.gmra.mxu0 %v1899
  %v1944 = vpop.f32.mrf.mxu0
  %v1945 = vadd.f32 0.0, %v1944
  %v1946 = vpop.f32.mrf.mxu0
  %v1947 = vadd.f32 0.0, %v1946
  %1948 = vmatmul.bf16.gmra.mxu0 %v1902
  %v1949 = vpop.f32.mrf.mxu0
  %v1950 = vadd.f32 0.0, %v1949
  %v1951 = vpop.f32.mrf.mxu0
  %v1952 = vadd.f32 0.0, %v1951
  %1953 = vmatmul.bf16.gmra.mxu0 %v1905
  %v1954 = vpop.f32.mrf.mxu0
  %v1955 = vadd.f32 0.0, %v1954
  %v1956 = vpop.f32.mrf.mxu0
  %v1957 = vadd.f32 0.0, %v1956
  %1958 = vdwg.mxu0
  %v1959 = vadd.f32 %v1841, %v1920
  %v1960 = vadd.f32 %v1842, %v1922
  %v1961 = vadd.f32 %v1843, %v1925
  %v1962 = vadd.f32 %v1844, %v1927
  %v1963 = vadd.f32 %v1845, %v1930
  %v1964 = vadd.f32 %v1846, %v1932
  %v1965 = vadd.f32 %v1847, %v1935
  %v1966 = vadd.f32 %v1848, %v1937
  %v1967 = vadd.f32 %v1849, %v1940
  %v1968 = vadd.f32 %v1850, %v1942
  %v1969 = vadd.f32 %v1851, %v1945
  %v1970 = vadd.f32 %v1852, %v1947
  %v1971 = vadd.f32 %v1853, %v1950
  %v1972 = vadd.f32 %v1854, %v1952
  %v1973 = vadd.f32 %v1855, %v1955
  %v1974 = vadd.f32 %v1856, %v1957
  %v1975 = vld [vmem:[%s1401 + $0x2] sm:$0xff]
  %v1976 = vld [vmem:[%s1401 + $0x12] sm:$0xff]
  %v1977 = vld [vmem:[%s1401 + $0x22] sm:$0xff]
  %v1978 = vld [vmem:[%s1401 + $0x32] sm:$0xff]
  %v1979 = vld [vmem:[%s1401 + $0x42] sm:$0xff]
  %v1980 = vld [vmem:[%s1401 + $0x52] sm:$0xff]
  %v1981 = vld [vmem:[%s1401 + $0x62] sm:$0xff]
  %v1982 = vld [vmem:[%s1401 + $0x72] sm:$0xff]
  %v1983 = vld [vmem:[%s1401 + $0xa2] sm:$0xff]
  %v1984 = vld [vmem:[%s1401 + $0xb2] sm:$0xff]
  %v1985 = vld [vmem:[%s1401 + $0xc2] sm:$0xff]
  %v1986 = vld [vmem:[%s1401 + $0xd2] sm:$0xff]
  %v1987 = vld [vmem:[%s1401 + $0xe2] sm:$0xff]
  %v1988 = vld [vmem:[%s1401 + $0xf2] sm:$0xff]
  %v1989 = vld [vmem:[%s1401 + $0x102] sm:$0xff]
  %v1990 = vld [vmem:[%s1401 + $0x112] sm:$0xff]
  %v1991 = vpack.c.bf16 %v1976, %v1975
  %v1992 = vpack.c.bf16 %v1978, %v1977
  %v1993 = vpack.c.bf16 %v1980, %v1979
  %v1994 = vpack.c.bf16 %v1982, %v1981
  %v1995 = vpack.c.bf16 %v1984, %v1983
  %v1996 = vpack.c.bf16 %v1986, %v1985
  %v1997 = vpack.c.bf16 %v1988, %v1987
  %v1998 = vpack.c.bf16 %v1990, %v1989
  %s1999 = scalar_lea.vmem %s5, 20
  %v2000 = vld [vmem:[%s1999] sm:$0xf]
  %v2002 = vsel %vm210, %v1991, 0
  %v2005 = vsel %vm210, %v1992, 0
  %v2008 = vsel %vm210, %v1993, 0
  %v2011 = vsel %vm210, %v1994, 0
  %v2014 = vsel %vm210, %v1995, 0
  %v2017 = vsel %vm210, %v1996, 0
  %v2020 = vsel %vm210, %v1997, 0
  %v2023 = vsel %vm210, %v1998, 0
  %v2026 = vsel %vm235, %v2000, 0
  %2028 = vmatpush.bf16.msra.mxu0 0
  %2029 = vmatpush.bf16.msra.mxu0 0
  %2030 = vmatpush.bf16.msra.mxu0 0
  %2031 = vmatpush.bf16.msra.mxu0 0
  %2032 = vmatpush.bf16.msra.mxu0 0
  %2033 = vmatpush.bf16.msra.mxu0 0
  %2034 = vmatpush.bf16.msra.mxu0 0
  %2035 = vmatpush.bf16.msra.mxu0 %v2026
  %2036 = vmatmul.bf16.gmra.mxu0 %v2002
  %v2037 = vpop.f32.mrf.mxu0
  %v2038 = vadd.f32 0.0, %v2037
  %v2039 = vpop.f32.mrf.mxu0
  %v2040 = vadd.f32 0.0, %v2039
  %2041 = vmatmul.bf16.gmra.mxu0 %v2005
  %v2042 = vpop.f32.mrf.mxu0
  %v2043 = vadd.f32 0.0, %v2042
  %v2044 = vpop.f32.mrf.mxu0
  %v2045 = vadd.f32 0.0, %v2044
  %2046 = vmatmul.bf16.gmra.mxu0 %v2008
  %v2047 = vpop.f32.mrf.mxu0
  %v2048 = vadd.f32 0.0, %v2047
  %v2049 = vpop.f32.mrf.mxu0
  %v2050 = vadd.f32 0.0, %v2049
  %2051 = vmatmul.bf16.gmra.mxu0 %v2011
  %v2052 = vpop.f32.mrf.mxu0
  %v2053 = vadd.f32 0.0, %v2052
  %v2054 = vpop.f32.mrf.mxu0
  %v2055 = vadd.f32 0.0, %v2054
  %2056 = vmatmul.bf16.gmra.mxu0 %v2014
  %v2057 = vpop.f32.mrf.mxu0
  %v2058 = vadd.f32 0.0, %v2057
  %v2059 = vpop.f32.mrf.mxu0
  %v2060 = vadd.f32 0.0, %v2059
  %2061 = vmatmul.bf16.gmra.mxu0 %v2017
  %v2062 = vpop.f32.mrf.mxu0
  %v2063 = vadd.f32 0.0, %v2062
  %v2064 = vpop.f32.mrf.mxu0
  %v2065 = vadd.f32 0.0, %v2064
  %2066 = vmatmul.bf16.gmra.mxu0 %v2020
  %v2067 = vpop.f32.mrf.mxu0
  %v2068 = vadd.f32 0.0, %v2067
  %v2069 = vpop.f32.mrf.mxu0
  %v2070 = vadd.f32 0.0, %v2069
  %2071 = vmatmul.bf16.gmra.mxu0 %v2023
  %v2072 = vpop.f32.mrf.mxu0
  %v2073 = vadd.f32 0.0, %v2072
  %v2074 = vpop.f32.mrf.mxu0
  %v2075 = vadd.f32 0.0, %v2074
  %2076 = vdwg.mxu0
  %v2077 = vadd.f32 %v1959, %v2038
  %v2078 = vadd.f32 %v1960, %v2040
  %v2079 = vadd.f32 %v1961, %v2043
  %v2080 = vadd.f32 %v1962, %v2045
  %v2081 = vadd.f32 %v1963, %v2048
  %v2082 = vadd.f32 %v1964, %v2050
  %v2083 = vadd.f32 %v1965, %v2053
  %v2084 = vadd.f32 %v1966, %v2055
  %v2085 = vadd.f32 %v1967, %v2058
  %v2086 = vadd.f32 %v1968, %v2060
  %v2087 = vadd.f32 %v1969, %v2063
  %v2088 = vadd.f32 %v1970, %v2065
  %v2089 = vadd.f32 %v1971, %v2068
  %v2090 = vadd.f32 %v1972, %v2070
  %v2091 = vadd.f32 %v1973, %v2073
  %v2092 = vadd.f32 %v1974, %v2075
  %s2093 = scalar_lea.vmem [#allocation2], 32
  %v2094 = vld [vmem:[%s2093] sm:$0xff]
  %v2095 = vld [vmem:[%s2093 + $0x10] sm:$0xff]
  %v2096 = vld [vmem:[%s2093 + $0x20] sm:$0xff]
  %v2097 = vld [vmem:[%s2093 + $0x30] sm:$0xff]
  %v2098 = vld [vmem:[%s2093 + $0x40] sm:$0xff]
  %v2099 = vld [vmem:[%s2093 + $0x50] sm:$0xff]
  %v2100 = vld [vmem:[%s2093 + $0x60] sm:$0xff]
  %v2101 = vld [vmem:[%s2093 + $0x70] sm:$0xff]
  %v2102 = vld [vmem:[%s2093 + $0xa0] sm:$0xff]
  %v2103 = vld [vmem:[%s2093 + $0xb0] sm:$0xff]
  %v2104 = vld [vmem:[%s2093 + $0xc0] sm:$0xff]
  %v2105 = vld [vmem:[%s2093 + $0xd0] sm:$0xff]
  %v2106 = vld [vmem:[%s2093 + $0xe0] sm:$0xff]
  %v2107 = vld [vmem:[%s2093 + $0xf0] sm:$0xff]
  %v2108 = vld [vmem:[%s2093 + $0x100] sm:$0xff]
  %v2109 = vld [vmem:[%s2093 + $0x110] sm:$0xff]
  %v2110 = vpack.c.bf16 %v2095, %v2094
  %v2111 = vpack.c.bf16 %v2097, %v2096
  %v2112 = vpack.c.bf16 %v2099, %v2098
  %v2113 = vpack.c.bf16 %v2101, %v2100
  %v2114 = vpack.c.bf16 %v2103, %v2102
  %v2115 = vpack.c.bf16 %v2105, %v2104
  %v2116 = vpack.c.bf16 %v2107, %v2106
  %v2117 = vpack.c.bf16 %v2109, %v2108
  %s2118 = scalar_lea.vmem %s5, 24
  %v2119 = vld [vmem:[%s2118] sm:$0xf]
  %v2121 = vsel %vm210, %v2110, 0
  %v2124 = vsel %vm210, %v2111, 0
  %v2127 = vsel %vm210, %v2112, 0
  %v2130 = vsel %vm210, %v2113, 0
  %v2133 = vsel %vm210, %v2114, 0
  %v2136 = vsel %vm210, %v2115, 0
  %v2139 = vsel %vm210, %v2116, 0
  %v2142 = vsel %vm210, %v2117, 0
  %v2145 = vsel %vm235, %v2119, 0
  %2147 = vmatpush.bf16.msra.mxu0 0
  %2148 = vmatpush.bf16.msra.mxu0 0
  %2149 = vmatpush.bf16.msra.mxu0 0
  %2150 = vmatpush.bf16.msra.mxu0 0
  %2151 = vmatpush.bf16.msra.mxu0 0
  %2152 = vmatpush.bf16.msra.mxu0 0
  %2153 = vmatpush.bf16.msra.mxu0 0
  %2154 = vmatpush.bf16.msra.mxu0 %v2145
  %2155 = vmatmul.bf16.gmra.mxu0 %v2121
  %v2156 = vpop.f32.mrf.mxu0
  %v2157 = vadd.f32 0.0, %v2156
  %v2158 = vpop.f32.mrf.mxu0
  %v2159 = vadd.f32 0.0, %v2158
  %2160 = vmatmul.bf16.gmra.mxu0 %v2124
  %v2161 = vpop.f32.mrf.mxu0
  %v2162 = vadd.f32 0.0, %v2161
  %v2163 = vpop.f32.mrf.mxu0
  %v2164 = vadd.f32 0.0, %v2163
  %2165 = vmatmul.bf16.gmra.mxu0 %v2127
  %v2166 = vpop.f32.mrf.mxu0
  %v2167 = vadd.f32 0.0, %v2166
  %v2168 = vpop.f32.mrf.mxu0
  %v2169 = vadd.f32 0.0, %v2168
  %2170 = vmatmul.bf16.gmra.mxu0 %v2130
  %v2171 = vpop.f32.mrf.mxu0
  %v2172 = vadd.f32 0.0, %v2171
  %v2173 = vpop.f32.mrf.mxu0
  %v2174 = vadd.f32 0.0, %v2173
  %2175 = vmatmul.bf16.gmra.mxu0 %v2133
  %v2176 = vpop.f32.mrf.mxu0
  %v2177 = vadd.f32 0.0, %v2176
  %v2178 = vpop.f32.mrf.mxu0
  %v2179 = vadd.f32 0.0, %v2178
  %2180 = vmatmul.bf16.gmra.mxu0 %v2136
  %v2181 = vpop.f32.mrf.mxu0
  %v2182 = vadd.f32 0.0, %v2181
  %v2183 = vpop.f32.mrf.mxu0
  %v2184 = vadd.f32 0.0, %v2183
  %2185 = vmatmul.bf16.gmra.mxu0 %v2139
  %v2186 = vpop.f32.mrf.mxu0
  %v2187 = vadd.f32 0.0, %v2186
  %v2188 = vpop.f32.mrf.mxu0
  %v2189 = vadd.f32 0.0, %v2188
  %2190 = vmatmul.bf16.gmra.mxu0 %v2142
  %v2191 = vpop.f32.mrf.mxu0
  %v2192 = vadd.f32 0.0, %v2191
  %v2193 = vpop.f32.mrf.mxu0
  %v2194 = vadd.f32 0.0, %v2193
  %2195 = vdwg.mxu0
  %v2196 = vadd.f32 %v2077, %v2157
  %v2197 = vadd.f32 %v2078, %v2159
  %v2198 = vadd.f32 %v2079, %v2162
  %v2199 = vadd.f32 %v2080, %v2164
  %v2200 = vadd.f32 %v2081, %v2167
  %v2201 = vadd.f32 %v2082, %v2169
  %v2202 = vadd.f32 %v2083, %v2172
  %v2203 = vadd.f32 %v2084, %v2174
  %v2204 = vadd.f32 %v2085, %v2177
  %v2205 = vadd.f32 %v2086, %v2179
  %v2206 = vadd.f32 %v2087, %v2182
  %v2207 = vadd.f32 %v2088, %v2184
  %v2208 = vadd.f32 %v2089, %v2187
  %v2209 = vadd.f32 %v2090, %v2189
  %v2210 = vadd.f32 %v2091, %v2192
  %v2211 = vadd.f32 %v2092, %v2194
  %v2212 = vld [vmem:[%s2093 + $0x1] sm:$0xff]
  %v2213 = vld [vmem:[%s2093 + $0x11] sm:$0xff]
  %v2214 = vld [vmem:[%s2093 + $0x21] sm:$0xff]
  %v2215 = vld [vmem:[%s2093 + $0x31] sm:$0xff]
  %v2216 = vld [vmem:[%s2093 + $0x41] sm:$0xff]
  %v2217 = vld [vmem:[%s2093 + $0x51] sm:$0xff]
  %v2218 = vld [vmem:[%s2093 + $0x61] sm:$0xff]
  %v2219 = vld [vmem:[%s2093 + $0x71] sm:$0xff]
  %v2220 = vld [vmem:[%s2093 + $0xa1] sm:$0xff]
  %v2221 = vld [vmem:[%s2093 + $0xb1] sm:$0xff]
  %v2222 = vld [vmem:[%s2093 + $0xc1] sm:$0xff]
  %v2223 = vld [vmem:[%s2093 + $0xd1] sm:$0xff]
  %v2224 = vld [vmem:[%s2093 + $0xe1] sm:$0xff]
  %v2225 = vld [vmem:[%s2093 + $0xf1] sm:$0xff]
  %v2226 = vld [vmem:[%s2093 + $0x101] sm:$0xff]
  %v2227 = vld [vmem:[%s2093 + $0x111] sm:$0xff]
  %v2228 = vpack.c.bf16 %v2213, %v2212
  %v2229 = vpack.c.bf16 %v2215, %v2214
  %v2230 = vpack.c.bf16 %v2217, %v2216
  %v2231 = vpack.c.bf16 %v2219, %v2218
  %v2232 = vpack.c.bf16 %v2221, %v2220
  %v2233 = vpack.c.bf16 %v2223, %v2222
  %v2234 = vpack.c.bf16 %v2225, %v2224
  %v2235 = vpack.c.bf16 %v2227, %v2226
  %s2236 = scalar_lea.vmem %s5, 28
  %v2237 = vld [vmem:[%s2236] sm:$0xf]
  %v2239 = vsel %vm210, %v2228, 0
  %v2242 = vsel %vm210, %v2229, 0
  %v2245 = vsel %vm210, %v2230, 0
  %v2248 = vsel %vm210, %v2231, 0
  %v2251 = vsel %vm210, %v2232, 0
  %v2254 = vsel %vm210, %v2233, 0
  %v2257 = vsel %vm210, %v2234, 0
  %v2260 = vsel %vm210, %v2235, 0
  %v2263 = vsel %vm235, %v2237, 0
  %2265 = vmatpush.bf16.msra.mxu0 0
  %2266 = vmatpush.bf16.msra.mxu0 0
  %2267 = vmatpush.bf16.msra.mxu0 0
  %2268 = vmatpush.bf16.msra.mxu0 0
  %2269 = vmatpush.bf16.msra.mxu0 0
  %2270 = vmatpush.bf16.msra.mxu0 0
  %2271 = vmatpush.bf16.msra.mxu0 0
  %2272 = vmatpush.bf16.msra.mxu0 %v2263
  %2273 = vmatmul.bf16.gmra.mxu0 %v2239
  %v2274 = vpop.f32.mrf.mxu0
  %v2275 = vadd.f32 0.0, %v2274
  %v2276 = vpop.f32.mrf.mxu0
  %v2277 = vadd.f32 0.0, %v2276
  %2278 = vmatmul.bf16.gmra.mxu0 %v2242
  %v2279 = vpop.f32.mrf.mxu0
  %v2280 = vadd.f32 0.0, %v2279
  %v2281 = vpop.f32.mrf.mxu0
  %v2282 = vadd.f32 0.0, %v2281
  %2283 = vmatmul.bf16.gmra.mxu0 %v2245
  %v2284 = vpop.f32.mrf.mxu0
  %v2285 = vadd.f32 0.0, %v2284
  %v2286 = vpop.f32.mrf.mxu0
  %v2287 = vadd.f32 0.0, %v2286
  %2288 = vmatmul.bf16.gmra.mxu0 %v2248
  %v2289 = vpop.f32.mrf.mxu0
  %v2290 = vadd.f32 0.0, %v2289
  %v2291 = vpop.f32.mrf.mxu0
  %v2292 = vadd.f32 0.0, %v2291
  %2293 = vmatmul.bf16.gmra.mxu0 %v2251
  %v2294 = vpop.f32.mrf.mxu0
  %v2295 = vadd.f32 0.0, %v2294
  %v2296 = vpop.f32.mrf.mxu0
  %v2297 = vadd.f32 0.0, %v2296
  %2298 = vmatmul.bf16.gmra.mxu0 %v2254
  %v2299 = vpop.f32.mrf.mxu0
  %v2300 = vadd.f32 0.0, %v2299
  %v2301 = vpop.f32.mrf.mxu0
  %v2302 = vadd.f32 0.0, %v2301
  %2303 = vmatmul.bf16.gmra.mxu0 %v2257
  %v2304 = vpop.f32.mrf.mxu0
  %v2305 = vadd.f32 0.0, %v2304
  %v2306 = vpop.f32.mrf.mxu0
  %v2307 = vadd.f32 0.0, %v2306
  %2308 = vmatmul.bf16.gmra.mxu0 %v2260
  %v2309 = vpop.f32.mrf.mxu0
  %v2310 = vadd.f32 0.0, %v2309
  %v2311 = vpop.f32.mrf.mxu0
  %v2312 = vadd.f32 0.0, %v2311
  %2313 = vdwg.mxu0
  %v2314 = vadd.f32 %v2196, %v2275
  %v2315 = vadd.f32 %v2197, %v2277
  %v2316 = vadd.f32 %v2198, %v2280
  %v2317 = vadd.f32 %v2199, %v2282
  %v2318 = vadd.f32 %v2200, %v2285
  %v2319 = vadd.f32 %v2201, %v2287
  %v2320 = vadd.f32 %v2202, %v2290
  %v2321 = vadd.f32 %v2203, %v2292
  %v2322 = vadd.f32 %v2204, %v2295
  %v2323 = vadd.f32 %v2205, %v2297
  %v2324 = vadd.f32 %v2206, %v2300
  %v2325 = vadd.f32 %v2207, %v2302
  %v2326 = vadd.f32 %v2208, %v2305
  %v2327 = vadd.f32 %v2209, %v2307
  %v2328 = vadd.f32 %v2210, %v2310
  %v2329 = vadd.f32 %v2211, %v2312
  %v2330 = vld [vmem:[%s2093 + $0x2] sm:$0xff]
  %v2331 = vld [vmem:[%s2093 + $0x12] sm:$0xff]
  %v2332 = vld [vmem:[%s2093 + $0x22] sm:$0xff]
  %v2333 = vld [vmem:[%s2093 + $0x32] sm:$0xff]
  %v2334 = vld [vmem:[%s2093 + $0x42] sm:$0xff]
  %v2335 = vld [vmem:[%s2093 + $0x52] sm:$0xff]
  %v2336 = vld [vmem:[%s2093 + $0x62] sm:$0xff]
  %v2337 = vld [vmem:[%s2093 + $0x72] sm:$0xff]
  %v2338 = vld [vmem:[%s2093 + $0xa2] sm:$0xff]
  %v2339 = vld [vmem:[%s2093 + $0xb2] sm:$0xff]
  %v2340 = vld [vmem:[%s2093 + $0xc2] sm:$0xff]
  %v2341 = vld [vmem:[%s2093 + $0xd2] sm:$0xff]
  %v2342 = vld [vmem:[%s2093 + $0xe2] sm:$0xff]
  %v2343 = vld [vmem:[%s2093 + $0xf2] sm:$0xff]
  %v2344 = vld [vmem:[%s2093 + $0x102] sm:$0xff]
  %v2345 = vld [vmem:[%s2093 + $0x112] sm:$0xff]
  %v2346 = vpack.c.bf16 %v2331, %v2330
  %v2347 = vpack.c.bf16 %v2333, %v2332
  %v2348 = vpack.c.bf16 %v2335, %v2334
  %v2349 = vpack.c.bf16 %v2337, %v2336
  %v2350 = vpack.c.bf16 %v2339, %v2338
  %v2351 = vpack.c.bf16 %v2341, %v2340
  %v2352 = vpack.c.bf16 %v2343, %v2342
  %v2353 = vpack.c.bf16 %v2345, %v2344
  %s2354 = scalar_lea.vmem %s5, 32
  %v2355 = vld [vmem:[%s2354] sm:$0xf]
  %v2357 = vsel %vm210, %v2346, 0
  %v2360 = vsel %vm210, %v2347, 0
  %v2363 = vsel %vm210, %v2348, 0
  %v2366 = vsel %vm210, %v2349, 0
  %v2369 = vsel %vm210, %v2350, 0
  %v2372 = vsel %vm210, %v2351, 0
  %v2375 = vsel %vm210, %v2352, 0
  %v2378 = vsel %vm210, %v2353, 0
  %v2381 = vsel %vm235, %v2355, 0
  %2383 = vmatpush.bf16.msra.mxu0 0
  %2384 = vmatpush.bf16.msra.mxu0 0
  %2385 = vmatpush.bf16.msra.mxu0 0
  %2386 = vmatpush.bf16.msra.mxu0 0
  %2387 = vmatpush.bf16.msra.mxu0 0
  %2388 = vmatpush.bf16.msra.mxu0 0
  %2389 = vmatpush.bf16.msra.mxu0 0
  %2390 = vmatpush.bf16.msra.mxu0 %v2381
  %2391 = vmatmul.bf16.gmra.mxu0 %v2357
  %v2392 = vpop.f32.mrf.mxu0
  %v2393 = vadd.f32 0.0, %v2392
  %v2394 = vpop.f32.mrf.mxu0
  %v2395 = vadd.f32 0.0, %v2394
  %2396 = vmatmul.bf16.gmra.mxu0 %v2360
  %v2397 = vpop.f32.mrf.mxu0
  %v2398 = vadd.f32 0.0, %v2397
  %v2399 = vpop.f32.mrf.mxu0
  %v2400 = vadd.f32 0.0, %v2399
  %2401 = vmatmul.bf16.gmra.mxu0 %v2363
  %v2402 = vpop.f32.mrf.mxu0
  %v2403 = vadd.f32 0.0, %v2402
  %v2404 = vpop.f32.mrf.mxu0
  %v2405 = vadd.f32 0.0, %v2404
  %2406 = vmatmul.bf16.gmra.mxu0 %v2366
  %v2407 = vpop.f32.mrf.mxu0
  %v2408 = vadd.f32 0.0, %v2407
  %v2409 = vpop.f32.mrf.mxu0
  %v2410 = vadd.f32 0.0, %v2409
  %2411 = vmatmul.bf16.gmra.mxu0 %v2369
  %v2412 = vpop.f32.mrf.mxu0
  %v2413 = vadd.f32 0.0, %v2412
  %v2414 = vpop.f32.mrf.mxu0
  %v2415 = vadd.f32 0.0, %v2414
  %2416 = vmatmul.bf16.gmra.mxu0 %v2372
  %v2417 = vpop.f32.mrf.mxu0
  %v2418 = vadd.f32 0.0, %v2417
  %v2419 = vpop.f32.mrf.mxu0
  %v2420 = vadd.f32 0.0, %v2419
  %2421 = vmatmul.bf16.gmra.mxu0 %v2375
  %v2422 = vpop.f32.mrf.mxu0
  %v2423 = vadd.f32 0.0, %v2422
  %v2424 = vpop.f32.mrf.mxu0
  %v2425 = vadd.f32 0.0, %v2424
  %2426 = vmatmul.bf16.gmra.mxu0 %v2378
  %v2427 = vpop.f32.mrf.mxu0
  %v2428 = vadd.f32 0.0, %v2427
  %v2429 = vpop.f32.mrf.mxu0
  %v2430 = vadd.f32 0.0, %v2429
  %2431 = vdwg.mxu0
  %v2432 = vadd.f32 %v2314, %v2393
  %v2433 = vadd.f32 %v2315, %v2395
  %v2434 = vadd.f32 %v2316, %v2398
  %v2435 = vadd.f32 %v2317, %v2400
  %v2436 = vadd.f32 %v2318, %v2403
  %v2437 = vadd.f32 %v2319, %v2405
  %v2438 = vadd.f32 %v2320, %v2408
  %v2439 = vadd.f32 %v2321, %v2410
  %v2440 = vadd.f32 %v2322, %v2413
  %v2441 = vadd.f32 %v2323, %v2415
  %v2442 = vadd.f32 %v2324, %v2418
  %v2443 = vadd.f32 %v2325, %v2420
  %v2444 = vadd.f32 %v2326, %v2423
  %v2445 = vadd.f32 %v2327, %v2425
  %v2446 = vadd.f32 %v2328, %v2428
  %v2447 = vadd.f32 %v2329, %v2430
  %v2448 = vld [vmem:[%s6] sm:$0x1]
  %v2450 = vperm.slane %v2448, 0
  %v2452 = vadd.f32 %v2432, %v2450
  %v2453 = vadd.f32 %v2433, %v2450
  %v2454 = vadd.f32 %v2434, %v2450
  %v2455 = vadd.f32 %v2435, %v2450
  %v2456 = vadd.f32 %v2436, %v2450
  %v2457 = vadd.f32 %v2437, %v2450
  %v2458 = vadd.f32 %v2438, %v2450
  %v2459 = vadd.f32 %v2439, %v2450
  %v2460 = vadd.f32 %v2440, %v2450
  %v2461 = vadd.f32 %v2441, %v2450
  %v2462 = vadd.f32 %v2442, %v2450
  %v2463 = vadd.f32 %v2443, %v2450
  %v2464 = vadd.f32 %v2444, %v2450
  %v2465 = vadd.f32 %v2445, %v2450
  %v2466 = vadd.f32 %v2446, %v2450
  %v2467 = vadd.f32 %v2447, %v2450
  %v2468 = vld [vmem:[%s7] sm:$0x1]
  %v2469 = vld [vmem:[%s8] sm:$0x1]
  %v2470 = vsel %vm210, %v2452, 0.0
  %v2471 = vsel %vm210, %v2453, 0.0
  %v2472 = vadd.f32 %v2470, %v2471
  %v2473 = vsel %vm210, %v2454, 0.0
  %v2474 = vadd.f32 %v2472, %v2473
  %v2475 = vsel %vm210, %v2455, 0.0
  %v2476 = vadd.f32 %v2474, %v2475
  %v2477 = vsel %vm210, %v2456, 0.0
  %v2478 = vadd.f32 %v2476, %v2477
  %v2479 = vsel %vm210, %v2457, 0.0
  %v2480 = vadd.f32 %v2478, %v2479
  %v2481 = vsel %vm210, %v2458, 0.0
  %v2482 = vadd.f32 %v2480, %v2481
  %v2483 = vsel %vm210, %v2459, 0.0
  %v2484 = vadd.f32 %v2482, %v2483
  %v2485 = vsel %vm210, %v2460, 0.0
  %v2486 = vadd.f32 %v2484, %v2485
  %v2487 = vsel %vm210, %v2461, 0.0
  %v2488 = vadd.f32 %v2486, %v2487
  %v2489 = vsel %vm210, %v2462, 0.0
  %v2490 = vadd.f32 %v2488, %v2489
  %v2491 = vsel %vm210, %v2463, 0.0
  %v2492 = vadd.f32 %v2490, %v2491
  %v2493 = vsel %vm210, %v2464, 0.0
  %v2494 = vadd.f32 %v2492, %v2493
  %v2495 = vsel %vm210, %v2465, 0.0
  %v2496 = vadd.f32 %v2494, %v2495
  %v2497 = vsel %vm210, %v2466, 0.0
  %v2498 = vadd.f32 %v2496, %v2497
  %v2499 = vsel %vm210, %v2467, 0.0
  %v2500 = vadd.f32 %v2498, %v2499
  %v2501 = vrot.slane %v2500, 4
  %v2502 = vadd.f32 %v2500, %v2501
  %v2503 = vrot.slane %v2502, 2
  %v2504 = vadd.f32 %v2502, %v2503
  %v2505 = vrot.slane %v2504, 1
  %v2506 = vadd.f32 %v2504, %v2505
  %v2507 = vmul.f32 %v2506, %v1143
  %v2508 = vsub.f32 %v2452, %v2507
  %v2509 = vsub.f32 %v2453, %v2507
  %v2510 = vsub.f32 %v2454, %v2507
  %v2511 = vsub.f32 %v2455, %v2507
  %v2512 = vsub.f32 %v2456, %v2507
  %v2513 = vsub.f32 %v2457, %v2507
  %v2514 = vsub.f32 %v2458, %v2507
  %v2515 = vsub.f32 %v2459, %v2507
  %v2516 = vsub.f32 %v2460, %v2507
  %v2517 = vsub.f32 %v2461, %v2507
  %v2518 = vsub.f32 %v2462, %v2507
  %v2519 = vsub.f32 %v2463, %v2507
  %v2520 = vsub.f32 %v2464, %v2507
  %v2521 = vsub.f32 %v2465, %v2507
  %v2522 = vsub.f32 %v2466, %v2507
  %v2523 = vsub.f32 %v2467, %v2507
  %v2524 = vmul.f32 %v2508, %v2508
  %v2525 = vmul.f32 %v2509, %v2509
  %v2526 = vmul.f32 %v2510, %v2510
  %v2527 = vmul.f32 %v2511, %v2511
  %v2528 = vmul.f32 %v2512, %v2512
  %v2529 = vmul.f32 %v2513, %v2513
  %v2530 = vmul.f32 %v2514, %v2514
  %v2531 = vmul.f32 %v2515, %v2515
  %v2532 = vmul.f32 %v2516, %v2516
  %v2533 = vmul.f32 %v2517, %v2517
  %v2534 = vmul.f32 %v2518, %v2518
  %v2535 = vmul.f32 %v2519, %v2519
  %v2536 = vmul.f32 %v2520, %v2520
  %v2537 = vmul.f32 %v2521, %v2521
  %v2538 = vmul.f32 %v2522, %v2522
  %v2539 = vmul.f32 %v2523, %v2523
  %v2540 = vsel %vm210, %v2524, 0.0
  %v2541 = vsel %vm210, %v2525, 0.0
  %v2542 = vadd.f32 %v2540, %v2541
  %v2543 = vsel %vm210, %v2526, 0.0
  %v2544 = vadd.f32 %v2542, %v2543
  %v2545 = vsel %vm210, %v2527, 0.0
  %v2546 = vadd.f32 %v2544, %v2545
  %v2547 = vsel %vm210, %v2528, 0.0
  %v2548 = vadd.f32 %v2546, %v2547
  %v2549 = vsel %vm210, %v2529, 0.0
  %v2550 = vadd.f32 %v2548, %v2549
  %v2551 = vsel %vm210, %v2530, 0.0
  %v2552 = vadd.f32 %v2550, %v2551
  %v2553 = vsel %vm210, %v2531, 0.0
  %v2554 = vadd.f32 %v2552, %v2553
  %v2555 = vsel %vm210, %v2532, 0.0
  %v2556 = vadd.f32 %v2554, %v2555
  %v2557 = vsel %vm210, %v2533, 0.0
  %v2558 = vadd.f32 %v2556, %v2557
  %v2559 = vsel %vm210, %v2534, 0.0
  %v2560 = vadd.f32 %v2558, %v2559
  %v2561 = vsel %vm210, %v2535, 0.0
  %v2562 = vadd.f32 %v2560, %v2561
  %v2563 = vsel %vm210, %v2536, 0.0
  %v2564 = vadd.f32 %v2562, %v2563
  %v2565 = vsel %vm210, %v2537, 0.0
  %v2566 = vadd.f32 %v2564, %v2565
  %v2567 = vsel %vm210, %v2538, 0.0
  %v2568 = vadd.f32 %v2566, %v2567
  %v2569 = vsel %vm210, %v2539, 0.0
  %v2570 = vadd.f32 %v2568, %v2569
  %v2571 = vrot.slane %v2570, 4
  %v2572 = vadd.f32 %v2570, %v2571
  %v2573 = vrot.slane %v2572, 2
  %v2574 = vadd.f32 %v2572, %v2573
  %v2575 = vrot.slane %v2574, 1
  %v2576 = vadd.f32 %v2574, %v2575
  %v2577 = vmul.f32 %v2576, %v1143
  %v2578 = vadd.f32 %v2577, 1e-05
  %v2579 = vrsqrt.pop %v2578
  %v2580 = vmul.f32 %v2579, %v2578
  %v2581 = vmul.f32 %v2580, %v2579
  %v2582 = vmul.f32 0.5, %v2581
  %v2583 = vsub.f32 1.5, %v2582
  %v2584 = vmul.f32 %v2579, %v2583
  %vm2585 = vweird.f32 %v2578
  %vm2586 = vweird.f32 %v2579
  %vm2587 = vmor %vm2585, %vm2586
  %v2588 = vsel %vm2587, %v2579, %v2584
  %v2589 = vmul.f32 %v2508, %v2588
  %v2590 = vmul.f32 %v2509, %v2588
  %v2591 = vmul.f32 %v2510, %v2588
  %v2592 = vmul.f32 %v2511, %v2588
  %v2593 = vmul.f32 %v2512, %v2588
  %v2594 = vmul.f32 %v2513, %v2588
  %v2595 = vmul.f32 %v2514, %v2588
  %v2596 = vmul.f32 %v2515, %v2588
  %v2597 = vmul.f32 %v2516, %v2588
  %v2598 = vmul.f32 %v2517, %v2588
  %v2599 = vmul.f32 %v2518, %v2588
  %v2600 = vmul.f32 %v2519, %v2588
  %v2601 = vmul.f32 %v2520, %v2588
  %v2602 = vmul.f32 %v2521, %v2588
  %v2603 = vmul.f32 %v2522, %v2588
  %v2604 = vmul.f32 %v2523, %v2588
  %v2606 = vperm.slane %v2468, 0
  %v2608 = vmul.f32 %v2589, %v2606
  %v2609 = vmul.f32 %v2590, %v2606
  %v2610 = vmul.f32 %v2591, %v2606
  %v2611 = vmul.f32 %v2592, %v2606
  %v2612 = vmul.f32 %v2593, %v2606
  %v2613 = vmul.f32 %v2594, %v2606
  %v2614 = vmul.f32 %v2595, %v2606
  %v2615 = vmul.f32 %v2596, %v2606
  %v2616 = vmul.f32 %v2597, %v2606
  %v2617 = vmul.f32 %v2598, %v2606
  %v2618 = vmul.f32 %v2599, %v2606
  %v2619 = vmul.f32 %v2600, %v2606
  %v2620 = vmul.f32 %v2601, %v2606
  %v2621 = vmul.f32 %v2602, %v2606
  %v2622 = vmul.f32 %v2603, %v2606
  %v2623 = vmul.f32 %v2604, %v2606
  %v2625 = vperm.slane %v2469, 0
  %v2627 = vadd.f32 %v2608, %v2625
  %v2628 = vadd.f32 %v2609, %v2625
  %v2629 = vadd.f32 %v2610, %v2625
  %v2630 = vadd.f32 %v2611, %v2625
  %v2631 = vadd.f32 %v2612, %v2625
  %v2632 = vadd.f32 %v2613, %v2625
  %v2633 = vadd.f32 %v2614, %v2625
  %v2634 = vadd.f32 %v2615, %v2625
  %v2635 = vadd.f32 %v2616, %v2625
  %v2636 = vadd.f32 %v2617, %v2625
  %v2637 = vadd.f32 %v2618, %v2625
  %v2638 = vadd.f32 %v2619, %v2625
  %v2639 = vadd.f32 %v2620, %v2625
  %v2640 = vadd.f32 %v2621, %v2625
  %v2641 = vadd.f32 %v2622, %v2625
  %v2642 = vadd.f32 %v2623, %v2625
  %vm2643 = vcmp.gt.f32.partialorder %v2627, 0.0
  %vm2644 = vcmp.gt.f32.partialorder %v2628, 0.0
  %vm2645 = vcmp.gt.f32.partialorder %v2629, 0.0
  %vm2646 = vcmp.gt.f32.partialorder %v2630, 0.0
  %vm2647 = vcmp.gt.f32.partialorder %v2631, 0.0
  %vm2648 = vcmp.gt.f32.partialorder %v2632, 0.0
  %vm2649 = vcmp.gt.f32.partialorder %v2633, 0.0
  %vm2650 = vcmp.gt.f32.partialorder %v2634, 0.0
  %vm2651 = vcmp.gt.f32.partialorder %v2635, 0.0
  %vm2652 = vcmp.gt.f32.partialorder %v2636, 0.0
  %vm2653 = vcmp.gt.f32.partialorder %v2637, 0.0
  %vm2654 = vcmp.gt.f32.partialorder %v2638, 0.0
  %vm2655 = vcmp.gt.f32.partialorder %v2639, 0.0
  %vm2656 = vcmp.gt.f32.partialorder %v2640, 0.0
  %vm2657 = vcmp.gt.f32.partialorder %v2641, 0.0
  %vm2658 = vcmp.gt.f32.partialorder %v2642, 0.0
  %v2659 = vmul.f32 %v2627, 1.442695
  %v2660 = vpow.pop %v2659
  %v2661 = vmul.f32 %v2628, 1.442695
  %v2662 = vpow.pop %v2661
  %v2663 = vmul.f32 %v2629, 1.442695
  %v2664 = vpow.pop %v2663
  %v2665 = vmul.f32 %v2630, 1.442695
  %v2666 = vpow.pop %v2665
  %v2667 = vmul.f32 %v2631, 1.442695
  %v2668 = vpow.pop %v2667
  %v2669 = vmul.f32 %v2632, 1.442695
  %v2670 = vpow.pop %v2669
  %v2671 = vmul.f32 %v2633, 1.442695
  %v2672 = vpow.pop %v2671
  %v2673 = vmul.f32 %v2634, 1.442695
  %v2674 = vpow.pop %v2673
  %v2675 = vmul.f32 %v2635, 1.442695
  %v2676 = vpow.pop %v2675
  %v2677 = vmul.f32 %v2636, 1.442695
  %v2678 = vpow.pop %v2677
  %v2679 = vmul.f32 %v2637, 1.442695
  %v2680 = vpow.pop %v2679
  %v2681 = vmul.f32 %v2638, 1.442695
  %v2682 = vpow.pop %v2681
  %v2683 = vmul.f32 %v2639, 1.442695
  %v2684 = vpow.pop %v2683
  %v2685 = vmul.f32 %v2640, 1.442695
  %v2686 = vpow.pop %v2685
  %v2687 = vmul.f32 %v2641, 1.442695
  %v2688 = vpow.pop %v2687
  %v2689 = vmul.f32 %v2642, 1.442695
  %v2690 = vpow.pop %v2689
  %v2691 = vsub.f32 %v2660, 1.0
  %v2692 = vsub.f32 %v2662, 1.0
  %v2693 = vsub.f32 %v2664, 1.0
  %v2694 = vsub.f32 %v2666, 1.0
  %v2695 = vsub.f32 %v2668, 1.0
  %v2696 = vsub.f32 %v2670, 1.0
  %v2697 = vsub.f32 %v2672, 1.0
  %v2698 = vsub.f32 %v2674, 1.0
  %v2699 = vsub.f32 %v2676, 1.0
  %v2700 = vsub.f32 %v2678, 1.0
  %v2701 = vsub.f32 %v2680, 1.0
  %v2702 = vsub.f32 %v2682, 1.0
  %v2703 = vsub.f32 %v2684, 1.0
  %v2704 = vsub.f32 %v2686, 1.0
  %v2705 = vsub.f32 %v2688, 1.0
  %v2706 = vsub.f32 %v2690, 1.0
  %v2707 = vsel %vm2643, %v2627, %v2691
  %v2708 = vsel %vm2644, %v2628, %v2692
  %v2709 = vsel %vm2645, %v2629, %v2693
  %v2710 = vsel %vm2646, %v2630, %v2694
  %v2711 = vsel %vm2647, %v2631, %v2695
  %v2712 = vsel %vm2648, %v2632, %v2696
  %v2713 = vsel %vm2649, %v2633, %v2697
  %v2714 = vsel %vm2650, %v2634, %v2698
  %v2715 = vsel %vm2651, %v2635, %v2699
  %v2716 = vsel %vm2652, %v2636, %v2700
  %v2717 = vsel %vm2653, %v2637, %v2701
  %v2718 = vsel %vm2654, %v2638, %v2702
  %v2719 = vsel %vm2655, %v2639, %v2703
  %v2720 = vsel %vm2656, %v2640, %v2704
  %v2721 = vsel %vm2657, %v2641, %v2705
  %v2722 = vsel %vm2658, %v2642, %v2706
  %v2723 = vsel %vm210, %v2707, 0.0
  %v2724 = vsel %vm210, %v2708, 0.0
  %v2725 = vadd.f32 %v2723, %v2724
  %v2726 = vsel %vm210, %v2709, 0.0
  %v2727 = vadd.f32 %v2725, %v2726
  %v2728 = vsel %vm210, %v2710, 0.0
  %v2729 = vadd.f32 %v2727, %v2728
  %v2730 = vsel %vm210, %v2711, 0.0
  %v2731 = vadd.f32 %v2729, %v2730
  %v2732 = vsel %vm210, %v2712, 0.0
  %v2733 = vadd.f32 %v2731, %v2732
  %v2734 = vsel %vm210, %v2713, 0.0
  %v2735 = vadd.f32 %v2733, %v2734
  %v2736 = vsel %vm210, %v2714, 0.0
  %v2737 = vadd.f32 %v2735, %v2736
  %v2738 = vrot.slane %v2737, 4
  %v2739 = vadd.f32 %v2737, %v2738
  %v2740 = vrot.slane %v2739, 2
  %v2741 = vadd.f32 %v2739, %v2740
  %v2742 = vrot.slane %v2741, 1
  %v2743 = vadd.f32 %v2741, %v2742
  %v2744 = vsel %vm210, %v2715, 0.0
  %v2745 = vsel %vm210, %v2716, 0.0
  %v2746 = vadd.f32 %v2744, %v2745
  %v2747 = vsel %vm210, %v2717, 0.0
  %v2748 = vadd.f32 %v2746, %v2747
  %v2749 = vsel %vm210, %v2718, 0.0
  %v2750 = vadd.f32 %v2748, %v2749
  %v2751 = vsel %vm210, %v2719, 0.0
  %v2752 = vadd.f32 %v2750, %v2751
  %v2753 = vsel %vm210, %v2720, 0.0
  %v2754 = vadd.f32 %v2752, %v2753
  %v2755 = vsel %vm210, %v2721, 0.0
  %v2756 = vadd.f32 %v2754, %v2755
  %v2757 = vsel %vm210, %v2722, 0.0
  %v2758 = vadd.f32 %v2756, %v2757
  %v2759 = vrot.slane %v2758, 4
  %v2760 = vadd.f32 %v2758, %v2759
  %v2761 = vrot.slane %v2760, 2
  %v2762 = vadd.f32 %v2760, %v2761
  %v2763 = vrot.slane %v2762, 1
  %v2764 = vadd.f32 %v2762, %v2763
  %v2765 = vrcp.pop 64.0
  %v2766 = vmul.f32 64.0, %v2765
  %v2767 = vsub.f32 1.0, %v2766
  %v2768 = vmul.f32 %v2765, %v2767
  %v2769 = vadd.f32 %v2765, %v2768
  %vm2770 = vweird.f32 %v2765
  %v2771 = vsel %vm2770, %v2765, %v2769
  %v2772 = vmul.f32 %v2743, %v2771
  %v2773 = vmul.f32 %v2764, %v2771
  %v2774 = vpack.c.bf16 %v2772, %v2772
  %v2775 = vpack.c.bf16 %v2773, %v2773
  %v2776 = vld [vmem:[%s9] sm:$0xf]
  %v2777 = vld [vmem:[%s10] sm:$0x1]
  %v2779 = vperm.slane %v2777, 0
  %v2783 = vunpack.c.l.b16 %v2774
  %v2784 = vunpack.c.l.b16 %v2775
  %vm2785 = vcmask 1041409
  %v2786 = vsel %vm2785, %v2784, %v2783
  %v2787 = vpack.c.b16 %v2786, %v2786
  %v2789 = vsel %vm210, %v2787, 0
  %v2792 = vsel %vm235, %v2776, 0
  %2794 = vmatpush.bf16.msra.mxu0 0
  %2795 = vmatpush.bf16.msra.mxu0 0
  %2796 = vmatpush.bf16.msra.mxu0 0
  %2797 = vmatpush.bf16.msra.mxu0 0
  %2798 = vmatpush.bf16.msra.mxu0 0
  %2799 = vmatpush.bf16.msra.mxu0 0
  %2800 = vmatpush.bf16.msra.mxu0 0
  %2801 = vmatpush.bf16.msra.mxu0 %v2792
  %2802 = vmatmul.bf16.gmra.mxu0 %v2789
  %v2803 = vpop.f32.mrf.mxu0
  %v2804 = vadd.f32 %v2779, %v2803
  %v2805 = vpop.f32.mrf.mxu0
  %2806 = vdwg.mxu0
  %vm2807 = vcmp.gt.f32.partialorder %v2804, 0.0
  %v2808 = vmul.f32 %v2804, 1.442695
  %v2809 = vpow.pop %v2808
  %v2810 = vsub.f32 %v2809, 1.0
  %v2811 = vsel %vm2807, %v2804, %v2810
  %v2812 = vpack.c.bf16 %v2811, %v2811
  %v2813 = vld [vmem:[%s11] sm:$0x1]
  %v2814 = vld [vmem:[%s12] sm:$0x1]
  %v2816 = vperm.slane %v2814, 0
  %vm2818 = vcmask 15360
  %v2820 = vsel %vm2818, %v2812, 0
  %vm2822 = vcmask 1040384
  %v2824 = vsel %vm2822, %v2813, 0
  %2826 = vmatpush.bf16.msra.mxu0 0
  %2827 = vmatpush.bf16.msra.mxu0 0
  %2828 = vmatpush.bf16.msra.mxu0 0
  %2829 = vmatpush.bf16.msra.mxu0 0
  %2830 = vmatpush.bf16.msra.mxu0 0
  %2831 = vmatpush.bf16.msra.mxu0 0
  %2832 = vmatpush.bf16.msra.mxu0 0
  %2833 = vmatpush.bf16.msra.mxu0 %v2824
  %2834 = vmatmul.bf16.gmra.mxu0 %v2820
  %v2835 = vpop.f32.mrf.mxu0
  %v2836 = vadd.f32 %v2816, %v2835
  %v2837 = vpop.f32.mrf.mxu0
  %2838 = vdwg.mxu0
  %v2839 = vsub.f32 0.0, %v2836
  %v2840 = vmul.f32 %v2839, 1.442695
  %v2841 = vpow.pop %v2840
  %v2842 = vadd.f32 %v2841, 1.0
  %v2843 = vrcp.pop %v2842
  %v2845 = vrot.slane %v2843, 1
  %v2846 = vperm.slane %v2843, 0
  %v2847 = vperm.slane %v2845, 0
  %v2850 = vmul.f32 %v2707, %v2846
  %v2851 = vmul.f32 %v2708, %v2846
  %v2852 = vmul.f32 %v2709, %v2846
  %v2853 = vmul.f32 %v2710, %v2846
  %v2854 = vmul.f32 %v2711, %v2846
  %v2855 = vmul.f32 %v2712, %v2846
  %v2856 = vmul.f32 %v2713, %v2846
  %v2857 = vmul.f32 %v2714, %v2846
  %v2858 = vmul.f32 %v2715, %v2847
  %v2859 = vmul.f32 %v2716, %v2847
  %v2860 = vmul.f32 %v2717, %v2847
  %v2861 = vmul.f32 %v2718, %v2847
  %v2862 = vmul.f32 %v2719, %v2847
  %v2863 = vmul.f32 %v2720, %v2847
  %v2864 = vmul.f32 %v2721, %v2847
  %v2865 = vmul.f32 %v2722, %v2847
  %v2866 = vadd.f32 %v2850, %v110
  %v2867 = vadd.f32 %v2851, %v111
  %v2868 = vadd.f32 %v2852, %v112
  %v2869 = vadd.f32 %v2853, %v113
  %v2870 = vadd.f32 %v2854, %v114
  %v2871 = vadd.f32 %v2855, %v115
  %v2872 = vadd.f32 %v2856, %v116
  %v2873 = vadd.f32 %v2857, %v117
  %v2874 = vadd.f32 %v2858, %v118
  %v2875 = vadd.f32 %v2859, %v119
  %v2876 = vadd.f32 %v2860, %v120
  %v2877 = vadd.f32 %v2861, %v121
  %v2878 = vadd.f32 %v2862, %v122
  %v2879 = vadd.f32 %v2863, %v123
  %v2880 = vadd.f32 %v2864, %v124
  %v2881 = vadd.f32 %v2865, %v125
  %vm2882 = vcmp.gt.f32.partialorder %v2866, 0.0
  %vm2883 = vcmp.gt.f32.partialorder %v2867, 0.0
  %vm2884 = vcmp.gt.f32.partialorder %v2868, 0.0
  %vm2885 = vcmp.gt.f32.partialorder %v2869, 0.0
  %vm2886 = vcmp.gt.f32.partialorder %v2870, 0.0
  %vm2887 = vcmp.gt.f32.partialorder %v2871, 0.0
  %vm2888 = vcmp.gt.f32.partialorder %v2872, 0.0
  %vm2889 = vcmp.gt.f32.partialorder %v2873, 0.0
  %vm2890 = vcmp.gt.f32.partialorder %v2874, 0.0
  %vm2891 = vcmp.gt.f32.partialorder %v2875, 0.0
  %vm2892 = vcmp.gt.f32.partialorder %v2876, 0.0
  %vm2893 = vcmp.gt.f32.partialorder %v2877, 0.0
  %vm2894 = vcmp.gt.f32.partialorder %v2878, 0.0
  %vm2895 = vcmp.gt.f32.partialorder %v2879, 0.0
  %vm2896 = vcmp.gt.f32.partialorder %v2880, 0.0
  %vm2897 = vcmp.gt.f32.partialorder %v2881, 0.0
  %v2898 = vmul.f32 %v2866, 1.442695
  %v2899 = vpow.pop %v2898
  %v2900 = vmul.f32 %v2867, 1.442695
  %v2901 = vpow.pop %v2900
  %v2902 = vmul.f32 %v2868, 1.442695
  %v2903 = vpow.pop %v2902
  %v2904 = vmul.f32 %v2869, 1.442695
  %v2905 = vpow.pop %v2904
  %v2906 = vmul.f32 %v2870, 1.442695
  %v2907 = vpow.pop %v2906
  %v2908 = vmul.f32 %v2871, 1.442695
  %v2909 = vpow.pop %v2908
  %v2910 = vmul.f32 %v2872, 1.442695
  %v2911 = vpow.pop %v2910
  %v2912 = vmul.f32 %v2873, 1.442695
  %v2913 = vpow.pop %v2912
  %v2914 = vmul.f32 %v2874, 1.442695
  %v2915 = vpow.pop %v2914
  %v2916 = vmul.f32 %v2875, 1.442695
  %v2917 = vpow.pop %v2916
  %v2918 = vmul.f32 %v2876, 1.442695
  %v2919 = vpow.pop %v2918
  %v2920 = vmul.f32 %v2877, 1.442695
  %v2921 = vpow.pop %v2920
  %v2922 = vmul.f32 %v2878, 1.442695
  %v2923 = vpow.pop %v2922
  %v2924 = vmul.f32 %v2879, 1.442695
  %v2925 = vpow.pop %v2924
  %v2926 = vmul.f32 %v2880, 1.442695
  %v2927 = vpow.pop %v2926
  %v2928 = vmul.f32 %v2881, 1.442695
  %v2929 = vpow.pop %v2928
  %v2930 = vsub.f32 %v2899, 1.0
  %v2931 = vsub.f32 %v2901, 1.0
  %v2932 = vsub.f32 %v2903, 1.0
  %v2933 = vsub.f32 %v2905, 1.0
  %v2934 = vsub.f32 %v2907, 1.0
  %v2935 = vsub.f32 %v2909, 1.0
  %v2936 = vsub.f32 %v2911, 1.0
  %v2937 = vsub.f32 %v2913, 1.0
  %v2938 = vsub.f32 %v2915, 1.0
  %v2939 = vsub.f32 %v2917, 1.0
  %v2940 = vsub.f32 %v2919, 1.0
  %v2941 = vsub.f32 %v2921, 1.0
  %v2942 = vsub.f32 %v2923, 1.0
  %v2943 = vsub.f32 %v2925, 1.0
  %v2944 = vsub.f32 %v2927, 1.0
  %v2945 = vsub.f32 %v2929, 1.0
  %v2946 = vsel %vm2882, %v2866, %v2930
  %v2947 = vsel %vm2883, %v2867, %v2931
  %v2948 = vsel %vm2884, %v2868, %v2932
  %v2949 = vsel %vm2885, %v2869, %v2933
  %v2950 = vsel %vm2886, %v2870, %v2934
  %v2951 = vsel %vm2887, %v2871, %v2935
  %v2952 = vsel %vm2888, %v2872, %v2936
  %v2953 = vsel %vm2889, %v2873, %v2937
  %v2954 = vsel %vm2890, %v2874, %v2938
  %v2955 = vsel %vm2891, %v2875, %v2939
  %v2956 = vsel %vm2892, %v2876, %v2940
  %v2957 = vsel %vm2893, %v2877, %v2941
  %v2958 = vsel %vm2894, %v2878, %v2942
  %v2959 = vsel %vm2895, %v2879, %v2943
  %v2960 = vsel %vm2896, %v2880, %v2944
  %v2961 = vsel %vm2897, %v2881, %v2945
  %2962 = vst.msk [vmem:[%s13] sm:$0xff] %vm210, %v2946
  %2963 = vst.msk [vmem:[%s13 + $0x8] sm:$0xff] %vm210, %v2947
  %2964 = vst.msk [vmem:[%s13 + $0x10] sm:$0xff] %vm210, %v2948
  %2965 = vst.msk [vmem:[%s13 + $0x18] sm:$0xff] %vm210, %v2949
  %2966 = vst.msk [vmem:[%s13 + $0x20] sm:$0xff] %vm210, %v2950
  %2967 = vst.msk [vmem:[%s13 + $0x28] sm:$0xff] %vm210, %v2951
  %2968 = vst.msk [vmem:[%s13 + $0x30] sm:$0xff] %vm210, %v2952
  %2969 = vst.msk [vmem:[%s13 + $0x38] sm:$0xff] %vm210, %v2953
  %2970 = vst.msk [vmem:[%s13 + $0x40] sm:$0xff] %vm210, %v2954
  %2971 = vst.msk [vmem:[%s13 + $0x48] sm:$0xff] %vm210, %v2955
  %2972 = vst.msk [vmem:[%s13 + $0x50] sm:$0xff] %vm210, %v2956
  %2973 = vst.msk [vmem:[%s13 + $0x58] sm:$0xff] %vm210, %v2957
  %2974 = vst.msk [vmem:[%s13 + $0x60] sm:$0xff] %vm210, %v2958
  %2975 = vst.msk [vmem:[%s13 + $0x68] sm:$0xff] %vm210, %v2959
  %2976 = vst.msk [vmem:[%s13 + $0x70] sm:$0xff] %vm210, %v2960
  %2977 = vst.msk [vmem:[%s13 + $0x78] sm:$0xff] %vm210, %v2961
  // Predicated region
  $region54: #{_lambda_.3} parent=0 // pred_check
    _
  $region55: #{_lambda_.3} parent=0 // pred_check_branch
    %2979 = sbr.rel (0) target = $region57
  $region56: #{_lambda_.3} parent=0 // pred_region
    _
  $region57: #{_lambda_.3} parent=0 // pred_fallthru
    _
  // Predicated region
  $region58: #{_lambda_.3} parent=0 // pred_check
    _
  $region59: #{_lambda_.3} parent=0 // pred_check_branch
    %2981 = sbr.rel (0) target = $region61
  $region60: #{_lambda_.3} parent=0 // pred_region
    _
  $region61: #{_lambda_.3} parent=0 // pred_fallthru
    _

// kernel: _lambda_.2
$region0: #{_lambda_.2}
  #allocation0 [shape = 'u32[]', space=smem, size = 0x4, offset = 0x4, fixed_abs, tag = 'smem constant byte address 0x4 - core index']
  #allocation1 [shape = 'u32[72,128]{1,0:T(1,128)}', space=vmem, size = 0x9000, scoped, tag = 'internal scratch']
  #allocation2 [shape = 'f32[2,10,10,8]{3,2,1,0:T(8,128)}', space=vmem, size = 0x28000, scoped, tag = 'scratch operand']
  %s0 = inlined_call_operand.vmem [shape: f32[4,2,9,9,4], index: 0, kind: input, shape index: {}]
  %s1 = inlined_call_operand.vmem [shape: bf16[9,4,8], index: 1, kind: input, shape index: {}]
  %s2 = inlined_call_operand.vmem [shape: f32[1,8], index: 2, kind: input, shape index: {}]
  %s3 = inlined_call_operand.vmem [shape: f32[1,8], index: 3, kind: input, shape index: {}, may-alias: {3,7}]
  %s4 = inlined_call_operand.vmem [shape: f32[1,8], index: 4, kind: input, shape index: {}, may-alias: {4,8,12}]
  %s5 = inlined_call_operand.vmem [shape: bf16[9,8,8], index: 5, kind: input, shape index: {}]
  %s6 = inlined_call_operand.vmem [shape: f32[1,8], index: 6, kind: input, shape index: {}]
  %s7 = inlined_call_operand.vmem [shape: f32[1,8], index: 7, kind: input, shape index: {}, may-alias: {3,7}]
  %s8 = inlined_call_operand.vmem [shape: f32[1,8], index: 8, kind: input, shape index: {}, may-alias: {4,8,12}]
  %s9 = inlined_call_operand.vmem [shape: bf16[8,2], index: 9, kind: input, shape index: {}]
  %s10 = inlined_call_operand.vmem [shape: f32[1,2], index: 10, kind: input, shape index: {}]
  %s11 = inlined_call_operand.vmem [shape: bf16[2,8], index: 11, kind: input, shape index: {}]
  %s12 = inlined_call_operand.vmem [shape: f32[1,8], index: 12, kind: input, shape index: {}, may-alias: {4,8,12}]
  %s13 = inlined_call_operand.vmem [shape: bf16[4,8], index: 13, kind: input, shape index: {}]
  %s14 = inlined_call_operand.vmem [shape: f32[1,8], index: 14, kind: input, shape index: {}]
  %s15 = inlined_call_operand.vmem [shape: f32[128,8], index: 15, kind: output, shape index: {}]
  %s16 = sld [smem:[#allocation0]]
  $region70: #{_lambda_.2} parent=0
    _
  %s18 = ssub.s32 1, %s16
  %s19 = scalar_select 0, %s18, %s16
  // Predicated region
  $region2: #{_lambda_.2} parent=0 // pred_check
    _
  $region3: #{_lambda_.2} parent=0 // pred_check_branch
    %21 = sbr.rel (0) target = $region5
  $region4: #{_lambda_.2} parent=0 // pred_region
    _
  $region5: #{_lambda_.2} parent=0 // pred_fallthru
    _
  // Predicated region
  $region6: #{_lambda_.2} parent=0 // pred_check
    _
  $region7: #{_lambda_.2} parent=0 // pred_check_branch
    %23 = sbr.rel (0) target = $region9
  $region8: #{_lambda_.2} parent=0 // pred_region
    _
  $region9: #{_lambda_.2} parent=0 // pred_fallthru
    _
  // Predicated region
  $region10: #{_lambda_.2} parent=0 // pred_check
    _
  $region11: #{_lambda_.2} parent=0 // pred_check_branch
    %25 = sbr.rel (0) target = $region13
  $region12: #{_lambda_.2} parent=0 // pred_region
    _
  $region13: #{_lambda_.2} parent=0 // pred_fallthru
    _
  // Predicated region
  $region14: #{_lambda_.2} parent=0 // pred_check
    _
  $region15: #{_lambda_.2} parent=0 // pred_check_branch
    %27 = sbr.rel (0) target = $region17
  $region16: #{_lambda_.2} parent=0 // pred_region
    _
  $region17: #{_lambda_.2} parent=0 // pred_fallthru
    _
  // Predicated region
  $region18: #{_lambda_.2} parent=0 // pred_check
    _
  $region19: #{_lambda_.2} parent=0 // pred_check_branch
    %29 = sbr.rel (0) target = $region21
  $region20: #{_lambda_.2} parent=0 // pred_region
    _
  $region21: #{_lambda_.2} parent=0 // pred_fallthru
    _
  // Predicated region
  $region22: #{_lambda_.2} parent=0 // pred_check
    _
  $region23: #{_lambda_.2} parent=0 // pred_check_branch
    %31 = sbr.rel (0) target = $region25
  $region24: #{_lambda_.2} parent=0 // pred_region
    _
  $region25: #{_lambda_.2} parent=0 // pred_fallthru
    _
  // Predicated region
  $region26: #{_lambda_.2} parent=0 // pred_check
    _
  $region27: #{_lambda_.2} parent=0 // pred_check_branch
    %33 = sbr.rel (0) target = $region29
  $region28: #{_lambda_.2} parent=0 // pred_region
    _
  $region29: #{_lambda_.2} parent=0 // pred_fallthru
    _
  // Predicated region
  $region30: #{_lambda_.2} parent=0 // pred_check
    _
  $region31: #{_lambda_.2} parent=0 // pred_check_branch
    %35 = sbr.rel (0) target = $region33
  $region32: #{_lambda_.2} parent=0 // pred_region
    _
  $region33: #{_lambda_.2} parent=0 // pred_fallthru
    _
  // Predicated region
  $region34: #{_lambda_.2} parent=0 // pred_check
    _
  $region35: #{_lambda_.2} parent=0 // pred_check_branch
    %37 = sbr.rel (0) target = $region37
  $region36: #{_lambda_.2} parent=0 // pred_region
    _
  $region37: #{_lambda_.2} parent=0 // pred_fallthru
    _
  // Predicated region
  $region38: #{_lambda_.2} parent=0 // pred_check
    _
  $region39: #{_lambda_.2} parent=0 // pred_check_branch
    %39 = sbr.rel (0) target = $region41
  $region40: #{_lambda_.2} parent=0 // pred_region
    _
  $region41: #{_lambda_.2} parent=0 // pred_fallthru
    _
  // Predicated region
  $region42: #{_lambda_.2} parent=0 // pred_check
    _
  $region43: #{_lambda_.2} parent=0 // pred_check_branch
    %41 = sbr.rel (0) target = $region45
  $region44: #{_lambda_.2} parent=0 // pred_region
    _
  $region45: #{_lambda_.2} parent=0 // pred_fallthru
    _
  // Predicated region
  $region46: #{_lambda_.2} parent=0 // pred_check
    _
  $region47: #{_lambda_.2} parent=0 // pred_check_branch
    %43 = sbr.rel (0) target = $region49
  $region48: #{_lambda_.2} parent=0 // pred_region
    _
  $region49: #{_lambda_.2} parent=0 // pred_fallthru
    _
  // Predicated region
  $region50: #{_lambda_.2} parent=0 // pred_check
    _
  $region51: #{_lambda_.2} parent=0 // pred_check_branch
    %45 = sbr.rel (0) target = $region53
  $region52: #{_lambda_.2} parent=0 // pred_region
    _
  $region53: #{_lambda_.2} parent=0 // pred_fallthru
    _
  // Predicated region
  $region54: #{_lambda_.2} parent=0 // pred_check
    _
  $region55: #{_lambda_.2} parent=0 // pred_check_branch
    %47 = sbr.rel (0) target = $region57
  $region56: #{_lambda_.2} parent=0 // pred_region
    _
  $region57: #{_lambda_.2} parent=0 // pred_fallthru
    _
  // Predicated region
  $region58: #{_lambda_.2} parent=0 // pred_check
    _
  $region59: #{_lambda_.2} parent=0 // pred_check_branch
    %49 = sbr.rel (0) target = $region61
  $region60: #{_lambda_.2} parent=0 // pred_region
    _
  $region61: #{_lambda_.2} parent=0 // pred_fallthru
    _
  %v51 = vld [vmem:[%s0] sm:$0xff]
  %v52 = vld [vmem:[%s0 + $0x10] sm:$0xff]
  %v53 = vld [vmem:[%s0 + $0x20] sm:$0xff]
  %v54 = vld [vmem:[%s0 + $0x30] sm:$0xff]
  %v55 = vld [vmem:[%s0 + $0x40] sm:$0xff]
  %v56 = vld [vmem:[%s0 + $0x50] sm:$0xff]
  %v57 = vld [vmem:[%s0 + $0x60] sm:$0xff]
  %v58 = vld [vmem:[%s0 + $0x70] sm:$0xff]
  %v59 = vld [vmem:[%s0 + $0x90] sm:$0xff]
  %v60 = vld [vmem:[%s0 + $0xa0] sm:$0xff]
  %v61 = vld [vmem:[%s0 + $0xb0] sm:$0xff]
  %v62 = vld [vmem:[%s0 + $0xc0] sm:$0xff]
  %v63 = vld [vmem:[%s0 + $0xd0] sm:$0xff]
  %v64 = vld [vmem:[%s0 + $0xe0] sm:$0xff]
  %v65 = vld [vmem:[%s0 + $0xf0] sm:$0xff]
  %v66 = vld [vmem:[%s0 + $0x100] sm:$0xff]
  %s67 = scalar_lea.vmem %s0, 288
  %v68 = vld [vmem:[%s67] sm:$0xff]
  %v69 = vld [vmem:[%s67 + $0x10] sm:$0xff]
  %v70 = vld [vmem:[%s67 + $0x20] sm:$0xff]
  %v71 = vld [vmem:[%s67 + $0x30] sm:$0xff]
  %v72 = vld [vmem:[%s67 + $0x40] sm:$0xff]
  %v73 = vld [vmem:[%s67 + $0x50] sm:$0xff]
  %v74 = vld [vmem:[%s67 + $0x60] sm:$0xff]
  %v75 = vld [vmem:[%s67 + $0x70] sm:$0xff]
  %v76 = vld [vmem:[%s67 + $0x90] sm:$0xff]
  %v77 = vld [vmem:[%s67 + $0xa0] sm:$0xff]
  %v78 = vld [vmem:[%s67 + $0xb0] sm:$0xff]
  %v79 = vld [vmem:[%s67 + $0xc0] sm:$0xff]
  %v80 = vld [vmem:[%s67 + $0xd0] sm:$0xff]
  %v81 = vld [vmem:[%s67 + $0xe0] sm:$0xff]
  %v82 = vld [vmem:[%s67 + $0xf0] sm:$0xff]
  %v83 = vld [vmem:[%s67 + $0x100] sm:$0xff]
  %v84 = vld [vmem:[%s0 + $0x1] sm:$0xff]
  %v85 = vld [vmem:[%s0 + $0x11] sm:$0xff]
  %v86 = vld [vmem:[%s0 + $0x21] sm:$0xff]
  %v87 = vld [vmem:[%s0 + $0x31] sm:$0xff]
  %v88 = vld [vmem:[%s0 + $0x41] sm:$0xff]
  %v89 = vld [vmem:[%s0 + $0x51] sm:$0xff]
  %v90 = vld [vmem:[%s0 + $0x61] sm:$0xff]
  %v91 = vld [vmem:[%s0 + $0x71] sm:$0xff]
  %v92 = vld [vmem:[%s0 + $0x91] sm:$0xff]
  %v93 = vld [vmem:[%s0 + $0xa1] sm:$0xff]
  %v94 = vld [vmem:[%s0 + $0xb1] sm:$0xff]
  %v95 = vld [vmem:[%s0 + $0xc1] sm:$0xff]
  %v96 = vld [vmem:[%s0 + $0xd1] sm:$0xff]
  %v97 = vld [vmem:[%s0 + $0xe1] sm:$0xff]
  %v98 = vld [vmem:[%s0 + $0xf1] sm:$0xff]
  %v99 = vld [vmem:[%s0 + $0x101] sm:$0xff]
  %s100 = scalar_lea.vmem %s0, 576
  %v101 = vld [vmem:[%s100] sm:$0xff]
  %v102 = vld [vmem:[%s100 + $0x10] sm:$0xff]
  %v103 = vld [vmem:[%s100 + $0x20] sm:$0xff]
  %v104 = vld [vmem:[%s100 + $0x30] sm:$0xff]
  %v105 = vld [vmem:[%s100 + $0x40] sm:$0xff]
  %v106 = vld [vmem:[%s100 + $0x50] sm:$0xff]
  %v107 = vld [vmem:[%s100 + $0x60] sm:$0xff]
  %v108 = vld [vmem:[%s100 + $0x70] sm:$0xff]
  %v109 = vld [vmem:[%s100 + $0x90] sm:$0xff]
  %v110 = vld [vmem:[%s100 + $0xa0] sm:$0xff]
  %v111 = vld [vmem:[%s100 + $0xb0] sm:$0xff]
  %v112 = vld [vmem:[%s100 + $0xc0] sm:$0xff]
  %v113 = vld [vmem:[%s100 + $0xd0] sm:$0xff]
  %v114 = vld [vmem:[%s100 + $0xe0] sm:$0xff]
  %v115 = vld [vmem:[%s100 + $0xf0] sm:$0xff]
  %v116 = vld [vmem:[%s100 + $0x100] sm:$0xff]
  %s117 = scalar_lea.vmem %s0, 864
  %v118 = vld [vmem:[%s117] sm:$0xff]
  %v119 = vld [vmem:[%s117 + $0x10] sm:$0xff]
  %v120 = vld [vmem:[%s117 + $0x20] sm:$0xff]
  %v121 = vld [vmem:[%s117 + $0x30] sm:$0xff]
  %v122 = vld [vmem:[%s117 + $0x40] sm:$0xff]
  %v123 = vld [vmem:[%s117 + $0x50] sm:$0xff]
  %v124 = vld [vmem:[%s117 + $0x60] sm:$0xff]
  %v125 = vld [vmem:[%s117 + $0x70] sm:$0xff]
  %v126 = vld [vmem:[%s117 + $0x90] sm:$0xff]
  %v127 = vld [vmem:[%s117 + $0xa0] sm:$0xff]
  %v128 = vld [vmem:[%s117 + $0xb0] sm:$0xff]
  %v129 = vld [vmem:[%s117 + $0xc0] sm:$0xff]
  %v130 = vld [vmem:[%s117 + $0xd0] sm:$0xff]
  %v131 = vld [vmem:[%s117 + $0xe0] sm:$0xff]
  %v132 = vld [vmem:[%s117 + $0xf0] sm:$0xff]
  %v133 = vld [vmem:[%s117 + $0x100] sm:$0xff]
  %v134 = vld [vmem:[%s100 + $0x1] sm:$0xff]
  %v135 = vld [vmem:[%s100 + $0x11] sm:$0xff]
  %v136 = vld [vmem:[%s100 + $0x21] sm:$0xff]
  %v137 = vld [vmem:[%s100 + $0x31] sm:$0xff]
  %v138 = vld [vmem:[%s100 + $0x41] sm:$0xff]
  %v139 = vld [vmem:[%s100 + $0x51] sm:$0xff]
  %v140 = vld [vmem:[%s100 + $0x61] sm:$0xff]
  %v141 = vld [vmem:[%s100 + $0x71] sm:$0xff]
  %v142 = vld [vmem:[%s100 + $0x91] sm:$0xff]
  %v143 = vld [vmem:[%s100 + $0xa1] sm:$0xff]
  %v144 = vld [vmem:[%s100 + $0xb1] sm:$0xff]
  %v145 = vld [vmem:[%s100 + $0xc1] sm:$0xff]
  %v146 = vld [vmem:[%s100 + $0xd1] sm:$0xff]
  %v147 = vld [vmem:[%s100 + $0xe1] sm:$0xff]
  %v148 = vld [vmem:[%s100 + $0xf1] sm:$0xff]
  %v149 = vld [vmem:[%s100 + $0x101] sm:$0xff]
  %s150 = scalar_lea.vmem %s0, 16
  %v151 = vld [vmem:[%s150] sm:$0xff]
  %v152 = vld [vmem:[%s150 + $0x10] sm:$0xff]
  %v153 = vld [vmem:[%s150 + $0x20] sm:$0xff]
  %v154 = vld [vmem:[%s150 + $0x30] sm:$0xff]
  %v155 = vld [vmem:[%s150 + $0x40] sm:$0xff]
  %v156 = vld [vmem:[%s150 + $0x50] sm:$0xff]
  %v157 = vld [vmem:[%s150 + $0x60] sm:$0xff]
  %v158 = vld [vmem:[%s150 + $0x70] sm:$0xff]
  %v159 = vld [vmem:[%s150 + $0x90] sm:$0xff]
  %v160 = vld [vmem:[%s150 + $0xa0] sm:$0xff]
  %v161 = vld [vmem:[%s150 + $0xb0] sm:$0xff]
  %v162 = vld [vmem:[%s150 + $0xc0] sm:$0xff]
  %v163 = vld [vmem:[%s150 + $0xd0] sm:$0xff]
  %v164 = vld [vmem:[%s150 + $0xe0] sm:$0xff]
  %v165 = vld [vmem:[%s150 + $0xf0] sm:$0xff]
  %v166 = vld [vmem:[%s150 + $0x100] sm:$0xff]
  %s167 = scalar_lea.vmem %s0, 304
  %v168 = vld [vmem:[%s167] sm:$0xff]
  %v169 = vld [vmem:[%s167 + $0x10] sm:$0xff]
  %v170 = vld [vmem:[%s167 + $0x20] sm:$0xff]
  %v171 = vld [vmem:[%s167 + $0x30] sm:$0xff]
  %v172 = vld [vmem:[%s167 + $0x40] sm:$0xff]
  %v173 = vld [vmem:[%s167 + $0x50] sm:$0xff]
  %v174 = vld [vmem:[%s167 + $0x60] sm:$0xff]
  %v175 = vld [vmem:[%s167 + $0x70] sm:$0xff]
  %v176 = vld [vmem:[%s167 + $0x90] sm:$0xff]
  %v177 = vld [vmem:[%s167 + $0xa0] sm:$0xff]
  %v178 = vld [vmem:[%s167 + $0xb0] sm:$0xff]
  %v179 = vld [vmem:[%s167 + $0xc0] sm:$0xff]
  %v180 = vld [vmem:[%s167 + $0xd0] sm:$0xff]
  %v181 = vld [vmem:[%s167 + $0xe0] sm:$0xff]
  %v182 = vld [vmem:[%s167 + $0xf0] sm:$0xff]
  %v183 = vld [vmem:[%s167 + $0x100] sm:$0xff]
  %v184 = vld [vmem:[%s150 + $0x1] sm:$0xff]
  %v185 = vld [vmem:[%s150 + $0x11] sm:$0xff]
  %v186 = vld [vmem:[%s150 + $0x21] sm:$0xff]
  %v187 = vld [vmem:[%s150 + $0x31] sm:$0xff]
  %v188 = vld [vmem:[%s150 + $0x41] sm:$0xff]
  %v189 = vld [vmem:[%s150 + $0x51] sm:$0xff]
  %v190 = vld [vmem:[%s150 + $0x61] sm:$0xff]
  %v191 = vld [vmem:[%s150 + $0x71] sm:$0xff]
  %v192 = vld [vmem:[%s150 + $0x91] sm:$0xff]
  %v193 = vld [vmem:[%s150 + $0xa1] sm:$0xff]
  %v194 = vld [vmem:[%s150 + $0xb1] sm:$0xff]
  %v195 = vld [vmem:[%s150 + $0xc1] sm:$0xff]
  %v196 = vld [vmem:[%s150 + $0xd1] sm:$0xff]
  %v197 = vld [vmem:[%s150 + $0xe1] sm:$0xff]
  %v198 = vld [vmem:[%s150 + $0xf1] sm:$0xff]
  %v199 = vld [vmem:[%s150 + $0x101] sm:$0xff]
  %v200 = vpack.c.bf16 %v52, %v51
  %v201 = vpack.c.bf16 %v54, %v53
  %v202 = vpack.c.bf16 %v56, %v55
  %v203 = vpack.c.bf16 %v58, %v57
  %v204 = vpack.c.bf16 %v60, %v59
  %v205 = vpack.c.bf16 %v62, %v61
  %v206 = vpack.c.bf16 %v64, %v63
  %v207 = vpack.c.bf16 %v66, %v65
  %v208 = vld [vmem:[%s1] sm:$0x3]
  %v209 = vpack.c.bf16 %v69, %v68
  %v210 = vpack.c.bf16 %v71, %v70
  %v211 = vpack.c.bf16 %v73, %v72
  %v212 = vpack.c.bf16 %v75, %v74
  %v213 = vpack.c.bf16 %v77, %v76
  %v214 = vpack.c.bf16 %v79, %v78
  %v215 = vpack.c.bf16 %v81, %v80
  %v216 = vpack.c.bf16 %v83, %v82
  %s217 = scalar_lea.vmem %s1, 2
  %v218 = vld [vmem:[%s217] sm:$0x3]
  %vm219 = vcmask 31744
  %v221 = vsel %vm219, %v209, 0
  %v224 = vsel %vm219, %v210, 0
  %v227 = vsel %vm219, %v211, 0
  %v230 = vsel %vm219, %v212, 0
  %v233 = vsel %vm219, %v213, 0
  %v236 = vsel %vm219, %v214, 0
  %v239 = vsel %vm219, %v215, 0
  %v242 = vsel %vm219, %v216, 0
  %vm244 = vcmask 1041408
  %v246 = vsel %vm244, %v218, 0
  %248 = vmatpush.bf16.msra.mxu0 0
  %249 = vmatpush.bf16.msra.mxu0 0
  %250 = vmatpush.bf16.msra.mxu0 0
  %251 = vmatpush.bf16.msra.mxu0 0
  %252 = vmatpush.bf16.msra.mxu0 0
  %253 = vmatpush.bf16.msra.mxu0 0
  %254 = vmatpush.bf16.msra.mxu0 0
  %255 = vmatpush.bf16.msra.mxu0 %v246
  %256 = vmatmul.bf16.gmra.mxu0 %v221
  %v257 = vpop.f32.mrf.mxu0
  %v258 = vadd.f32 0.0, %v257
  %v259 = vpop.f32.mrf.mxu0
  %v260 = vadd.f32 0.0, %v259
  %261 = vmatmul.bf16.gmra.mxu0 %v224
  %v262 = vpop.f32.mrf.mxu0
  %v263 = vadd.f32 0.0, %v262
  %v264 = vpop.f32.mrf.mxu0
  %v265 = vadd.f32 0.0, %v264
  %266 = vmatmul.bf16.gmra.mxu0 %v227
  %v267 = vpop.f32.mrf.mxu0
  %v268 = vadd.f32 0.0, %v267
  %v269 = vpop.f32.mrf.mxu0
  %v270 = vadd.f32 0.0, %v269
  %271 = vmatmul.bf16.gmra.mxu0 %v230
  %v272 = vpop.f32.mrf.mxu0
  %v273 = vadd.f32 0.0, %v272
  %v274 = vpop.f32.mrf.mxu0
  %v275 = vadd.f32 0.0, %v274
  %276 = vmatmul.bf16.gmra.mxu0 %v233
  %v277 = vpop.f32.mrf.mxu0
  %v278 = vadd.f32 0.0, %v277
  %v279 = vpop.f32.mrf.mxu0
  %v280 = vadd.f32 0.0, %v279
  %281 = vmatmul.bf16.gmra.mxu0 %v236
  %v282 = vpop.f32.mrf.mxu0
  %v283 = vadd.f32 0.0, %v282
  %v284 = vpop.f32.mrf.mxu0
  %v285 = vadd.f32 0.0, %v284
  %286 = vmatmul.bf16.gmra.mxu0 %v239
  %v287 = vpop.f32.mrf.mxu0
  %v288 = vadd.f32 0.0, %v287
  %v289 = vpop.f32.mrf.mxu0
  %v290 = vadd.f32 0.0, %v289
  %291 = vmatmul.bf16.gmra.mxu0 %v242
  %v292 = vpop.f32.mrf.mxu0
  %v293 = vadd.f32 0.0, %v292
  %v294 = vpop.f32.mrf.mxu0
  %v295 = vadd.f32 0.0, %v294
  %296 = vdwg.mxu0
  %v298 = vsel %vm219, %v200, 0
  %v301 = vsel %vm219, %v201, 0
  %v304 = vsel %vm219, %v202, 0
  %v307 = vsel %vm219, %v203, 0
  %v310 = vsel %vm219, %v204, 0
  %v313 = vsel %vm219, %v205, 0
  %v316 = vsel %vm219, %v206, 0
  %v319 = vsel %vm219, %v207, 0
  %v322 = vsel %vm244, %v208, 0
  %324 = vmatpush.bf16.msra.mxu0 0
  %325 = vmatpush.bf16.msra.mxu0 0
  %326 = vmatpush.bf16.msra.mxu0 0
  %327 = vmatpush.bf16.msra.mxu0 0
  %328 = vmatpush.bf16.msra.mxu0 0
  %329 = vmatpush.bf16.msra.mxu0 0
  %330 = vmatpush.bf16.msra.mxu0 0
  %331 = vmatpush.bf16.msra.mxu0 %v322
  %332 = vmatmul.bf16.gmra.mxu0 %v298
  %v333 = vpop.f32.mrf.mxu0
  %v334 = vadd.f32 %v258, %v333
  %v335 = vpop.f32.mrf.mxu0
  %v336 = vadd.f32 %v260, %v335
  %337 = vmatmul.bf16.gmra.mxu0 %v301
  %v338 = vpop.f32.mrf.mxu0
  %v339 = vadd.f32 %v263, %v338
  %v340 = vpop.f32.mrf.mxu0
  %v341 = vadd.f32 %v265, %v340
  %342 = vmatmul.bf16.gmra.mxu0 %v304
  %v343 = vpop.f32.mrf.mxu0
  %v344 = vadd.f32 %v268, %v343
  %v345 = vpop.f32.mrf.mxu0
  %v346 = vadd.f32 %v270, %v345
  %347 = vmatmul.bf16.gmra.mxu0 %v307
  %v348 = vpop.f32.mrf.mxu0
  %v349 = vadd.f32 %v273, %v348
  %v350 = vpop.f32.mrf.mxu0
  %v351 = vadd.f32 %v275, %v350
  %352 = vmatmul.bf16.gmra.mxu0 %v310
  %v353 = vpop.f32.mrf.mxu0
  %v354 = vadd.f32 %v278, %v353
  %v355 = vpop.f32.mrf.mxu0
  %v356 = vadd.f32 %v280, %v355
  %357 = vmatmul.bf16.gmra.mxu0 %v313
  %v358 = vpop.f32.mrf.mxu0
  %v359 = vadd.f32 %v283, %v358
  %v360 = vpop.f32.mrf.mxu0
  %v361 = vadd.f32 %v285, %v360
  %362 = vmatmul.bf16.gmra.mxu0 %v316
  %v363 = vpop.f32.mrf.mxu0
  %v364 = vadd.f32 %v288, %v363
  %v365 = vpop.f32.mrf.mxu0
  %v366 = vadd.f32 %v290, %v365
  %367 = vmatmul.bf16.gmra.mxu0 %v319
  %v368 = vpop.f32.mrf.mxu0
  %v369 = vadd.f32 %v293, %v368
  %v370 = vpop.f32.mrf.mxu0
  %v371 = vadd.f32 %v295, %v370
  %372 = vdwg.mxu0
  %v373 = vpack.c.bf16 %v85, %v84
  %v374 = vpack.c.bf16 %v87, %v86
  %v375 = vpack.c.bf16 %v89, %v88
  %v376 = vpack.c.bf16 %v91, %v90
  %v377 = vpack.c.bf16 %v93, %v92
  %v378 = vpack.c.bf16 %v95, %v94
  %v379 = vpack.c.bf16 %v97, %v96
  %v380 = vpack.c.bf16 %v99, %v98
  %s381 = scalar_lea.vmem %s1, 4
  %v382 = vld [vmem:[%s381] sm:$0x3]
  %v384 = vsel %vm219, %v373, 0
  %v387 = vsel %vm219, %v374, 0
  %v390 = vsel %vm219, %v375, 0
  %v393 = vsel %vm219, %v376, 0
  %v396 = vsel %vm219, %v377, 0
  %v399 = vsel %vm219, %v378, 0
  %v402 = vsel %vm219, %v379, 0
  %v405 = vsel %vm219, %v380, 0
  %v408 = vsel %vm244, %v382, 0
  %410 = vmatpush.bf16.msra.mxu0 0
  %411 = vmatpush.bf16.msra.mxu0 0
  %412 = vmatpush.bf16.msra.mxu0 0
  %413 = vmatpush.bf16.msra.mxu0 0
  %414 = vmatpush.bf16.msra.mxu0 0
  %415 = vmatpush.bf16.msra.mxu0 0
  %416 = vmatpush.bf16.msra.mxu0 0
  %417 = vmatpush.bf16.msra.mxu0 %v408
  %418 = vmatmul.bf16.gmra.mxu0 %v384
  %v419 = vpop.f32.mrf.mxu0
  %v420 = vadd.f32 0.0, %v419
  %v421 = vpop.f32.mrf.mxu0
  %v422 = vadd.f32 0.0, %v421
  %423 = vmatmul.bf16.gmra.mxu0 %v387
  %v424 = vpop.f32.mrf.mxu0
  %v425 = vadd.f32 0.0, %v424
  %v426 = vpop.f32.mrf.mxu0
  %v427 = vadd.f32 0.0, %v426
  %428 = vmatmul.bf16.gmra.mxu0 %v390
  %v429 = vpop.f32.mrf.mxu0
  %v430 = vadd.f32 0.0, %v429
  %v431 = vpop.f32.mrf.mxu0
  %v432 = vadd.f32 0.0, %v431
  %433 = vmatmul.bf16.gmra.mxu0 %v393
  %v434 = vpop.f32.mrf.mxu0
  %v435 = vadd.f32 0.0, %v434
  %v436 = vpop.f32.mrf.mxu0
  %v437 = vadd.f32 0.0, %v436
  %438 = vmatmul.bf16.gmra.mxu0 %v396
  %v439 = vpop.f32.mrf.mxu0
  %v440 = vadd.f32 0.0, %v439
  %v441 = vpop.f32.mrf.mxu0
  %v442 = vadd.f32 0.0, %v441
  %443 = vmatmul.bf16.gmra.mxu0 %v399
  %v444 = vpop.f32.mrf.mxu0
  %v445 = vadd.f32 0.0, %v444
  %v446 = vpop.f32.mrf.mxu0
  %v447 = vadd.f32 0.0, %v446
  %448 = vmatmul.bf16.gmra.mxu0 %v402
  %v449 = vpop.f32.mrf.mxu0
  %v450 = vadd.f32 0.0, %v449
  %v451 = vpop.f32.mrf.mxu0
  %v452 = vadd.f32 0.0, %v451
  %453 = vmatmul.bf16.gmra.mxu0 %v405
  %v454 = vpop.f32.mrf.mxu0
  %v455 = vadd.f32 0.0, %v454
  %v456 = vpop.f32.mrf.mxu0
  %v457 = vadd.f32 0.0, %v456
  %458 = vdwg.mxu0
  %v459 = vadd.f32 %v334, %v420
  %v460 = vadd.f32 %v336, %v422
  %v461 = vadd.f32 %v339, %v425
  %v462 = vadd.f32 %v341, %v427
  %v463 = vadd.f32 %v344, %v430
  %v464 = vadd.f32 %v346, %v432
  %v465 = vadd.f32 %v349, %v435
  %v466 = vadd.f32 %v351, %v437
  %v467 = vadd.f32 %v354, %v440
  %v468 = vadd.f32 %v356, %v442
  %v469 = vadd.f32 %v359, %v445
  %v470 = vadd.f32 %v361, %v447
  %v471 = vadd.f32 %v364, %v450
  %v472 = vadd.f32 %v366, %v452
  %v473 = vadd.f32 %v369, %v455
  %v474 = vadd.f32 %v371, %v457
  %v475 = vpack.c.bf16 %v102, %v101
  %v476 = vpack.c.bf16 %v104, %v103
  %v477 = vpack.c.bf16 %v106, %v105
  %v478 = vpack.c.bf16 %v108, %v107
  %v479 = vpack.c.bf16 %v110, %v109
  %v480 = vpack.c.bf16 %v112, %v111
  %v481 = vpack.c.bf16 %v114, %v113
  %v482 = vpack.c.bf16 %v116, %v115
  %s483 = scalar_lea.vmem %s1, 6
  %v484 = vld [vmem:[%s483] sm:$0x3]
  %v486 = vsel %vm219, %v475, 0
  %v489 = vsel %vm219, %v476, 0
  %v492 = vsel %vm219, %v477, 0
  %v495 = vsel %vm219, %v478, 0
  %v498 = vsel %vm219, %v479, 0
  %v501 = vsel %vm219, %v480, 0
  %v504 = vsel %vm219, %v481, 0
  %v507 = vsel %vm219, %v482, 0
  %v510 = vsel %vm244, %v484, 0
  %512 = vmatpush.bf16.msra.mxu0 0
  %513 = vmatpush.bf16.msra.mxu0 0
  %514 = vmatpush.bf16.msra.mxu0 0
  %515 = vmatpush.bf16.msra.mxu0 0
  %516 = vmatpush.bf16.msra.mxu0 0
  %517 = vmatpush.bf16.msra.mxu0 0
  %518 = vmatpush.bf16.msra.mxu0 0
  %519 = vmatpush.bf16.msra.mxu0 %v510
  %520 = vmatmul.bf16.gmra.mxu0 %v486
  %v521 = vpop.f32.mrf.mxu0
  %v522 = vadd.f32 0.0, %v521
  %v523 = vpop.f32.mrf.mxu0
  %v524 = vadd.f32 0.0, %v523
  %525 = vmatmul.bf16.gmra.mxu0 %v489
  %v526 = vpop.f32.mrf.mxu0
  %v527 = vadd.f32 0.0, %v526
  %v528 = vpop.f32.mrf.mxu0
  %v529 = vadd.f32 0.0, %v528
  %530 = vmatmul.bf16.gmra.mxu0 %v492
  %v531 = vpop.f32.mrf.mxu0
  %v532 = vadd.f32 0.0, %v531
  %v533 = vpop.f32.mrf.mxu0
  %v534 = vadd.f32 0.0, %v533
  %535 = vmatmul.bf16.gmra.mxu0 %v495
  %v536 = vpop.f32.mrf.mxu0
  %v537 = vadd.f32 0.0, %v536
  %v538 = vpop.f32.mrf.mxu0
  %v539 = vadd.f32 0.0, %v538
  %540 = vmatmul.bf16.gmra.mxu0 %v498
  %v541 = vpop.f32.mrf.mxu0
  %v542 = vadd.f32 0.0, %v541
  %v543 = vpop.f32.mrf.mxu0
  %v544 = vadd.f32 0.0, %v543
  %545 = vmatmul.bf16.gmra.mxu0 %v501
  %v546 = vpop.f32.mrf.mxu0
  %v547 = vadd.f32 0.0, %v546
  %v548 = vpop.f32.mrf.mxu0
  %v549 = vadd.f32 0.0, %v548
  %550 = vmatmul.bf16.gmra.mxu0 %v504
  %v551 = vpop.f32.mrf.mxu0
  %v552 = vadd.f32 0.0, %v551
  %v553 = vpop.f32.mrf.mxu0
  %v554 = vadd.f32 0.0, %v553
  %555 = vmatmul.bf16.gmra.mxu0 %v507
  %v556 = vpop.f32.mrf.mxu0
  %v557 = vadd.f32 0.0, %v556
  %v558 = vpop.f32.mrf.mxu0
  %v559 = vadd.f32 0.0, %v558
  %560 = vdwg.mxu0
  %v561 = vadd.f32 %v459, %v522
  %v562 = vadd.f32 %v460, %v524
  %v563 = vadd.f32 %v461, %v527
  %v564 = vadd.f32 %v462, %v529
  %v565 = vadd.f32 %v463, %v532
  %v566 = vadd.f32 %v464, %v534
  %v567 = vadd.f32 %v465, %v537
  %v568 = vadd.f32 %v466, %v539
  %v569 = vadd.f32 %v467, %v542
  %v570 = vadd.f32 %v468, %v544
  %v571 = vadd.f32 %v469, %v547
  %v572 = vadd.f32 %v470, %v549
  %v573 = vadd.f32 %v471, %v552
  %v574 = vadd.f32 %v472, %v554
  %v575 = vadd.f32 %v473, %v557
  %v576 = vadd.f32 %v474, %v559
  %v577 = vpack.c.bf16 %v119, %v118
  %v578 = vpack.c.bf16 %v121, %v120
  %v579 = vpack.c.bf16 %v123, %v122
  %v580 = vpack.c.bf16 %v125, %v124
  %v581 = vpack.c.bf16 %v127, %v126
  %v582 = vpack.c.bf16 %v129, %v128
  %v583 = vpack.c.bf16 %v131, %v130
  %v584 = vpack.c.bf16 %v133, %v132
  %s585 = scalar_lea.vmem %s1, 8
  %v586 = vld [vmem:[%s585] sm:$0x3]
  %v588 = vsel %vm219, %v577, 0
  %v591 = vsel %vm219, %v578, 0
  %v594 = vsel %vm219, %v579, 0
  %v597 = vsel %vm219, %v580, 0
  %v600 = vsel %vm219, %v581, 0
  %v603 = vsel %vm219, %v582, 0
  %v606 = vsel %vm219, %v583, 0
  %v609 = vsel %vm219, %v584, 0
  %v612 = vsel %vm244, %v586, 0
  %614 = vmatpush.bf16.msra.mxu0 0
  %615 = vmatpush.bf16.msra.mxu0 0
  %616 = vmatpush.bf16.msra.mxu0 0
  %617 = vmatpush.bf16.msra.mxu0 0
  %618 = vmatpush.bf16.msra.mxu0 0
  %619 = vmatpush.bf16.msra.mxu0 0
  %620 = vmatpush.bf16.msra.mxu0 0
  %621 = vmatpush.bf16.msra.mxu0 %v612
  %622 = vmatmul.bf16.gmra.mxu0 %v588
  %v623 = vpop.f32.mrf.mxu0
  %v624 = vadd.f32 0.0, %v623
  %v625 = vpop.f32.mrf.mxu0
  %v626 = vadd.f32 0.0, %v625
  %627 = vmatmul.bf16.gmra.mxu0 %v591
  %v628 = vpop.f32.mrf.mxu0
  %v629 = vadd.f32 0.0, %v628
  %v630 = vpop.f32.mrf.mxu0
  %v631 = vadd.f32 0.0, %v630
  %632 = vmatmul.bf16.gmra.mxu0 %v594
  %v633 = vpop.f32.mrf.mxu0
  %v634 = vadd.f32 0.0, %v633
  %v635 = vpop.f32.mrf.mxu0
  %v636 = vadd.f32 0.0, %v635
  %637 = vmatmul.bf16.gmra.mxu0 %v597
  %v638 = vpop.f32.mrf.mxu0
  %v639 = vadd.f32 0.0, %v638
  %v640 = vpop.f32.mrf.mxu0
  %v641 = vadd.f32 0.0, %v640
  %642 = vmatmul.bf16.gmra.mxu0 %v600
  %v643 = vpop.f32.mrf.mxu0
  %v644 = vadd.f32 0.0, %v643
  %v645 = vpop.f32.mrf.mxu0
  %v646 = vadd.f32 0.0, %v645
  %647 = vmatmul.bf16.gmra.mxu0 %v603
  %v648 = vpop.f32.mrf.mxu0
  %v649 = vadd.f32 0.0, %v648
  %v650 = vpop.f32.mrf.mxu0
  %v651 = vadd.f32 0.0, %v650
  %652 = vmatmul.bf16.gmra.mxu0 %v606
  %v653 = vpop.f32.mrf.mxu0
  %v654 = vadd.f32 0.0, %v653
  %v655 = vpop.f32.mrf.mxu0
  %v656 = vadd.f32 0.0, %v655
  %657 = vmatmul.bf16.gmra.mxu0 %v609
  %v658 = vpop.f32.mrf.mxu0
  %v659 = vadd.f32 0.0, %v658
  %v660 = vpop.f32.mrf.mxu0
  %v661 = vadd.f32 0.0, %v660
  %662 = vdwg.mxu0
  %v663 = vadd.f32 %v561, %v624
  %v664 = vadd.f32 %v562, %v626
  %v665 = vadd.f32 %v563, %v629
  %v666 = vadd.f32 %v564, %v631
  %v667 = vadd.f32 %v565, %v634
  %v668 = vadd.f32 %v566, %v636
  %v669 = vadd.f32 %v567, %v639
  %v670 = vadd.f32 %v568, %v641
  %v671 = vadd.f32 %v569, %v644
  %v672 = vadd.f32 %v570, %v646
  %v673 = vadd.f32 %v571, %v649
  %v674 = vadd.f32 %v572, %v651
  %v675 = vadd.f32 %v573, %v654
  %v676 = vadd.f32 %v574, %v656
  %v677 = vadd.f32 %v575, %v659
  %v678 = vadd.f32 %v576, %v661
  %v679 = vpack.c.bf16 %v135, %v134
  %v680 = vpack.c.bf16 %v137, %v136
  %v681 = vpack.c.bf16 %v139, %v138
  %v682 = vpack.c.bf16 %v141, %v140
  %v683 = vpack.c.bf16 %v143, %v142
  %v684 = vpack.c.bf16 %v145, %v144
  %v685 = vpack.c.bf16 %v147, %v146
  %v686 = vpack.c.bf16 %v149, %v148
  %s687 = scalar_lea.vmem %s1, 10
  %v688 = vld [vmem:[%s687] sm:$0x3]
  %v690 = vsel %vm219, %v679, 0
  %v693 = vsel %vm219, %v680, 0
  %v696 = vsel %vm219, %v681, 0
  %v699 = vsel %vm219, %v682, 0
  %v702 = vsel %vm219, %v683, 0
  %v705 = vsel %vm219, %v684, 0
  %v708 = vsel %vm219, %v685, 0
  %v711 = vsel %vm219, %v686, 0
  %v714 = vsel %vm244, %v688, 0
  %716 = vmatpush.bf16.msra.mxu0 0
  %717 = vmatpush.bf16.msra.mxu0 0
  %718 = vmatpush.bf16.msra.mxu0 0
  %719 = vmatpush.bf16.msra.mxu0 0
  %720 = vmatpush.bf16.msra.mxu0 0
  %721 = vmatpush.bf16.msra.mxu0 0
  %722 = vmatpush.bf16.msra.mxu0 0
  %723 = vmatpush.bf16.msra.mxu0 %v714
  %724 = vmatmul.bf16.gmra.mxu0 %v690
  %v725 = vpop.f32.mrf.mxu0
  %v726 = vadd.f32 0.0, %v725
  %v727 = vpop.f32.mrf.mxu0
  %v728 = vadd.f32 0.0, %v727
  %729 = vmatmul.bf16.gmra.mxu0 %v693
  %v730 = vpop.f32.mrf.mxu0
  %v731 = vadd.f32 0.0, %v730
  %v732 = vpop.f32.mrf.mxu0
  %v733 = vadd.f32 0.0, %v732
  %734 = vmatmul.bf16.gmra.mxu0 %v696
  %v735 = vpop.f32.mrf.mxu0
  %v736 = vadd.f32 0.0, %v735
  %v737 = vpop.f32.mrf.mxu0
  %v738 = vadd.f32 0.0, %v737
  %739 = vmatmul.bf16.gmra.mxu0 %v699
  %v740 = vpop.f32.mrf.mxu0
  %v741 = vadd.f32 0.0, %v740
  %v742 = vpop.f32.mrf.mxu0
  %v743 = vadd.f32 0.0, %v742
  %744 = vmatmul.bf16.gmra.mxu0 %v702
  %v745 = vpop.f32.mrf.mxu0
  %v746 = vadd.f32 0.0, %v745
  %v747 = vpop.f32.mrf.mxu0
  %v748 = vadd.f32 0.0, %v747
  %749 = vmatmul.bf16.gmra.mxu0 %v705
  %v750 = vpop.f32.mrf.mxu0
  %v751 = vadd.f32 0.0, %v750
  %v752 = vpop.f32.mrf.mxu0
  %v753 = vadd.f32 0.0, %v752
  %754 = vmatmul.bf16.gmra.mxu0 %v708
  %v755 = vpop.f32.mrf.mxu0
  %v756 = vadd.f32 0.0, %v755
  %v757 = vpop.f32.mrf.mxu0
  %v758 = vadd.f32 0.0, %v757
  %759 = vmatmul.bf16.gmra.mxu0 %v711
  %v760 = vpop.f32.mrf.mxu0
  %v761 = vadd.f32 0.0, %v760
  %v762 = vpop.f32.mrf.mxu0
  %v763 = vadd.f32 0.0, %v762
  %764 = vdwg.mxu0
  %v765 = vadd.f32 %v663, %v726
  %v766 = vadd.f32 %v664, %v728
  %v767 = vadd.f32 %v665, %v731
  %v768 = vadd.f32 %v666, %v733
  %v769 = vadd.f32 %v667, %v736
  %v770 = vadd.f32 %v668, %v738
  %v771 = vadd.f32 %v669, %v741
  %v772 = vadd.f32 %v670, %v743
  %v773 = vadd.f32 %v671, %v746
  %v774 = vadd.f32 %v672, %v748
  %v775 = vadd.f32 %v673, %v751
  %v776 = vadd.f32 %v674, %v753
  %v777 = vadd.f32 %v675, %v756
  %v778 = vadd.f32 %v676, %v758
  %v779 = vadd.f32 %v677, %v761
  %v780 = vadd.f32 %v678, %v763
  %v781 = vpack.c.bf16 %v152, %v151
  %v782 = vpack.c.bf16 %v154, %v153
  %v783 = vpack.c.bf16 %v156, %v155
  %v784 = vpack.c.bf16 %v158, %v157
  %v785 = vpack.c.bf16 %v160, %v159
  %v786 = vpack.c.bf16 %v162, %v161
  %v787 = vpack.c.bf16 %v164, %v163
  %v788 = vpack.c.bf16 %v166, %v165
  %s789 = scalar_lea.vmem %s1, 12
  %v790 = vld [vmem:[%s789] sm:$0x3]
  %v792 = vsel %vm219, %v781, 0
  %v795 = vsel %vm219, %v782, 0
  %v798 = vsel %vm219, %v783, 0
  %v801 = vsel %vm219, %v784, 0
  %v804 = vsel %vm219, %v785, 0
  %v807 = vsel %vm219, %v786, 0
  %v810 = vsel %vm219, %v787, 0
  %v813 = vsel %vm219, %v788, 0
  %v816 = vsel %vm244, %v790, 0
  %818 = vmatpush.bf16.msra.mxu0 0
  %819 = vmatpush.bf16.msra.mxu0 0
  %820 = vmatpush.bf16.msra.mxu0 0
  %821 = vmatpush.bf16.msra.mxu0 0
  %822 = vmatpush.bf16.msra.mxu0 0
  %823 = vmatpush.bf16.msra.mxu0 0
  %824 = vmatpush.bf16.msra.mxu0 0
  %825 = vmatpush.bf16.msra.mxu0 %v816
  %826 = vmatmul.bf16.gmra.mxu0 %v792
  %v827 = vpop.f32.mrf.mxu0
  %v828 = vadd.f32 0.0, %v827
  %v829 = vpop.f32.mrf.mxu0
  %v830 = vadd.f32 0.0, %v829
  %831 = vmatmul.bf16.gmra.mxu0 %v795
  %v832 = vpop.f32.mrf.mxu0
  %v833 = vadd.f32 0.0, %v832
  %v834 = vpop.f32.mrf.mxu0
  %v835 = vadd.f32 0.0, %v834
  %836 = vmatmul.bf16.gmra.mxu0 %v798
  %v837 = vpop.f32.mrf.mxu0
  %v838 = vadd.f32 0.0, %v837
  %v839 = vpop.f32.mrf.mxu0
  %v840 = vadd.f32 0.0, %v839
  %841 = vmatmul.bf16.gmra.mxu0 %v801
  %v842 = vpop.f32.mrf.mxu0
  %v843 = vadd.f32 0.0, %v842
  %v844 = vpop.f32.mrf.mxu0
  %v845 = vadd.f32 0.0, %v844
  %846 = vmatmul.bf16.gmra.mxu0 %v804
  %v847 = vpop.f32.mrf.mxu0
  %v848 = vadd.f32 0.0, %v847
  %v849 = vpop.f32.mrf.mxu0
  %v850 = vadd.f32 0.0, %v849
  %851 = vmatmul.bf16.gmra.mxu0 %v807
  %v852 = vpop.f32.mrf.mxu0
  %v853 = vadd.f32 0.0, %v852
  %v854 = vpop.f32.mrf.mxu0
  %v855 = vadd.f32 0.0, %v854
  %856 = vmatmul.bf16.gmra.mxu0 %v810
  %v857 = vpop.f32.mrf.mxu0
  %v858 = vadd.f32 0.0, %v857
  %v859 = vpop.f32.mrf.mxu0
  %v860 = vadd.f32 0.0, %v859
  %861 = vmatmul.bf16.gmra.mxu0 %v813
  %v862 = vpop.f32.mrf.mxu0
  %v863 = vadd.f32 0.0, %v862
  %v864 = vpop.f32.mrf.mxu0
  %v865 = vadd.f32 0.0, %v864
  %866 = vdwg.mxu0
  %v867 = vadd.f32 %v765, %v828
  %v868 = vadd.f32 %v766, %v830
  %v869 = vadd.f32 %v767, %v833
  %v870 = vadd.f32 %v768, %v835
  %v871 = vadd.f32 %v769, %v838
  %v872 = vadd.f32 %v770, %v840
  %v873 = vadd.f32 %v771, %v843
  %v874 = vadd.f32 %v772, %v845
  %v875 = vadd.f32 %v773, %v848
  %v876 = vadd.f32 %v774, %v850
  %v877 = vadd.f32 %v775, %v853
  %v878 = vadd.f32 %v776, %v855
  %v879 = vadd.f32 %v777, %v858
  %v880 = vadd.f32 %v778, %v860
  %v881 = vadd.f32 %v779, %v863
  %v882 = vadd.f32 %v780, %v865
  %v883 = vpack.c.bf16 %v169, %v168
  %v884 = vpack.c.bf16 %v171, %v170
  %v885 = vpack.c.bf16 %v173, %v172
  %v886 = vpack.c.bf16 %v175, %v174
  %v887 = vpack.c.bf16 %v177, %v176
  %v888 = vpack.c.bf16 %v179, %v178
  %v889 = vpack.c.bf16 %v181, %v180
  %v890 = vpack.c.bf16 %v183, %v182
  %s891 = scalar_lea.vmem %s1, 14
  %v892 = vld [vmem:[%s891] sm:$0x3]
  %v894 = vsel %vm219, %v883, 0
  %v897 = vsel %vm219, %v884, 0
  %v900 = vsel %vm219, %v885, 0
  %v903 = vsel %vm219, %v886, 0
  %v906 = vsel %vm219, %v887, 0
  %v909 = vsel %vm219, %v888, 0
  %v912 = vsel %vm219, %v889, 0
  %v915 = vsel %vm219, %v890, 0
  %v918 = vsel %vm244, %v892, 0
  %920 = vmatpush.bf16.msra.mxu0 0
  %921 = vmatpush.bf16.msra.mxu0 0
  %922 = vmatpush.bf16.msra.mxu0 0
  %923 = vmatpush.bf16.msra.mxu0 0
  %924 = vmatpush.bf16.msra.mxu0 0
  %925 = vmatpush.bf16.msra.mxu0 0
  %926 = vmatpush.bf16.msra.mxu0 0
  %927 = vmatpush.bf16.msra.mxu0 %v918
  %928 = vmatmul.bf16.gmra.mxu0 %v894
  %v929 = vpop.f32.mrf.mxu0
  %v930 = vadd.f32 0.0, %v929
  %v931 = vpop.f32.mrf.mxu0
  %v932 = vadd.f32 0.0, %v931
  %933 = vmatmul.bf16.gmra.mxu0 %v897
  %v934 = vpop.f32.mrf.mxu0
  %v935 = vadd.f32 0.0, %v934
  %v936 = vpop.f32.mrf.mxu0
  %v937 = vadd.f32 0.0, %v936
  %938 = vmatmul.bf16.gmra.mxu0 %v900
  %v939 = vpop.f32.mrf.mxu0
  %v940 = vadd.f32 0.0, %v939
  %v941 = vpop.f32.mrf.mxu0
  %v942 = vadd.f32 0.0, %v941
  %943 = vmatmul.bf16.gmra.mxu0 %v903
  %v944 = vpop.f32.mrf.mxu0
  %v945 = vadd.f32 0.0, %v944
  %v946 = vpop.f32.mrf.mxu0
  %v947 = vadd.f32 0.0, %v946
  %948 = vmatmul.bf16.gmra.mxu0 %v906
  %v949 = vpop.f32.mrf.mxu0
  %v950 = vadd.f32 0.0, %v949
  %v951 = vpop.f32.mrf.mxu0
  %v952 = vadd.f32 0.0, %v951
  %953 = vmatmul.bf16.gmra.mxu0 %v909
  %v954 = vpop.f32.mrf.mxu0
  %v955 = vadd.f32 0.0, %v954
  %v956 = vpop.f32.mrf.mxu0
  %v957 = vadd.f32 0.0, %v956
  %958 = vmatmul.bf16.gmra.mxu0 %v912
  %v959 = vpop.f32.mrf.mxu0
  %v960 = vadd.f32 0.0, %v959
  %v961 = vpop.f32.mrf.mxu0
  %v962 = vadd.f32 0.0, %v961
  %963 = vmatmul.bf16.gmra.mxu0 %v915
  %v964 = vpop.f32.mrf.mxu0
  %v965 = vadd.f32 0.0, %v964
  %v966 = vpop.f32.mrf.mxu0
  %v967 = vadd.f32 0.0, %v966
  %968 = vdwg.mxu0
  %v969 = vadd.f32 %v867, %v930
  %v970 = vadd.f32 %v868, %v932
  %v971 = vadd.f32 %v869, %v935
  %v972 = vadd.f32 %v870, %v937
  %v973 = vadd.f32 %v871, %v940
  %v974 = vadd.f32 %v872, %v942
  %v975 = vadd.f32 %v873, %v945
  %v976 = vadd.f32 %v874, %v947
  %v977 = vadd.f32 %v875, %v950
  %v978 = vadd.f32 %v876, %v952
  %v979 = vadd.f32 %v877, %v955
  %v980 = vadd.f32 %v878, %v957
  %v981 = vadd.f32 %v879, %v960
  %v982 = vadd.f32 %v880, %v962
  %v983 = vadd.f32 %v881, %v965
  %v984 = vadd.f32 %v882, %v967
  %v985 = vpack.c.bf16 %v185, %v184
  %v986 = vpack.c.bf16 %v187, %v186
  %v987 = vpack.c.bf16 %v189, %v188
  %v988 = vpack.c.bf16 %v191, %v190
  %v989 = vpack.c.bf16 %v193, %v192
  %v990 = vpack.c.bf16 %v195, %v194
  %v991 = vpack.c.bf16 %v197, %v196
  %v992 = vpack.c.bf16 %v199, %v198
  %s993 = scalar_lea.vmem %s1, 16
  %v994 = vld [vmem:[%s993] sm:$0x3]
  %v996 = vsel %vm219, %v985, 0
  %v999 = vsel %vm219, %v986, 0
  %v1002 = vsel %vm219, %v987, 0
  %v1005 = vsel %vm219, %v988, 0
  %v1008 = vsel %vm219, %v989, 0
  %v1011 = vsel %vm219, %v990, 0
  %v1014 = vsel %vm219, %v991, 0
  %v1017 = vsel %vm219, %v992, 0
  %v1020 = vsel %vm244, %v994, 0
  %1022 = vmatpush.bf16.msra.mxu0 0
  %1023 = vmatpush.bf16.msra.mxu0 0
  %1024 = vmatpush.bf16.msra.mxu0 0
  %1025 = vmatpush.bf16.msra.mxu0 0
  %1026 = vmatpush.bf16.msra.mxu0 0
  %1027 = vmatpush.bf16.msra.mxu0 0
  %1028 = vmatpush.bf16.msra.mxu0 0
  %1029 = vmatpush.bf16.msra.mxu0 %v1020
  %1030 = vmatmul.bf16.gmra.mxu0 %v996
  %v1031 = vpop.f32.mrf.mxu0
  %v1032 = vadd.f32 0.0, %v1031
  %v1033 = vpop.f32.mrf.mxu0
  %v1034 = vadd.f32 0.0, %v1033
  %1035 = vmatmul.bf16.gmra.mxu0 %v999
  %v1036 = vpop.f32.mrf.mxu0
  %v1037 = vadd.f32 0.0, %v1036
  %v1038 = vpop.f32.mrf.mxu0
  %v1039 = vadd.f32 0.0, %v1038
  %1040 = vmatmul.bf16.gmra.mxu0 %v1002
  %v1041 = vpop.f32.mrf.mxu0
  %v1042 = vadd.f32 0.0, %v1041
  %v1043 = vpop.f32.mrf.mxu0
  %v1044 = vadd.f32 0.0, %v1043
  %1045 = vmatmul.bf16.gmra.mxu0 %v1005
  %v1046 = vpop.f32.mrf.mxu0
  %v1047 = vadd.f32 0.0, %v1046
  %v1048 = vpop.f32.mrf.mxu0
  %v1049 = vadd.f32 0.0, %v1048
  %1050 = vmatmul.bf16.gmra.mxu0 %v1008
  %v1051 = vpop.f32.mrf.mxu0
  %v1052 = vadd.f32 0.0, %v1051
  %v1053 = vpop.f32.mrf.mxu0
  %v1054 = vadd.f32 0.0, %v1053
  %1055 = vmatmul.bf16.gmra.mxu0 %v1011
  %v1056 = vpop.f32.mrf.mxu0
  %v1057 = vadd.f32 0.0, %v1056
  %v1058 = vpop.f32.mrf.mxu0
  %v1059 = vadd.f32 0.0, %v1058
  %1060 = vmatmul.bf16.gmra.mxu0 %v1014
  %v1061 = vpop.f32.mrf.mxu0
  %v1062 = vadd.f32 0.0, %v1061
  %v1063 = vpop.f32.mrf.mxu0
  %v1064 = vadd.f32 0.0, %v1063
  %1065 = vmatmul.bf16.gmra.mxu0 %v1017
  %v1066 = vpop.f32.mrf.mxu0
  %v1067 = vadd.f32 0.0, %v1066
  %v1068 = vpop.f32.mrf.mxu0
  %v1069 = vadd.f32 0.0, %v1068
  %1070 = vdwg.mxu0
  %v1071 = vadd.f32 %v969, %v1032
  %v1072 = vadd.f32 %v970, %v1034
  %v1073 = vadd.f32 %v971, %v1037
  %v1074 = vadd.f32 %v972, %v1039
  %v1075 = vadd.f32 %v973, %v1042
  %v1076 = vadd.f32 %v974, %v1044
  %v1077 = vadd.f32 %v975, %v1047
  %v1078 = vadd.f32 %v976, %v1049
  %v1079 = vadd.f32 %v977, %v1052
  %v1080 = vadd.f32 %v978, %v1054
  %v1081 = vadd.f32 %v979, %v1057
  %v1082 = vadd.f32 %v980, %v1059
  %v1083 = vadd.f32 %v981, %v1062
  %v1084 = vadd.f32 %v982, %v1064
  %v1085 = vadd.f32 %v983, %v1067
  %v1086 = vadd.f32 %v984, %v1069
  %v1087 = vld [vmem:[%s2] sm:$0x1]
  %v1089 = vperm.slane %v1087, 0
  %v1091 = vadd.f32 %v1071, %v1089
  %v1092 = vadd.f32 %v1072, %v1089
  %v1093 = vadd.f32 %v1073, %v1089
  %v1094 = vadd.f32 %v1074, %v1089
  %v1095 = vadd.f32 %v1075, %v1089
  %v1096 = vadd.f32 %v1076, %v1089
  %v1097 = vadd.f32 %v1077, %v1089
  %v1098 = vadd.f32 %v1078, %v1089
  %v1099 = vadd.f32 %v1079, %v1089
  %v1100 = vadd.f32 %v1080, %v1089
  %v1101 = vadd.f32 %v1081, %v1089
  %v1102 = vadd.f32 %v1082, %v1089
  %v1103 = vadd.f32 %v1083, %v1089
  %v1104 = vadd.f32 %v1084, %v1089
  %v1105 = vadd.f32 %v1085, %v1089
  %v1106 = vadd.f32 %v1086, %v1089
  %v1107 = vld [vmem:[%s3] sm:$0x1]
  %v1108 = vld [vmem:[%s4] sm:$0x1]
  %vm1109 = vcmask 64512
  %v1110 = vsel %vm1109, %v1091, 0.0
  %v1111 = vsel %vm1109, %v1092, 0.0
  %v1112 = vadd.f32 %v1110, %v1111
  %v1113 = vsel %vm1109, %v1093, 0.0
  %v1114 = vadd.f32 %v1112, %v1113
  %v1115 = vsel %vm1109, %v1094, 0.0
  %v1116 = vadd.f32 %v1114, %v1115
  %v1117 = vsel %vm1109, %v1095, 0.0
  %v1118 = vadd.f32 %v1116, %v1117
  %v1119 = vsel %vm1109, %v1096, 0.0
  %v1120 = vadd.f32 %v1118, %v1119
  %v1121 = vsel %vm1109, %v1097, 0.0
  %v1122 = vadd.f32 %v1120, %v1121
  %v1123 = vsel %vm1109, %v1098, 0.0
  %v1124 = vadd.f32 %v1122, %v1123
  %v1125 = vsel %vm1109, %v1099, 0.0
  %v1126 = vadd.f32 %v1124, %v1125
  %v1127 = vsel %vm1109, %v1100, 0.0
  %v1128 = vadd.f32 %v1126, %v1127
  %v1129 = vsel %vm1109, %v1101, 0.0
  %v1130 = vadd.f32 %v1128, %v1129
  %v1131 = vsel %vm1109, %v1102, 0.0
  %v1132 = vadd.f32 %v1130, %v1131
  %v1133 = vsel %vm1109, %v1103, 0.0
  %v1134 = vadd.f32 %v1132, %v1133
  %v1135 = vsel %vm1109, %v1104, 0.0
  %v1136 = vadd.f32 %v1134, %v1135
  %v1137 = vsel %vm1109, %v1105, 0.0
  %v1138 = vadd.f32 %v1136, %v1137
  %v1139 = vsel %vm1109, %v1106, 0.0
  %v1140 = vadd.f32 %v1138, %v1139
  %v1141 = vrot.slane %v1140, 4
  %v1142 = vadd.f32 %v1140, %v1141
  %v1143 = vrot.slane %v1142, 2
  %v1144 = vadd.f32 %v1142, %v1143
  %v1145 = vrot.slane %v1144, 1
  %v1146 = vadd.f32 %v1144, %v1145
  %v1147 = vrcp.pop 128.0
  %v1148 = vmul.f32 128.0, %v1147
  %v1149 = vsub.f32 1.0, %v1148
  %v1150 = vmul.f32 %v1147, %v1149
  %v1151 = vadd.f32 %v1147, %v1150
  %vm1152 = vweird.f32 %v1147
  %v1153 = vsel %vm1152, %v1147, %v1151
  %v1154 = vmul.f32 %v1146, %v1153
  %v1155 = vsub.f32 %v1091, %v1154
  %v1156 = vsub.f32 %v1092, %v1154
  %v1157 = vsub.f32 %v1093, %v1154
  %v1158 = vsub.f32 %v1094, %v1154
  %v1159 = vsub.f32 %v1095, %v1154
  %v1160 = vsub.f32 %v1096, %v1154
  %v1161 = vsub.f32 %v1097, %v1154
  %v1162 = vsub.f32 %v1098, %v1154
  %v1163 = vsub.f32 %v1099, %v1154
  %v1164 = vsub.f32 %v1100, %v1154
  %v1165 = vsub.f32 %v1101, %v1154
  %v1166 = vsub.f32 %v1102, %v1154
  %v1167 = vsub.f32 %v1103, %v1154
  %v1168 = vsub.f32 %v1104, %v1154
  %v1169 = vsub.f32 %v1105, %v1154
  %v1170 = vsub.f32 %v1106, %v1154
  %v1171 = vmul.f32 %v1155, %v1155
  %v1172 = vmul.f32 %v1156, %v1156
  %v1173 = vmul.f32 %v1157, %v1157
  %v1174 = vmul.f32 %v1158, %v1158
  %v1175 = vmul.f32 %v1159, %v1159
  %v1176 = vmul.f32 %v1160, %v1160
  %v1177 = vmul.f32 %v1161, %v1161
  %v1178 = vmul.f32 %v1162, %v1162
  %v1179 = vmul.f32 %v1163, %v1163
  %v1180 = vmul.f32 %v1164, %v1164
  %v1181 = vmul.f32 %v1165, %v1165
  %v1182 = vmul.f32 %v1166, %v1166
  %v1183 = vmul.f32 %v1167, %v1167
  %v1184 = vmul.f32 %v1168, %v1168
  %v1185 = vmul.f32 %v1169, %v1169
  %v1186 = vmul.f32 %v1170, %v1170
  %v1187 = vsel %vm1109, %v1171, 0.0
  %v1188 = vsel %vm1109, %v1172, 0.0
  %v1189 = vadd.f32 %v1187, %v1188
  %v1190 = vsel %vm1109, %v1173, 0.0
  %v1191 = vadd.f32 %v1189, %v1190
  %v1192 = vsel %vm1109, %v1174, 0.0
  %v1193 = vadd.f32 %v1191, %v1192
  %v1194 = vsel %vm1109, %v1175, 0.0
  %v1195 = vadd.f32 %v1193, %v1194
  %v1196 = vsel %vm1109, %v1176, 0.0
  %v1197 = vadd.f32 %v1195, %v1196
  %v1198 = vsel %vm1109, %v1177, 0.0
  %v1199 = vadd.f32 %v1197, %v1198
  %v1200 = vsel %vm1109, %v1178, 0.0
  %v1201 = vadd.f32 %v1199, %v1200
  %v1202 = vsel %vm1109, %v1179, 0.0
  %v1203 = vadd.f32 %v1201, %v1202
  %v1204 = vsel %vm1109, %v1180, 0.0
  %v1205 = vadd.f32 %v1203, %v1204
  %v1206 = vsel %vm1109, %v1181, 0.0
  %v1207 = vadd.f32 %v1205, %v1206
  %v1208 = vsel %vm1109, %v1182, 0.0
  %v1209 = vadd.f32 %v1207, %v1208
  %v1210 = vsel %vm1109, %v1183, 0.0
  %v1211 = vadd.f32 %v1209, %v1210
  %v1212 = vsel %vm1109, %v1184, 0.0
  %v1213 = vadd.f32 %v1211, %v1212
  %v1214 = vsel %vm1109, %v1185, 0.0
  %v1215 = vadd.f32 %v1213, %v1214
  %v1216 = vsel %vm1109, %v1186, 0.0
  %v1217 = vadd.f32 %v1215, %v1216
  %v1218 = vrot.slane %v1217, 4
  %v1219 = vadd.f32 %v1217, %v1218
  %v1220 = vrot.slane %v1219, 2
  %v1221 = vadd.f32 %v1219, %v1220
  %v1222 = vrot.slane %v1221, 1
  %v1223 = vadd.f32 %v1221, %v1222
  %v1224 = vmul.f32 %v1223, %v1153
  %v1225 = vadd.f32 %v1224, 1e-05
  %v1226 = vrsqrt.pop %v1225
  %v1227 = vmul.f32 %v1226, %v1225
  %v1228 = vmul.f32 %v1227, %v1226
  %v1229 = vmul.f32 0.5, %v1228
  %v1230 = vsub.f32 1.5, %v1229
  %v1231 = vmul.f32 %v1226, %v1230
  %vm1232 = vweird.f32 %v1225
  %vm1233 = vweird.f32 %v1226
  %vm1234 = vmor %vm1232, %vm1233
  %v1235 = vsel %vm1234, %v1226, %v1231
  %v1236 = vmul.f32 %v1155, %v1235
  %v1237 = vmul.f32 %v1156, %v1235
  %v1238 = vmul.f32 %v1157, %v1235
  %v1239 = vmul.f32 %v1158, %v1235
  %v1240 = vmul.f32 %v1159, %v1235
  %v1241 = vmul.f32 %v1160, %v1235
  %v1242 = vmul.f32 %v1161, %v1235
  %v1243 = vmul.f32 %v1162, %v1235
  %v1244 = vmul.f32 %v1163, %v1235
  %v1245 = vmul.f32 %v1164, %v1235
  %v1246 = vmul.f32 %v1165, %v1235
  %v1247 = vmul.f32 %v1166, %v1235
  %v1248 = vmul.f32 %v1167, %v1235
  %v1249 = vmul.f32 %v1168, %v1235
  %v1250 = vmul.f32 %v1169, %v1235
  %v1251 = vmul.f32 %v1170, %v1235
  %v1253 = vperm.slane %v1107, 0
  %v1255 = vmul.f32 %v1236, %v1253
  %v1256 = vmul.f32 %v1237, %v1253
  %v1257 = vmul.f32 %v1238, %v1253
  %v1258 = vmul.f32 %v1239, %v1253
  %v1259 = vmul.f32 %v1240, %v1253
  %v1260 = vmul.f32 %v1241, %v1253
  %v1261 = vmul.f32 %v1242, %v1253
  %v1262 = vmul.f32 %v1243, %v1253
  %v1263 = vmul.f32 %v1244, %v1253
  %v1264 = vmul.f32 %v1245, %v1253
  %v1265 = vmul.f32 %v1246, %v1253
  %v1266 = vmul.f32 %v1247, %v1253
  %v1267 = vmul.f32 %v1248, %v1253
  %v1268 = vmul.f32 %v1249, %v1253
  %v1269 = vmul.f32 %v1250, %v1253
  %v1270 = vmul.f32 %v1251, %v1253
  %v1272 = vperm.slane %v1108, 0
  %v1274 = vadd.f32 %v1255, %v1272
  %v1275 = vadd.f32 %v1256, %v1272
  %v1276 = vadd.f32 %v1257, %v1272
  %v1277 = vadd.f32 %v1258, %v1272
  %v1278 = vadd.f32 %v1259, %v1272
  %v1279 = vadd.f32 %v1260, %v1272
  %v1280 = vadd.f32 %v1261, %v1272
  %v1281 = vadd.f32 %v1262, %v1272
  %v1282 = vadd.f32 %v1263, %v1272
  %v1283 = vadd.f32 %v1264, %v1272
  %v1284 = vadd.f32 %v1265, %v1272
  %v1285 = vadd.f32 %v1266, %v1272
  %v1286 = vadd.f32 %v1267, %v1272
  %v1287 = vadd.f32 %v1268, %v1272
  %v1288 = vadd.f32 %v1269, %v1272
  %v1289 = vadd.f32 %v1270, %v1272
  %vm1290 = vcmp.gt.f32.partialorder %v1274, 0.0
  %vm1291 = vcmp.gt.f32.partialorder %v1275, 0.0
  %vm1292 = vcmp.gt.f32.partialorder %v1276, 0.0
  %vm1293 = vcmp.gt.f32.partialorder %v1277, 0.0
  %vm1294 = vcmp.gt.f32.partialorder %v1278, 0.0
  %vm1295 = vcmp.gt.f32.partialorder %v1279, 0.0
  %vm1296 = vcmp.gt.f32.partialorder %v1280, 0.0
  %vm1297 = vcmp.gt.f32.partialorder %v1281, 0.0
  %vm1298 = vcmp.gt.f32.partialorder %v1282, 0.0
  %vm1299 = vcmp.gt.f32.partialorder %v1283, 0.0
  %vm1300 = vcmp.gt.f32.partialorder %v1284, 0.0
  %vm1301 = vcmp.gt.f32.partialorder %v1285, 0.0
  %vm1302 = vcmp.gt.f32.partialorder %v1286, 0.0
  %vm1303 = vcmp.gt.f32.partialorder %v1287, 0.0
  %vm1304 = vcmp.gt.f32.partialorder %v1288, 0.0
  %vm1305 = vcmp.gt.f32.partialorder %v1289, 0.0
  %v1306 = vmul.f32 %v1274, 1.442695
  %v1307 = vpow.pop %v1306
  %v1308 = vmul.f32 %v1275, 1.442695
  %v1309 = vpow.pop %v1308
  %v1310 = vmul.f32 %v1276, 1.442695
  %v1311 = vpow.pop %v1310
  %v1312 = vmul.f32 %v1277, 1.442695
  %v1313 = vpow.pop %v1312
  %v1314 = vmul.f32 %v1278, 1.442695
  %v1315 = vpow.pop %v1314
  %v1316 = vmul.f32 %v1279, 1.442695
  %v1317 = vpow.pop %v1316
  %v1318 = vmul.f32 %v1280, 1.442695
  %v1319 = vpow.pop %v1318
  %v1320 = vmul.f32 %v1281, 1.442695
  %v1321 = vpow.pop %v1320
  %v1322 = vmul.f32 %v1282, 1.442695
  %v1323 = vpow.pop %v1322
  %v1324 = vmul.f32 %v1283, 1.442695
  %v1325 = vpow.pop %v1324
  %v1326 = vmul.f32 %v1284, 1.442695
  %v1327 = vpow.pop %v1326
  %v1328 = vmul.f32 %v1285, 1.442695
  %v1329 = vpow.pop %v1328
  %v1330 = vmul.f32 %v1286, 1.442695
  %v1331 = vpow.pop %v1330
  %v1332 = vmul.f32 %v1287, 1.442695
  %v1333 = vpow.pop %v1332
  %v1334 = vmul.f32 %v1288, 1.442695
  %v1335 = vpow.pop %v1334
  %v1336 = vmul.f32 %v1289, 1.442695
  %v1337 = vpow.pop %v1336
  %v1338 = vsub.f32 %v1307, 1.0
  %v1339 = vsub.f32 %v1309, 1.0
  %v1340 = vsub.f32 %v1311, 1.0
  %v1341 = vsub.f32 %v1313, 1.0
  %v1342 = vsub.f32 %v1315, 1.0
  %v1343 = vsub.f32 %v1317, 1.0
  %v1344 = vsub.f32 %v1319, 1.0
  %v1345 = vsub.f32 %v1321, 1.0
  %v1346 = vsub.f32 %v1323, 1.0
  %v1347 = vsub.f32 %v1325, 1.0
  %v1348 = vsub.f32 %v1327, 1.0
  %v1349 = vsub.f32 %v1329, 1.0
  %v1350 = vsub.f32 %v1331, 1.0
  %v1351 = vsub.f32 %v1333, 1.0
  %v1352 = vsub.f32 %v1335, 1.0
  %v1353 = vsub.f32 %v1337, 1.0
  %v1354 = vsel %vm1290, %v1274, %v1338
  %v1355 = vsel %vm1291, %v1275, %v1339
  %v1356 = vsel %vm1292, %v1276, %v1340
  %v1357 = vsel %vm1293, %v1277, %v1341
  %v1358 = vsel %vm1294, %v1278, %v1342
  %v1359 = vsel %vm1295, %v1279, %v1343
  %v1360 = vsel %vm1296, %v1280, %v1344
  %v1361 = vsel %vm1297, %v1281, %v1345
  %v1362 = vsel %vm1298, %v1282, %v1346
  %v1363 = vsel %vm1299, %v1283, %v1347
  %v1364 = vsel %vm1300, %v1284, %v1348
  %v1365 = vsel %vm1301, %v1285, %v1349
  %v1366 = vsel %vm1302, %v1286, %v1350
  %v1367 = vsel %vm1303, %v1287, %v1351
  %v1368 = vsel %vm1304, %v1288, %v1352
  %v1369 = vsel %vm1305, %v1289, %v1353
  %1370 = vst.msk [vmem:[#allocation2] sm:$0xff] %vm1109, 0.0
  %vm1371 = vcmask 58368
  %1372 = vst.msk [vmem:[#allocation2 + $0x8] sm:$0x3] %vm1371, 0.0
  %1373 = vst.msk [vmem:[#allocation2 + $0x10] sm:$0xff] %vm1109, 0.0
  %1374 = vst.msk [vmem:[#allocation2 + $0x18] sm:$0x3] %vm1371, 0.0
  %1375 = vst.msk [vmem:[#allocation2 + $0x20] sm:$0xff] %vm1109, 0.0
  %1376 = vst.msk [vmem:[#allocation2 + $0x28] sm:$0x3] %vm1371, 0.0
  %1377 = vst.msk [vmem:[#allocation2 + $0x30] sm:$0xff] %vm1109, 0.0
  %1378 = vst.msk [vmem:[#allocation2 + $0x38] sm:$0x3] %vm1371, 0.0
  %1379 = vst.msk [vmem:[#allocation2 + $0x40] sm:$0xff] %vm1109, 0.0
  %1380 = vst.msk [vmem:[#allocation2 + $0x48] sm:$0x3] %vm1371, 0.0
  %1381 = vst.msk [vmem:[#allocation2 + $0x50] sm:$0xff] %vm1109, 0.0
  %1382 = vst.msk [vmem:[#allocation2 + $0x58] sm:$0x3] %vm1371, 0.0
  %1383 = vst.msk [vmem:[#allocation2 + $0x60] sm:$0xff] %vm1109, 0.0
  %1384 = vst.msk [vmem:[#allocation2 + $0x68] sm:$0x3] %vm1371, 0.0
  %1385 = vst.msk [vmem:[#allocation2 + $0x70] sm:$0xff] %vm1109, 0.0
  %1386 = vst.msk [vmem:[#allocation2 + $0x78] sm:$0x3] %vm1371, 0.0
  %1387 = vst.msk [vmem:[#allocation2 + $0x80] sm:$0xff] %vm1109, 0.0
  %1388 = vst.msk [vmem:[#allocation2 + $0x88] sm:$0x3] %vm1371, 0.0
  %1389 = vst.msk [vmem:[#allocation2 + $0x90] sm:$0xff] %vm1109, 0.0
  %1390 = vst.msk [vmem:[#allocation2 + $0x98] sm:$0x3] %vm1371, 0.0
  %1391 = vst.msk [vmem:[#allocation2 + $0xa0] sm:$0xff] %vm1109, 0.0
  %1392 = vst.msk [vmem:[#allocation2 + $0xa8] sm:$0x3] %vm1371, 0.0
  %1393 = vst.msk [vmem:[#allocation2 + $0xb0] sm:$0xff] %vm1109, 0.0
  %1394 = vst.msk [vmem:[#allocation2 + $0xb8] sm:$0x3] %vm1371, 0.0
  %1395 = vst.msk [vmem:[#allocation2 + $0xc0] sm:$0xff] %vm1109, 0.0
  %1396 = vst.msk [vmem:[#allocation2 + $0xc8] sm:$0x3] %vm1371, 0.0
  %1397 = vst.msk [vmem:[#allocation2 + $0xd0] sm:$0xff] %vm1109, 0.0
  %1398 = vst.msk [vmem:[#allocation2 + $0xd8] sm:$0x3] %vm1371, 0.0
  %1399 = vst.msk [vmem:[#allocation2 + $0xe0] sm:$0xff] %vm1109, 0.0
  %1400 = vst.msk [vmem:[#allocation2 + $0xe8] sm:$0x3] %vm1371, 0.0
  %1401 = vst.msk [vmem:[#allocation2 + $0xf0] sm:$0xff] %vm1109, 0.0
  %1402 = vst.msk [vmem:[#allocation2 + $0xf8] sm:$0x3] %vm1371, 0.0
  %1403 = vst.msk [vmem:[#allocation2 + $0x100] sm:$0xff] %vm1109, 0.0
  %1404 = vst.msk [vmem:[#allocation2 + $0x108] sm:$0x3] %vm1371, 0.0
  %1405 = vst.msk [vmem:[#allocation2 + $0x110] sm:$0xff] %vm1109, 0.0
  %1406 = vst.msk [vmem:[#allocation2 + $0x118] sm:$0x3] %vm1371, 0.0
  %1407 = vst.msk [vmem:[#allocation2 + $0x120] sm:$0xff] %vm1109, 0.0
  %1408 = vst.msk [vmem:[#allocation2 + $0x128] sm:$0x3] %vm1371, 0.0
  %1409 = vst.msk [vmem:[#allocation2 + $0x130] sm:$0xff] %vm1109, 0.0
  %1410 = vst.msk [vmem:[#allocation2 + $0x138] sm:$0x3] %vm1371, 0.0
  %s1411 = scalar_lea.vmem [#allocation2], 16
  %1412 = vst.msk [vmem:[%s1411 + $0x1] sm:$0xff] %vm1109, %v1354
  %1413 = vst.msk [vmem:[%s1411 + $0x11] sm:$0xff] %vm1109, %v1355
  %1414 = vst.msk [vmem:[%s1411 + $0x21] sm:$0xff] %vm1109, %v1356
  %1415 = vst.msk [vmem:[%s1411 + $0x31] sm:$0xff] %vm1109, %v1357
  %1416 = vst.msk [vmem:[%s1411 + $0x41] sm:$0xff] %vm1109, %v1358
  %1417 = vst.msk [vmem:[%s1411 + $0x51] sm:$0xff] %vm1109, %v1359
  %1418 = vst.msk [vmem:[%s1411 + $0x61] sm:$0xff] %vm1109, %v1360
  %1419 = vst.msk [vmem:[%s1411 + $0x71] sm:$0xff] %vm1109, %v1361
  %1420 = vst.msk [vmem:[%s1411 + $0xa1] sm:$0xff] %vm1109, %v1362
  %1421 = vst.msk [vmem:[%s1411 + $0xb1] sm:$0xff] %vm1109, %v1363
  %1422 = vst.msk [vmem:[%s1411 + $0xc1] sm:$0xff] %vm1109, %v1364
  %1423 = vst.msk [vmem:[%s1411 + $0xd1] sm:$0xff] %vm1109, %v1365
  %1424 = vst.msk [vmem:[%s1411 + $0xe1] sm:$0xff] %vm1109, %v1366
  %1425 = vst.msk [vmem:[%s1411 + $0xf1] sm:$0xff] %vm1109, %v1367
  %1426 = vst.msk [vmem:[%s1411 + $0x101] sm:$0xff] %vm1109, %v1368
  %1427 = vst.msk [vmem:[%s1411 + $0x111] sm:$0xff] %vm1109, %v1369
  %v1428 = vld [vmem:[#allocation2] sm:$0xff]
  %v1429 = vld [vmem:[#allocation2 + $0x10] sm:$0xff]
  %v1430 = vld [vmem:[#allocation2 + $0x20] sm:$0xff]
  %v1431 = vld [vmem:[#allocation2 + $0x30] sm:$0xff]
  %v1432 = vld [vmem:[#allocation2 + $0x40] sm:$0xff]
  %v1433 = vld [vmem:[#allocation2 + $0x50] sm:$0xff]
  %v1434 = vld [vmem:[#allocation2 + $0x60] sm:$0xff]
  %v1435 = vld [vmem:[#allocation2 + $0x70] sm:$0xff]
  %v1436 = vld [vmem:[#allocation2 + $0xa0] sm:$0xff]
  %v1437 = vld [vmem:[#allocation2 + $0xb0] sm:$0xff]
  %v1438 = vld [vmem:[#allocation2 + $0xc0] sm:$0xff]
  %v1439 = vld [vmem:[#allocation2 + $0xd0] sm:$0xff]
  %v1440 = vld [vmem:[#allocation2 + $0xe0] sm:$0xff]
  %v1441 = vld [vmem:[#allocation2 + $0xf0] sm:$0xff]
  %v1442 = vld [vmem:[#allocation2 + $0x100] sm:$0xff]
  %v1443 = vld [vmem:[#allocation2 + $0x110] sm:$0xff]
  %v1444 = vpack.c.bf16 %v1429, %v1428
  %v1445 = vpack.c.bf16 %v1431, %v1430
  %v1446 = vpack.c.bf16 %v1433, %v1432
  %v1447 = vpack.c.bf16 %v1435, %v1434
  %v1448 = vpack.c.bf16 %v1437, %v1436
  %v1449 = vpack.c.bf16 %v1439, %v1438
  %v1450 = vpack.c.bf16 %v1441, %v1440
  %v1451 = vpack.c.bf16 %v1443, %v1442
  %v1452 = vld [vmem:[%s5] sm:$0xf]
  %v1453 = vld [vmem:[#allocation2 + $0x1] sm:$0xff]
  %v1454 = vld [vmem:[#allocation2 + $0x11] sm:$0xff]
  %v1455 = vld [vmem:[#allocation2 + $0x21] sm:$0xff]
  %v1456 = vld [vmem:[#allocation2 + $0x31] sm:$0xff]
  %v1457 = vld [vmem:[#allocation2 + $0x41] sm:$0xff]
  %v1458 = vld [vmem:[#allocation2 + $0x51] sm:$0xff]
  %v1459 = vld [vmem:[#allocation2 + $0x61] sm:$0xff]
  %v1460 = vld [vmem:[#allocation2 + $0x71] sm:$0xff]
  %v1461 = vld [vmem:[#allocation2 + $0xa1] sm:$0xff]
  %v1462 = vld [vmem:[#allocation2 + $0xb1] sm:$0xff]
  %v1463 = vld [vmem:[#allocation2 + $0xc1] sm:$0xff]
  %v1464 = vld [vmem:[#allocation2 + $0xd1] sm:$0xff]
  %v1465 = vld [vmem:[#allocation2 + $0xe1] sm:$0xff]
  %v1466 = vld [vmem:[#allocation2 + $0xf1] sm:$0xff]
  %v1467 = vld [vmem:[#allocation2 + $0x101] sm:$0xff]
  %v1468 = vld [vmem:[#allocation2 + $0x111] sm:$0xff]
  %v1469 = vpack.c.bf16 %v1454, %v1453
  %v1470 = vpack.c.bf16 %v1456, %v1455
  %v1471 = vpack.c.bf16 %v1458, %v1457
  %v1472 = vpack.c.bf16 %v1460, %v1459
  %v1473 = vpack.c.bf16 %v1462, %v1461
  %v1474 = vpack.c.bf16 %v1464, %v1463
  %v1475 = vpack.c.bf16 %v1466, %v1465
  %v1476 = vpack.c.bf16 %v1468, %v1467
  %s1477 = scalar_lea.vmem %s5, 4
  %v1478 = vld [vmem:[%s1477] sm:$0xf]
  %v1480 = vsel %vm1109, %v1469, 0
  %v1483 = vsel %vm1109, %v1470, 0
  %v1486 = vsel %vm1109, %v1471, 0
  %v1489 = vsel %vm1109, %v1472, 0
  %v1492 = vsel %vm1109, %v1473, 0
  %v1495 = vsel %vm1109, %v1474, 0
  %v1498 = vsel %vm1109, %v1475, 0
  %v1501 = vsel %vm1109, %v1476, 0
  %vm1503 = vcmask 1043456
  %v1505 = vsel %vm1503, %v1478, 0
  %1507 = vmatpush.bf16.msra.mxu0 0
  %1508 = vmatpush.bf16.msra.mxu0 0
  %1509 = vmatpush.bf16.msra.mxu0 0
  %1510 = vmatpush.bf16.msra.mxu0 0
  %1511 = vmatpush.bf16.msra.mxu0 0
  %1512 = vmatpush.bf16.msra.mxu0 0
  %1513 = vmatpush.bf16.msra.mxu0 0
  %1514 = vmatpush.bf16.msra.mxu0 %v1505
  %1515 = vmatmul.bf16.gmra.mxu0 %v1480
  %v1516 = vpop.f32.mrf.mxu0
  %v1517 = vadd.f32 0.0, %v1516
  %v1518 = vpop.f32.mrf.mxu0
  %v1519 = vadd.f32 0.0, %v1518
  %1520 = vmatmul.bf16.gmra.mxu0 %v1483
  %v1521 = vpop.f32.mrf.mxu0
  %v1522 = vadd.f32 0.0, %v1521
  %v1523 = vpop.f32.mrf.mxu0
  %v1524 = vadd.f32 0.0, %v1523
  %1525 = vmatmul.bf16.gmra.mxu0 %v1486
  %v1526 = vpop.f32.mrf.mxu0
  %v1527 = vadd.f32 0.0, %v1526
  %v1528 = vpop.f32.mrf.mxu0
  %v1529 = vadd.f32 0.0, %v1528
  %1530 = vmatmul.bf16.gmra.mxu0 %v1489
  %v1531 = vpop.f32.mrf.mxu0
  %v1532 = vadd.f32 0.0, %v1531
  %v1533 = vpop.f32.mrf.mxu0
  %v1534 = vadd.f32 0.0, %v1533
  %1535 = vmatmul.bf16.gmra.mxu0 %v1492
  %v1536 = vpop.f32.mrf.mxu0
  %v1537 = vadd.f32 0.0, %v1536
  %v1538 = vpop.f32.mrf.mxu0
  %v1539 = vadd.f32 0.0, %v1538
  %1540 = vmatmul.bf16.gmra.mxu0 %v1495
  %v1541 = vpop.f32.mrf.mxu0
  %v1542 = vadd.f32 0.0, %v1541
  %v1543 = vpop.f32.mrf.mxu0
  %v1544 = vadd.f32 0.0, %v1543
  %1545 = vmatmul.bf16.gmra.mxu0 %v1498
  %v1546 = vpop.f32.mrf.mxu0
  %v1547 = vadd.f32 0.0, %v1546
  %v1548 = vpop.f32.mrf.mxu0
  %v1549 = vadd.f32 0.0, %v1548
  %1550 = vmatmul.bf16.gmra.mxu0 %v1501
  %v1551 = vpop.f32.mrf.mxu0
  %v1552 = vadd.f32 0.0, %v1551
  %v1553 = vpop.f32.mrf.mxu0
  %v1554 = vadd.f32 0.0, %v1553
  %1555 = vdwg.mxu0
  %v1557 = vsel %vm1109, %v1444, 0
  %v1560 = vsel %vm1109, %v1445, 0
  %v1563 = vsel %vm1109, %v1446, 0
  %v1566 = vsel %vm1109, %v1447, 0
  %v1569 = vsel %vm1109, %v1448, 0
  %v1572 = vsel %vm1109, %v1449, 0
  %v1575 = vsel %vm1109, %v1450, 0
  %v1578 = vsel %vm1109, %v1451, 0
  %v1581 = vsel %vm1503, %v1452, 0
  %1583 = vmatpush.bf16.msra.mxu0 0
  %1584 = vmatpush.bf16.msra.mxu0 0
  %1585 = vmatpush.bf16.msra.mxu0 0
  %1586 = vmatpush.bf16.msra.mxu0 0
  %1587 = vmatpush.bf16.msra.mxu0 0
  %1588 = vmatpush.bf16.msra.mxu0 0
  %1589 = vmatpush.bf16.msra.mxu0 0
  %1590 = vmatpush.bf16.msra.mxu0 %v1581
  %1591 = vmatmul.bf16.gmra.mxu0 %v1557
  %v1592 = vpop.f32.mrf.mxu0
  %v1593 = vadd.f32 %v1517, %v1592
  %v1594 = vpop.f32.mrf.mxu0
  %v1595 = vadd.f32 %v1519, %v1594
  %1596 = vmatmul.bf16.gmra.mxu0 %v1560
  %v1597 = vpop.f32.mrf.mxu0
  %v1598 = vadd.f32 %v1522, %v1597
  %v1599 = vpop.f32.mrf.mxu0
  %v1600 = vadd.f32 %v1524, %v1599
  %1601 = vmatmul.bf16.gmra.mxu0 %v1563
  %v1602 = vpop.f32.mrf.mxu0
  %v1603 = vadd.f32 %v1527, %v1602
  %v1604 = vpop.f32.mrf.mxu0
  %v1605 = vadd.f32 %v1529, %v1604
  %1606 = vmatmul.bf16.gmra.mxu0 %v1566
  %v1607 = vpop.f32.mrf.mxu0
  %v1608 = vadd.f32 %v1532, %v1607
  %v1609 = vpop.f32.mrf.mxu0
  %v1610 = vadd.f32 %v1534, %v1609
  %1611 = vmatmul.bf16.gmra.mxu0 %v1569
  %v1612 = vpop.f32.mrf.mxu0
  %v1613 = vadd.f32 %v1537, %v1612
  %v1614 = vpop.f32.mrf.mxu0
  %v1615 = vadd.f32 %v1539, %v1614
  %1616 = vmatmul.bf16.gmra.mxu0 %v1572
  %v1617 = vpop.f32.mrf.mxu0
  %v1618 = vadd.f32 %v1542, %v1617
  %v1619 = vpop.f32.mrf.mxu0
  %v1620 = vadd.f32 %v1544, %v1619
  %1621 = vmatmul.bf16.gmra.mxu0 %v1575
  %v1622 = vpop.f32.mrf.mxu0
  %v1623 = vadd.f32 %v1547, %v1622
  %v1624 = vpop.f32.mrf.mxu0
  %v1625 = vadd.f32 %v1549, %v1624
  %1626 = vmatmul.bf16.gmra.mxu0 %v1578
  %v1627 = vpop.f32.mrf.mxu0
  %v1628 = vadd.f32 %v1552, %v1627
  %v1629 = vpop.f32.mrf.mxu0
  %v1630 = vadd.f32 %v1554, %v1629
  %1631 = vdwg.mxu0
  %v1632 = vld [vmem:[#allocation2 + $0x2] sm:$0xff]
  %v1633 = vld [vmem:[#allocation2 + $0x12] sm:$0xff]
  %v1634 = vld [vmem:[#allocation2 + $0x22] sm:$0xff]
  %v1635 = vld [vmem:[#allocation2 + $0x32] sm:$0xff]
  %v1636 = vld [vmem:[#allocation2 + $0x42] sm:$0xff]
  %v1637 = vld [vmem:[#allocation2 + $0x52] sm:$0xff]
  %v1638 = vld [vmem:[#allocation2 + $0x62] sm:$0xff]
  %v1639 = vld [vmem:[#allocation2 + $0x72] sm:$0xff]
  %v1640 = vld [vmem:[#allocation2 + $0xa2] sm:$0xff]
  %v1641 = vld [vmem:[#allocation2 + $0xb2] sm:$0xff]
  %v1642 = vld [vmem:[#allocation2 + $0xc2] sm:$0xff]
  %v1643 = vld [vmem:[#allocation2 + $0xd2] sm:$0xff]
  %v1644 = vld [vmem:[#allocation2 + $0xe2] sm:$0xff]
  %v1645 = vld [vmem:[#allocation2 + $0xf2] sm:$0xff]
  %v1646 = vld [vmem:[#allocation2 + $0x102] sm:$0xff]
  %v1647 = vld [vmem:[#allocation2 + $0x112] sm:$0xff]
  %v1648 = vpack.c.bf16 %v1633, %v1632
  %v1649 = vpack.c.bf16 %v1635, %v1634
  %v1650 = vpack.c.bf16 %v1637, %v1636
  %v1651 = vpack.c.bf16 %v1639, %v1638
  %v1652 = vpack.c.bf16 %v1641, %v1640
  %v1653 = vpack.c.bf16 %v1643, %v1642
  %v1654 = vpack.c.bf16 %v1645, %v1644
  %v1655 = vpack.c.bf16 %v1647, %v1646
  %s1656 = scalar_lea.vmem %s5, 8
  %v1657 = vld [vmem:[%s1656] sm:$0xf]
  %v1659 = vsel %vm1109, %v1648, 0
  %v1662 = vsel %vm1109, %v1649, 0
  %v1665 = vsel %vm1109, %v1650, 0
  %v1668 = vsel %vm1109, %v1651, 0
  %v1671 = vsel %vm1109, %v1652, 0
  %v1674 = vsel %vm1109, %v1653, 0
  %v1677 = vsel %vm1109, %v1654, 0
  %v1680 = vsel %vm1109, %v1655, 0
  %v1683 = vsel %vm1503, %v1657, 0
  %1685 = vmatpush.bf16.msra.mxu0 0
  %1686 = vmatpush.bf16.msra.mxu0 0
  %1687 = vmatpush.bf16.msra.mxu0 0
  %1688 = vmatpush.bf16.msra.mxu0 0
  %1689 = vmatpush.bf16.msra.mxu0 0
  %1690 = vmatpush.bf16.msra.mxu0 0
  %1691 = vmatpush.bf16.msra.mxu0 0
  %1692 = vmatpush.bf16.msra.mxu0 %v1683
  %1693 = vmatmul.bf16.gmra.mxu0 %v1659
  %v1694 = vpop.f32.mrf.mxu0
  %v1695 = vadd.f32 0.0, %v1694
  %v1696 = vpop.f32.mrf.mxu0
  %v1697 = vadd.f32 0.0, %v1696
  %1698 = vmatmul.bf16.gmra.mxu0 %v1662
  %v1699 = vpop.f32.mrf.mxu0
  %v1700 = vadd.f32 0.0, %v1699
  %v1701 = vpop.f32.mrf.mxu0
  %v1702 = vadd.f32 0.0, %v1701
  %1703 = vmatmul.bf16.gmra.mxu0 %v1665
  %v1704 = vpop.f32.mrf.mxu0
  %v1705 = vadd.f32 0.0, %v1704
  %v1706 = vpop.f32.mrf.mxu0
  %v1707 = vadd.f32 0.0, %v1706
  %1708 = vmatmul.bf16.gmra.mxu0 %v1668
  %v1709 = vpop.f32.mrf.mxu0
  %v1710 = vadd.f32 0.0, %v1709
  %v1711 = vpop.f32.mrf.mxu0
  %v1712 = vadd.f32 0.0, %v1711
  %1713 = vmatmul.bf16.gmra.mxu0 %v1671
  %v1714 = vpop.f32.mrf.mxu0
  %v1715 = vadd.f32 0.0, %v1714
  %v1716 = vpop.f32.mrf.mxu0
  %v1717 = vadd.f32 0.0, %v1716
  %1718 = vmatmul.bf16.gmra.mxu0 %v1674
  %v1719 = vpop.f32.mrf.mxu0
  %v1720 = vadd.f32 0.0, %v1719
  %v1721 = vpop.f32.mrf.mxu0
  %v1722 = vadd.f32 0.0, %v1721
  %1723 = vmatmul.bf16.gmra.mxu0 %v1677
  %v1724 = vpop.f32.mrf.mxu0
  %v1725 = vadd.f32 0.0, %v1724
  %v1726 = vpop.f32.mrf.mxu0
  %v1727 = vadd.f32 0.0, %v1726
  %1728 = vmatmul.bf16.gmra.mxu0 %v1680
  %v1729 = vpop.f32.mrf.mxu0
  %v1730 = vadd.f32 0.0, %v1729
  %v1731 = vpop.f32.mrf.mxu0
  %v1732 = vadd.f32 0.0, %v1731
  %1733 = vdwg.mxu0
  %v1734 = vadd.f32 %v1593, %v1695
  %v1735 = vadd.f32 %v1595, %v1697
  %v1736 = vadd.f32 %v1598, %v1700
  %v1737 = vadd.f32 %v1600, %v1702
  %v1738 = vadd.f32 %v1603, %v1705
  %v1739 = vadd.f32 %v1605, %v1707
  %v1740 = vadd.f32 %v1608, %v1710
  %v1741 = vadd.f32 %v1610, %v1712
  %v1742 = vadd.f32 %v1613, %v1715
  %v1743 = vadd.f32 %v1615, %v1717
  %v1744 = vadd.f32 %v1618, %v1720
  %v1745 = vadd.f32 %v1620, %v1722
  %v1746 = vadd.f32 %v1623, %v1725
  %v1747 = vadd.f32 %v1625, %v1727
  %v1748 = vadd.f32 %v1628, %v1730
  %v1749 = vadd.f32 %v1630, %v1732
  %v1750 = vld [vmem:[%s1411] sm:$0xff]
  %v1751 = vld [vmem:[%s1411 + $0x10] sm:$0xff]
  %v1752 = vld [vmem:[%s1411 + $0x20] sm:$0xff]
  %v1753 = vld [vmem:[%s1411 + $0x30] sm:$0xff]
  %v1754 = vld [vmem:[%s1411 + $0x40] sm:$0xff]
  %v1755 = vld [vmem:[%s1411 + $0x50] sm:$0xff]
  %v1756 = vld [vmem:[%s1411 + $0x60] sm:$0xff]
  %v1757 = vld [vmem:[%s1411 + $0x70] sm:$0xff]
  %v1758 = vld [vmem:[%s1411 + $0xa0] sm:$0xff]
  %v1759 = vld [vmem:[%s1411 + $0xb0] sm:$0xff]
  %v1760 = vld [vmem:[%s1411 + $0xc0] sm:$0xff]
  %v1761 = vld [vmem:[%s1411 + $0xd0] sm:$0xff]
  %v1762 = vld [vmem:[%s1411 + $0xe0] sm:$0xff]
  %v1763 = vld [vmem:[%s1411 + $0xf0] sm:$0xff]
  %v1764 = vld [vmem:[%s1411 + $0x100] sm:$0xff]
  %v1765 = vld [vmem:[%s1411 + $0x110] sm:$0xff]
  %v1766 = vpack.c.bf16 %v1751, %v1750
  %v1767 = vpack.c.bf16 %v1753, %v1752
  %v1768 = vpack.c.bf16 %v1755, %v1754
  %v1769 = vpack.c.bf16 %v1757, %v1756
  %v1770 = vpack.c.bf16 %v1759, %v1758
  %v1771 = vpack.c.bf16 %v1761, %v1760
  %v1772 = vpack.c.bf16 %v1763, %v1762
  %v1773 = vpack.c.bf16 %v1765, %v1764
  %s1774 = scalar_lea.vmem %s5, 12
  %v1775 = vld [vmem:[%s1774] sm:$0xf]
  %v1777 = vsel %vm1109, %v1766, 0
  %v1780 = vsel %vm1109, %v1767, 0
  %v1783 = vsel %vm1109, %v1768, 0
  %v1786 = vsel %vm1109, %v1769, 0
  %v1789 = vsel %vm1109, %v1770, 0
  %v1792 = vsel %vm1109, %v1771, 0
  %v1795 = vsel %vm1109, %v1772, 0
  %v1798 = vsel %vm1109, %v1773, 0
  %v1801 = vsel %vm1503, %v1775, 0
  %1803 = vmatpush.bf16.msra.mxu0 0
  %1804 = vmatpush.bf16.msra.mxu0 0
  %1805 = vmatpush.bf16.msra.mxu0 0
  %1806 = vmatpush.bf16.msra.mxu0 0
  %1807 = vmatpush.bf16.msra.mxu0 0
  %1808 = vmatpush.bf16.msra.mxu0 0
  %1809 = vmatpush.bf16.msra.mxu0 0
  %1810 = vmatpush.bf16.msra.mxu0 %v1801
  %1811 = vmatmul.bf16.gmra.mxu0 %v1777
  %v1812 = vpop.f32.mrf.mxu0
  %v1813 = vadd.f32 0.0, %v1812
  %v1814 = vpop.f32.mrf.mxu0
  %v1815 = vadd.f32 0.0, %v1814
  %1816 = vmatmul.bf16.gmra.mxu0 %v1780
  %v1817 = vpop.f32.mrf.mxu0
  %v1818 = vadd.f32 0.0, %v1817
  %v1819 = vpop.f32.mrf.mxu0
  %v1820 = vadd.f32 0.0, %v1819
  %1821 = vmatmul.bf16.gmra.mxu0 %v1783
  %v1822 = vpop.f32.mrf.mxu0
  %v1823 = vadd.f32 0.0, %v1822
  %v1824 = vpop.f32.mrf.mxu0
  %v1825 = vadd.f32 0.0, %v1824
  %1826 = vmatmul.bf16.gmra.mxu0 %v1786
  %v1827 = vpop.f32.mrf.mxu0
  %v1828 = vadd.f32 0.0, %v1827
  %v1829 = vpop.f32.mrf.mxu0
  %v1830 = vadd.f32 0.0, %v1829
  %1831 = vmatmul.bf16.gmra.mxu0 %v1789
  %v1832 = vpop.f32.mrf.mxu0
  %v1833 = vadd.f32 0.0, %v1832
  %v1834 = vpop.f32.mrf.mxu0
  %v1835 = vadd.f32 0.0, %v1834
  %1836 = vmatmul.bf16.gmra.mxu0 %v1792
  %v1837 = vpop.f32.mrf.mxu0
  %v1838 = vadd.f32 0.0, %v1837
  %v1839 = vpop.f32.mrf.mxu0
  %v1840 = vadd.f32 0.0, %v1839
  %1841 = vmatmul.bf16.gmra.mxu0 %v1795
  %v1842 = vpop.f32.mrf.mxu0
  %v1843 = vadd.f32 0.0, %v1842
  %v1844 = vpop.f32.mrf.mxu0
  %v1845 = vadd.f32 0.0, %v1844
  %1846 = vmatmul.bf16.gmra.mxu0 %v1798
  %v1847 = vpop.f32.mrf.mxu0
  %v1848 = vadd.f32 0.0, %v1847
  %v1849 = vpop.f32.mrf.mxu0
  %v1850 = vadd.f32 0.0, %v1849
  %1851 = vdwg.mxu0
  %v1852 = vadd.f32 %v1734, %v1813
  %v1853 = vadd.f32 %v1735, %v1815
  %v1854 = vadd.f32 %v1736, %v1818
  %v1855 = vadd.f32 %v1737, %v1820
  %v1856 = vadd.f32 %v1738, %v1823
  %v1857 = vadd.f32 %v1739, %v1825
  %v1858 = vadd.f32 %v1740, %v1828
  %v1859 = vadd.f32 %v1741, %v1830
  %v1860 = vadd.f32 %v1742, %v1833
  %v1861 = vadd.f32 %v1743, %v1835
  %v1862 = vadd.f32 %v1744, %v1838
  %v1863 = vadd.f32 %v1745, %v1840
  %v1864 = vadd.f32 %v1746, %v1843
  %v1865 = vadd.f32 %v1747, %v1845
  %v1866 = vadd.f32 %v1748, %v1848
  %v1867 = vadd.f32 %v1749, %v1850
  %v1868 = vld [vmem:[%s1411 + $0x1] sm:$0xff]
  %v1869 = vld [vmem:[%s1411 + $0x11] sm:$0xff]
  %v1870 = vld [vmem:[%s1411 + $0x21] sm:$0xff]
  %v1871 = vld [vmem:[%s1411 + $0x31] sm:$0xff]
  %v1872 = vld [vmem:[%s1411 + $0x41] sm:$0xff]
  %v1873 = vld [vmem:[%s1411 + $0x51] sm:$0xff]
  %v1874 = vld [vmem:[%s1411 + $0x61] sm:$0xff]
  %v1875 = vld [vmem:[%s1411 + $0x71] sm:$0xff]
  %v1876 = vld [vmem:[%s1411 + $0xa1] sm:$0xff]
  %v1877 = vld [vmem:[%s1411 + $0xb1] sm:$0xff]
  %v1878 = vld [vmem:[%s1411 + $0xc1] sm:$0xff]
  %v1879 = vld [vmem:[%s1411 + $0xd1] sm:$0xff]
  %v1880 = vld [vmem:[%s1411 + $0xe1] sm:$0xff]
  %v1881 = vld [vmem:[%s1411 + $0xf1] sm:$0xff]
  %v1882 = vld [vmem:[%s1411 + $0x101] sm:$0xff]
  %v1883 = vld [vmem:[%s1411 + $0x111] sm:$0xff]
  %v1884 = vpack.c.bf16 %v1869, %v1868
  %v1885 = vpack.c.bf16 %v1871, %v1870
  %v1886 = vpack.c.bf16 %v1873, %v1872
  %v1887 = vpack.c.bf16 %v1875, %v1874
  %v1888 = vpack.c.bf16 %v1877, %v1876
  %v1889 = vpack.c.bf16 %v1879, %v1878
  %v1890 = vpack.c.bf16 %v1881, %v1880
  %v1891 = vpack.c.bf16 %v1883, %v1882
  %s1892 = scalar_lea.vmem %s5, 16
  %v1893 = vld [vmem:[%s1892] sm:$0xf]
  %v1895 = vsel %vm1109, %v1884, 0
  %v1898 = vsel %vm1109, %v1885, 0
  %v1901 = vsel %vm1109, %v1886, 0
  %v1904 = vsel %vm1109, %v1887, 0
  %v1907 = vsel %vm1109, %v1888, 0
  %v1910 = vsel %vm1109, %v1889, 0
  %v1913 = vsel %vm1109, %v1890, 0
  %v1916 = vsel %vm1109, %v1891, 0
  %v1919 = vsel %vm1503, %v1893, 0
  %1921 = vmatpush.bf16.msra.mxu0 0
  %1922 = vmatpush.bf16.msra.mxu0 0
  %1923 = vmatpush.bf16.msra.mxu0 0
  %1924 = vmatpush.bf16.msra.mxu0 0
  %1925 = vmatpush.bf16.msra.mxu0 0
  %1926 = vmatpush.bf16.msra.mxu0 0
  %1927 = vmatpush.bf16.msra.mxu0 0
  %1928 = vmatpush.bf16.msra.mxu0 %v1919
  %1929 = vmatmul.bf16.gmra.mxu0 %v1895
  %v1930 = vpop.f32.mrf.mxu0
  %v1931 = vadd.f32 0.0, %v1930
  %v1932 = vpop.f32.mrf.mxu0
  %v1933 = vadd.f32 0.0, %v1932
  %1934 = vmatmul.bf16.gmra.mxu0 %v1898
  %v1935 = vpop.f32.mrf.mxu0
  %v1936 = vadd.f32 0.0, %v1935
  %v1937 = vpop.f32.mrf.mxu0
  %v1938 = vadd.f32 0.0, %v1937
  %1939 = vmatmul.bf16.gmra.mxu0 %v1901
  %v1940 = vpop.f32.mrf.mxu0
  %v1941 = vadd.f32 0.0, %v1940
  %v1942 = vpop.f32.mrf.mxu0
  %v1943 = vadd.f32 0.0, %v1942
  %1944 = vmatmul.bf16.gmra.mxu0 %v1904
  %v1945 = vpop.f32.mrf.mxu0
  %v1946 = vadd.f32 0.0, %v1945
  %v1947 = vpop.f32.mrf.mxu0
  %v1948 = vadd.f32 0.0, %v1947
  %1949 = vmatmul.bf16.gmra.mxu0 %v1907
  %v1950 = vpop.f32.mrf.mxu0
  %v1951 = vadd.f32 0.0, %v1950
  %v1952 = vpop.f32.mrf.mxu0
  %v1953 = vadd.f32 0.0, %v1952
  %1954 = vmatmul.bf16.gmra.mxu0 %v1910
  %v1955 = vpop.f32.mrf.mxu0
  %v1956 = vadd.f32 0.0, %v1955
  %v1957 = vpop.f32.mrf.mxu0
  %v1958 = vadd.f32 0.0, %v1957
  %1959 = vmatmul.bf16.gmra.mxu0 %v1913
  %v1960 = vpop.f32.mrf.mxu0
  %v1961 = vadd.f32 0.0, %v1960
  %v1962 = vpop.f32.mrf.mxu0
  %v1963 = vadd.f32 0.0, %v1962
  %1964 = vmatmul.bf16.gmra.mxu0 %v1916
  %v1965 = vpop.f32.mrf.mxu0
  %v1966 = vadd.f32 0.0, %v1965
  %v1967 = vpop.f32.mrf.mxu0
  %v1968 = vadd.f32 0.0, %v1967
  %1969 = vdwg.mxu0
  %v1970 = vadd.f32 %v1852, %v1931
  %v1971 = vadd.f32 %v1853, %v1933
  %v1972 = vadd.f32 %v1854, %v1936
  %v1973 = vadd.f32 %v1855, %v1938
  %v1974 = vadd.f32 %v1856, %v1941
  %v1975 = vadd.f32 %v1857, %v1943
  %v1976 = vadd.f32 %v1858, %v1946
  %v1977 = vadd.f32 %v1859, %v1948
  %v1978 = vadd.f32 %v1860, %v1951
  %v1979 = vadd.f32 %v1861, %v1953
  %v1980 = vadd.f32 %v1862, %v1956
  %v1981 = vadd.f32 %v1863, %v1958
  %v1982 = vadd.f32 %v1864, %v1961
  %v1983 = vadd.f32 %v1865, %v1963
  %v1984 = vadd.f32 %v1866, %v1966
  %v1985 = vadd.f32 %v1867, %v1968
  %v1986 = vld [vmem:[%s1411 + $0x2] sm:$0xff]
  %v1987 = vld [vmem:[%s1411 + $0x12] sm:$0xff]
  %v1988 = vld [vmem:[%s1411 + $0x22] sm:$0xff]
  %v1989 = vld [vmem:[%s1411 + $0x32] sm:$0xff]
  %v1990 = vld [vmem:[%s1411 + $0x42] sm:$0xff]
  %v1991 = vld [vmem:[%s1411 + $0x52] sm:$0xff]
  %v1992 = vld [vmem:[%s1411 + $0x62] sm:$0xff]
  %v1993 = vld [vmem:[%s1411 + $0x72] sm:$0xff]
  %v1994 = vld [vmem:[%s1411 + $0xa2] sm:$0xff]
  %v1995 = vld [vmem:[%s1411 + $0xb2] sm:$0xff]
  %v1996 = vld [vmem:[%s1411 + $0xc2] sm:$0xff]
  %v1997 = vld [vmem:[%s1411 + $0xd2] sm:$0xff]
  %v1998 = vld [vmem:[%s1411 + $0xe2] sm:$0xff]
  %v1999 = vld [vmem:[%s1411 + $0xf2] sm:$0xff]
  %v2000 = vld [vmem:[%s1411 + $0x102] sm:$0xff]
  %v2001 = vld [vmem:[%s1411 + $0x112] sm:$0xff]
  %v2002 = vpack.c.bf16 %v1987, %v1986
  %v2003 = vpack.c.bf16 %v1989, %v1988
  %v2004 = vpack.c.bf16 %v1991, %v1990
  %v2005 = vpack.c.bf16 %v1993, %v1992
  %v2006 = vpack.c.bf16 %v1995, %v1994
  %v2007 = vpack.c.bf16 %v1997, %v1996
  %v2008 = vpack.c.bf16 %v1999, %v1998
  %v2009 = vpack.c.bf16 %v2001, %v2000
  %s2010 = scalar_lea.vmem %s5, 20
  %v2011 = vld [vmem:[%s2010] sm:$0xf]
  %v2013 = vsel %vm1109, %v2002, 0
  %v2016 = vsel %vm1109, %v2003, 0
  %v2019 = vsel %vm1109, %v2004, 0
  %v2022 = vsel %vm1109, %v2005, 0
  %v2025 = vsel %vm1109, %v2006, 0
  %v2028 = vsel %vm1109, %v2007, 0
  %v2031 = vsel %vm1109, %v2008, 0
  %v2034 = vsel %vm1109, %v2009, 0
  %v2037 = vsel %vm1503, %v2011, 0
  %2039 = vmatpush.bf16.msra.mxu0 0
  %2040 = vmatpush.bf16.msra.mxu0 0
  %2041 = vmatpush.bf16.msra.mxu0 0
  %2042 = vmatpush.bf16.msra.mxu0 0
  %2043 = vmatpush.bf16.msra.mxu0 0
  %2044 = vmatpush.bf16.msra.mxu0 0
  %2045 = vmatpush.bf16.msra.mxu0 0
  %2046 = vmatpush.bf16.msra.mxu0 %v2037
  %2047 = vmatmul.bf16.gmra.mxu0 %v2013
  %v2048 = vpop.f32.mrf.mxu0
  %v2049 = vadd.f32 0.0, %v2048
  %v2050 = vpop.f32.mrf.mxu0
  %v2051 = vadd.f32 0.0, %v2050
  %2052 = vmatmul.bf16.gmra.mxu0 %v2016
  %v2053 = vpop.f32.mrf.mxu0
  %v2054 = vadd.f32 0.0, %v2053
  %v2055 = vpop.f32.mrf.mxu0
  %v2056 = vadd.f32 0.0, %v2055
  %2057 = vmatmul.bf16.gmra.mxu0 %v2019
  %v2058 = vpop.f32.mrf.mxu0
  %v2059 = vadd.f32 0.0, %v2058
  %v2060 = vpop.f32.mrf.mxu0
  %v2061 = vadd.f32 0.0, %v2060
  %2062 = vmatmul.bf16.gmra.mxu0 %v2022
  %v2063 = vpop.f32.mrf.mxu0
  %v2064 = vadd.f32 0.0, %v2063
  %v2065 = vpop.f32.mrf.mxu0
  %v2066 = vadd.f32 0.0, %v2065
  %2067 = vmatmul.bf16.gmra.mxu0 %v2025
  %v2068 = vpop.f32.mrf.mxu0
  %v2069 = vadd.f32 0.0, %v2068
  %v2070 = vpop.f32.mrf.mxu0
  %v2071 = vadd.f32 0.0, %v2070
  %2072 = vmatmul.bf16.gmra.mxu0 %v2028
  %v2073 = vpop.f32.mrf.mxu0
  %v2074 = vadd.f32 0.0, %v2073
  %v2075 = vpop.f32.mrf.mxu0
  %v2076 = vadd.f32 0.0, %v2075
  %2077 = vmatmul.bf16.gmra.mxu0 %v2031
  %v2078 = vpop.f32.mrf.mxu0
  %v2079 = vadd.f32 0.0, %v2078
  %v2080 = vpop.f32.mrf.mxu0
  %v2081 = vadd.f32 0.0, %v2080
  %2082 = vmatmul.bf16.gmra.mxu0 %v2034
  %v2083 = vpop.f32.mrf.mxu0
  %v2084 = vadd.f32 0.0, %v2083
  %v2085 = vpop.f32.mrf.mxu0
  %v2086 = vadd.f32 0.0, %v2085
  %2087 = vdwg.mxu0
  %v2088 = vadd.f32 %v1970, %v2049
  %v2089 = vadd.f32 %v1971, %v2051
  %v2090 = vadd.f32 %v1972, %v2054
  %v2091 = vadd.f32 %v1973, %v2056
  %v2092 = vadd.f32 %v1974, %v2059
  %v2093 = vadd.f32 %v1975, %v2061
  %v2094 = vadd.f32 %v1976, %v2064
  %v2095 = vadd.f32 %v1977, %v2066
  %v2096 = vadd.f32 %v1978, %v2069
  %v2097 = vadd.f32 %v1979, %v2071
  %v2098 = vadd.f32 %v1980, %v2074
  %v2099 = vadd.f32 %v1981, %v2076
  %v2100 = vadd.f32 %v1982, %v2079
  %v2101 = vadd.f32 %v1983, %v2081
  %v2102 = vadd.f32 %v1984, %v2084
  %v2103 = vadd.f32 %v1985, %v2086
  %s2104 = scalar_lea.vmem [#allocation2], 32
  %v2105 = vld [vmem:[%s2104] sm:$0xff]
  %v2106 = vld [vmem:[%s2104 + $0x10] sm:$0xff]
  %v2107 = vld [vmem:[%s2104 + $0x20] sm:$0xff]
  %v2108 = vld [vmem:[%s2104 + $0x30] sm:$0xff]
  %v2109 = vld [vmem:[%s2104 + $0x40] sm:$0xff]
  %v2110 = vld [vmem:[%s2104 + $0x50] sm:$0xff]
  %v2111 = vld [vmem:[%s2104 + $0x60] sm:$0xff]
  %v2112 = vld [vmem:[%s2104 + $0x70] sm:$0xff]
  %v2113 = vld [vmem:[%s2104 + $0xa0] sm:$0xff]
  %v2114 = vld [vmem:[%s2104 + $0xb0] sm:$0xff]
  %v2115 = vld [vmem:[%s2104 + $0xc0] sm:$0xff]
  %v2116 = vld [vmem:[%s2104 + $0xd0] sm:$0xff]
  %v2117 = vld [vmem:[%s2104 + $0xe0] sm:$0xff]
  %v2118 = vld [vmem:[%s2104 + $0xf0] sm:$0xff]
  %v2119 = vld [vmem:[%s2104 + $0x100] sm:$0xff]
  %v2120 = vld [vmem:[%s2104 + $0x110] sm:$0xff]
  %v2121 = vpack.c.bf16 %v2106, %v2105
  %v2122 = vpack.c.bf16 %v2108, %v2107
  %v2123 = vpack.c.bf16 %v2110, %v2109
  %v2124 = vpack.c.bf16 %v2112, %v2111
  %v2125 = vpack.c.bf16 %v2114, %v2113
  %v2126 = vpack.c.bf16 %v2116, %v2115
  %v2127 = vpack.c.bf16 %v2118, %v2117
  %v2128 = vpack.c.bf16 %v2120, %v2119
  %s2129 = scalar_lea.vmem %s5, 24
  %v2130 = vld [vmem:[%s2129] sm:$0xf]
  %v2132 = vsel %vm1109, %v2121, 0
  %v2135 = vsel %vm1109, %v2122, 0
  %v2138 = vsel %vm1109, %v2123, 0
  %v2141 = vsel %vm1109, %v2124, 0
  %v2144 = vsel %vm1109, %v2125, 0
  %v2147 = vsel %vm1109, %v2126, 0
  %v2150 = vsel %vm1109, %v2127, 0
  %v2153 = vsel %vm1109, %v2128, 0
  %v2156 = vsel %vm1503, %v2130, 0
  %2158 = vmatpush.bf16.msra.mxu0 0
  %2159 = vmatpush.bf16.msra.mxu0 0
  %2160 = vmatpush.bf16.msra.mxu0 0
  %2161 = vmatpush.bf16.msra.mxu0 0
  %2162 = vmatpush.bf16.msra.mxu0 0
  %2163 = vmatpush.bf16.msra.mxu0 0
  %2164 = vmatpush.bf16.msra.mxu0 0
  %2165 = vmatpush.bf16.msra.mxu0 %v2156
  %2166 = vmatmul.bf16.gmra.mxu0 %v2132
  %v2167 = vpop.f32.mrf.mxu0
  %v2168 = vadd.f32 0.0, %v2167
  %v2169 = vpop.f32.mrf.mxu0
  %v2170 = vadd.f32 0.0, %v2169
  %2171 = vmatmul.bf16.gmra.mxu0 %v2135
  %v2172 = vpop.f32.mrf.mxu0
  %v2173 = vadd.f32 0.0, %v2172
  %v2174 = vpop.f32.mrf.mxu0
  %v2175 = vadd.f32 0.0, %v2174
  %2176 = vmatmul.bf16.gmra.mxu0 %v2138
  %v2177 = vpop.f32.mrf.mxu0
  %v2178 = vadd.f32 0.0, %v2177
  %v2179 = vpop.f32.mrf.mxu0
  %v2180 = vadd.f32 0.0, %v2179
  %2181 = vmatmul.bf16.gmra.mxu0 %v2141
  %v2182 = vpop.f32.mrf.mxu0
  %v2183 = vadd.f32 0.0, %v2182
  %v2184 = vpop.f32.mrf.mxu0
  %v2185 = vadd.f32 0.0, %v2184
  %2186 = vmatmul.bf16.gmra.mxu0 %v2144
  %v2187 = vpop.f32.mrf.mxu0
  %v2188 = vadd.f32 0.0, %v2187
  %v2189 = vpop.f32.mrf.mxu0
  %v2190 = vadd.f32 0.0, %v2189
  %2191 = vmatmul.bf16.gmra.mxu0 %v2147
  %v2192 = vpop.f32.mrf.mxu0
  %v2193 = vadd.f32 0.0, %v2192
  %v2194 = vpop.f32.mrf.mxu0
  %v2195 = vadd.f32 0.0, %v2194
  %2196 = vmatmul.bf16.gmra.mxu0 %v2150
  %v2197 = vpop.f32.mrf.mxu0
  %v2198 = vadd.f32 0.0, %v2197
  %v2199 = vpop.f32.mrf.mxu0
  %v2200 = vadd.f32 0.0, %v2199
  %2201 = vmatmul.bf16.gmra.mxu0 %v2153
  %v2202 = vpop.f32.mrf.mxu0
  %v2203 = vadd.f32 0.0, %v2202
  %v2204 = vpop.f32.mrf.mxu0
  %v2205 = vadd.f32 0.0, %v2204
  %2206 = vdwg.mxu0
  %v2207 = vadd.f32 %v2088, %v2168
  %v2208 = vadd.f32 %v2089, %v2170
  %v2209 = vadd.f32 %v2090, %v2173
  %v2210 = vadd.f32 %v2091, %v2175
  %v2211 = vadd.f32 %v2092, %v2178
  %v2212 = vadd.f32 %v2093, %v2180
  %v2213 = vadd.f32 %v2094, %v2183
  %v2214 = vadd.f32 %v2095, %v2185
  %v2215 = vadd.f32 %v2096, %v2188
  %v2216 = vadd.f32 %v2097, %v2190
  %v2217 = vadd.f32 %v2098, %v2193
  %v2218 = vadd.f32 %v2099, %v2195
  %v2219 = vadd.f32 %v2100, %v2198
  %v2220 = vadd.f32 %v2101, %v2200
  %v2221 = vadd.f32 %v2102, %v2203
  %v2222 = vadd.f32 %v2103, %v2205
  %v2223 = vld [vmem:[%s2104 + $0x1] sm:$0xff]
  %v2224 = vld [vmem:[%s2104 + $0x11] sm:$0xff]
  %v2225 = vld [vmem:[%s2104 + $0x21] sm:$0xff]
  %v2226 = vld [vmem:[%s2104 + $0x31] sm:$0xff]
  %v2227 = vld [vmem:[%s2104 + $0x41] sm:$0xff]
  %v2228 = vld [vmem:[%s2104 + $0x51] sm:$0xff]
  %v2229 = vld [vmem:[%s2104 + $0x61] sm:$0xff]
  %v2230 = vld [vmem:[%s2104 + $0x71] sm:$0xff]
  %v2231 = vld [vmem:[%s2104 + $0xa1] sm:$0xff]
  %v2232 = vld [vmem:[%s2104 + $0xb1] sm:$0xff]
  %v2233 = vld [vmem:[%s2104 + $0xc1] sm:$0xff]
  %v2234 = vld [vmem:[%s2104 + $0xd1] sm:$0xff]
  %v2235 = vld [vmem:[%s2104 + $0xe1] sm:$0xff]
  %v2236 = vld [vmem:[%s2104 + $0xf1] sm:$0xff]
  %v2237 = vld [vmem:[%s2104 + $0x101] sm:$0xff]
  %v2238 = vld [vmem:[%s2104 + $0x111] sm:$0xff]
  %v2239 = vpack.c.bf16 %v2224, %v2223
  %v2240 = vpack.c.bf16 %v2226, %v2225
  %v2241 = vpack.c.bf16 %v2228, %v2227
  %v2242 = vpack.c.bf16 %v2230, %v2229
  %v2243 = vpack.c.bf16 %v2232, %v2231
  %v2244 = vpack.c.bf16 %v2234, %v2233
  %v2245 = vpack.c.bf16 %v2236, %v2235
  %v2246 = vpack.c.bf16 %v2238, %v2237
  %s2247 = scalar_lea.vmem %s5, 28
  %v2248 = vld [vmem:[%s2247] sm:$0xf]
  %v2250 = vsel %vm1109, %v2239, 0
  %v2253 = vsel %vm1109, %v2240, 0
  %v2256 = vsel %vm1109, %v2241, 0
  %v2259 = vsel %vm1109, %v2242, 0
  %v2262 = vsel %vm1109, %v2243, 0
  %v2265 = vsel %vm1109, %v2244, 0
  %v2268 = vsel %vm1109, %v2245, 0
  %v2271 = vsel %vm1109, %v2246, 0
  %v2274 = vsel %vm1503, %v2248, 0
  %2276 = vmatpush.bf16.msra.mxu0 0
  %2277 = vmatpush.bf16.msra.mxu0 0
  %2278 = vmatpush.bf16.msra.mxu0 0
  %2279 = vmatpush.bf16.msra.mxu0 0
  %2280 = vmatpush.bf16.msra.mxu0 0
  %2281 = vmatpush.bf16.msra.mxu0 0
  %2282 = vmatpush.bf16.msra.mxu0 0
  %2283 = vmatpush.bf16.msra.mxu0 %v2274
  %2284 = vmatmul.bf16.gmra.mxu0 %v2250
  %v2285 = vpop.f32.mrf.mxu0
  %v2286 = vadd.f32 0.0, %v2285
  %v2287 = vpop.f32.mrf.mxu0
  %v2288 = vadd.f32 0.0, %v2287
  %2289 = vmatmul.bf16.gmra.mxu0 %v2253
  %v2290 = vpop.f32.mrf.mxu0
  %v2291 = vadd.f32 0.0, %v2290
  %v2292 = vpop.f32.mrf.mxu0
  %v2293 = vadd.f32 0.0, %v2292
  %2294 = vmatmul.bf16.gmra.mxu0 %v2256
  %v2295 = vpop.f32.mrf.mxu0
  %v2296 = vadd.f32 0.0, %v2295
  %v2297 = vpop.f32.mrf.mxu0
  %v2298 = vadd.f32 0.0, %v2297
  %2299 = vmatmul.bf16.gmra.mxu0 %v2259
  %v2300 = vpop.f32.mrf.mxu0
  %v2301 = vadd.f32 0.0, %v2300
  %v2302 = vpop.f32.mrf.mxu0
  %v2303 = vadd.f32 0.0, %v2302
  %2304 = vmatmul.bf16.gmra.mxu0 %v2262
  %v2305 = vpop.f32.mrf.mxu0
  %v2306 = vadd.f32 0.0, %v2305
  %v2307 = vpop.f32.mrf.mxu0
  %v2308 = vadd.f32 0.0, %v2307
  %2309 = vmatmul.bf16.gmra.mxu0 %v2265
  %v2310 = vpop.f32.mrf.mxu0
  %v2311 = vadd.f32 0.0, %v2310
  %v2312 = vpop.f32.mrf.mxu0
  %v2313 = vadd.f32 0.0, %v2312
  %2314 = vmatmul.bf16.gmra.mxu0 %v2268
  %v2315 = vpop.f32.mrf.mxu0
  %v2316 = vadd.f32 0.0, %v2315
  %v2317 = vpop.f32.mrf.mxu0
  %v2318 = vadd.f32 0.0, %v2317
  %2319 = vmatmul.bf16.gmra.mxu0 %v2271
  %v2320 = vpop.f32.mrf.mxu0
  %v2321 = vadd.f32 0.0, %v2320
  %v2322 = vpop.f32.mrf.mxu0
  %v2323 = vadd.f32 0.0, %v2322
  %2324 = vdwg.mxu0
  %v2325 = vadd.f32 %v2207, %v2286
  %v2326 = vadd.f32 %v2208, %v2288
  %v2327 = vadd.f32 %v2209, %v2291
  %v2328 = vadd.f32 %v2210, %v2293
  %v2329 = vadd.f32 %v2211, %v2296
  %v2330 = vadd.f32 %v2212, %v2298
  %v2331 = vadd.f32 %v2213, %v2301
  %v2332 = vadd.f32 %v2214, %v2303
  %v2333 = vadd.f32 %v2215, %v2306
  %v2334 = vadd.f32 %v2216, %v2308
  %v2335 = vadd.f32 %v2217, %v2311
  %v2336 = vadd.f32 %v2218, %v2313
  %v2337 = vadd.f32 %v2219, %v2316
  %v2338 = vadd.f32 %v2220, %v2318
  %v2339 = vadd.f32 %v2221, %v2321
  %v2340 = vadd.f32 %v2222, %v2323
  %v2341 = vld [vmem:[%s2104 + $0x2] sm:$0xff]
  %v2342 = vld [vmem:[%s2104 + $0x12] sm:$0xff]
  %v2343 = vld [vmem:[%s2104 + $0x22] sm:$0xff]
  %v2344 = vld [vmem:[%s2104 + $0x32] sm:$0xff]
  %v2345 = vld [vmem:[%s2104 + $0x42] sm:$0xff]
  %v2346 = vld [vmem:[%s2104 + $0x52] sm:$0xff]
  %v2347 = vld [vmem:[%s2104 + $0x62] sm:$0xff]
  %v2348 = vld [vmem:[%s2104 + $0x72] sm:$0xff]
  %v2349 = vld [vmem:[%s2104 + $0xa2] sm:$0xff]
  %v2350 = vld [vmem:[%s2104 + $0xb2] sm:$0xff]
  %v2351 = vld [vmem:[%s2104 + $0xc2] sm:$0xff]
  %v2352 = vld [vmem:[%s2104 + $0xd2] sm:$0xff]
  %v2353 = vld [vmem:[%s2104 + $0xe2] sm:$0xff]
  %v2354 = vld [vmem:[%s2104 + $0xf2] sm:$0xff]
  %v2355 = vld [vmem:[%s2104 + $0x102] sm:$0xff]
  %v2356 = vld [vmem:[%s2104 + $0x112] sm:$0xff]
  %v2357 = vpack.c.bf16 %v2342, %v2341
  %v2358 = vpack.c.bf16 %v2344, %v2343
  %v2359 = vpack.c.bf16 %v2346, %v2345
  %v2360 = vpack.c.bf16 %v2348, %v2347
  %v2361 = vpack.c.bf16 %v2350, %v2349
  %v2362 = vpack.c.bf16 %v2352, %v2351
  %v2363 = vpack.c.bf16 %v2354, %v2353
  %v2364 = vpack.c.bf16 %v2356, %v2355
  %s2365 = scalar_lea.vmem %s5, 32
  %v2366 = vld [vmem:[%s2365] sm:$0xf]
  %v2368 = vsel %vm1109, %v2357, 0
  %v2371 = vsel %vm1109, %v2358, 0
  %v2374 = vsel %vm1109, %v2359, 0
  %v2377 = vsel %vm1109, %v2360, 0
  %v2380 = vsel %vm1109, %v2361, 0
  %v2383 = vsel %vm1109, %v2362, 0
  %v2386 = vsel %vm1109, %v2363, 0
  %v2389 = vsel %vm1109, %v2364, 0
  %v2392 = vsel %vm1503, %v2366, 0
  %2394 = vmatpush.bf16.msra.mxu0 0
  %2395 = vmatpush.bf16.msra.mxu0 0
  %2396 = vmatpush.bf16.msra.mxu0 0
  %2397 = vmatpush.bf16.msra.mxu0 0
  %2398 = vmatpush.bf16.msra.mxu0 0
  %2399 = vmatpush.bf16.msra.mxu0 0
  %2400 = vmatpush.bf16.msra.mxu0 0
  %2401 = vmatpush.bf16.msra.mxu0 %v2392
  %2402 = vmatmul.bf16.gmra.mxu0 %v2368
  %v2403 = vpop.f32.mrf.mxu0
  %v2404 = vadd.f32 0.0, %v2403
  %v2405 = vpop.f32.mrf.mxu0
  %v2406 = vadd.f32 0.0, %v2405
  %2407 = vmatmul.bf16.gmra.mxu0 %v2371
  %v2408 = vpop.f32.mrf.mxu0
  %v2409 = vadd.f32 0.0, %v2408
  %v2410 = vpop.f32.mrf.mxu0
  %v2411 = vadd.f32 0.0, %v2410
  %2412 = vmatmul.bf16.gmra.mxu0 %v2374
  %v2413 = vpop.f32.mrf.mxu0
  %v2414 = vadd.f32 0.0, %v2413
  %v2415 = vpop.f32.mrf.mxu0
  %v2416 = vadd.f32 0.0, %v2415
  %2417 = vmatmul.bf16.gmra.mxu0 %v2377
  %v2418 = vpop.f32.mrf.mxu0
  %v2419 = vadd.f32 0.0, %v2418
  %v2420 = vpop.f32.mrf.mxu0
  %v2421 = vadd.f32 0.0, %v2420
  %2422 = vmatmul.bf16.gmra.mxu0 %v2380
  %v2423 = vpop.f32.mrf.mxu0
  %v2424 = vadd.f32 0.0, %v2423
  %v2425 = vpop.f32.mrf.mxu0
  %v2426 = vadd.f32 0.0, %v2425
  %2427 = vmatmul.bf16.gmra.mxu0 %v2383
  %v2428 = vpop.f32.mrf.mxu0
  %v2429 = vadd.f32 0.0, %v2428
  %v2430 = vpop.f32.mrf.mxu0
  %v2431 = vadd.f32 0.0, %v2430
  %2432 = vmatmul.bf16.gmra.mxu0 %v2386
  %v2433 = vpop.f32.mrf.mxu0
  %v2434 = vadd.f32 0.0, %v2433
  %v2435 = vpop.f32.mrf.mxu0
  %v2436 = vadd.f32 0.0, %v2435
  %2437 = vmatmul.bf16.gmra.mxu0 %v2389
  %v2438 = vpop.f32.mrf.mxu0
  %v2439 = vadd.f32 0.0, %v2438
  %v2440 = vpop.f32.mrf.mxu0
  %v2441 = vadd.f32 0.0, %v2440
  %2442 = vdwg.mxu0
  %v2443 = vadd.f32 %v2325, %v2404
  %v2444 = vadd.f32 %v2326, %v2406
  %v2445 = vadd.f32 %v2327, %v2409
  %v2446 = vadd.f32 %v2328, %v2411
  %v2447 = vadd.f32 %v2329, %v2414
  %v2448 = vadd.f32 %v2330, %v2416
  %v2449 = vadd.f32 %v2331, %v2419
  %v2450 = vadd.f32 %v2332, %v2421
  %v2451 = vadd.f32 %v2333, %v2424
  %v2452 = vadd.f32 %v2334, %v2426
  %v2453 = vadd.f32 %v2335, %v2429
  %v2454 = vadd.f32 %v2336, %v2431
  %v2455 = vadd.f32 %v2337, %v2434
  %v2456 = vadd.f32 %v2338, %v2436
  %v2457 = vadd.f32 %v2339, %v2439
  %v2458 = vadd.f32 %v2340, %v2441
  %v2459 = vld [vmem:[%s6] sm:$0x1]
  %v2461 = vperm.slane %v2459, 0
  %v2463 = vadd.f32 %v2443, %v2461
  %v2464 = vadd.f32 %v2444, %v2461
  %v2465 = vadd.f32 %v2445, %v2461
  %v2466 = vadd.f32 %v2446, %v2461
  %v2467 = vadd.f32 %v2447, %v2461
  %v2468 = vadd.f32 %v2448, %v2461
  %v2469 = vadd.f32 %v2449, %v2461
  %v2470 = vadd.f32 %v2450, %v2461
  %v2471 = vadd.f32 %v2451, %v2461
  %v2472 = vadd.f32 %v2452, %v2461
  %v2473 = vadd.f32 %v2453, %v2461
  %v2474 = vadd.f32 %v2454, %v2461
  %v2475 = vadd.f32 %v2455, %v2461
  %v2476 = vadd.f32 %v2456, %v2461
  %v2477 = vadd.f32 %v2457, %v2461
  %v2478 = vadd.f32 %v2458, %v2461
  %v2479 = vld [vmem:[%s7] sm:$0x1]
  %v2480 = vld [vmem:[%s8] sm:$0x1]
  %v2481 = vsel %vm1109, %v2463, 0.0
  %v2482 = vsel %vm1109, %v2464, 0.0
  %v2483 = vadd.f32 %v2481, %v2482
  %v2484 = vsel %vm1109, %v2465, 0.0
  %v2485 = vadd.f32 %v2483, %v2484
  %v2486 = vsel %vm1109, %v2466, 0.0
  %v2487 = vadd.f32 %v2485, %v2486
  %v2488 = vsel %vm1109, %v2467, 0.0
  %v2489 = vadd.f32 %v2487, %v2488
  %v2490 = vsel %vm1109, %v2468, 0.0
  %v2491 = vadd.f32 %v2489, %v2490
  %v2492 = vsel %vm1109, %v2469, 0.0
  %v2493 = vadd.f32 %v2491, %v2492
  %v2494 = vsel %vm1109, %v2470, 0.0
  %v2495 = vadd.f32 %v2493, %v2494
  %v2496 = vsel %vm1109, %v2471, 0.0
  %v2497 = vadd.f32 %v2495, %v2496
  %v2498 = vsel %vm1109, %v2472, 0.0
  %v2499 = vadd.f32 %v2497, %v2498
  %v2500 = vsel %vm1109, %v2473, 0.0
  %v2501 = vadd.f32 %v2499, %v2500
  %v2502 = vsel %vm1109, %v2474, 0.0
  %v2503 = vadd.f32 %v2501, %v2502
  %v2504 = vsel %vm1109, %v2475, 0.0
  %v2505 = vadd.f32 %v2503, %v2504
  %v2506 = vsel %vm1109, %v2476, 0.0
  %v2507 = vadd.f32 %v2505, %v2506
  %v2508 = vsel %vm1109, %v2477, 0.0
  %v2509 = vadd.f32 %v2507, %v2508
  %v2510 = vsel %vm1109, %v2478, 0.0
  %v2511 = vadd.f32 %v2509, %v2510
  %v2512 = vrot.slane %v2511, 4
  %v2513 = vadd.f32 %v2511, %v2512
  %v2514 = vrot.slane %v2513, 2
  %v2515 = vadd.f32 %v2513, %v2514
  %v2516 = vrot.slane %v2515, 1
  %v2517 = vadd.f32 %v2515, %v2516
  %v2518 = vmul.f32 %v2517, %v1153
  %v2519 = vsub.f32 %v2463, %v2518
  %v2520 = vsub.f32 %v2464, %v2518
  %v2521 = vsub.f32 %v2465, %v2518
  %v2522 = vsub.f32 %v2466, %v2518
  %v2523 = vsub.f32 %v2467, %v2518
  %v2524 = vsub.f32 %v2468, %v2518
  %v2525 = vsub.f32 %v2469, %v2518
  %v2526 = vsub.f32 %v2470, %v2518
  %v2527 = vsub.f32 %v2471, %v2518
  %v2528 = vsub.f32 %v2472, %v2518
  %v2529 = vsub.f32 %v2473, %v2518
  %v2530 = vsub.f32 %v2474, %v2518
  %v2531 = vsub.f32 %v2475, %v2518
  %v2532 = vsub.f32 %v2476, %v2518
  %v2533 = vsub.f32 %v2477, %v2518
  %v2534 = vsub.f32 %v2478, %v2518
  %v2535 = vmul.f32 %v2519, %v2519
  %v2536 = vmul.f32 %v2520, %v2520
  %v2537 = vmul.f32 %v2521, %v2521
  %v2538 = vmul.f32 %v2522, %v2522
  %v2539 = vmul.f32 %v2523, %v2523
  %v2540 = vmul.f32 %v2524, %v2524
  %v2541 = vmul.f32 %v2525, %v2525
  %v2542 = vmul.f32 %v2526, %v2526
  %v2543 = vmul.f32 %v2527, %v2527
  %v2544 = vmul.f32 %v2528, %v2528
  %v2545 = vmul.f32 %v2529, %v2529
  %v2546 = vmul.f32 %v2530, %v2530
  %v2547 = vmul.f32 %v2531, %v2531
  %v2548 = vmul.f32 %v2532, %v2532
  %v2549 = vmul.f32 %v2533, %v2533
  %v2550 = vmul.f32 %v2534, %v2534
  %v2551 = vsel %vm1109, %v2535, 0.0
  %v2552 = vsel %vm1109, %v2536, 0.0
  %v2553 = vadd.f32 %v2551, %v2552
  %v2554 = vsel %vm1109, %v2537, 0.0
  %v2555 = vadd.f32 %v2553, %v2554
  %v2556 = vsel %vm1109, %v2538, 0.0
  %v2557 = vadd.f32 %v2555, %v2556
  %v2558 = vsel %vm1109, %v2539, 0.0
  %v2559 = vadd.f32 %v2557, %v2558
  %v2560 = vsel %vm1109, %v2540, 0.0
  %v2561 = vadd.f32 %v2559, %v2560
  %v2562 = vsel %vm1109, %v2541, 0.0
  %v2563 = vadd.f32 %v2561, %v2562
  %v2564 = vsel %vm1109, %v2542, 0.0
  %v2565 = vadd.f32 %v2563, %v2564
  %v2566 = vsel %vm1109, %v2543, 0.0
  %v2567 = vadd.f32 %v2565, %v2566
  %v2568 = vsel %vm1109, %v2544, 0.0
  %v2569 = vadd.f32 %v2567, %v2568
  %v2570 = vsel %vm1109, %v2545, 0.0
  %v2571 = vadd.f32 %v2569, %v2570
  %v2572 = vsel %vm1109, %v2546, 0.0
  %v2573 = vadd.f32 %v2571, %v2572
  %v2574 = vsel %vm1109, %v2547, 0.0
  %v2575 = vadd.f32 %v2573, %v2574
  %v2576 = vsel %vm1109, %v2548, 0.0
  %v2577 = vadd.f32 %v2575, %v2576
  %v2578 = vsel %vm1109, %v2549, 0.0
  %v2579 = vadd.f32 %v2577, %v2578
  %v2580 = vsel %vm1109, %v2550, 0.0
  %v2581 = vadd.f32 %v2579, %v2580
  %v2582 = vrot.slane %v2581, 4
  %v2583 = vadd.f32 %v2581, %v2582
  %v2584 = vrot.slane %v2583, 2
  %v2585 = vadd.f32 %v2583, %v2584
  %v2586 = vrot.slane %v2585, 1
  %v2587 = vadd.f32 %v2585, %v2586
  %v2588 = vmul.f32 %v2587, %v1153
  %v2589 = vadd.f32 %v2588, 1e-05
  %v2590 = vrsqrt.pop %v2589
  %v2591 = vmul.f32 %v2590, %v2589
  %v2592 = vmul.f32 %v2591, %v2590
  %v2593 = vmul.f32 0.5, %v2592
  %v2594 = vsub.f32 1.5, %v2593
  %v2595 = vmul.f32 %v2590, %v2594
  %vm2596 = vweird.f32 %v2589
  %vm2597 = vweird.f32 %v2590
  %vm2598 = vmor %vm2596, %vm2597
  %v2599 = vsel %vm2598, %v2590, %v2595
  %v2600 = vmul.f32 %v2519, %v2599
  %v2601 = vmul.f32 %v2520, %v2599
  %v2602 = vmul.f32 %v2521, %v2599
  %v2603 = vmul.f32 %v2522, %v2599
  %v2604 = vmul.f32 %v2523, %v2599
  %v2605 = vmul.f32 %v2524, %v2599
  %v2606 = vmul.f32 %v2525, %v2599
  %v2607 = vmul.f32 %v2526, %v2599
  %v2608 = vmul.f32 %v2527, %v2599
  %v2609 = vmul.f32 %v2528, %v2599
  %v2610 = vmul.f32 %v2529, %v2599
  %v2611 = vmul.f32 %v2530, %v2599
  %v2612 = vmul.f32 %v2531, %v2599
  %v2613 = vmul.f32 %v2532, %v2599
  %v2614 = vmul.f32 %v2533, %v2599
  %v2615 = vmul.f32 %v2534, %v2599
  %v2617 = vperm.slane %v2479, 0
  %v2619 = vmul.f32 %v2600, %v2617
  %v2620 = vmul.f32 %v2601, %v2617
  %v2621 = vmul.f32 %v2602, %v2617
  %v2622 = vmul.f32 %v2603, %v2617
  %v2623 = vmul.f32 %v2604, %v2617
  %v2624 = vmul.f32 %v2605, %v2617
  %v2625 = vmul.f32 %v2606, %v2617
  %v2626 = vmul.f32 %v2607, %v2617
  %v2627 = vmul.f32 %v2608, %v2617
  %v2628 = vmul.f32 %v2609, %v2617
  %v2629 = vmul.f32 %v2610, %v2617
  %v2630 = vmul.f32 %v2611, %v2617
  %v2631 = vmul.f32 %v2612, %v2617
  %v2632 = vmul.f32 %v2613, %v2617
  %v2633 = vmul.f32 %v2614, %v2617
  %v2634 = vmul.f32 %v2615, %v2617
  %v2636 = vperm.slane %v2480, 0
  %v2638 = vadd.f32 %v2619, %v2636
  %v2639 = vadd.f32 %v2620, %v2636
  %v2640 = vadd.f32 %v2621, %v2636
  %v2641 = vadd.f32 %v2622, %v2636
  %v2642 = vadd.f32 %v2623, %v2636
  %v2643 = vadd.f32 %v2624, %v2636
  %v2644 = vadd.f32 %v2625, %v2636
  %v2645 = vadd.f32 %v2626, %v2636
  %v2646 = vadd.f32 %v2627, %v2636
  %v2647 = vadd.f32 %v2628, %v2636
  %v2648 = vadd.f32 %v2629, %v2636
  %v2649 = vadd.f32 %v2630, %v2636
  %v2650 = vadd.f32 %v2631, %v2636
  %v2651 = vadd.f32 %v2632, %v2636
  %v2652 = vadd.f32 %v2633, %v2636
  %v2653 = vadd.f32 %v2634, %v2636
  %vm2654 = vcmp.gt.f32.partialorder %v2638, 0.0
  %vm2655 = vcmp.gt.f32.partialorder %v2639, 0.0
  %vm2656 = vcmp.gt.f32.partialorder %v2640, 0.0
  %vm2657 = vcmp.gt.f32.partialorder %v2641, 0.0
  %vm2658 = vcmp.gt.f32.partialorder %v2642, 0.0
  %vm2659 = vcmp.gt.f32.partialorder %v2643, 0.0
  %vm2660 = vcmp.gt.f32.partialorder %v2644, 0.0
  %vm2661 = vcmp.gt.f32.partialorder %v2645, 0.0
  %vm2662 = vcmp.gt.f32.partialorder %v2646, 0.0
  %vm2663 = vcmp.gt.f32.partialorder %v2647, 0.0
  %vm2664 = vcmp.gt.f32.partialorder %v2648, 0.0
  %vm2665 = vcmp.gt.f32.partialorder %v2649, 0.0
  %vm2666 = vcmp.gt.f32.partialorder %v2650, 0.0
  %vm2667 = vcmp.gt.f32.partialorder %v2651, 0.0
  %vm2668 = vcmp.gt.f32.partialorder %v2652, 0.0
  %vm2669 = vcmp.gt.f32.partialorder %v2653, 0.0
  %v2670 = vmul.f32 %v2638, 1.442695
  %v2671 = vpow.pop %v2670
  %v2672 = vmul.f32 %v2639, 1.442695
  %v2673 = vpow.pop %v2672
  %v2674 = vmul.f32 %v2640, 1.442695
  %v2675 = vpow.pop %v2674
  %v2676 = vmul.f32 %v2641, 1.442695
  %v2677 = vpow.pop %v2676
  %v2678 = vmul.f32 %v2642, 1.442695
  %v2679 = vpow.pop %v2678
  %v2680 = vmul.f32 %v2643, 1.442695
  %v2681 = vpow.pop %v2680
  %v2682 = vmul.f32 %v2644, 1.442695
  %v2683 = vpow.pop %v2682
  %v2684 = vmul.f32 %v2645, 1.442695
  %v2685 = vpow.pop %v2684
  %v2686 = vmul.f32 %v2646, 1.442695
  %v2687 = vpow.pop %v2686
  %v2688 = vmul.f32 %v2647, 1.442695
  %v2689 = vpow.pop %v2688
  %v2690 = vmul.f32 %v2648, 1.442695
  %v2691 = vpow.pop %v2690
  %v2692 = vmul.f32 %v2649, 1.442695
  %v2693 = vpow.pop %v2692
  %v2694 = vmul.f32 %v2650, 1.442695
  %v2695 = vpow.pop %v2694
  %v2696 = vmul.f32 %v2651, 1.442695
  %v2697 = vpow.pop %v2696
  %v2698 = vmul.f32 %v2652, 1.442695
  %v2699 = vpow.pop %v2698
  %v2700 = vmul.f32 %v2653, 1.442695
  %v2701 = vpow.pop %v2700
  %v2702 = vsub.f32 %v2671, 1.0
  %v2703 = vsub.f32 %v2673, 1.0
  %v2704 = vsub.f32 %v2675, 1.0
  %v2705 = vsub.f32 %v2677, 1.0
  %v2706 = vsub.f32 %v2679, 1.0
  %v2707 = vsub.f32 %v2681, 1.0
  %v2708 = vsub.f32 %v2683, 1.0
  %v2709 = vsub.f32 %v2685, 1.0
  %v2710 = vsub.f32 %v2687, 1.0
  %v2711 = vsub.f32 %v2689, 1.0
  %v2712 = vsub.f32 %v2691, 1.0
  %v2713 = vsub.f32 %v2693, 1.0
  %v2714 = vsub.f32 %v2695, 1.0
  %v2715 = vsub.f32 %v2697, 1.0
  %v2716 = vsub.f32 %v2699, 1.0
  %v2717 = vsub.f32 %v2701, 1.0
  %v2718 = vsel %vm2654, %v2638, %v2702
  %v2719 = vsel %vm2655, %v2639, %v2703
  %v2720 = vsel %vm2656, %v2640, %v2704
  %v2721 = vsel %vm2657, %v2641, %v2705
  %v2722 = vsel %vm2658, %v2642, %v2706
  %v2723 = vsel %vm2659, %v2643, %v2707
  %v2724 = vsel %vm2660, %v2644, %v2708
  %v2725 = vsel %vm2661, %v2645, %v2709
  %v2726 = vsel %vm2662, %v2646, %v2710
  %v2727 = vsel %vm2663, %v2647, %v2711
  %v2728 = vsel %vm2664, %v2648, %v2712
  %v2729 = vsel %vm2665, %v2649, %v2713
  %v2730 = vsel %vm2666, %v2650, %v2714
  %v2731 = vsel %vm2667, %v2651, %v2715
  %v2732 = vsel %vm2668, %v2652, %v2716
  %v2733 = vsel %vm2669, %v2653, %v2717
  %v2734 = vsel %vm1109, %v2718, 0.0
  %v2735 = vsel %vm1109, %v2719, 0.0
  %v2736 = vadd.f32 %v2734, %v2735
  %v2737 = vsel %vm1109, %v2720, 0.0
  %v2738 = vadd.f32 %v2736, %v2737
  %v2739 = vsel %vm1109, %v2721, 0.0
  %v2740 = vadd.f32 %v2738, %v2739
  %v2741 = vsel %vm1109, %v2722, 0.0
  %v2742 = vadd.f32 %v2740, %v2741
  %v2743 = vsel %vm1109, %v2723, 0.0
  %v2744 = vadd.f32 %v2742, %v2743
  %v2745 = vsel %vm1109, %v2724, 0.0
  %v2746 = vadd.f32 %v2744, %v2745
  %v2747 = vsel %vm1109, %v2725, 0.0
  %v2748 = vadd.f32 %v2746, %v2747
  %v2749 = vrot.slane %v2748, 4
  %v2750 = vadd.f32 %v2748, %v2749
  %v2751 = vrot.slane %v2750, 2
  %v2752 = vadd.f32 %v2750, %v2751
  %v2753 = vrot.slane %v2752, 1
  %v2754 = vadd.f32 %v2752, %v2753
  %v2755 = vsel %vm1109, %v2726, 0.0
  %v2756 = vsel %vm1109, %v2727, 0.0
  %v2757 = vadd.f32 %v2755, %v2756
  %v2758 = vsel %vm1109, %v2728, 0.0
  %v2759 = vadd.f32 %v2757, %v2758
  %v2760 = vsel %vm1109, %v2729, 0.0
  %v2761 = vadd.f32 %v2759, %v2760
  %v2762 = vsel %vm1109, %v2730, 0.0
  %v2763 = vadd.f32 %v2761, %v2762
  %v2764 = vsel %vm1109, %v2731, 0.0
  %v2765 = vadd.f32 %v2763, %v2764
  %v2766 = vsel %vm1109, %v2732, 0.0
  %v2767 = vadd.f32 %v2765, %v2766
  %v2768 = vsel %vm1109, %v2733, 0.0
  %v2769 = vadd.f32 %v2767, %v2768
  %v2770 = vrot.slane %v2769, 4
  %v2771 = vadd.f32 %v2769, %v2770
  %v2772 = vrot.slane %v2771, 2
  %v2773 = vadd.f32 %v2771, %v2772
  %v2774 = vrot.slane %v2773, 1
  %v2775 = vadd.f32 %v2773, %v2774
  %v2776 = vrcp.pop 64.0
  %v2777 = vmul.f32 64.0, %v2776
  %v2778 = vsub.f32 1.0, %v2777
  %v2779 = vmul.f32 %v2776, %v2778
  %v2780 = vadd.f32 %v2776, %v2779
  %vm2781 = vweird.f32 %v2776
  %v2782 = vsel %vm2781, %v2776, %v2780
  %v2783 = vmul.f32 %v2754, %v2782
  %v2784 = vmul.f32 %v2775, %v2782
  %v2785 = vpack.c.bf16 %v2783, %v2783
  %v2786 = vpack.c.bf16 %v2784, %v2784
  %v2787 = vld [vmem:[%s9] sm:$0xf]
  %v2788 = vld [vmem:[%s10] sm:$0x1]
  %v2790 = vperm.slane %v2788, 0
  %v2794 = vunpack.c.l.b16 %v2785
  %v2795 = vunpack.c.l.b16 %v2786
  %vm2796 = vcmask 1041409
  %v2797 = vsel %vm2796, %v2795, %v2794
  %v2798 = vpack.c.b16 %v2797, %v2797
  %v2800 = vsel %vm1109, %v2798, 0
  %v2803 = vsel %vm1503, %v2787, 0
  %2805 = vmatpush.bf16.msra.mxu0 0
  %2806 = vmatpush.bf16.msra.mxu0 0
  %2807 = vmatpush.bf16.msra.mxu0 0
  %2808 = vmatpush.bf16.msra.mxu0 0
  %2809 = vmatpush.bf16.msra.mxu0 0
  %2810 = vmatpush.bf16.msra.mxu0 0
  %2811 = vmatpush.bf16.msra.mxu0 0
  %2812 = vmatpush.bf16.msra.mxu0 %v2803
  %2813 = vmatmul.bf16.gmra.mxu0 %v2800
  %v2814 = vpop.f32.mrf.mxu0
  %v2815 = vadd.f32 %v2790, %v2814
  %v2816 = vpop.f32.mrf.mxu0
  %2817 = vdwg.mxu0
  %vm2818 = vcmp.gt.f32.partialorder %v2815, 0.0
  %v2819 = vmul.f32 %v2815, 1.442695
  %v2820 = vpow.pop %v2819
  %v2821 = vsub.f32 %v2820, 1.0
  %v2822 = vsel %vm2818, %v2815, %v2821
  %v2823 = vpack.c.bf16 %v2822, %v2822
  %v2824 = vld [vmem:[%s11] sm:$0x1]
  %v2825 = vld [vmem:[%s12] sm:$0x1]
  %v2827 = vperm.slane %v2825, 0
  %vm2829 = vcmask 15360
  %v2831 = vsel %vm2829, %v2823, 0
  %vm2833 = vcmask 1040384
  %v2835 = vsel %vm2833, %v2824, 0
  %2837 = vmatpush.bf16.msra.mxu0 0
  %2838 = vmatpush.bf16.msra.mxu0 0
  %2839 = vmatpush.bf16.msra.mxu0 0
  %2840 = vmatpush.bf16.msra.mxu0 0
  %2841 = vmatpush.bf16.msra.mxu0 0
  %2842 = vmatpush.bf16.msra.mxu0 0
  %2843 = vmatpush.bf16.msra.mxu0 0
  %2844 = vmatpush.bf16.msra.mxu0 %v2835
  %2845 = vmatmul.bf16.gmra.mxu0 %v2831
  %v2846 = vpop.f32.mrf.mxu0
  %v2847 = vadd.f32 %v2827, %v2846
  %v2848 = vpop.f32.mrf.mxu0
  %2849 = vdwg.mxu0
  %v2850 = vsub.f32 0.0, %v2847
  %v2851 = vmul.f32 %v2850, 1.442695
  %v2852 = vpow.pop %v2851
  %v2853 = vadd.f32 %v2852, 1.0
  %v2854 = vrcp.pop %v2853
  %v2856 = vrot.slane %v2854, 1
  %v2857 = vperm.slane %v2854, 0
  %v2858 = vperm.slane %v2856, 0
  %v2861 = vmul.f32 %v2718, %v2857
  %v2862 = vmul.f32 %v2719, %v2857
  %v2863 = vmul.f32 %v2720, %v2857
  %v2864 = vmul.f32 %v2721, %v2857
  %v2865 = vmul.f32 %v2722, %v2857
  %v2866 = vmul.f32 %v2723, %v2857
  %v2867 = vmul.f32 %v2724, %v2857
  %v2868 = vmul.f32 %v2725, %v2857
  %v2869 = vmul.f32 %v2726, %v2858
  %v2870 = vmul.f32 %v2727, %v2858
  %v2871 = vmul.f32 %v2728, %v2858
  %v2872 = vmul.f32 %v2729, %v2858
  %v2873 = vmul.f32 %v2730, %v2858
  %v2874 = vmul.f32 %v2731, %v2858
  %v2875 = vmul.f32 %v2732, %v2858
  %v2876 = vmul.f32 %v2733, %v2858
  %v2877 = vld [vmem:[%s13] sm:$0x3]
  %v2878 = vld [vmem:[%s14] sm:$0x1]
  %v2880 = vperm.slane %v2878, 0
  %v2883 = vsel %vm244, %v2877, 0
  %2885 = vmatpush.bf16.msra.mxu0 0
  %2886 = vmatpush.bf16.msra.mxu0 0
  %2887 = vmatpush.bf16.msra.mxu0 0
  %2888 = vmatpush.bf16.msra.mxu0 0
  %2889 = vmatpush.bf16.msra.mxu0 0
  %2890 = vmatpush.bf16.msra.mxu0 0
  %2891 = vmatpush.bf16.msra.mxu0 0
  %2892 = vmatpush.bf16.msra.mxu0 %v2883
  %2893 = vmatmul.bf16.gmra.mxu0 %v588
  %v2894 = vpop.f32.mrf.mxu0
  %v2895 = vadd.f32 %v2880, %v2894
  %v2896 = vpop.f32.mrf.mxu0
  %v2897 = vadd.f32 %v2880, %v2896
  %2898 = vmatmul.bf16.gmra.mxu0 %v591
  %v2899 = vpop.f32.mrf.mxu0
  %v2900 = vadd.f32 %v2880, %v2899
  %v2901 = vpop.f32.mrf.mxu0
  %v2902 = vadd.f32 %v2880, %v2901
  %2903 = vmatmul.bf16.gmra.mxu0 %v594
  %v2904 = vpop.f32.mrf.mxu0
  %v2905 = vadd.f32 %v2880, %v2904
  %v2906 = vpop.f32.mrf.mxu0
  %v2907 = vadd.f32 %v2880, %v2906
  %2908 = vmatmul.bf16.gmra.mxu0 %v597
  %v2909 = vpop.f32.mrf.mxu0
  %v2910 = vadd.f32 %v2880, %v2909
  %v2911 = vpop.f32.mrf.mxu0
  %v2912 = vadd.f32 %v2880, %v2911
  %2913 = vmatmul.bf16.gmra.mxu0 %v600
  %v2914 = vpop.f32.mrf.mxu0
  %v2915 = vadd.f32 %v2880, %v2914
  %v2916 = vpop.f32.mrf.mxu0
  %v2917 = vadd.f32 %v2880, %v2916
  %2918 = vmatmul.bf16.gmra.mxu0 %v603
  %v2919 = vpop.f32.mrf.mxu0
  %v2920 = vadd.f32 %v2880, %v2919
  %v2921 = vpop.f32.mrf.mxu0
  %v2922 = vadd.f32 %v2880, %v2921
  %2923 = vmatmul.bf16.gmra.mxu0 %v606
  %v2924 = vpop.f32.mrf.mxu0
  %v2925 = vadd.f32 %v2880, %v2924
  %v2926 = vpop.f32.mrf.mxu0
  %v2927 = vadd.f32 %v2880, %v2926
  %2928 = vmatmul.bf16.gmra.mxu0 %v609
  %v2929 = vpop.f32.mrf.mxu0
  %v2930 = vadd.f32 %v2880, %v2929
  %v2931 = vpop.f32.mrf.mxu0
  %v2932 = vadd.f32 %v2880, %v2931
  %2933 = vdwg.mxu0
  %v2934 = vadd.f32 %v2861, %v2895
  %v2935 = vadd.f32 %v2862, %v2897
  %v2936 = vadd.f32 %v2863, %v2900
  %v2937 = vadd.f32 %v2864, %v2902
  %v2938 = vadd.f32 %v2865, %v2905
  %v2939 = vadd.f32 %v2866, %v2907
  %v2940 = vadd.f32 %v2867, %v2910
  %v2941 = vadd.f32 %v2868, %v2912
  %v2942 = vadd.f32 %v2869, %v2915
  %v2943 = vadd.f32 %v2870, %v2917
  %v2944 = vadd.f32 %v2871, %v2920
  %v2945 = vadd.f32 %v2872, %v2922
  %v2946 = vadd.f32 %v2873, %v2925
  %v2947 = vadd.f32 %v2874, %v2927
  %v2948 = vadd.f32 %v2875, %v2930
  %v2949 = vadd.f32 %v2876, %v2932
  %vm2950 = vcmp.gt.f32.partialorder %v2934, 0.0
  %vm2951 = vcmp.gt.f32.partialorder %v2935, 0.0
  %vm2952 = vcmp.gt.f32.partialorder %v2936, 0.0
  %vm2953 = vcmp.gt.f32.partialorder %v2937, 0.0
  %vm2954 = vcmp.gt.f32.partialorder %v2938, 0.0
  %vm2955 = vcmp.gt.f32.partialorder %v2939, 0.0
  %vm2956 = vcmp.gt.f32.partialorder %v2940, 0.0
  %vm2957 = vcmp.gt.f32.partialorder %v2941, 0.0
  %vm2958 = vcmp.gt.f32.partialorder %v2942, 0.0
  %vm2959 = vcmp.gt.f32.partialorder %v2943, 0.0
  %vm2960 = vcmp.gt.f32.partialorder %v2944, 0.0
  %vm2961 = vcmp.gt.f32.partialorder %v2945, 0.0
  %vm2962 = vcmp.gt.f32.partialorder %v2946, 0.0
  %vm2963 = vcmp.gt.f32.partialorder %v2947, 0.0
  %vm2964 = vcmp.gt.f32.partialorder %v2948, 0.0
  %vm2965 = vcmp.gt.f32.partialorder %v2949, 0.0
  %v2966 = vmul.f32 %v2934, 1.442695
  %v2967 = vpow.pop %v2966
  %v2968 = vmul.f32 %v2935, 1.442695
  %v2969 = vpow.pop %v2968
  %v2970 = vmul.f32 %v2936, 1.442695
  %v2971 = vpow.pop %v2970
  %v2972 = vmul.f32 %v2937, 1.442695
  %v2973 = vpow.pop %v2972
  %v2974 = vmul.f32 %v2938, 1.442695
  %v2975 = vpow.pop %v2974
  %v2976 = vmul.f32 %v2939, 1.442695
  %v2977 = vpow.pop %v2976
  %v2978 = vmul.f32 %v2940, 1.442695
  %v2979 = vpow.pop %v2978
  %v2980 = vmul.f32 %v2941, 1.442695
  %v2981 = vpow.pop %v2980
  %v2982 = vmul.f32 %v2942, 1.442695
  %v2983 = vpow.pop %v2982
  %v2984 = vmul.f32 %v2943, 1.442695
  %v2985 = vpow.pop %v2984
  %v2986 = vmul.f32 %v2944, 1.442695
  %v2987 = vpow.pop %v2986
  %v2988 = vmul.f32 %v2945, 1.442695
  %v2989 = vpow.pop %v2988
  %v2990 = vmul.f32 %v2946, 1.442695
  %v2991 = vpow.pop %v2990
  %v2992 = vmul.f32 %v2947, 1.442695
  %v2993 = vpow.pop %v2992
  %v2994 = vmul.f32 %v2948, 1.442695
  %v2995 = vpow.pop %v2994
  %v2996 = vmul.f32 %v2949, 1.442695
  %v2997 = vpow.pop %v2996
  %v2998 = vsub.f32 %v2967, 1.0
  %v2999 = vsub.f32 %v2969, 1.0
  %v3000 = vsub.f32 %v2971, 1.0
  %v3001 = vsub.f32 %v2973, 1.0
  %v3002 = vsub.f32 %v2975, 1.0
  %v3003 = vsub.f32 %v2977, 1.0
  %v3004 = vsub.f32 %v2979, 1.0
  %v3005 = vsub.f32 %v2981, 1.0
  %v3006 = vsub.f32 %v2983, 1.0
  %v3007 = vsub.f32 %v2985, 1.0
  %v3008 = vsub.f32 %v2987, 1.0
  %v3009 = vsub.f32 %v2989, 1.0
  %v3010 = vsub.f32 %v2991, 1.0
  %v3011 = vsub.f32 %v2993, 1.0
  %v3012 = vsub.f32 %v2995, 1.0
  %v3013 = vsub.f32 %v2997, 1.0
  %v3014 = vsel %vm2950, %v2934, %v2998
  %v3015 = vsel %vm2951, %v2935, %v2999
  %v3016 = vsel %vm2952, %v2936, %v3000
  %v3017 = vsel %vm2953, %v2937, %v3001
  %v3018 = vsel %vm2954, %v2938, %v3002
  %v3019 = vsel %vm2955, %v2939, %v3003
  %v3020 = vsel %vm2956, %v2940, %v3004
  %v3021 = vsel %vm2957, %v2941, %v3005
  %v3022 = vsel %vm2958, %v2942, %v3006
  %v3023 = vsel %vm2959, %v2943, %v3007
  %v3024 = vsel %vm2960, %v2944, %v3008
  %v3025 = vsel %vm2961, %v2945, %v3009
  %v3026 = vsel %vm2962, %v2946, %v3010
  %v3027 = vsel %vm2963, %v2947, %v3011
  %v3028 = vsel %vm2964, %v2948, %v3012
  %v3029 = vsel %vm2965, %v2949, %v3013
  %3030 = vst.msk [vmem:[%s15] sm:$0xff] %vm1109, %v3014
  %3031 = vst.msk [vmem:[%s15 + $0x8] sm:$0xff] %vm1109, %v3015
  %3032 = vst.msk [vmem:[%s15 + $0x10] sm:$0xff] %vm1109, %v3016
  %3033 = vst.msk [vmem:[%s15 + $0x18] sm:$0xff] %vm1109, %v3017
  %3034 = vst.msk [vmem:[%s15 + $0x20] sm:$0xff] %vm1109, %v3018
  %3035 = vst.msk [vmem:[%s15 + $0x28] sm:$0xff] %vm1109, %v3019
  %3036 = vst.msk [vmem:[%s15 + $0x30] sm:$0xff] %vm1109, %v3020
  %3037 = vst.msk [vmem:[%s15 + $0x38] sm:$0xff] %vm1109, %v3021
  %3038 = vst.msk [vmem:[%s15 + $0x40] sm:$0xff] %vm1109, %v3022
  %3039 = vst.msk [vmem:[%s15 + $0x48] sm:$0xff] %vm1109, %v3023
  %3040 = vst.msk [vmem:[%s15 + $0x50] sm:$0xff] %vm1109, %v3024
  %3041 = vst.msk [vmem:[%s15 + $0x58] sm:$0xff] %vm1109, %v3025
  %3042 = vst.msk [vmem:[%s15 + $0x60] sm:$0xff] %vm1109, %v3026
  %3043 = vst.msk [vmem:[%s15 + $0x68] sm:$0xff] %vm1109, %v3027
  %3044 = vst.msk [vmem:[%s15 + $0x70] sm:$0xff] %vm1109, %v3028
  %3045 = vst.msk [vmem:[%s15 + $0x78] sm:$0xff] %vm1109, %v3029
  // Predicated region
  $region62: #{_lambda_.2} parent=0 // pred_check
    _
  $region63: #{_lambda_.2} parent=0 // pred_check_branch
    %3047 = sbr.rel (0) target = $region65
  $region64: #{_lambda_.2} parent=0 // pred_region
    _
  $region65: #{_lambda_.2} parent=0 // pred_fallthru
    _
  // Predicated region
  $region66: #{_lambda_.2} parent=0 // pred_check
    _
  $region67: #{_lambda_.2} parent=0 // pred_check_branch
    %3049 = sbr.rel (0) target = $region69
  $region68: #{_lambda_.2} parent=0 // pred_region
    _
  $region69: #{_lambda_.2} parent=0 // pred_fallthru
    _

</llo_original>
